<compile_context>
chip_gen: v5e
topology: v5e:2x2
jax: 0.10.0
libtpu: 0.0.40
codegen_flags: <defaults>
</compile_context>

<pallas_src>
import functools
import math

import numpy as np
import jax
import jax.numpy as jnp
from jax.experimental import pallas as pl
from jax.experimental.pallas import tpu as pltpu


# ----------------------------- Pallas kernel ------------------------------- #

def _se_deconv_kernel(x_ref, band1_ref, b1_ref, band2_ref, b2_ref,
                      pool_ref, sw1_ref, sb1_ref, sw2_ref, sb2_ref,
                      o_ref, *, ksize, hsize, bsize, enable):
    K, H, B = ksize, hsize, bsize
    KH = K // 2
    M, CW = o_ref.shape                     # M = B * H

    # local row index h within each sample (hoisted: used by both convs)
    row_h = jax.lax.broadcasted_iota(jnp.int32, (M, 1), 0) % H

    def conv_transpose(v, band_ref, bias_ref):
        # v: (M, CW) f32.  K small matmuls accumulated in f32; off-center
        # taps are sublane rolls (XLU) + boundary masks (VPU) -- no MXU work
        # is spent on the 0/1 row shifts.
        v_bf = v.astype(jnp.bfloat16)
        acc = jnp.dot(v_bf, band_ref[KH], preferred_element_type=jnp.float32)
        for ky in range(K):
            d = ky - KH
            if d == 0:
                continue
            # tap[h_out] = v[h_out + d]  (zero outside the sample's H range)
            valid = (row_h + d >= 0) & (row_h + d < H)       # (M, 1)
            t = pltpu.roll(v, shift=(-d) % M, axis=0)        # sublane roll
            t = jnp.where(valid, t, 0.0).astype(jnp.bfloat16)
            acc = acc + jnp.dot(t, band_ref[ky],
                                preferred_element_type=jnp.float32)
        return acc + bias_ref[...]

    def instance_norm(v, eps=1e-5):
        # Two-pass per-sample, per-channel mean/var over (H, W); all in f32.
        # Also returns se_h = mean over H of the normalized output (reused by
        # the SE global pool: se_h == (m1 - mu) * inv, exact identity).
        v3 = v.reshape(B, H, CW)
        m1 = jnp.mean(v3, axis=1)                            # (B, CW)
        mu = jnp.dot(m1, pool_ref[...], preferred_element_type=jnp.float32)
        centered = v3 - mu[:, None, :]
        m2 = jnp.mean(centered * centered, axis=1)           # (B, CW)
        var = jnp.dot(m2, pool_ref[...], preferred_element_type=jnp.float32)
        inv = jax.lax.rsqrt(var + eps)                       # (B, CW)
        y = (centered * inv[:, None, :]).reshape(M, CW)
        se_h = (m1 - mu) * inv                               # (B, CW)
        return y, se_h

    h1, _ = instance_norm(conv_transpose(x_ref[...], band1_ref, b1_ref))
    h1 = jnp.maximum(h1, 0.0)
    h2, se_h = instance_norm(conv_transpose(h1, band2_ref, b2_ref))

    if enable:
        # Squeeze-excite (per sample): global avg-pool + two 1x1 convs folded
        # into two small f32 matmuls (sw1/sw2 already contain the 1/W average
        # and the channel -> C*W broadcast).  se_h comes from instance_norm.
        se1 = jnp.maximum(
            jnp.dot(se_h, sw1_ref[...], preferred_element_type=jnp.float32)
            + sb1_ref[...], 0.0)                             # (B, Cr)
        z = (jnp.dot(se1, sw2_ref[...], preferred_element_type=jnp.float32)
             + sb2_ref[...])                                 # (B, CW)
        scale = 1.0 / (1.0 + jnp.exp(-z))                    # sigmoid
        h2 = (h2.reshape(B, H, CW) * scale[:, None, :]).reshape(M, CW)

    # residual + relu
    o_ref[...] = jnp.maximum(h2 + x_ref[...], 0.0).astype(o_ref.dtype)


# --------------------- parameter re-packing (plain glue) ------------------- #

def _conv_equiv_weight(wt):
    # ConvTranspose2d weight (Cin, Cout, K, K), stride=1, padding=(K-1)/2
    # is equivalent to a "same" correlation with wconv[ky, kx, ci, co].
    return np.transpose(np.flip(np.asarray(wt, np.float32), axis=(2, 3)),
                        (2, 3, 0, 1))


def _make_band(wconv, C, W):
    # (K, C*W, C*W) banded column-mix matrices (channel mix + W shift).
    # TODO(synk): if C*W grows beyond ~512-1024, tile the band contraction
    # with a third grid axis instead of holding both bands fully resident
    # (VMEM guard, matters on v7x's 64 MiB).
    K = wconv.shape[0]
    sel = np.zeros((K, W, W), np.float32)          # [kx, w_in, w_out]
    for kx in range(K):
        for w_out in range(W):
            w_in = w_out + kx - (K // 2)
            if 0 <= w_in < W:
                sel[kx, w_in, w_out] = 1.0
    band = np.einsum('yxio,xab->yiaob', wconv, sel)   # (K, Ci, Win, Co, Wout)
    return band.reshape(K, C * W, C * W).astype(np.float32)


def _make_pool(C, W):
    pool = np.zeros((C * W, C * W), np.float32)
    for c in range(C):
        pool[c * W:(c + 1) * W, c * W:(c + 1) * W] = 1.0 / W
    return pool


def _default_block_samples(N, H):
    """Generation-aware samples per grid step (M = B*H rows)."""
    try:
        kind = jax.devices()[0].device_kind.lower()
    except Exception:
        kind = ""
    narrow_mxu = any(v in kind for v in ("v2", "v3", "v4", "v5"))
    two_cores = ("v7" in kind) or ("7x" in kind)
    target_rows = 128 if narrow_mxu else 256        # fill MXU M dimension
    B = max(1, min(N, target_rows // max(1, H)))
    # keep >= 2 grid steps so x/out DMAs pipeline behind compute
    while B > 1 and -(-N // B) < 2:
        B //= 2
    if two_cores:
        # prefer an even step count so neither v7x TensorCore idles
        while B > 1 and (-(-N // B)) % 2 == 1 and (-(-N // B)) < 8:
            B //= 2
    # block row count must be a multiple of 8 (sublane tile)
    g = 8 // math.gcd(8, H)
    B = max(g, (B // g) * g)
    return B


# ------------------------------- wrapper ----------------------------------- #

def se_block_deconv_forward(x, params, enable=True, block_samples=None):
    """x: (N, C, H, W) float32. params: dict of ConvTranspose2d / SE weights."""
    N, C, H, W = x.shape
    K = params['w1'].shape[2]
    Cr = params['se_w1'].shape[0]
    CW = C * W

    if block_samples is None:
        B = _default_block_samples(N, H)
    else:
        B = max(1, min(int(block_samples), N))
        g = 8 // math.gcd(8, H)
        B = max(g, (B // g) * g)
    n_blocks = -(-N // B)                 # ceil(N / B)
    N_pad = n_blocks * B
    M = B * H

    # -- conv weights: (K, CW, CW) banded matrices (bf16 MXU operands) --
    band1 = jnp.asarray(
        _make_band(_conv_equiv_weight(params['w1']), C, W)).astype(jnp.bfloat16)
    band2 = jnp.asarray(
        _make_band(_conv_equiv_weight(params['w2']), C, W)).astype(jnp.bfloat16)
    b1t = jnp.asarray(np.repeat(np.asarray(params['b1'], np.float32), W)[None])
    b2t = jnp.asarray(np.repeat(np.asarray(params['b2'], np.float32), W)[None])

    # -- instance-norm pooling matrix (f32: norm math stays f32) --
    pool = jnp.asarray(_make_pool(C, W))

    # -- SE: fold avg-pool / channel-broadcast into the 1x1 conv weights --
    w1m = np.asarray(params['se_w1'], np.float32)[:, :, 0, 0]   # (Cr, C)
    w2m = np.asarray(params['se_w2'], np.float32)[:, :, 0, 0]   # (C, Cr)
    pavg = np.zeros((CW, C), np.float32)
    brd = np.zeros((C, CW), np.float32)
    for c in range(C):
        pavg[c * W:(c + 1) * W, c] = 1.0 / W
        brd[c, c * W:(c + 1) * W] = 1.0
    sw1 = jnp.asarray(pavg @ w1m.T)                                   # (CW, Cr)
    sb1 = jnp.asarray(np.asarray(params['se_b1'], np.float32)[None])  # (1, Cr)
    sw2 = jnp.asarray(w2m.T @ brd)                                    # (Cr, CW)
    sb2 = jnp.asarray(
        np.repeat(np.asarray(params['se_b2'], np.float32), W)[None])  # (1, CW)

    # -- NCHW -> (N*H, C*W) slab, pad batch to a multiple of B with zeros --
    x_slab = (jnp.transpose(x, (0, 2, 1, 3))
              .reshape(N * H, CW).astype(jnp.float32))
    if N_pad != N:
        x_slab = jnp.concatenate(
            [x_slab, jnp.zeros(((N_pad - N) * H, CW), jnp.float32)], axis=0)

    kernel = functools.partial(_se_deconv_kernel, ksize=K, hsize=H,
                               bsize=B, enable=enable)

    def const_spec(shape):
        # constant index_map -> weights are DMA'd once and stay resident
        n = len(shape)
        return pl.BlockSpec(shape, lambda i, _n=n: (0,) * _n)

    # advisory cost estimate (per whole call) so XLA schedules the glue well
    flops_per_step = (2 * K * 2 * M * CW * CW          # conv tap matmuls
                      + 2 * 2 * 2 * B * CW * CW        # 2 norms x 2 pool mm
                      + 4 * B * CW * Cr)               # SE matmuls
    weight_bytes = (2 * K * CW * CW * 2 + CW * CW * 4
                    + CW * Cr * 4 + Cr * 4 + Cr * CW * 4 + 3 * CW * 4)
    cost = pl.CostEstimate(
        flops=int(n_blocks * flops_per_step),
        transcendentals=int(n_blocks * 3 * B * CW),
        bytes_accessed=int(n_blocks * 2 * M * CW * 4 + weight_bytes))

    out = pl.pallas_call(
        kernel,
        out_shape=jax.ShapeDtypeStruct((N_pad * H, CW), jnp.float32),
        grid_spec=pltpu.PrefetchScalarGridSpec(
            num_scalar_prefetch=0,
            grid=(n_blocks,),
            in_specs=[
                pl.BlockSpec((M, CW), lambda i: (i, 0)),     # x slab (B samples)
                const_spec((K, CW, CW)), const_spec((1, CW)),    # deconv1
                const_spec((K, CW, CW)), const_spec((1, CW)),    # deconv2
                const_spec((CW, CW)),                            # IN pooling
                const_spec((CW, Cr)), const_spec((1, Cr)),       # SE conv1 (folded)
                const_spec((Cr, CW)), const_spec((1, CW)),       # SE conv2 (folded)
            ],
            out_specs=pl.BlockSpec((M, CW), lambda i: (i, 0)),
        ),
        compiler_params=pltpu.CompilerParams(
            dimension_semantics=("parallel",),
            vmem_limit_bytes=32 * 1024 * 1024),
        cost_estimate=cost,
    )(x_slab, band1, b1t, band2, b2t, pool, sw1, sb1, sw2, sb2)

    out = out[:N * H]
    return jnp.transpose(out.reshape(N, H, C, W), (0, 2, 1, 3))


# --------------------------- NumPy reference -------------------------------- #

def _ref_forward(x, p):
    def conv_transpose2d(v, wt, b, pad=1):
        N_, Ci, H_, W_ = v.shape
        K_, Co = wt.shape[2], wt.shape[1]
        out = np.zeros((N_, Co, H_, W_), np.float64)
        for kh in range(K_):
            for kw in range(K_):
                contrib = np.einsum('ncij,cd->ndij', v, wt[:, :, kh, kw])
                oi0, oj0 = kh - pad, kw - pad
                i_lo, i_hi = max(0, -oi0), min(H_, H_ - oi0)
                j_lo, j_hi = max(0, -oj0), min(W_, W_ - oj0)
                out[:, :, i_lo + oi0:i_hi + oi0, j_lo + oj0:j_hi + oj0] += \
                    contrib[:, :, i_lo:i_hi, j_lo:j_hi]
        return out + b[None, :, None, None]

    def instance_norm(v, eps=1e-5):
        mu = v.mean(axis=(2, 3), keepdims=True)
        var = v.var(axis=(2, 3), keepdims=True)
        return (v - mu) / np.sqrt(var + eps)

    h = np.maximum(instance_norm(conv_transpose2d(x, p['w1'], p['b1'])), 0.0)
    h2 = instance_norm(conv_transpose2d(h, p['w2'], p['b2']))
    se = h2.mean(axis=(2, 3))                                      # (N, C)
    se1 = np.maximum(se @ p['se_w1'][:, :, 0, 0].T + p['se_b1'], 0.0)
    se2 = 1.0 / (1.0 + np.exp(-(se1 @ p['se_w2'][:, :, 0, 0].T + p['se_b2'])))
    h2 = h2 * se2[:, :, None, None]
    return np.maximum(h2 + x, 0.0)


# --------------------------------- main ------------------------------------- #

if __name__ == "__main__":
    # N=32, H=8 -> the generation-aware default gives B=16 (M=128, 2-step
    # grid) on every current TPU generation for this toy size; production N
    # gets M=256 on v6e/v7x automatically.  C must be >= 16 for C // 16.
    N, C, H, W = 32, 32, 8, 8
    K, stride, padding = 3, 1, 1    # keeps spatial size so the residual adds up
    Cr = C // 16

    key = jax.random.PRNGKey(0)
    ks = jax.random.split(key, 9)
    params = {
        'w1': 0.2 * jax.random.normal(ks[0], (C, C, K, K), jnp.float32),
        'b1': 0.1 * jax.random.normal(ks[1], (C,), jnp.float32),
        'w2': 0.2 * jax.random.normal(ks[2], (C, C, K, K), jnp.float32),
        'b2': 0.1 * jax.random.normal(ks[3], (C,), jnp.float32),
        'se_w1': 0.2 * jax.random.normal(ks[4], (Cr, C, 1, 1), jnp.float32),
        'se_b1': 0.1 * jax.random.normal(ks[5], (Cr,), jnp.float32),
        'se_w2': 0.2 * jax.random.normal(ks[6], (C, Cr, 1, 1), jnp.float32),
        'se_b2': 0.1 * jax.random.normal(ks[7], (C,), jnp.float32),
    }
    x = jax.random.normal(ks[8], (N, C, H, W), jnp.float32)

    out = jax.block_until_ready(
        se_block_deconv_forward(x, params, enable=True))

    ref = _ref_forward(np.asarray(x, np.float64),
                       {k: np.asarray(v, np.float64) for k, v in params.items()})
    assert out.shape == (N, C, H, W)
    err = np.max(np.abs(np.asarray(out, np.float64) - ref))
    assert np.allclose(np.asarray(out, np.float64), ref, rtol=5e-2, atol=5e-2), \
        f"max abs error {err}"
    print("KERNEL_OK")
</pallas_src>

<mosaic_0001>
module attributes {stable_mosaic.version = 11 : i64} {
  func.func @_se_deconv_kernel(%arg0: i32, %arg1: memref<128x256xf32, #tpu.memory_space<vmem>>, %arg2: memref<3x256x256xbf16, #tpu.memory_space<vmem>>, %arg3: memref<1x256xf32, #tpu.memory_space<vmem>>, %arg4: memref<3x256x256xbf16, #tpu.memory_space<vmem>>, %arg5: memref<1x256xf32, #tpu.memory_space<vmem>>, %arg6: memref<256x256xf32, #tpu.memory_space<vmem>>, %arg7: memref<256x2xf32, #tpu.memory_space<vmem>>, %arg8: memref<1x2xf32, #tpu.memory_space<vmem>>, %arg9: memref<2x256xf32, #tpu.memory_space<vmem>>, %arg10: memref<1x256xf32, #tpu.memory_space<vmem>>, %arg11: memref<128x256xf32, #tpu.memory_space<vmem>>) attributes {dimension_semantics = [#tpu.dimension_semantics<parallel>], iteration_bounds = array<i64: 2>, scalar_prefetch = 0 : i64, scratch_operands = 0 : i64, tpu.core_type = #tpu.core_type<tc>, window_params = [{transform_indices = @transform_0, window_bounds = array<i64: 128, 256>}, {pipeline_mode = #tpu.pipeline_mode<synchronous>, transform_indices = @transform_1, window_bounds = array<i64: 3, 256, 256>}, {pipeline_mode = #tpu.pipeline_mode<synchronous>, transform_indices = @transform_2, window_bounds = array<i64: 1, 256>}, {pipeline_mode = #tpu.pipeline_mode<synchronous>, transform_indices = @transform_3, window_bounds = array<i64: 3, 256, 256>}, {pipeline_mode = #tpu.pipeline_mode<synchronous>, transform_indices = @transform_4, window_bounds = array<i64: 1, 256>}, {pipeline_mode = #tpu.pipeline_mode<synchronous>, transform_indices = @transform_5, window_bounds = array<i64: 256, 256>}, {pipeline_mode = #tpu.pipeline_mode<synchronous>, transform_indices = @transform_6, window_bounds = array<i64: 256, 2>}, {pipeline_mode = #tpu.pipeline_mode<synchronous>, transform_indices = @transform_7, window_bounds = array<i64: 1, 2>}, {pipeline_mode = #tpu.pipeline_mode<synchronous>, transform_indices = @transform_8, window_bounds = array<i64: 2, 256>}, {pipeline_mode = #tpu.pipeline_mode<synchronous>, transform_indices = @transform_9, window_bounds = array<i64: 1, 256>}, {transform_indices = @transform_10, window_bounds = array<i64: 128, 256>}]} {
    %0 = tpu.iota {dimensions = array<i32: 0>} : vector<128x1xi32>
    %c8_i32 = arith.constant 8 : i32
    %c0_i32 = arith.constant 0 : i32
    %1 = arith.cmpi eq, %c8_i32, %c0_i32 : i32
    %c1_i32 = arith.constant 1 : i32
    %2 = arith.select %1, %c1_i32, %c8_i32 : i32
    %3 = vector.broadcast %2 : i32 to vector<128x1xi32>
    %4 = arith.remsi %0, %3 : vector<128x1xi32>
    %c0_i32_0 = arith.constant 0 : i32
    %5 = vector.broadcast %c0_i32_0 : i32 to vector<128x1xi32>
    %6 = arith.cmpi ne, %4, %5 : vector<128x1xi32>
    %c0_i32_1 = arith.constant 0 : i32
    %7 = vector.broadcast %c0_i32_1 : i32 to vector<128x1xi32>
    %8 = arith.cmpi slt, %4, %7 : vector<128x1xi32>
    %c0_i32_2 = arith.constant 0 : i32
    %9 = arith.cmpi slt, %2, %c0_i32_2 : i32
    %10 = vector.broadcast %9 : i1 to vector<128x1xi1>
    %11 = vector.broadcast %10 : vector<128x1xi1> to vector<128x1xi1>
    %12 = arith.xori %8, %11 : vector<128x1xi1>
    %13 = arith.andi %12, %6 : vector<128x1xi1>
    %14 = vector.broadcast %2 : i32 to vector<128x1xi32>
    %15 = arith.addi %4, %14 : vector<128x1xi32>
    %16 = arith.select %13, %15, %4 : vector<128x1xi1>, vector<128x1xi32>
    %c0 = arith.constant 0 : index
    %c0_3 = arith.constant 0 : index
    %17 = vector.load %arg1[%c0, %c0_3] : memref<128x256xf32, #tpu.memory_space<vmem>>, vector<128x256xf32>
    %18 = arith.truncf %17 : vector<128x256xf32> to vector<128x256xbf16>
    %c1 = arith.constant 1 : index
    %c0_4 = arith.constant 0 : index
    %c0_5 = arith.constant 0 : index
    %19 = vector.load %arg2[%c1, %c0_4, %c0_5] : memref<3x256x256xbf16, #tpu.memory_space<vmem>>, vector<1x256x256xbf16>
    %20 = vector.shape_cast %19 : vector<1x256x256xbf16> to vector<256x256xbf16>
    %cst = arith.constant dense<0.000000e+00> : vector<128x256xf32>
    %21 = tpu.matmul %18, %20, %cst {dimension_numbers = #tpu.dot_dimension_numbers<[1], [0], [0], [1], [0, 0, 1, 1], [], []>} : vector<128x256xbf16>, vector<256x256xbf16>, vector<128x256xf32> -> vector<128x256xf32>
    %c-1_i32 = arith.constant -1 : i32
    %22 = vector.broadcast %c-1_i32 : i32 to vector<128x1xi32>
    %23 = arith.addi %16, %22 : vector<128x1xi32>
    %c0_i32_6 = arith.constant 0 : i32
    %24 = vector.broadcast %c0_i32_6 : i32 to vector<128x1xi32>
    %25 = arith.cmpi sge, %23, %24 : vector<128x1xi32>
    %c-1_i32_7 = arith.constant -1 : i32
    %26 = vector.broadcast %c-1_i32_7 : i32 to vector<128x1xi32>
    %27 = arith.addi %16, %26 : vector<128x1xi32>
    %c8_i32_8 = arith.constant 8 : i32
    %28 = vector.broadcast %c8_i32_8 : i32 to vector<128x1xi32>
    %29 = arith.cmpi slt, %27, %28 : vector<128x1xi32>
    %30 = arith.andi %25, %29 : vector<128x1xi1>
    %c1_i32_9 = arith.constant 1 : i32
    %31 = tpu.dynamic_rotate %17 by %c1_i32_9 dim 0 : vector<128x256xf32>, i32 -> vector<128x256xf32>
    %cst_10 = arith.constant 0.000000e+00 : f32
    %32 = vector.shape_cast %30 : vector<128x1xi1> to vector<128x1xi1>
    %33 = vector.broadcast %32 : vector<128x1xi1> to vector<128x256xi1>
    %34 = vector.broadcast %cst_10 : f32 to vector<128x256xf32>
    %35 = arith.select %33, %31, %34 : vector<128x256xi1>, vector<128x256xf32>
    %36 = arith.truncf %35 : vector<128x256xf32> to vector<128x256xbf16>
    %c0_11 = arith.constant 0 : index
    %c0_12 = arith.constant 0 : index
    %c0_13 = arith.constant 0 : index
    %37 = vector.load %arg2[%c0_11, %c0_12, %c0_13] : memref<3x256x256xbf16, #tpu.memory_space<vmem>>, vector<1x256x256xbf16>
    %38 = vector.shape_cast %37 : vector<1x256x256xbf16> to vector<256x256xbf16>
    %cst_14 = arith.constant dense<0.000000e+00> : vector<128x256xf32>
    %39 = tpu.matmul %36, %38, %cst_14 {dimension_numbers = #tpu.dot_dimension_numbers<[1], [0], [0], [1], [0, 0, 1, 1], [], []>} : vector<128x256xbf16>, vector<256x256xbf16>, vector<128x256xf32> -> vector<128x256xf32>
    %40 = arith.addf %21, %39 : vector<128x256xf32>
    %c1_i32_15 = arith.constant 1 : i32
    %41 = vector.broadcast %c1_i32_15 : i32 to vector<128x1xi32>
    %42 = arith.addi %16, %41 : vector<128x1xi32>
    %c0_i32_16 = arith.constant 0 : i32
    %43 = vector.broadcast %c0_i32_16 : i32 to vector<128x1xi32>
    %44 = arith.cmpi sge, %42, %43 : vector<128x1xi32>
    %c1_i32_17 = arith.constant 1 : i32
    %45 = vector.broadcast %c1_i32_17 : i32 to vector<128x1xi32>
    %46 = arith.addi %16, %45 : vector<128x1xi32>
    %c8_i32_18 = arith.constant 8 : i32
    %47 = vector.broadcast %c8_i32_18 : i32 to vector<128x1xi32>
    %48 = arith.cmpi slt, %46, %47 : vector<128x1xi32>
    %49 = arith.andi %44, %48 : vector<128x1xi1>
    %c127_i32 = arith.constant 127 : i32
    %50 = tpu.dynamic_rotate %17 by %c127_i32 dim 0 : vector<128x256xf32>, i32 -> vector<128x256xf32>
    %cst_19 = arith.constant 0.000000e+00 : f32
    %51 = vector.shape_cast %49 : vector<128x1xi1> to vector<128x1xi1>
    %52 = vector.broadcast %51 : vector<128x1xi1> to vector<128x256xi1>
    %53 = vector.broadcast %cst_19 : f32 to vector<128x256xf32>
    %54 = arith.select %52, %50, %53 : vector<128x256xi1>, vector<128x256xf32>
    %55 = arith.truncf %54 : vector<128x256xf32> to vector<128x256xbf16>
    %c2 = arith.constant 2 : index
    %c0_20 = arith.constant 0 : index
    %c0_21 = arith.constant 0 : index
    %56 = vector.load %arg2[%c2, %c0_20, %c0_21] : memref<3x256x256xbf16, #tpu.memory_space<vmem>>, vector<1x256x256xbf16>
    %57 = vector.shape_cast %56 : vector<1x256x256xbf16> to vector<256x256xbf16>
    %cst_22 = arith.constant dense<0.000000e+00> : vector<128x256xf32>
    %58 = tpu.matmul %55, %57, %cst_22 {dimension_numbers = #tpu.dot_dimension_numbers<[1], [0], [0], [1], [0, 0, 1, 1], [], []>} : vector<128x256xbf16>, vector<256x256xbf16>, vector<128x256xf32> -> vector<128x256xf32>
    %59 = arith.addf %40, %58 : vector<128x256xf32>
    %c0_23 = arith.constant 0 : index
    %c0_24 = arith.constant 0 : index
    %60 = vector.load %arg3[%c0_23, %c0_24] : memref<1x256xf32, #tpu.memory_space<vmem>>, vector<1x256xf32>
    %61 = vector.broadcast %60 : vector<1x256xf32> to vector<128x256xf32>
    %62 = arith.addf %59, %61 : vector<128x256xf32>
    %63 = vector.shape_cast %62 : vector<128x256xf32> to vector<16x8x256xf32>
    %cst_25 = arith.constant dense<0.000000e+00> : vector<16x256xf32>
    %64 = vector.multi_reduction <add>, %63, %cst_25 [1] : vector<16x8x256xf32> to vector<16x256xf32>
    %cst_26 = arith.constant 8.000000e+00 : f32
    %65 = vector.broadcast %cst_26 : f32 to vector<16x256xf32>
    %66 = arith.divf %64, %65 : vector<16x256xf32>
    %c0_27 = arith.constant 0 : index
    %c0_28 = arith.constant 0 : index
    %67 = vector.load %arg6[%c0_27, %c0_28] : memref<256x256xf32, #tpu.memory_space<vmem>>, vector<256x256xf32>
    %cst_29 = arith.constant dense<0.000000e+00> : vector<16x256xf32>
    %68 = tpu.matmul %66, %67, %cst_29 {dimension_numbers = #tpu.dot_dimension_numbers<[1], [0], [0], [1], [0, 0, 1, 1], [], []>} : vector<16x256xf32>, vector<256x256xf32>, vector<16x256xf32> -> vector<16x256xf32>
    %69 = vector.shape_cast %68 : vector<16x256xf32> to vector<16x1x256xf32>
    %70 = vector.broadcast %69 : vector<16x1x256xf32> to vector<16x8x256xf32>
    %71 = arith.subf %63, %70 : vector<16x8x256xf32>
    %72 = arith.mulf %71, %71 : vector<16x8x256xf32>
    %cst_30 = arith.constant dense<0.000000e+00> : vector<16x256xf32>
    %73 = vector.multi_reduction <add>, %72, %cst_30 [1] : vector<16x8x256xf32> to vector<16x256xf32>
    %cst_31 = arith.constant 8.000000e+00 : f32
    %74 = vector.broadcast %cst_31 : f32 to vector<16x256xf32>
    %75 = arith.divf %73, %74 : vector<16x256xf32>
    %c0_32 = arith.constant 0 : index
    %c0_33 = arith.constant 0 : index
    %76 = vector.load %arg6[%c0_32, %c0_33] : memref<256x256xf32, #tpu.memory_space<vmem>>, vector<256x256xf32>
    %cst_34 = arith.constant dense<0.000000e+00> : vector<16x256xf32>
    %77 = tpu.matmul %75, %76, %cst_34 {dimension_numbers = #tpu.dot_dimension_numbers<[1], [0], [0], [1], [0, 0, 1, 1], [], []>} : vector<16x256xf32>, vector<256x256xf32>, vector<16x256xf32> -> vector<16x256xf32>
    %cst_35 = arith.constant 9.99999974E-6 : f32
    %78 = vector.broadcast %cst_35 : f32 to vector<16x256xf32>
    %79 = arith.addf %77, %78 : vector<16x256xf32>
    %80 = math.rsqrt %79 : vector<16x256xf32>
    %81 = vector.shape_cast %80 : vector<16x256xf32> to vector<16x1x256xf32>
    %82 = vector.broadcast %81 : vector<16x1x256xf32> to vector<16x8x256xf32>
    %83 = arith.mulf %71, %82 : vector<16x8x256xf32>
    %84 = vector.shape_cast %83 : vector<16x8x256xf32> to vector<128x256xf32>
    %cst_36 = arith.constant 0.000000e+00 : f32
    %85 = vector.broadcast %cst_36 : f32 to vector<128x256xf32>
    %86 = arith.maximumf %84, %85 : vector<128x256xf32>
    %87 = arith.truncf %86 : vector<128x256xf32> to vector<128x256xbf16>
    %c1_37 = arith.constant 1 : index
    %c0_38 = arith.constant 0 : index
    %c0_39 = arith.constant 0 : index
    %88 = vector.load %arg4[%c1_37, %c0_38, %c0_39] : memref<3x256x256xbf16, #tpu.memory_space<vmem>>, vector<1x256x256xbf16>
    %89 = vector.shape_cast %88 : vector<1x256x256xbf16> to vector<256x256xbf16>
    %cst_40 = arith.constant dense<0.000000e+00> : vector<128x256xf32>
    %90 = tpu.matmul %87, %89, %cst_40 {dimension_numbers = #tpu.dot_dimension_numbers<[1], [0], [0], [1], [0, 0, 1, 1], [], []>} : vector<128x256xbf16>, vector<256x256xbf16>, vector<128x256xf32> -> vector<128x256xf32>
    %c-1_i32_41 = arith.constant -1 : i32
    %91 = vector.broadcast %c-1_i32_41 : i32 to vector<128x1xi32>
    %92 = arith.addi %16, %91 : vector<128x1xi32>
    %c0_i32_42 = arith.constant 0 : i32
    %93 = vector.broadcast %c0_i32_42 : i32 to vector<128x1xi32>
    %94 = arith.cmpi sge, %92, %93 : vector<128x1xi32>
    %c-1_i32_43 = arith.constant -1 : i32
    %95 = vector.broadcast %c-1_i32_43 : i32 to vector<128x1xi32>
    %96 = arith.addi %16, %95 : vector<128x1xi32>
    %c8_i32_44 = arith.constant 8 : i32
    %97 = vector.broadcast %c8_i32_44 : i32 to vector<128x1xi32>
    %98 = arith.cmpi slt, %96, %97 : vector<128x1xi32>
    %99 = arith.andi %94, %98 : vector<128x1xi1>
    %c1_i32_45 = arith.constant 1 : i32
    %100 = tpu.dynamic_rotate %86 by %c1_i32_45 dim 0 : vector<128x256xf32>, i32 -> vector<128x256xf32>
    %cst_46 = arith.constant 0.000000e+00 : f32
    %101 = vector.shape_cast %99 : vector<128x1xi1> to vector<128x1xi1>
    %102 = vector.broadcast %101 : vector<128x1xi1> to vector<128x256xi1>
    %103 = vector.broadcast %cst_46 : f32 to vector<128x256xf32>
    %104 = arith.select %102, %100, %103 : vector<128x256xi1>, vector<128x256xf32>
    %105 = arith.truncf %104 : vector<128x256xf32> to vector<128x256xbf16>
    %c0_47 = arith.constant 0 : index
    %c0_48 = arith.constant 0 : index
    %c0_49 = arith.constant 0 : index
    %106 = vector.load %arg4[%c0_47, %c0_48, %c0_49] : memref<3x256x256xbf16, #tpu.memory_space<vmem>>, vector<1x256x256xbf16>
    %107 = vector.shape_cast %106 : vector<1x256x256xbf16> to vector<256x256xbf16>
    %cst_50 = arith.constant dense<0.000000e+00> : vector<128x256xf32>
    %108 = tpu.matmul %105, %107, %cst_50 {dimension_numbers = #tpu.dot_dimension_numbers<[1], [0], [0], [1], [0, 0, 1, 1], [], []>} : vector<128x256xbf16>, vector<256x256xbf16>, vector<128x256xf32> -> vector<128x256xf32>
    %109 = arith.addf %90, %108 : vector<128x256xf32>
    %c1_i32_51 = arith.constant 1 : i32
    %110 = vector.broadcast %c1_i32_51 : i32 to vector<128x1xi32>
    %111 = arith.addi %16, %110 : vector<128x1xi32>
    %c0_i32_52 = arith.constant 0 : i32
    %112 = vector.broadcast %c0_i32_52 : i32 to vector<128x1xi32>
    %113 = arith.cmpi sge, %111, %112 : vector<128x1xi32>
    %c1_i32_53 = arith.constant 1 : i32
    %114 = vector.broadcast %c1_i32_53 : i32 to vector<128x1xi32>
    %115 = arith.addi %16, %114 : vector<128x1xi32>
    %c8_i32_54 = arith.constant 8 : i32
    %116 = vector.broadcast %c8_i32_54 : i32 to vector<128x1xi32>
    %117 = arith.cmpi slt, %115, %116 : vector<128x1xi32>
    %118 = arith.andi %113, %117 : vector<128x1xi1>
    %c127_i32_55 = arith.constant 127 : i32
    %119 = tpu.dynamic_rotate %86 by %c127_i32_55 dim 0 : vector<128x256xf32>, i32 -> vector<128x256xf32>
    %cst_56 = arith.constant 0.000000e+00 : f32
    %120 = vector.shape_cast %118 : vector<128x1xi1> to vector<128x1xi1>
    %121 = vector.broadcast %120 : vector<128x1xi1> to vector<128x256xi1>
    %122 = vector.broadcast %cst_56 : f32 to vector<128x256xf32>
    %123 = arith.select %121, %119, %122 : vector<128x256xi1>, vector<128x256xf32>
    %124 = arith.truncf %123 : vector<128x256xf32> to vector<128x256xbf16>
    %c2_57 = arith.constant 2 : index
    %c0_58 = arith.constant 0 : index
    %c0_59 = arith.constant 0 : index
    %125 = vector.load %arg4[%c2_57, %c0_58, %c0_59] : memref<3x256x256xbf16, #tpu.memory_space<vmem>>, vector<1x256x256xbf16>
    %126 = vector.shape_cast %125 : vector<1x256x256xbf16> to vector<256x256xbf16>
    %cst_60 = arith.constant dense<0.000000e+00> : vector<128x256xf32>
    %127 = tpu.matmul %124, %126, %cst_60 {dimension_numbers = #tpu.dot_dimension_numbers<[1], [0], [0], [1], [0, 0, 1, 1], [], []>} : vector<128x256xbf16>, vector<256x256xbf16>, vector<128x256xf32> -> vector<128x256xf32>
    %128 = arith.addf %109, %127 : vector<128x256xf32>
    %c0_61 = arith.constant 0 : index
    %c0_62 = arith.constant 0 : index
    %129 = vector.load %arg5[%c0_61, %c0_62] : memref<1x256xf32, #tpu.memory_space<vmem>>, vector<1x256xf32>
    %130 = vector.broadcast %129 : vector<1x256xf32> to vector<128x256xf32>
    %131 = arith.addf %128, %130 : vector<128x256xf32>
    %132 = vector.shape_cast %131 : vector<128x256xf32> to vector<16x8x256xf32>
    %cst_63 = arith.constant dense<0.000000e+00> : vector<16x256xf32>
    %133 = vector.multi_reduction <add>, %132, %cst_63 [1] : vector<16x8x256xf32> to vector<16x256xf32>
    %cst_64 = arith.constant 8.000000e+00 : f32
    %134 = vector.broadcast %cst_64 : f32 to vector<16x256xf32>
    %135 = arith.divf %133, %134 : vector<16x256xf32>
    %c0_65 = arith.constant 0 : index
    %c0_66 = arith.constant 0 : index
    %136 = vector.load %arg6[%c0_65, %c0_66] : memref<256x256xf32, #tpu.memory_space<vmem>>, vector<256x256xf32>
    %cst_67 = arith.constant dense<0.000000e+00> : vector<16x256xf32>
    %137 = tpu.matmul %135, %136, %cst_67 {dimension_numbers = #tpu.dot_dimension_numbers<[1], [0], [0], [1], [0, 0, 1, 1], [], []>} : vector<16x256xf32>, vector<256x256xf32>, vector<16x256xf32> -> vector<16x256xf32>
    %138 = vector.shape_cast %137 : vector<16x256xf32> to vector<16x1x256xf32>
    %139 = vector.broadcast %138 : vector<16x1x256xf32> to vector<16x8x256xf32>
    %140 = arith.subf %132, %139 : vector<16x8x256xf32>
    %141 = arith.mulf %140, %140 : vector<16x8x256xf32>
    %cst_68 = arith.constant dense<0.000000e+00> : vector<16x256xf32>
    %142 = vector.multi_reduction <add>, %141, %cst_68 [1] : vector<16x8x256xf32> to vector<16x256xf32>
    %cst_69 = arith.constant 8.000000e+00 : f32
    %143 = vector.broadcast %cst_69 : f32 to vector<16x256xf32>
    %144 = arith.divf %142, %143 : vector<16x256xf32>
    %c0_70 = arith.constant 0 : index
    %c0_71 = arith.constant 0 : index
    %145 = vector.load %arg6[%c0_70, %c0_71] : memref<256x256xf32, #tpu.memory_space<vmem>>, vector<256x256xf32>
    %cst_72 = arith.constant dense<0.000000e+00> : vector<16x256xf32>
    %146 = tpu.matmul %144, %145, %cst_72 {dimension_numbers = #tpu.dot_dimension_numbers<[1], [0], [0], [1], [0, 0, 1, 1], [], []>} : vector<16x256xf32>, vector<256x256xf32>, vector<16x256xf32> -> vector<16x256xf32>
    %cst_73 = arith.constant 9.99999974E-6 : f32
    %147 = vector.broadcast %cst_73 : f32 to vector<16x256xf32>
    %148 = arith.addf %146, %147 : vector<16x256xf32>
    %149 = math.rsqrt %148 : vector<16x256xf32>
    %150 = vector.shape_cast %149 : vector<16x256xf32> to vector<16x1x256xf32>
    %151 = vector.broadcast %150 : vector<16x1x256xf32> to vector<16x8x256xf32>
    %152 = arith.mulf %140, %151 : vector<16x8x256xf32>
    %153 = vector.shape_cast %152 : vector<16x8x256xf32> to vector<128x256xf32>
    %154 = arith.subf %135, %137 : vector<16x256xf32>
    %155 = arith.mulf %154, %149 : vector<16x256xf32>
    %c0_74 = arith.constant 0 : index
    %c0_75 = arith.constant 0 : index
    %156 = vector.load %arg7[%c0_74, %c0_75] : memref<256x2xf32, #tpu.memory_space<vmem>>, vector<256x2xf32>
    %cst_76 = arith.constant dense<0.000000e+00> : vector<16x2xf32>
    %157 = tpu.matmul %155, %156, %cst_76 {dimension_numbers = #tpu.dot_dimension_numbers<[1], [0], [0], [1], [0, 0, 1, 1], [], []>} : vector<16x256xf32>, vector<256x2xf32>, vector<16x2xf32> -> vector<16x2xf32>
    %c0_77 = arith.constant 0 : index
    %c0_78 = arith.constant 0 : index
    %158 = vector.load %arg8[%c0_77, %c0_78] : memref<1x2xf32, #tpu.memory_space<vmem>>, vector<1x2xf32>
    %159 = vector.broadcast %158 : vector<1x2xf32> to vector<16x2xf32>
    %160 = arith.addf %157, %159 : vector<16x2xf32>
    %cst_79 = arith.constant 0.000000e+00 : f32
    %161 = vector.broadcast %cst_79 : f32 to vector<16x2xf32>
    %162 = arith.maximumf %160, %161 : vector<16x2xf32>
    %c0_80 = arith.constant 0 : index
    %c0_81 = arith.constant 0 : index
    %163 = vector.load %arg9[%c0_80, %c0_81] : memref<2x256xf32, #tpu.memory_space<vmem>>, vector<2x256xf32>
    %cst_82 = arith.constant dense<0.000000e+00> : vector<16x256xf32>
    %164 = tpu.matmul %162, %163, %cst_82 {dimension_numbers = #tpu.dot_dimension_numbers<[1], [0], [0], [1], [0, 0, 1, 1], [], []>} : vector<16x2xf32>, vector<2x256xf32>, vector<16x256xf32> -> vector<16x256xf32>
    %c0_83 = arith.constant 0 : index
    %c0_84 = arith.constant 0 : index
    %165 = vector.load %arg10[%c0_83, %c0_84] : memref<1x256xf32, #tpu.memory_space<vmem>>, vector<1x256xf32>
    %166 = vector.broadcast %165 : vector<1x256xf32> to vector<16x256xf32>
    %167 = arith.addf %164, %166 : vector<16x256xf32>
    %cst_85 = arith.constant 0.000000e+00 : f32
    %168 = vector.broadcast %cst_85 : f32 to vector<16x256xf32>
    %169 = arith.subf %168, %167 : vector<16x256xf32>
    %170 = math.exp %169 : vector<16x256xf32>
    %cst_86 = arith.constant 1.000000e+00 : f32
    %171 = vector.broadcast %cst_86 : f32 to vector<16x256xf32>
    %172 = arith.addf %171, %170 : vector<16x256xf32>
    %cst_87 = arith.constant 1.000000e+00 : f32
    %173 = vector.broadcast %cst_87 : f32 to vector<16x256xf32>
    %174 = arith.divf %173, %172 : vector<16x256xf32>
    %175 = vector.shape_cast %153 : vector<128x256xf32> to vector<16x8x256xf32>
    %176 = vector.shape_cast %174 : vector<16x256xf32> to vector<16x1x256xf32>
    %177 = vector.broadcast %176 : vector<16x1x256xf32> to vector<16x8x256xf32>
    %178 = arith.mulf %175, %177 : vector<16x8x256xf32>
    %179 = vector.shape_cast %178 : vector<16x8x256xf32> to vector<128x256xf32>
    %c0_88 = arith.constant 0 : index
    %c0_89 = arith.constant 0 : index
    %180 = vector.load %arg1[%c0_88, %c0_89] : memref<128x256xf32, #tpu.memory_space<vmem>>, vector<128x256xf32>
    %181 = arith.addf %179, %180 : vector<128x256xf32>
    %cst_90 = arith.constant 0.000000e+00 : f32
    %182 = vector.broadcast %cst_90 : f32 to vector<128x256xf32>
    %183 = arith.maximumf %181, %182 : vector<128x256xf32>
    %c0_91 = arith.constant 0 : index
    %c0_92 = arith.constant 0 : index
    %184 = vector.load %arg11[%c0_91, %c0_92] : memref<128x256xf32, #tpu.memory_space<vmem>>, vector<128x256xf32>
    tpu.vector_store %arg11[%c0_91, %c0_92], %183 {strides = array<i32>} : memref<128x256xf32, #tpu.memory_space<vmem>>, vector<128x256xf32>,
    return
  }
  func.func @transform_0(%arg0: i32) -> (i32, i32) {
    %c0_i32 = arith.constant 0 : i32
    %c0_i32_0 = arith.constant 0 : i32
    return %arg0, %c0_i32 : i32, i32
  }
  func.func @transform_1(%arg0: i32) -> (i32, i32, i32) {
    %c0_i32 = arith.constant 0 : i32
    %c0_i32_0 = arith.constant 0 : i32
    %c0_i32_1 = arith.constant 0 : i32
    %c0_i32_2 = arith.constant 0 : i32
    return %c0_i32, %c0_i32_0, %c0_i32_1 : i32, i32, i32
  }
  func.func @transform_2(%arg0: i32) -> (i32, i32) {
    %c0_i32 = arith.constant 0 : i32
    %c0_i32_0 = arith.constant 0 : i32
    %c0_i32_1 = arith.constant 0 : i32
    return %c0_i32, %c0_i32_0 : i32, i32
  }
  func.func @transform_3(%arg0: i32) -> (i32, i32, i32) {
    %c0_i32 = arith.constant 0 : i32
    %c0_i32_0 = arith.constant 0 : i32
    %c0_i32_1 = arith.constant 0 : i32
    %c0_i32_2 = arith.constant 0 : i32
    return %c0_i32, %c0_i32_0, %c0_i32_1 : i32, i32, i32
  }
  func.func @transform_4(%arg0: i32) -> (i32, i32) {
    %c0_i32 = arith.constant 0 : i32
    %c0_i32_0 = arith.constant 0 : i32
    %c0_i32_1 = arith.constant 0 : i32
    return %c0_i32, %c0_i32_0 : i32, i32
  }
  func.func @transform_5(%arg0: i32) -> (i32, i32) {
    %c0_i32 = arith.constant 0 : i32
    %c0_i32_0 = arith.constant 0 : i32
    %c0_i32_1 = arith.constant 0 : i32
    return %c0_i32, %c0_i32_0 : i32, i32
  }
  func.func @transform_6(%arg0: i32) -> (i32, i32) {
    %c0_i32 = arith.constant 0 : i32
    %c0_i32_0 = arith.constant 0 : i32
    %c0_i32_1 = arith.constant 0 : i32
    return %c0_i32, %c0_i32_0 : i32, i32
  }
  func.func @transform_7(%arg0: i32) -> (i32, i32) {
    %c0_i32 = arith.constant 0 : i32
    %c0_i32_0 = arith.constant 0 : i32
    %c0_i32_1 = arith.constant 0 : i32
    return %c0_i32, %c0_i32_0 : i32, i32
  }
  func.func @transform_8(%arg0: i32) -> (i32, i32) {
    %c0_i32 = arith.constant 0 : i32
    %c0_i32_0 = arith.constant 0 : i32
    %c0_i32_1 = arith.constant 0 : i32
    return %c0_i32, %c0_i32_0 : i32, i32
  }
  func.func @transform_9(%arg0: i32) -> (i32, i32) {
    %c0_i32 = arith.constant 0 : i32
    %c0_i32_0 = arith.constant 0 : i32
    %c0_i32_1 = arith.constant 0 : i32
    return %c0_i32, %c0_i32_0 : i32, i32
  }
  func.func @transform_10(%arg0: i32) -> (i32, i32) {
    %c0_i32 = arith.constant 0 : i32
    %c0_i32_0 = arith.constant 0 : i32
    return %arg0, %c0_i32 : i32, i32
  }
}

</mosaic_0001>

<llo_original>
// kernel: tpu_custom_call.1
$region0: #{tpu_custom_call.1}
  #allocation0 [shape = 'u32[]', space=smem, size = 0x4, offset = 0x4, fixed_abs, tag = 'smem constant byte address 0x4 - core index']
  #allocation1 [shape = 'u32[72,128]{1,0:T(1,128)}', space=vmem, size = 0x9000, scoped, tag = 'internal scratch']
  %s0 = inlined_call_operand.hbm [shape: f32[256,256], index: 0, kind: input, shape index: {}]
  %s1 = inlined_call_operand.hbm [shape: bf16[3,256,256], index: 1, kind: input, shape index: {}]
  %s2 = inlined_call_operand.vmem [shape: f32[1,256], index: 2, kind: input, shape index: {}]
  %s3 = inlined_call_operand.hbm [shape: bf16[3,256,256], index: 3, kind: input, shape index: {}]
  %s4 = inlined_call_operand.vmem [shape: f32[1,256], index: 4, kind: input, shape index: {}]
  %s5 = inlined_call_operand.hbm [shape: f32[256,256], index: 5, kind: input, shape index: {}]
  %s6 = inlined_call_operand.vmem [shape: f32[256,2], index: 6, kind: input, shape index: {}]
  %s7 = inlined_call_operand.vmem [shape: f32[1,2], index: 7, kind: input, shape index: {}]
  %s8 = inlined_call_operand.vmem [shape: f32[2,256], index: 8, kind: input, shape index: {}]
  %s9 = inlined_call_operand.vmem [shape: f32[1,256], index: 9, kind: input, shape index: {}]
  %s10 = inlined_call_operand.hbm [shape: f32[256,256], index: 10, kind: output, shape index: {}]
  %s11 = sld [smem:[#allocation0]]
  $region89: #{tpu_custom_call.1} parent=0
    _
  %s13 = ssub.s32 1, %s11
  %s14 = scalar_select 0, %s13, %s11
  $region1: #{tpu_custom_call.1} parent=0
    #allocation2 [shape = 'u8[262144]{0}', space=vmem, size = 0x40000, scoped, tag = 'input window, operand 0']
    #allocation3 [shape = 's32[2]{0}', space=sflag, size = 0x8, scoped, tag = 'scoped memory for tpu_custom_call.1']
    #allocation4 [shape = 's32[2]{0}', space=sflag, size = 0x8, scoped, tag = 'scoped memory for tpu_custom_call.1']
    #allocation5 [shape = 'u8[393216]{0}', space=vmem, size = 0x60000, scoped, tag = 'input window, operand 1, single buffered']
    #allocation6 [shape = 's32[1]{0}', space=sflag, size = 0x4, scoped, tag = 'scoped memory for tpu_custom_call.1']
    #allocation7 [shape = 'u8[393216]{0}', space=vmem, size = 0x60000, scoped, tag = 'input window, operand 3, single buffered']
    #allocation8 [shape = 'u8[262144]{0}', space=vmem, size = 0x40000, scoped, tag = 'input window, operand 5, single buffered']
    #allocation9 [shape = 's32[1]{0}', space=sflag, size = 0x4, scoped, tag = 'scoped memory for tpu_custom_call.1']
    #allocation10 [shape = 'u8[262144]{0}', space=vmem, size = 0x40000, scoped, tag = 'output window, operand 0']
    %15 = vsyncpa [#allocation3], 0
    %s16 = scalar_lea.sflag [#allocation3], 1
    %17 = vsyncpa %s16, 0
    %18 = vsyncpa [#allocation6], 0
    %19 = vsyncpa [#allocation9], 0
    %20 = vsyncpa [#allocation4], 0
    %s21 = scalar_lea.sflag [#allocation4], 1
    %22 = vsyncpa %s21, 0
    loop: start=0, step=1, limit=4
    $region2: #{tpu_custom_call.1} parent=1 // loop_pre_header
      _
    $region3: #{tpu_custom_call.1} parent=1 // loop_header
      %s24 = sphi 0, %s28
      %p25 = scmp.ge.s32.totalorder %s24, 4
      %s34 = sphi 0, %s36
      %s37 = sphi 0, %s34
      %s38 = sphi 0, %s37
      %s54 = sphi 0, %s38
      %s58 = sphi 0, %s58
      %s60 = sphi 0, %s58
      %s61 = sphi 0, %s60
      %s75 = sphi 0, %s61
      %s79 = sphi 0, %s79
      %s81 = sphi 0, %s79
      %s82 = sphi 0, %s81
      %s96 = sphi 0, %s82
      %s100 = sphi 0, %s100
      %s102 = sphi 0, %s100
      %s103 = sphi 0, %s102
      %s117 = sphi 0, %s103
      %s121 = sphi 0, %s121
      %s123 = sphi 0, %s121
      %s124 = sphi 0, %s123
      %s138 = sphi 0, %s124
      %s142 = sphi 0, %s142
      %s144 = sphi 0, %s142
      %s145 = sphi 0, %s144
      %s159 = sphi 0, %s145
      %s163 = sphi 0, %s163
      %s165 = sphi 0, %s163
      %s166 = sphi 0, %s165
      %s180 = sphi 0, %s166
      %s184 = sphi 0, %s184
      %s186 = sphi 0, %s184
      %s187 = sphi 0, %s186
      %s201 = sphi 0, %s187
      %s205 = sphi 0, %s205
      %s207 = sphi 0, %s205
      %s208 = sphi 0, %s207
      %s222 = sphi 0, %s208
      %s226 = sphi 0, %s226
      %s228 = sphi 0, %s226
      %s229 = sphi 0, %s228
      %s243 = sphi 0, %s229
      %s249 = sphi 0, %s251
      %s252 = sphi 0, %s249
      %s253 = sphi 0, %s252
      %s269 = sphi 0, %s253
    $region4: #{tpu_custom_call.1} parent=1 // loop_header_branch
      %27 = sbr.rel (%p25) target = $region8
    $region5: #{tpu_custom_call.1} parent=1 // loop_body
      %s29 = ssub.s32 %s24, 1
      %s30 = ssub.s32 %s24, 2
      %s31 = sadd.s32 %s24, 1
      %s32 = ssub.s32 %s24, %s31
      %p33 = scmp.eq.s32.totalorder %s32, 0
      %s35 = sadd.s32 %s34, 1
      %s36 = scalar_select %p33, %s34, %s35
      %p39 = pneg %p33
      %p40 = scmp.eq.s32.totalorder %s24, 1
      %p41 = por %p39, %p40
      %p42 = scmp.ne.s32.totalorder %s34, %s37
      %p43 = scmp.eq.s32.totalorder %s24, 0
      %p44 = por %p42, %p43
      %p45 = scmp.ne.s32.totalorder %s34, %s37
      %p46 = scmp.eq.s32.totalorder %s29, 1
      %p47 = por %p45, %p46
      %p48 = scmp.ne.s32.totalorder %s37, %s38
      %p49 = scmp.eq.s32.totalorder %s29, 0
      %p50 = por %p48, %p49
      %p51 = scmp.ne.s32.totalorder %s37, %s38
      %p52 = scmp.eq.s32.totalorder %s30, 1
      %p53 = por %p51, %p52
      %p55 = scmp.ne.s32.totalorder %s38, %s54
      %p56 = scmp.eq.s32.totalorder %s30, 0
      %p57 = por %p55, %p56
      %s59 = sadd.s32 %s58, 1
      %p62 = scmp.eq.s32.totalorder %s24, 1
      %p63 = scmp.ne.s32.totalorder %s58, %s60
      %p64 = scmp.eq.s32.totalorder %s24, 0
      %p65 = por %p63, %p64
      %p66 = scmp.ne.s32.totalorder %s58, %s60
      %p67 = scmp.eq.s32.totalorder %s29, 1
      %p68 = por %p66, %p67
      %p69 = scmp.ne.s32.totalorder %s60, %s61
      %p70 = scmp.eq.s32.totalorder %s29, 0
      %p71 = por %p69, %p70
      %p72 = scmp.ne.s32.totalorder %s60, %s61
      %p73 = scmp.eq.s32.totalorder %s30, 1
      %p74 = por %p72, %p73
      %p76 = scmp.ne.s32.totalorder %s61, %s75
      %p77 = scmp.eq.s32.totalorder %s30, 0
      %p78 = por %p76, %p77
      %s80 = sadd.s32 %s79, 1
      %p83 = scmp.eq.s32.totalorder %s24, 1
      %p84 = scmp.ne.s32.totalorder %s79, %s81
      %p85 = scmp.eq.s32.totalorder %s24, 0
      %p86 = por %p84, %p85
      %p87 = scmp.ne.s32.totalorder %s79, %s81
      %p88 = scmp.eq.s32.totalorder %s29, 1
      %p89 = por %p87, %p88
      %p90 = scmp.ne.s32.totalorder %s81, %s82
      %p91 = scmp.eq.s32.totalorder %s29, 0
      %p92 = por %p90, %p91
      %p93 = scmp.ne.s32.totalorder %s81, %s82
      %p94 = scmp.eq.s32.totalorder %s30, 1
      %p95 = por %p93, %p94
      %p97 = scmp.ne.s32.totalorder %s82, %s96
      %p98 = scmp.eq.s32.totalorder %s30, 0
      %p99 = por %p97, %p98
      %s101 = sadd.s32 %s100, 1
      %p104 = scmp.eq.s32.totalorder %s24, 1
      %p105 = scmp.ne.s32.totalorder %s100, %s102
      %p106 = scmp.eq.s32.totalorder %s24, 0
      %p107 = por %p105, %p106
      %p108 = scmp.ne.s32.totalorder %s100, %s102
      %p109 = scmp.eq.s32.totalorder %s29, 1
      %p110 = por %p108, %p109
      %p111 = scmp.ne.s32.totalorder %s102, %s103
      %p112 = scmp.eq.s32.totalorder %s29, 0
      %p113 = por %p111, %p112
      %p114 = scmp.ne.s32.totalorder %s102, %s103
      %p115 = scmp.eq.s32.totalorder %s30, 1
      %p116 = por %p114, %p115
      %p118 = scmp.ne.s32.totalorder %s103, %s117
      %p119 = scmp.eq.s32.totalorder %s30, 0
      %p120 = por %p118, %p119
      %s122 = sadd.s32 %s121, 1
      %p125 = scmp.eq.s32.totalorder %s24, 1
      %p126 = scmp.ne.s32.totalorder %s121, %s123
      %p127 = scmp.eq.s32.totalorder %s24, 0
      %p128 = por %p126, %p127
      %p129 = scmp.ne.s32.totalorder %s121, %s123
      %p130 = scmp.eq.s32.totalorder %s29, 1
      %p131 = por %p129, %p130
      %p132 = scmp.ne.s32.totalorder %s123, %s124
      %p133 = scmp.eq.s32.totalorder %s29, 0
      %p134 = por %p132, %p133
      %p135 = scmp.ne.s32.totalorder %s123, %s124
      %p136 = scmp.eq.s32.totalorder %s30, 1
      %p137 = por %p135, %p136
      %p139 = scmp.ne.s32.totalorder %s124, %s138
      %p140 = scmp.eq.s32.totalorder %s30, 0
      %p141 = por %p139, %p140
      %s143 = sadd.s32 %s142, 1
      %p146 = scmp.eq.s32.totalorder %s24, 1
      %p147 = scmp.ne.s32.totalorder %s142, %s144
      %p148 = scmp.eq.s32.totalorder %s24, 0
      %p149 = por %p147, %p148
      %p150 = scmp.ne.s32.totalorder %s142, %s144
      %p151 = scmp.eq.s32.totalorder %s29, 1
      %p152 = por %p150, %p151
      %p153 = scmp.ne.s32.totalorder %s144, %s145
      %p154 = scmp.eq.s32.totalorder %s29, 0
      %p155 = por %p153, %p154
      %p156 = scmp.ne.s32.totalorder %s144, %s145
      %p157 = scmp.eq.s32.totalorder %s30, 1
      %p158 = por %p156, %p157
      %p160 = scmp.ne.s32.totalorder %s145, %s159
      %p161 = scmp.eq.s32.totalorder %s30, 0
      %p162 = por %p160, %p161
      %s164 = sadd.s32 %s163, 1
      %p167 = scmp.eq.s32.totalorder %s24, 1
      %p168 = scmp.ne.s32.totalorder %s163, %s165
      %p169 = scmp.eq.s32.totalorder %s24, 0
      %p170 = por %p168, %p169
      %p171 = scmp.ne.s32.totalorder %s163, %s165
      %p172 = scmp.eq.s32.totalorder %s29, 1
      %p173 = por %p171, %p172
      %p174 = scmp.ne.s32.totalorder %s165, %s166
      %p175 = scmp.eq.s32.totalorder %s29, 0
      %p176 = por %p174, %p175
      %p177 = scmp.ne.s32.totalorder %s165, %s166
      %p178 = scmp.eq.s32.totalorder %s30, 1
      %p179 = por %p177, %p178
      %p181 = scmp.ne.s32.totalorder %s166, %s180
      %p182 = scmp.eq.s32.totalorder %s30, 0
      %p183 = por %p181, %p182
      %s185 = sadd.s32 %s184, 1
      %p188 = scmp.eq.s32.totalorder %s24, 1
      %p189 = scmp.ne.s32.totalorder %s184, %s186
      %p190 = scmp.eq.s32.totalorder %s24, 0
      %p191 = por %p189, %p190
      %p192 = scmp.ne.s32.totalorder %s184, %s186
      %p193 = scmp.eq.s32.totalorder %s29, 1
      %p194 = por %p192, %p193
      %p195 = scmp.ne.s32.totalorder %s186, %s187
      %p196 = scmp.eq.s32.totalorder %s29, 0
      %p197 = por %p195, %p196
      %p198 = scmp.ne.s32.totalorder %s186, %s187
      %p199 = scmp.eq.s32.totalorder %s30, 1
      %p200 = por %p198, %p199
      %p202 = scmp.ne.s32.totalorder %s187, %s201
      %p203 = scmp.eq.s32.totalorder %s30, 0
      %p204 = por %p202, %p203
      %s206 = sadd.s32 %s205, 1
      %p209 = scmp.eq.s32.totalorder %s24, 1
      %p210 = scmp.ne.s32.totalorder %s205, %s207
      %p211 = scmp.eq.s32.totalorder %s24, 0
      %p212 = por %p210, %p211
      %p213 = scmp.ne.s32.totalorder %s205, %s207
      %p214 = scmp.eq.s32.totalorder %s29, 1
      %p215 = por %p213, %p214
      %p216 = scmp.ne.s32.totalorder %s207, %s208
      %p217 = scmp.eq.s32.totalorder %s29, 0
      %p218 = por %p216, %p217
      %p219 = scmp.ne.s32.totalorder %s207, %s208
      %p220 = scmp.eq.s32.totalorder %s30, 1
      %p221 = por %p219, %p220
      %p223 = scmp.ne.s32.totalorder %s208, %s222
      %p224 = scmp.eq.s32.totalorder %s30, 0
      %p225 = por %p223, %p224
      %s227 = sadd.s32 %s226, 1
      %p230 = scmp.eq.s32.totalorder %s24, 1
      %p231 = scmp.ne.s32.totalorder %s226, %s228
      %p232 = scmp.eq.s32.totalorder %s24, 0
      %p233 = por %p231, %p232
      %p234 = scmp.ne.s32.totalorder %s226, %s228
      %p235 = scmp.eq.s32.totalorder %s29, 1
      %p236 = por %p234, %p235
      %p237 = scmp.ne.s32.totalorder %s228, %s229
      %p238 = scmp.eq.s32.totalorder %s29, 0
      %p239 = por %p237, %p238
      %p240 = scmp.ne.s32.totalorder %s228, %s229
      %p241 = scmp.eq.s32.totalorder %s30, 1
      %p242 = por %p240, %p241
      %p244 = scmp.ne.s32.totalorder %s229, %s243
      %p245 = scmp.eq.s32.totalorder %s30, 0
      %p246 = por %p244, %p245
      %s247 = ssub.s32 %s24, %s31
      %p248 = scmp.eq.s32.totalorder %s247, 0
      %s250 = sadd.s32 %s249, 1
      %s251 = scalar_select %p248, %s249, %s250
      %p254 = pneg %p248
      %p255 = scmp.eq.s32.totalorder %s24, 1
      %p256 = por %p254, %p255
      %p257 = scmp.ne.s32.totalorder %s249, %s252
      %p258 = scmp.eq.s32.totalorder %s24, 0
      %p259 = por %p257, %p258
      %p260 = scmp.ne.s32.totalorder %s249, %s252
      %p261 = scmp.eq.s32.totalorder %s29, 1
      %p262 = por %p260, %p261
      %p263 = scmp.ne.s32.totalorder %s252, %s253
      %p264 = scmp.eq.s32.totalorder %s29, 0
      %p265 = por %p263, %p264
      %p266 = scmp.ne.s32.totalorder %s252, %s253
      %p267 = scmp.eq.s32.totalorder %s30, 1
      %p268 = por %p266, %p267
      %p270 = scmp.ne.s32.totalorder %s253, %s269
      %p271 = scmp.eq.s32.totalorder %s30, 0
      %p272 = por %p270, %p271
      %p273 = scmp.le.s32.totalorder 1, %s24
      %p274 = scmp.lt.s32.totalorder %s24, 3
      %p275 = pnand %p273, %p274
      %p276 = pneg %p275
      // Predicated region
      $region9: #{tpu_custom_call.1} parent=5 // pred_check
        _
      $region10: #{tpu_custom_call.1} parent=5 // pred_check_branch
        %278 = sbr.rel (%p275) target = $region12
      $region11: #{tpu_custom_call.1} parent=5 // pred_region
        %s279 = ssub.s32 %s24, 1
        // Predicated region
        $region13: #{tpu_custom_call.1} parent=11 // pred_check
          %p280 = pneg %p71
        $region14: #{tpu_custom_call.1} parent=11 // pred_check_branch
          %282 = sbr.rel (%p280) target = $region16
        $region15: #{tpu_custom_call.1} parent=11 // pred_region
          %284 = vsyncadd [#allocation6], 0
          %s285 = sshll.u32 %s1, 4
          %s286 = int_to_ptr.hbm [resolvable:$true] %s285
          %s287 = sshll.u32 [#allocation5], 4
          %s288 = int_to_ptr.vmem [resolvable:$true] %s287
          %293 = dma.hbm_to_vmem [thread:$0]  %s286, 12288, %s288, [#allocation6], 128, 128, 8
        $region16: #{tpu_custom_call.1} parent=11 // pred_fallthru
          _
        // Predicated region
        $region17: #{tpu_custom_call.1} parent=11 // pred_check
          %p294 = pneg %p92
        $region18: #{tpu_custom_call.1} parent=11 // pred_check_branch
          %296 = sbr.rel (%p294) target = $region20
        $region19: #{tpu_custom_call.1} parent=11 // pred_region
          _
        $region20: #{tpu_custom_call.1} parent=11 // pred_fallthru
          _
        // Predicated region
        $region21: #{tpu_custom_call.1} parent=11 // pred_check
          %p297 = pneg %p113
        $region22: #{tpu_custom_call.1} parent=11 // pred_check_branch
          %299 = sbr.rel (%p297) target = $region24
        $region23: #{tpu_custom_call.1} parent=11 // pred_region
          %301 = vsyncadd [#allocation6], 0
          %s302 = sshll.u32 %s3, 4
          %s303 = int_to_ptr.hbm [resolvable:$true] %s302
          %s304 = sshll.u32 [#allocation7], 4
          %s305 = int_to_ptr.vmem [resolvable:$true] %s304
          %310 = dma.hbm_to_vmem [thread:$0]  %s303, 12288, %s305, [#allocation6], 128, 128, 8
        $region24: #{tpu_custom_call.1} parent=11 // pred_fallthru
          _
        // Predicated region
        $region25: #{tpu_custom_call.1} parent=11 // pred_check
          %p311 = pneg %p134
        $region26: #{tpu_custom_call.1} parent=11 // pred_check_branch
          %313 = sbr.rel (%p311) target = $region28
        $region27: #{tpu_custom_call.1} parent=11 // pred_region
          _
        $region28: #{tpu_custom_call.1} parent=11 // pred_fallthru
          _
        // Predicated region
        $region29: #{tpu_custom_call.1} parent=11 // pred_check
          %p314 = pneg %p155
        $region30: #{tpu_custom_call.1} parent=11 // pred_check_branch
          %316 = sbr.rel (%p314) target = $region32
        $region31: #{tpu_custom_call.1} parent=11 // pred_region
          %318 = vsyncadd [#allocation9], 0
          %s319 = sshll.u32 %s5, 4
          %s320 = int_to_ptr.hbm [resolvable:$true] %s319
          %s321 = sshll.u32 [#allocation8], 4
          %s322 = int_to_ptr.vmem [resolvable:$true] %s321
          %327 = dma.hbm_to_vmem [thread:$0]  %s320, 8192, %s322, [#allocation9], 256, 256, 16
        $region32: #{tpu_custom_call.1} parent=11 // pred_fallthru
          _
        // Predicated region
        $region33: #{tpu_custom_call.1} parent=11 // pred_check
          %p328 = pneg %p176
        $region34: #{tpu_custom_call.1} parent=11 // pred_check_branch
          %330 = sbr.rel (%p328) target = $region36
        $region35: #{tpu_custom_call.1} parent=11 // pred_region
          _
        $region36: #{tpu_custom_call.1} parent=11 // pred_fallthru
          _
        // Predicated region
        $region37: #{tpu_custom_call.1} parent=11 // pred_check
          %p331 = pneg %p197
        $region38: #{tpu_custom_call.1} parent=11 // pred_check_branch
          %333 = sbr.rel (%p331) target = $region40
        $region39: #{tpu_custom_call.1} parent=11 // pred_region
          _
        $region40: #{tpu_custom_call.1} parent=11 // pred_fallthru
          _
        // Predicated region
        $region41: #{tpu_custom_call.1} parent=11 // pred_check
          %p334 = pneg %p218
        $region42: #{tpu_custom_call.1} parent=11 // pred_check_branch
          %336 = sbr.rel (%p334) target = $region44
        $region43: #{tpu_custom_call.1} parent=11 // pred_region
          _
        $region44: #{tpu_custom_call.1} parent=11 // pred_fallthru
          _
        // Predicated region
        $region45: #{tpu_custom_call.1} parent=11 // pred_check
          %p337 = pneg %p239
        $region46: #{tpu_custom_call.1} parent=11 // pred_check_branch
          %339 = sbr.rel (%p337) target = $region48
        $region47: #{tpu_custom_call.1} parent=11 // pred_region
          _
        $region48: #{tpu_custom_call.1} parent=11 // pred_fallthru
          _
      $region12: #{tpu_custom_call.1} parent=5 // pred_fallthru
        _
      %p340 = scmp.lt.s32.totalorder %s24, 2
      // Predicated region
      $region49: #{tpu_custom_call.1} parent=5 // pred_check
        %p341 = pneg %p340
      $region50: #{tpu_custom_call.1} parent=5 // pred_check_branch
        %343 = sbr.rel (%p341) target = $region52
      $region51: #{tpu_custom_call.1} parent=5 // pred_region
        // Predicated region
        $region53: #{tpu_custom_call.1} parent=51 // pred_check
          %p344 = pneg %p44
        $region54: #{tpu_custom_call.1} parent=51 // pred_check_branch
          %346 = sbr.rel (%p344) target = $region56
        $region55: #{tpu_custom_call.1} parent=51 // pred_region
          %s347 = sand.u32 %s34, 1
          %s348 = scalar_lea.sflag [#allocation3], %s347
          %s349 = sand.u32 %s34, 1
          %s350 = smul.addr %s349, 256
          %s351 = scalar_lea.vmem [#allocation2], %s350
          %s352 = smul.u32 16, %s24
          %354 = vsyncadd %s348, 0
          %s355 = smul.addr %s352, 2
          %s356 = smul.addr %s355, 8
          %s357 = scalar_lea.hbm %s0, %s356
          %s358 = sshll.u32 %s357, 4
          %s359 = int_to_ptr.hbm [resolvable:$true] %s358
          %s360 = sshll.u32 %s351, 4
          %s361 = int_to_ptr.vmem [resolvable:$true] %s360
          %366 = dma.hbm_to_vmem [thread:$0]  %s359, 4096, %s361, %s348, 256, 256, 16
        $region56: #{tpu_custom_call.1} parent=51 // pred_fallthru
          _
      $region52: #{tpu_custom_call.1} parent=5 // pred_fallthru
        _
      %p367 = scmp.le.s32.totalorder 1, %s24
      %p368 = scmp.lt.s32.totalorder %s24, 3
      %p369 = pnand %p367, %p368
      %p370 = pneg %p369
      // Predicated region
      $region57: #{tpu_custom_call.1} parent=5 // pred_check
        _
      $region58: #{tpu_custom_call.1} parent=5 // pred_check_branch
        %372 = sbr.rel (%p369) target = $region60
      $region59: #{tpu_custom_call.1} parent=5 // pred_region
        %s373 = ssub.s32 %s24, 1
        %s374 = sand.u32 %s37, 1
        %s375 = scalar_lea.sflag [#allocation3], %s374
        %s376 = sand.u32 %s37, 1
        %s377 = smul.addr %s376, 256
        %s378 = scalar_lea.vmem [#allocation2], %s377
        // Predicated region
        $region61: #{tpu_custom_call.1} parent=59 // pred_check
          %p379 = pneg %p50
        $region62: #{tpu_custom_call.1} parent=59 // pred_check_branch
          %381 = sbr.rel (%p379) target = $region64
        $region63: #{tpu_custom_call.1} parent=59 // pred_region
          %383 = dma.done %s375, 4096
        $region64: #{tpu_custom_call.1} parent=59 // pred_fallthru
          _
        // Predicated region
        $region65: #{tpu_custom_call.1} parent=59 // pred_check
          %p384 = pneg %p71
        $region66: #{tpu_custom_call.1} parent=59 // pred_check_branch
          %386 = sbr.rel (%p384) target = $region68
        $region67: #{tpu_custom_call.1} parent=59 // pred_region
          %388 = dma.done [#allocation6], 12288
        $region68: #{tpu_custom_call.1} parent=59 // pred_fallthru
          _
        // Predicated region
        $region69: #{tpu_custom_call.1} parent=59 // pred_check
          %p389 = pneg %p113
        $region70: #{tpu_custom_call.1} parent=59 // pred_check_branch
          %391 = sbr.rel (%p389) target = $region72
        $region71: #{tpu_custom_call.1} parent=59 // pred_region
          %393 = dma.done [#allocation6], 12288
        $region72: #{tpu_custom_call.1} parent=59 // pred_fallthru
          _
        // Predicated region
        $region73: #{tpu_custom_call.1} parent=59 // pred_check
          %p394 = pneg %p155
        $region74: #{tpu_custom_call.1} parent=59 // pred_check_branch
          %396 = sbr.rel (%p394) target = $region76
        $region75: #{tpu_custom_call.1} parent=59 // pred_region
          %398 = dma.done [#allocation9], 8192
        $region76: #{tpu_custom_call.1} parent=59 // pred_fallthru
          _
        %s399 = sand.u32 %s37, 1
        %s400 = scalar_lea.sflag [#allocation3], %s399
        %s401 = sand.u32 %s37, 1
        %s402 = smul.addr %s401, 256
        %s403 = scalar_lea.vmem [#allocation2], %s402
        %p404 = pneg %p50
        %p405 = pneg %p47
        %p406 = pneg %p71
        %p407 = pneg %p68
        %p408 = pneg %p92
        %p409 = pneg %p89
        %p410 = pneg %p113
        %p411 = pneg %p110
        %p412 = pneg %p134
        %p413 = pneg %p131
        %p414 = pneg %p155
        %p415 = pneg %p152
        %p416 = pneg %p176
        %p417 = pneg %p173
        %p418 = pneg %p197
        %p419 = pneg %p194
        %p420 = pneg %p218
        %p421 = pneg %p215
        %p422 = pneg %p239
        %p423 = pneg %p236
        %p424 = pneg %p265
        %p425 = pneg %p262
        %s426 = sand.u32 %s252, 1
        %s427 = scalar_lea.sflag [#allocation4], %s426
        %s428 = sand.u32 %s252, 1
        %s429 = smul.addr %s428, 256
        %s430 = scalar_lea.vmem [#allocation10], %s429
        %s431 = smul.u32 16, %s29
        %s432 = smul.u32 16, %s29
        %v433 = vlaneseq
        %v434 = vshrl.u32 %v433, 7
        %v435 = vadd.s32 %v434, 8
        %v436 = vadd.s32 %v434, 16
        %v437 = vadd.s32 %v434, 24
        %v438 = vadd.s32 %v434, 32
        %v439 = vadd.s32 %v434, 40
        %v440 = vadd.s32 %v434, 48
        %v441 = vadd.s32 %v434, 56
        %v442 = vadd.s32 %v434, 64
        %v443 = vadd.s32 %v434, 72
        %v444 = vadd.s32 %v434, 80
        %v445 = vadd.s32 %v434, 88
        %v446 = vadd.s32 %v434, 96
        %v447 = vadd.s32 %v434, 104
        %v448 = vadd.s32 %v434, 112
        %v449 = vadd.s32 %v434, 120
        %vm450 = vcmp.lt.s32.totalorder %v434, 0
        %v451 = vsub.s32 0, %v434
        %v452 = vsel %vm450, %v451, %v434
        %v453 = vshrl.u32 %v452, 3
        %v454 = vand.u32 %v452, 7
        %v455 = vsub.s32 0, %v454
        %v456 = vsel %vm450, %v455, %v454
        %vm457 = vcmp.lt.s32.totalorder %v435, 0
        %v458 = vsub.s32 0, %v435
        %v459 = vsel %vm457, %v458, %v435
        %v460 = vshrl.u32 %v459, 3
        %v461 = vand.u32 %v459, 7
        %v462 = vsub.s32 0, %v461
        %v463 = vsel %vm457, %v462, %v461
        %vm464 = vcmp.lt.s32.totalorder %v436, 0
        %v465 = vsub.s32 0, %v436
        %v466 = vsel %vm464, %v465, %v436
        %v467 = vshrl.u32 %v466, 3
        %v468 = vand.u32 %v466, 7
        %v469 = vsub.s32 0, %v468
        %v470 = vsel %vm464, %v469, %v468
        %vm471 = vcmp.lt.s32.totalorder %v437, 0
        %v472 = vsub.s32 0, %v437
        %v473 = vsel %vm471, %v472, %v437
        %v474 = vshrl.u32 %v473, 3
        %v475 = vand.u32 %v473, 7
        %v476 = vsub.s32 0, %v475
        %v477 = vsel %vm471, %v476, %v475
        %vm478 = vcmp.lt.s32.totalorder %v438, 0
        %v479 = vsub.s32 0, %v438
        %v480 = vsel %vm478, %v479, %v438
        %v481 = vshrl.u32 %v480, 3
        %v482 = vand.u32 %v480, 7
        %v483 = vsub.s32 0, %v482
        %v484 = vsel %vm478, %v483, %v482
        %vm485 = vcmp.lt.s32.totalorder %v439, 0
        %v486 = vsub.s32 0, %v439
        %v487 = vsel %vm485, %v486, %v439
        %v488 = vshrl.u32 %v487, 3
        %v489 = vand.u32 %v487, 7
        %v490 = vsub.s32 0, %v489
        %v491 = vsel %vm485, %v490, %v489
        %vm492 = vcmp.lt.s32.totalorder %v440, 0
        %v493 = vsub.s32 0, %v440
        %v494 = vsel %vm492, %v493, %v440
        %v495 = vshrl.u32 %v494, 3
        %v496 = vand.u32 %v494, 7
        %v497 = vsub.s32 0, %v496
        %v498 = vsel %vm492, %v497, %v496
        %vm499 = vcmp.lt.s32.totalorder %v441, 0
        %v500 = vsub.s32 0, %v441
        %v501 = vsel %vm499, %v500, %v441
        %v502 = vshrl.u32 %v501, 3
        %v503 = vand.u32 %v501, 7
        %v504 = vsub.s32 0, %v503
        %v505 = vsel %vm499, %v504, %v503
        %vm506 = vcmp.lt.s32.totalorder %v442, 0
        %v507 = vsub.s32 0, %v442
        %v508 = vsel %vm506, %v507, %v442
        %v509 = vshrl.u32 %v508, 3
        %v510 = vand.u32 %v508, 7
        %v511 = vsub.s32 0, %v510
        %v512 = vsel %vm506, %v511, %v510
        %vm513 = vcmp.lt.s32.totalorder %v443, 0
        %v514 = vsub.s32 0, %v443
        %v515 = vsel %vm513, %v514, %v443
        %v516 = vshrl.u32 %v515, 3
        %v517 = vand.u32 %v515, 7
        %v518 = vsub.s32 0, %v517
        %v519 = vsel %vm513, %v518, %v517
        %vm520 = vcmp.lt.s32.totalorder %v444, 0
        %v521 = vsub.s32 0, %v444
        %v522 = vsel %vm520, %v521, %v444
        %v523 = vshrl.u32 %v522, 3
        %v524 = vand.u32 %v522, 7
        %v525 = vsub.s32 0, %v524
        %v526 = vsel %vm520, %v525, %v524
        %vm527 = vcmp.lt.s32.totalorder %v445, 0
        %v528 = vsub.s32 0, %v445
        %v529 = vsel %vm527, %v528, %v445
        %v530 = vshrl.u32 %v529, 3
        %v531 = vand.u32 %v529, 7
        %v532 = vsub.s32 0, %v531
        %v533 = vsel %vm527, %v532, %v531
        %vm534 = vcmp.lt.s32.totalorder %v446, 0
        %v535 = vsub.s32 0, %v446
        %v536 = vsel %vm534, %v535, %v446
        %v537 = vshrl.u32 %v536, 3
        %v538 = vand.u32 %v536, 7
        %v539 = vsub.s32 0, %v538
        %v540 = vsel %vm534, %v539, %v538
        %vm541 = vcmp.lt.s32.totalorder %v447, 0
        %v542 = vsub.s32 0, %v447
        %v543 = vsel %vm541, %v542, %v447
        %v544 = vshrl.u32 %v543, 3
        %v545 = vand.u32 %v543, 7
        %v546 = vsub.s32 0, %v545
        %v547 = vsel %vm541, %v546, %v545
        %vm548 = vcmp.lt.s32.totalorder %v448, 0
        %v549 = vsub.s32 0, %v448
        %v550 = vsel %vm548, %v549, %v448
        %v551 = vshrl.u32 %v550, 3
        %v552 = vand.u32 %v550, 7
        %v553 = vsub.s32 0, %v552
        %v554 = vsel %vm548, %v553, %v552
        %vm555 = vcmp.lt.s32.totalorder %v449, 0
        %v556 = vsub.s32 0, %v449
        %v557 = vsel %vm555, %v556, %v449
        %v558 = vshrl.u32 %v557, 3
        %v559 = vand.u32 %v557, 7
        %v560 = vsub.s32 0, %v559
        %v561 = vsel %vm555, %v560, %v559
        %vm562 = vcmp.ne.s32.totalorder %v456, 0
        %vm563 = vcmp.ne.s32.totalorder %v463, 0
        %vm564 = vcmp.ne.s32.totalorder %v470, 0
        %vm565 = vcmp.ne.s32.totalorder %v477, 0
        %vm566 = vcmp.ne.s32.totalorder %v484, 0
        %vm567 = vcmp.ne.s32.totalorder %v491, 0
        %vm568 = vcmp.ne.s32.totalorder %v498, 0
        %vm569 = vcmp.ne.s32.totalorder %v505, 0
        %vm570 = vcmp.ne.s32.totalorder %v512, 0
        %vm571 = vcmp.ne.s32.totalorder %v519, 0
        %vm572 = vcmp.ne.s32.totalorder %v526, 0
        %vm573 = vcmp.ne.s32.totalorder %v533, 0
        %vm574 = vcmp.ne.s32.totalorder %v540, 0
        %vm575 = vcmp.ne.s32.totalorder %v547, 0
        %vm576 = vcmp.ne.s32.totalorder %v554, 0
        %vm577 = vcmp.ne.s32.totalorder %v561, 0
        %vm578 = vcmp.lt.s32.totalorder %v456, 0
        %vm579 = vcmp.lt.s32.totalorder %v463, 0
        %vm580 = vcmp.lt.s32.totalorder %v470, 0
        %vm581 = vcmp.lt.s32.totalorder %v477, 0
        %vm582 = vcmp.lt.s32.totalorder %v484, 0
        %vm583 = vcmp.lt.s32.totalorder %v491, 0
        %vm584 = vcmp.lt.s32.totalorder %v498, 0
        %vm585 = vcmp.lt.s32.totalorder %v505, 0
        %vm586 = vcmp.lt.s32.totalorder %v512, 0
        %vm587 = vcmp.lt.s32.totalorder %v519, 0
        %vm588 = vcmp.lt.s32.totalorder %v526, 0
        %vm589 = vcmp.lt.s32.totalorder %v533, 0
        %vm590 = vcmp.lt.s32.totalorder %v540, 0
        %vm591 = vcmp.lt.s32.totalorder %v547, 0
        %vm592 = vcmp.lt.s32.totalorder %v554, 0
        %vm593 = vcmp.lt.s32.totalorder %v561, 0
        %vm594 = vmand %vm578, %vm562
        %vm595 = vmand %vm579, %vm563
        %vm596 = vmand %vm580, %vm564
        %vm597 = vmand %vm581, %vm565
        %vm598 = vmand %vm582, %vm566
        %vm599 = vmand %vm583, %vm567
        %vm600 = vmand %vm584, %vm568
        %vm601 = vmand %vm585, %vm569
        %vm602 = vmand %vm586, %vm570
        %vm603 = vmand %vm587, %vm571
        %vm604 = vmand %vm588, %vm572
        %vm605 = vmand %vm589, %vm573
        %vm606 = vmand %vm590, %vm574
        %vm607 = vmand %vm591, %vm575
        %vm608 = vmand %vm592, %vm576
        %vm609 = vmand %vm593, %vm577
        %v610 = vadd.s32 %v456, 8
        %v611 = vadd.s32 %v463, 8
        %v612 = vadd.s32 %v470, 8
        %v613 = vadd.s32 %v477, 8
        %v614 = vadd.s32 %v484, 8
        %v615 = vadd.s32 %v491, 8
        %v616 = vadd.s32 %v498, 8
        %v617 = vadd.s32 %v505, 8
        %v618 = vadd.s32 %v512, 8
        %v619 = vadd.s32 %v519, 8
        %v620 = vadd.s32 %v526, 8
        %v621 = vadd.s32 %v533, 8
        %v622 = vadd.s32 %v540, 8
        %v623 = vadd.s32 %v547, 8
        %v624 = vadd.s32 %v554, 8
        %v625 = vadd.s32 %v561, 8
        %v626 = vsel %vm594, %v610, %v456
        %v627 = vsel %vm595, %v611, %v463
        %v628 = vsel %vm596, %v612, %v470
        %v629 = vsel %vm597, %v613, %v477
        %v630 = vsel %vm598, %v614, %v484
        %v631 = vsel %vm599, %v615, %v491
        %v632 = vsel %vm600, %v616, %v498
        %v633 = vsel %vm601, %v617, %v505
        %v634 = vsel %vm602, %v618, %v512
        %v635 = vsel %vm603, %v619, %v519
        %v636 = vsel %vm604, %v620, %v526
        %v637 = vsel %vm605, %v621, %v533
        %v638 = vsel %vm606, %v622, %v540
        %v639 = vsel %vm607, %v623, %v547
        %v640 = vsel %vm608, %v624, %v554
        %v641 = vsel %vm609, %v625, %v561
        %v642 = vld [vmem:[%s378] sm:$0xff]
        %v643 = vld [vmem:[%s378 + $0x8] sm:$0xff]
        %v644 = vld [vmem:[%s378 + $0x10] sm:$0xff]
        %v645 = vld [vmem:[%s378 + $0x18] sm:$0xff]
        %v646 = vld [vmem:[%s378 + $0x20] sm:$0xff]
        %v647 = vld [vmem:[%s378 + $0x28] sm:$0xff]
        %v648 = vld [vmem:[%s378 + $0x30] sm:$0xff]
        %v649 = vld [vmem:[%s378 + $0x38] sm:$0xff]
        %v650 = vld [vmem:[%s378 + $0x40] sm:$0xff]
        %v651 = vld [vmem:[%s378 + $0x48] sm:$0xff]
        %v652 = vld [vmem:[%s378 + $0x50] sm:$0xff]
        %v653 = vld [vmem:[%s378 + $0x58] sm:$0xff]
        %v654 = vld [vmem:[%s378 + $0x60] sm:$0xff]
        %v655 = vld [vmem:[%s378 + $0x68] sm:$0xff]
        %v656 = vld [vmem:[%s378 + $0x70] sm:$0xff]
        %v657 = vld [vmem:[%s378 + $0x78] sm:$0xff]
        %v658 = vld [vmem:[%s378 + $0x80] sm:$0xff]
        %v659 = vld [vmem:[%s378 + $0x88] sm:$0xff]
        %v660 = vld [vmem:[%s378 + $0x90] sm:$0xff]
        %v661 = vld [vmem:[%s378 + $0x98] sm:$0xff]
        %v662 = vld [vmem:[%s378 + $0xa0] sm:$0xff]
        %v663 = vld [vmem:[%s378 + $0xa8] sm:$0xff]
        %v664 = vld [vmem:[%s378 + $0xb0] sm:$0xff]
        %v665 = vld [vmem:[%s378 + $0xb8] sm:$0xff]
        %v666 = vld [vmem:[%s378 + $0xc0] sm:$0xff]
        %v667 = vld [vmem:[%s378 + $0xc8] sm:$0xff]
        %v668 = vld [vmem:[%s378 + $0xd0] sm:$0xff]
        %v669 = vld [vmem:[%s378 + $0xd8] sm:$0xff]
        %v670 = vld [vmem:[%s378 + $0xe0] sm:$0xff]
        %v671 = vld [vmem:[%s378 + $0xe8] sm:$0xff]
        %v672 = vld [vmem:[%s378 + $0xf0] sm:$0xff]
        %v673 = vld [vmem:[%s378 + $0xf8] sm:$0xff]
        %v674 = vpack.c.bf16 %v644, %v642
        %v675 = vpack.c.bf16 %v645, %v643
        %v676 = vpack.c.bf16 %v648, %v646
        %v677 = vpack.c.bf16 %v649, %v647
        %v678 = vpack.c.bf16 %v652, %v650
        %v679 = vpack.c.bf16 %v653, %v651
        %v680 = vpack.c.bf16 %v656, %v654
        %v681 = vpack.c.bf16 %v657, %v655
        %v682 = vpack.c.bf16 %v660, %v658
        %v683 = vpack.c.bf16 %v661, %v659
        %v684 = vpack.c.bf16 %v664, %v662
        %v685 = vpack.c.bf16 %v665, %v663
        %v686 = vpack.c.bf16 %v668, %v666
        %v687 = vpack.c.bf16 %v669, %v667
        %v688 = vpack.c.bf16 %v672, %v670
        %v689 = vpack.c.bf16 %v673, %v671
        %s690 = scalar_lea.vmem [#allocation5], 256
        %v691 = vld [vmem:[%s690] sm:$0xff]
        %v692 = vld [vmem:[%s690 + $0x8] sm:$0xff]
        %v693 = vld [vmem:[%s690 + $0x10] sm:$0xff]
        %v694 = vld [vmem:[%s690 + $0x18] sm:$0xff]
        %v695 = vld [vmem:[%s690 + $0x20] sm:$0xff]
        %v696 = vld [vmem:[%s690 + $0x28] sm:$0xff]
        %v697 = vld [vmem:[%s690 + $0x30] sm:$0xff]
        %v698 = vld [vmem:[%s690 + $0x38] sm:$0xff]
        %v699 = vld [vmem:[%s690 + $0x40] sm:$0xff]
        %v700 = vld [vmem:[%s690 + $0x48] sm:$0xff]
        %v701 = vld [vmem:[%s690 + $0x50] sm:$0xff]
        %v702 = vld [vmem:[%s690 + $0x58] sm:$0xff]
        %v703 = vld [vmem:[%s690 + $0x60] sm:$0xff]
        %v704 = vld [vmem:[%s690 + $0x68] sm:$0xff]
        %v705 = vld [vmem:[%s690 + $0x70] sm:$0xff]
        %v706 = vld [vmem:[%s690 + $0x78] sm:$0xff]
        %v707 = vld [vmem:[%s690 + $0x80] sm:$0xff]
        %v708 = vld [vmem:[%s690 + $0x88] sm:$0xff]
        %v709 = vld [vmem:[%s690 + $0x90] sm:$0xff]
        %v710 = vld [vmem:[%s690 + $0x98] sm:$0xff]
        %v711 = vld [vmem:[%s690 + $0xa0] sm:$0xff]
        %v712 = vld [vmem:[%s690 + $0xa8] sm:$0xff]
        %v713 = vld [vmem:[%s690 + $0xb0] sm:$0xff]
        %v714 = vld [vmem:[%s690 + $0xb8] sm:$0xff]
        %v715 = vld [vmem:[%s690 + $0xc0] sm:$0xff]
        %v716 = vld [vmem:[%s690 + $0xc8] sm:$0xff]
        %v717 = vld [vmem:[%s690 + $0xd0] sm:$0xff]
        %v718 = vld [vmem:[%s690 + $0xd8] sm:$0xff]
        %v719 = vld [vmem:[%s690 + $0xe0] sm:$0xff]
        %v720 = vld [vmem:[%s690 + $0xe8] sm:$0xff]
        %v721 = vld [vmem:[%s690 + $0xf0] sm:$0xff]
        %v722 = vld [vmem:[%s690 + $0xf8] sm:$0xff]
        %v723 = vadd.s32 %v626, 4294967295
        %v724 = vadd.s32 %v627, 4294967295
        %v725 = vadd.s32 %v628, 4294967295
        %v726 = vadd.s32 %v629, 4294967295
        %v727 = vadd.s32 %v630, 4294967295
        %v728 = vadd.s32 %v631, 4294967295
        %v729 = vadd.s32 %v632, 4294967295
        %v730 = vadd.s32 %v633, 4294967295
        %v731 = vadd.s32 %v634, 4294967295
        %v732 = vadd.s32 %v635, 4294967295
        %v733 = vadd.s32 %v636, 4294967295
        %v734 = vadd.s32 %v637, 4294967295
        %v735 = vadd.s32 %v638, 4294967295
        %v736 = vadd.s32 %v639, 4294967295
        %v737 = vadd.s32 %v640, 4294967295
        %v738 = vadd.s32 %v641, 4294967295
        %vm739 = vcmp.ge.s32.totalorder %v723, 0
        %vm740 = vcmp.ge.s32.totalorder %v724, 0
        %vm741 = vcmp.ge.s32.totalorder %v725, 0
        %vm742 = vcmp.ge.s32.totalorder %v726, 0
        %vm743 = vcmp.ge.s32.totalorder %v727, 0
        %vm744 = vcmp.ge.s32.totalorder %v728, 0
        %vm745 = vcmp.ge.s32.totalorder %v729, 0
        %vm746 = vcmp.ge.s32.totalorder %v730, 0
        %vm747 = vcmp.ge.s32.totalorder %v731, 0
        %vm748 = vcmp.ge.s32.totalorder %v732, 0
        %vm749 = vcmp.ge.s32.totalorder %v733, 0
        %vm750 = vcmp.ge.s32.totalorder %v734, 0
        %vm751 = vcmp.ge.s32.totalorder %v735, 0
        %vm752 = vcmp.ge.s32.totalorder %v736, 0
        %vm753 = vcmp.ge.s32.totalorder %v737, 0
        %vm754 = vcmp.ge.s32.totalorder %v738, 0
        %vm755 = vcmp.lt.s32.totalorder %v723, 8
        %vm756 = vcmp.lt.s32.totalorder %v724, 8
        %vm757 = vcmp.lt.s32.totalorder %v725, 8
        %vm758 = vcmp.lt.s32.totalorder %v726, 8
        %vm759 = vcmp.lt.s32.totalorder %v727, 8
        %vm760 = vcmp.lt.s32.totalorder %v728, 8
        %vm761 = vcmp.lt.s32.totalorder %v729, 8
        %vm762 = vcmp.lt.s32.totalorder %v730, 8
        %vm763 = vcmp.lt.s32.totalorder %v731, 8
        %vm764 = vcmp.lt.s32.totalorder %v732, 8
        %vm765 = vcmp.lt.s32.totalorder %v733, 8
        %vm766 = vcmp.lt.s32.totalorder %v734, 8
        %vm767 = vcmp.lt.s32.totalorder %v735, 8
        %vm768 = vcmp.lt.s32.totalorder %v736, 8
        %vm769 = vcmp.lt.s32.totalorder %v737, 8
        %vm770 = vcmp.lt.s32.totalorder %v738, 8
        %vm771 = vmand %vm739, %vm755
        %vm772 = vmand %vm740, %vm756
        %vm773 = vmand %vm741, %vm757
        %vm774 = vmand %vm742, %vm758
        %vm775 = vmand %vm743, %vm759
        %vm776 = vmand %vm744, %vm760
        %vm777 = vmand %vm745, %vm761
        %vm778 = vmand %vm746, %vm762
        %vm779 = vmand %vm747, %vm763
        %vm780 = vmand %vm748, %vm764
        %vm781 = vmand %vm749, %vm765
        %vm782 = vmand %vm750, %vm766
        %vm783 = vmand %vm751, %vm767
        %vm784 = vmand %vm752, %vm768
        %vm785 = vmand %vm753, %vm769
        %vm786 = vmand %vm754, %vm770
        %v787 = vrot.slane %v642, 7
        %v788 = vrot.slane %v643, 7
        %v789 = vrot.slane %v644, 7
        %v790 = vrot.slane %v645, 7
        %v791 = vrot.slane %v646, 7
        %v792 = vrot.slane %v647, 7
        %v793 = vrot.slane %v648, 7
        %v794 = vrot.slane %v649, 7
        %v795 = vrot.slane %v650, 7
        %v796 = vrot.slane %v651, 7
        %v797 = vrot.slane %v652, 7
        %v798 = vrot.slane %v653, 7
        %v799 = vrot.slane %v654, 7
        %v800 = vrot.slane %v655, 7
        %v801 = vrot.slane %v656, 7
        %v802 = vrot.slane %v657, 7
        %v803 = vrot.slane %v658, 7
        %v804 = vrot.slane %v659, 7
        %v805 = vrot.slane %v660, 7
        %v806 = vrot.slane %v661, 7
        %v807 = vrot.slane %v662, 7
        %v808 = vrot.slane %v663, 7
        %v809 = vrot.slane %v664, 7
        %v810 = vrot.slane %v665, 7
        %v811 = vrot.slane %v666, 7
        %v812 = vrot.slane %v667, 7
        %v813 = vrot.slane %v668, 7
        %v814 = vrot.slane %v669, 7
        %v815 = vrot.slane %v670, 7
        %v816 = vrot.slane %v671, 7
        %v817 = vrot.slane %v672, 7
        %v818 = vrot.slane %v673, 7
        %vm819 = vcmp.lt.s32.totalorder %v434, 1
        %v820 = vsel %vm819, %v815, %v817
        %v821 = vsel %vm819, %v816, %v818
        %v822 = vsel %vm819, %v813, %v815
        %v823 = vsel %vm819, %v814, %v816
        %v824 = vsel %vm819, %v811, %v813
        %v825 = vsel %vm819, %v812, %v814
        %v826 = vsel %vm819, %v809, %v811
        %v827 = vsel %vm819, %v810, %v812
        %v828 = vsel %vm819, %v807, %v809
        %v829 = vsel %vm819, %v808, %v810
        %v830 = vsel %vm819, %v805, %v807
        %v831 = vsel %vm819, %v806, %v808
        %v832 = vsel %vm819, %v803, %v805
        %v833 = vsel %vm819, %v804, %v806
        %v834 = vsel %vm819, %v801, %v803
        %v835 = vsel %vm819, %v802, %v804
        %v836 = vsel %vm819, %v799, %v801
        %v837 = vsel %vm819, %v800, %v802
        %v838 = vsel %vm819, %v797, %v799
        %v839 = vsel %vm819, %v798, %v800
        %v840 = vsel %vm819, %v795, %v797
        %v841 = vsel %vm819, %v796, %v798
        %v842 = vsel %vm819, %v793, %v795
        %v843 = vsel %vm819, %v794, %v796
        %v844 = vsel %vm819, %v791, %v793
        %v845 = vsel %vm819, %v792, %v794
        %v846 = vsel %vm819, %v789, %v791
        %v847 = vsel %vm819, %v790, %v792
        %v848 = vsel %vm819, %v787, %v789
        %v849 = vsel %vm819, %v788, %v790
        %v850 = vsel %vm819, %v817, %v787
        %v851 = vsel %vm819, %v818, %v788
        %v852 = vsel %vm771, 1, 0
        %v853 = vsel %vm772, 1, 0
        %v854 = vsel %vm773, 1, 0
        %v855 = vsel %vm774, 1, 0
        %v856 = vsel %vm775, 1, 0
        %v857 = vsel %vm776, 1, 0
        %v858 = vsel %vm777, 1, 0
        %v859 = vsel %vm778, 1, 0
        %v860 = vsel %vm779, 1, 0
        %v861 = vsel %vm780, 1, 0
        %v862 = vsel %vm781, 1, 0
        %v863 = vsel %vm782, 1, 0
        %v864 = vsel %vm783, 1, 0
        %v865 = vsel %vm784, 1, 0
        %v866 = vsel %vm785, 1, 0
        %v867 = vsel %vm786, 1, 0
        %vm868 = vcmp.eq.s32.totalorder %v852, 1
        %vm869 = vcmp.eq.s32.totalorder %v853, 1
        %vm870 = vcmp.eq.s32.totalorder %v854, 1
        %vm871 = vcmp.eq.s32.totalorder %v855, 1
        %vm872 = vcmp.eq.s32.totalorder %v856, 1
        %vm873 = vcmp.eq.s32.totalorder %v857, 1
        %vm874 = vcmp.eq.s32.totalorder %v858, 1
        %vm875 = vcmp.eq.s32.totalorder %v859, 1
        %vm876 = vcmp.eq.s32.totalorder %v860, 1
        %vm877 = vcmp.eq.s32.totalorder %v861, 1
        %vm878 = vcmp.eq.s32.totalorder %v862, 1
        %vm879 = vcmp.eq.s32.totalorder %v863, 1
        %vm880 = vcmp.eq.s32.totalorder %v864, 1
        %vm881 = vcmp.eq.s32.totalorder %v865, 1
        %vm882 = vcmp.eq.s32.totalorder %v866, 1
        %vm883 = vcmp.eq.s32.totalorder %v867, 1
        %v884 = vsel %vm868, %v850, 0.0
        %v885 = vsel %vm868, %v851, 0.0
        %v886 = vsel %vm869, %v848, 0.0
        %v887 = vsel %vm869, %v849, 0.0
        %v888 = vsel %vm870, %v846, 0.0
        %v889 = vsel %vm870, %v847, 0.0
        %v890 = vsel %vm871, %v844, 0.0
        %v891 = vsel %vm871, %v845, 0.0
        %v892 = vsel %vm872, %v842, 0.0
        %v893 = vsel %vm872, %v843, 0.0
        %v894 = vsel %vm873, %v840, 0.0
        %v895 = vsel %vm873, %v841, 0.0
        %v896 = vsel %vm874, %v838, 0.0
        %v897 = vsel %vm874, %v839, 0.0
        %v898 = vsel %vm875, %v836, 0.0
        %v899 = vsel %vm875, %v837, 0.0
        %v900 = vsel %vm876, %v834, 0.0
        %v901 = vsel %vm876, %v835, 0.0
        %v902 = vsel %vm877, %v832, 0.0
        %v903 = vsel %vm877, %v833, 0.0
        %v904 = vsel %vm878, %v830, 0.0
        %v905 = vsel %vm878, %v831, 0.0
        %v906 = vsel %vm879, %v828, 0.0
        %v907 = vsel %vm879, %v829, 0.0
        %v908 = vsel %vm880, %v826, 0.0
        %v909 = vsel %vm880, %v827, 0.0
        %v910 = vsel %vm881, %v824, 0.0
        %v911 = vsel %vm881, %v825, 0.0
        %v912 = vsel %vm882, %v822, 0.0
        %v913 = vsel %vm882, %v823, 0.0
        %v914 = vsel %vm883, %v820, 0.0
        %v915 = vsel %vm883, %v821, 0.0
        %v916 = vpack.c.bf16 %v886, %v884
        %v917 = vpack.c.bf16 %v887, %v885
        %v918 = vpack.c.bf16 %v890, %v888
        %v919 = vpack.c.bf16 %v891, %v889
        %v920 = vpack.c.bf16 %v894, %v892
        %v921 = vpack.c.bf16 %v895, %v893
        %v922 = vpack.c.bf16 %v898, %v896
        %v923 = vpack.c.bf16 %v899, %v897
        %v924 = vpack.c.bf16 %v902, %v900
        %v925 = vpack.c.bf16 %v903, %v901
        %v926 = vpack.c.bf16 %v906, %v904
        %v927 = vpack.c.bf16 %v907, %v905
        %v928 = vpack.c.bf16 %v910, %v908
        %v929 = vpack.c.bf16 %v911, %v909
        %v930 = vpack.c.bf16 %v914, %v912
        %v931 = vpack.c.bf16 %v915, %v913
        %v932 = vld [vmem:[#allocation5] sm:$0xff]
        %v933 = vld [vmem:[#allocation5 + $0x8] sm:$0xff]
        %v934 = vld [vmem:[#allocation5 + $0x10] sm:$0xff]
        %v935 = vld [vmem:[#allocation5 + $0x18] sm:$0xff]
        %v936 = vld [vmem:[#allocation5 + $0x20] sm:$0xff]
        %v937 = vld [vmem:[#allocation5 + $0x28] sm:$0xff]
        %v938 = vld [vmem:[#allocation5 + $0x30] sm:$0xff]
        %v939 = vld [vmem:[#allocation5 + $0x38] sm:$0xff]
        %v940 = vld [vmem:[#allocation5 + $0x40] sm:$0xff]
        %v941 = vld [vmem:[#allocation5 + $0x48] sm:$0xff]
        %v942 = vld [vmem:[#allocation5 + $0x50] sm:$0xff]
        %v943 = vld [vmem:[#allocation5 + $0x58] sm:$0xff]
        %v944 = vld [vmem:[#allocation5 + $0x60] sm:$0xff]
        %v945 = vld [vmem:[#allocation5 + $0x68] sm:$0xff]
        %v946 = vld [vmem:[#allocation5 + $0x70] sm:$0xff]
        %v947 = vld [vmem:[#allocation5 + $0x78] sm:$0xff]
        %v948 = vld [vmem:[#allocation5 + $0x80] sm:$0xff]
        %v949 = vld [vmem:[#allocation5 + $0x88] sm:$0xff]
        %v950 = vld [vmem:[#allocation5 + $0x90] sm:$0xff]
        %v951 = vld [vmem:[#allocation5 + $0x98] sm:$0xff]
        %v952 = vld [vmem:[#allocation5 + $0xa0] sm:$0xff]
        %v953 = vld [vmem:[#allocation5 + $0xa8] sm:$0xff]
        %v954 = vld [vmem:[#allocation5 + $0xb0] sm:$0xff]
        %v955 = vld [vmem:[#allocation5 + $0xb8] sm:$0xff]
        %v956 = vld [vmem:[#allocation5 + $0xc0] sm:$0xff]
        %v957 = vld [vmem:[#allocation5 + $0xc8] sm:$0xff]
        %v958 = vld [vmem:[#allocation5 + $0xd0] sm:$0xff]
        %v959 = vld [vmem:[#allocation5 + $0xd8] sm:$0xff]
        %v960 = vld [vmem:[#allocation5 + $0xe0] sm:$0xff]
        %v961 = vld [vmem:[#allocation5 + $0xe8] sm:$0xff]
        %v962 = vld [vmem:[#allocation5 + $0xf0] sm:$0xff]
        %v963 = vld [vmem:[#allocation5 + $0xf8] sm:$0xff]
        %v996 = vunpack.c.l.b16 %v932
        %v997 = vunpack.c.h.b16 %v932
        %v998 = vunpack.c.l.b16 %v933
        %v999 = vunpack.c.h.b16 %v933
        %v1000 = vunpack.c.l.b16 %v934
        %v1001 = vunpack.c.h.b16 %v934
        %v1002 = vunpack.c.l.b16 %v935
        %v1003 = vunpack.c.h.b16 %v935
        %v1004 = vunpack.c.l.b16 %v936
        %v1005 = vunpack.c.h.b16 %v936
        %v1006 = vunpack.c.l.b16 %v937
        %v1007 = vunpack.c.h.b16 %v937
        %v1008 = vunpack.c.l.b16 %v938
        %v1009 = vunpack.c.h.b16 %v938
        %v1010 = vunpack.c.l.b16 %v939
        %v1011 = vunpack.c.h.b16 %v939
        %v1012 = vunpack.c.l.b16 %v940
        %v1013 = vunpack.c.h.b16 %v940
        %v1014 = vunpack.c.l.b16 %v941
        %v1015 = vunpack.c.h.b16 %v941
        %v1016 = vunpack.c.l.b16 %v942
        %v1017 = vunpack.c.h.b16 %v942
        %v1018 = vunpack.c.l.b16 %v943
        %v1019 = vunpack.c.h.b16 %v943
        %v1020 = vunpack.c.l.b16 %v944
        %v1021 = vunpack.c.h.b16 %v944
        %v1022 = vunpack.c.l.b16 %v945
        %v1023 = vunpack.c.h.b16 %v945
        %v1024 = vunpack.c.l.b16 %v946
        %v1025 = vunpack.c.h.b16 %v946
        %v1026 = vunpack.c.l.b16 %v947
        %v1027 = vunpack.c.h.b16 %v947
        %v1028 = vunpack.c.l.b16 %v948
        %v1029 = vunpack.c.h.b16 %v948
        %v1030 = vunpack.c.l.b16 %v949
        %v1031 = vunpack.c.h.b16 %v949
        %v1032 = vunpack.c.l.b16 %v950
        %v1033 = vunpack.c.h.b16 %v950
        %v1034 = vunpack.c.l.b16 %v951
        %v1035 = vunpack.c.h.b16 %v951
        %v1036 = vunpack.c.l.b16 %v952
        %v1037 = vunpack.c.h.b16 %v952
        %v1038 = vunpack.c.l.b16 %v953
        %v1039 = vunpack.c.h.b16 %v953
        %v1040 = vunpack.c.l.b16 %v954
        %v1041 = vunpack.c.h.b16 %v954
        %v1042 = vunpack.c.l.b16 %v955
        %v1043 = vunpack.c.h.b16 %v955
        %v1044 = vunpack.c.l.b16 %v956
        %v1045 = vunpack.c.h.b16 %v956
        %v1046 = vunpack.c.l.b16 %v957
        %v1047 = vunpack.c.h.b16 %v957
        %v1048 = vunpack.c.l.b16 %v958
        %v1049 = vunpack.c.h.b16 %v958
        %v1050 = vunpack.c.l.b16 %v959
        %v1051 = vunpack.c.h.b16 %v959
        %v1052 = vunpack.c.l.b16 %v960
        %v1053 = vunpack.c.h.b16 %v960
        %v1054 = vunpack.c.l.b16 %v961
        %v1055 = vunpack.c.h.b16 %v961
        %v1056 = vunpack.c.l.b16 %v962
        %v1057 = vunpack.c.h.b16 %v962
        %v1058 = vunpack.c.l.b16 %v963
        %v1059 = vunpack.c.h.b16 %v963
        %v1060 = vpack.c.b16 %v998, %v996
        %v1061 = vpack.c.b16 %v999, %v997
        %v1062 = vpack.c.b16 %v1002, %v1000
        %v1063 = vpack.c.b16 %v1003, %v1001
        %v1064 = vpack.c.b16 %v1006, %v1004
        %v1065 = vpack.c.b16 %v1007, %v1005
        %v1066 = vpack.c.b16 %v1010, %v1008
        %v1067 = vpack.c.b16 %v1011, %v1009
        %v1068 = vpack.c.b16 %v1014, %v1012
        %v1069 = vpack.c.b16 %v1015, %v1013
        %v1070 = vpack.c.b16 %v1018, %v1016
        %v1071 = vpack.c.b16 %v1019, %v1017
        %v1072 = vpack.c.b16 %v1022, %v1020
        %v1073 = vpack.c.b16 %v1023, %v1021
        %v1074 = vpack.c.b16 %v1026, %v1024
        %v1075 = vpack.c.b16 %v1027, %v1025
        %v1076 = vpack.c.b16 %v1030, %v1028
        %v1077 = vpack.c.b16 %v1031, %v1029
        %v1078 = vpack.c.b16 %v1034, %v1032
        %v1079 = vpack.c.b16 %v1035, %v1033
        %v1080 = vpack.c.b16 %v1038, %v1036
        %v1081 = vpack.c.b16 %v1039, %v1037
        %v1082 = vpack.c.b16 %v1042, %v1040
        %v1083 = vpack.c.b16 %v1043, %v1041
        %v1084 = vpack.c.b16 %v1046, %v1044
        %v1085 = vpack.c.b16 %v1047, %v1045
        %v1086 = vpack.c.b16 %v1050, %v1048
        %v1087 = vpack.c.b16 %v1051, %v1049
        %v1088 = vpack.c.b16 %v1054, %v1052
        %v1089 = vpack.c.b16 %v1055, %v1053
        %v1090 = vpack.c.b16 %v1058, %v1056
        %v1091 = vpack.c.b16 %v1059, %v1057
        %1124 = vmatpush.bf16.msra.mxu0 %v1074
        %1125 = vmatpush.bf16.msra.mxu0 %v1072
        %1126 = vmatpush.bf16.msra.mxu0 %v1070
        %1127 = vmatpush.bf16.msra.mxu0 %v1068
        %1128 = vmatpush.bf16.msra.mxu0 %v1066
        %1129 = vmatpush.bf16.msra.mxu0 %v1064
        %1130 = vmatpush.bf16.msra.mxu0 %v1062
        %1131 = vmatpush.bf16.msra.mxu0 %v1060
        %1132 = vmatmul.bf16.gmra.mxu0 %v916
        %v1133 = vpop.f32.mrf.mxu0
        %v1134 = vadd.f32 0.0, %v1133
        %v1135 = vpop.f32.mrf.mxu0
        %v1136 = vadd.f32 0.0, %v1135
        %1137 = vmatmul.bf16.gmra.mxu0 %v918
        %v1138 = vpop.f32.mrf.mxu0
        %v1139 = vadd.f32 0.0, %v1138
        %v1140 = vpop.f32.mrf.mxu0
        %v1141 = vadd.f32 0.0, %v1140
        %1142 = vmatmul.bf16.gmra.mxu0 %v920
        %v1143 = vpop.f32.mrf.mxu0
        %v1144 = vadd.f32 0.0, %v1143
        %v1145 = vpop.f32.mrf.mxu0
        %v1146 = vadd.f32 0.0, %v1145
        %1147 = vmatmul.bf16.gmra.mxu0 %v922
        %v1148 = vpop.f32.mrf.mxu0
        %v1149 = vadd.f32 0.0, %v1148
        %v1150 = vpop.f32.mrf.mxu0
        %v1151 = vadd.f32 0.0, %v1150
        %1152 = vmatmul.bf16.gmra.mxu0 %v924
        %v1153 = vpop.f32.mrf.mxu0
        %v1154 = vadd.f32 0.0, %v1153
        %v1155 = vpop.f32.mrf.mxu0
        %v1156 = vadd.f32 0.0, %v1155
        %1157 = vmatmul.bf16.gmra.mxu0 %v926
        %v1158 = vpop.f32.mrf.mxu0
        %v1159 = vadd.f32 0.0, %v1158
        %v1160 = vpop.f32.mrf.mxu0
        %v1161 = vadd.f32 0.0, %v1160
        %1162 = vmatmul.bf16.gmra.mxu0 %v928
        %v1163 = vpop.f32.mrf.mxu0
        %v1164 = vadd.f32 0.0, %v1163
        %v1165 = vpop.f32.mrf.mxu0
        %v1166 = vadd.f32 0.0, %v1165
        %1167 = vmatmul.bf16.gmra.mxu0 %v930
        %v1168 = vpop.f32.mrf.mxu0
        %v1169 = vadd.f32 0.0, %v1168
        %v1170 = vpop.f32.mrf.mxu0
        %v1171 = vadd.f32 0.0, %v1170
        %1172 = vdwg.mxu0
        %1173 = vmatpush.bf16.msra.mxu0 %v1090
        %1174 = vmatpush.bf16.msra.mxu0 %v1088
        %1175 = vmatpush.bf16.msra.mxu0 %v1086
        %1176 = vmatpush.bf16.msra.mxu0 %v1084
        %1177 = vmatpush.bf16.msra.mxu0 %v1082
        %1178 = vmatpush.bf16.msra.mxu0 %v1080
        %1179 = vmatpush.bf16.msra.mxu0 %v1078
        %1180 = vmatpush.bf16.msra.mxu0 %v1076
        %1181 = vmatmul.bf16.gmra.mxu0 %v917
        %v1182 = vpop.f32.mrf.mxu0
        %v1183 = vadd.f32 %v1134, %v1182
        %v1184 = vpop.f32.mrf.mxu0
        %v1185 = vadd.f32 %v1136, %v1184
        %1186 = vmatmul.bf16.gmra.mxu0 %v919
        %v1187 = vpop.f32.mrf.mxu0
        %v1188 = vadd.f32 %v1139, %v1187
        %v1189 = vpop.f32.mrf.mxu0
        %v1190 = vadd.f32 %v1141, %v1189
        %1191 = vmatmul.bf16.gmra.mxu0 %v921
        %v1192 = vpop.f32.mrf.mxu0
        %v1193 = vadd.f32 %v1144, %v1192
        %v1194 = vpop.f32.mrf.mxu0
        %v1195 = vadd.f32 %v1146, %v1194
        %1196 = vmatmul.bf16.gmra.mxu0 %v923
        %v1197 = vpop.f32.mrf.mxu0
        %v1198 = vadd.f32 %v1149, %v1197
        %v1199 = vpop.f32.mrf.mxu0
        %v1200 = vadd.f32 %v1151, %v1199
        %1201 = vmatmul.bf16.gmra.mxu0 %v925
        %v1202 = vpop.f32.mrf.mxu0
        %v1203 = vadd.f32 %v1154, %v1202
        %v1204 = vpop.f32.mrf.mxu0
        %v1205 = vadd.f32 %v1156, %v1204
        %1206 = vmatmul.bf16.gmra.mxu0 %v927
        %v1207 = vpop.f32.mrf.mxu0
        %v1208 = vadd.f32 %v1159, %v1207
        %v1209 = vpop.f32.mrf.mxu0
        %v1210 = vadd.f32 %v1161, %v1209
        %1211 = vmatmul.bf16.gmra.mxu0 %v929
        %v1212 = vpop.f32.mrf.mxu0
        %v1213 = vadd.f32 %v1164, %v1212
        %v1214 = vpop.f32.mrf.mxu0
        %v1215 = vadd.f32 %v1166, %v1214
        %1216 = vmatmul.bf16.gmra.mxu0 %v931
        %v1217 = vpop.f32.mrf.mxu0
        %v1218 = vadd.f32 %v1169, %v1217
        %v1219 = vpop.f32.mrf.mxu0
        %v1220 = vadd.f32 %v1171, %v1219
        %1221 = vdwg.mxu0
        %1222 = vmatpush.bf16.msra.mxu0 %v1075
        %1223 = vmatpush.bf16.msra.mxu0 %v1073
        %1224 = vmatpush.bf16.msra.mxu0 %v1071
        %1225 = vmatpush.bf16.msra.mxu0 %v1069
        %1226 = vmatpush.bf16.msra.mxu0 %v1067
        %1227 = vmatpush.bf16.msra.mxu0 %v1065
        %1228 = vmatpush.bf16.msra.mxu0 %v1063
        %1229 = vmatpush.bf16.msra.mxu0 %v1061
        %1230 = vmatmul.bf16.gmra.mxu0 %v916
        %v1231 = vpop.f32.mrf.mxu0
        %v1232 = vadd.f32 0.0, %v1231
        %v1233 = vpop.f32.mrf.mxu0
        %v1234 = vadd.f32 0.0, %v1233
        %1235 = vmatmul.bf16.gmra.mxu0 %v918
        %v1236 = vpop.f32.mrf.mxu0
        %v1237 = vadd.f32 0.0, %v1236
        %v1238 = vpop.f32.mrf.mxu0
        %v1239 = vadd.f32 0.0, %v1238
        %1240 = vmatmul.bf16.gmra.mxu0 %v920
        %v1241 = vpop.f32.mrf.mxu0
        %v1242 = vadd.f32 0.0, %v1241
        %v1243 = vpop.f32.mrf.mxu0
        %v1244 = vadd.f32 0.0, %v1243
        %1245 = vmatmul.bf16.gmra.mxu0 %v922
        %v1246 = vpop.f32.mrf.mxu0
        %v1247 = vadd.f32 0.0, %v1246
        %v1248 = vpop.f32.mrf.mxu0
        %v1249 = vadd.f32 0.0, %v1248
        %1250 = vmatmul.bf16.gmra.mxu0 %v924
        %v1251 = vpop.f32.mrf.mxu0
        %v1252 = vadd.f32 0.0, %v1251
        %v1253 = vpop.f32.mrf.mxu0
        %v1254 = vadd.f32 0.0, %v1253
        %1255 = vmatmul.bf16.gmra.mxu0 %v926
        %v1256 = vpop.f32.mrf.mxu0
        %v1257 = vadd.f32 0.0, %v1256
        %v1258 = vpop.f32.mrf.mxu0
        %v1259 = vadd.f32 0.0, %v1258
        %1260 = vmatmul.bf16.gmra.mxu0 %v928
        %v1261 = vpop.f32.mrf.mxu0
        %v1262 = vadd.f32 0.0, %v1261
        %v1263 = vpop.f32.mrf.mxu0
        %v1264 = vadd.f32 0.0, %v1263
        %1265 = vmatmul.bf16.gmra.mxu0 %v930
        %v1266 = vpop.f32.mrf.mxu0
        %v1267 = vadd.f32 0.0, %v1266
        %v1268 = vpop.f32.mrf.mxu0
        %v1269 = vadd.f32 0.0, %v1268
        %1270 = vdwg.mxu0
        %1271 = vmatpush.bf16.msra.mxu0 %v1091
        %1272 = vmatpush.bf16.msra.mxu0 %v1089
        %1273 = vmatpush.bf16.msra.mxu0 %v1087
        %1274 = vmatpush.bf16.msra.mxu0 %v1085
        %1275 = vmatpush.bf16.msra.mxu0 %v1083
        %1276 = vmatpush.bf16.msra.mxu0 %v1081
        %1277 = vmatpush.bf16.msra.mxu0 %v1079
        %1278 = vmatpush.bf16.msra.mxu0 %v1077
        %1279 = vmatmul.bf16.gmra.mxu0 %v917
        %v1280 = vpop.f32.mrf.mxu0
        %v1281 = vadd.f32 %v1232, %v1280
        %v1282 = vpop.f32.mrf.mxu0
        %v1283 = vadd.f32 %v1234, %v1282
        %1284 = vmatmul.bf16.gmra.mxu0 %v919
        %v1285 = vpop.f32.mrf.mxu0
        %v1286 = vadd.f32 %v1237, %v1285
        %v1287 = vpop.f32.mrf.mxu0
        %v1288 = vadd.f32 %v1239, %v1287
        %1289 = vmatmul.bf16.gmra.mxu0 %v921
        %v1290 = vpop.f32.mrf.mxu0
        %v1291 = vadd.f32 %v1242, %v1290
        %v1292 = vpop.f32.mrf.mxu0
        %v1293 = vadd.f32 %v1244, %v1292
        %1294 = vmatmul.bf16.gmra.mxu0 %v923
        %v1295 = vpop.f32.mrf.mxu0
        %v1296 = vadd.f32 %v1247, %v1295
        %v1297 = vpop.f32.mrf.mxu0
        %v1298 = vadd.f32 %v1249, %v1297
        %1299 = vmatmul.bf16.gmra.mxu0 %v925
        %v1300 = vpop.f32.mrf.mxu0
        %v1301 = vadd.f32 %v1252, %v1300
        %v1302 = vpop.f32.mrf.mxu0
        %v1303 = vadd.f32 %v1254, %v1302
        %1304 = vmatmul.bf16.gmra.mxu0 %v927
        %v1305 = vpop.f32.mrf.mxu0
        %v1306 = vadd.f32 %v1257, %v1305
        %v1307 = vpop.f32.mrf.mxu0
        %v1308 = vadd.f32 %v1259, %v1307
        %1309 = vmatmul.bf16.gmra.mxu0 %v929
        %v1310 = vpop.f32.mrf.mxu0
        %v1311 = vadd.f32 %v1262, %v1310
        %v1312 = vpop.f32.mrf.mxu0
        %v1313 = vadd.f32 %v1264, %v1312
        %1314 = vmatmul.bf16.gmra.mxu0 %v931
        %v1315 = vpop.f32.mrf.mxu0
        %v1316 = vadd.f32 %v1267, %v1315
        %v1317 = vpop.f32.mrf.mxu0
        %v1318 = vadd.f32 %v1269, %v1317
        %1319 = vdwg.mxu0
        %v1352 = vunpack.c.l.b16 %v691
        %v1353 = vunpack.c.h.b16 %v691
        %v1354 = vunpack.c.l.b16 %v692
        %v1355 = vunpack.c.h.b16 %v692
        %v1356 = vunpack.c.l.b16 %v693
        %v1357 = vunpack.c.h.b16 %v693
        %v1358 = vunpack.c.l.b16 %v694
        %v1359 = vunpack.c.h.b16 %v694
        %v1360 = vunpack.c.l.b16 %v695
        %v1361 = vunpack.c.h.b16 %v695
        %v1362 = vunpack.c.l.b16 %v696
        %v1363 = vunpack.c.h.b16 %v696
        %v1364 = vunpack.c.l.b16 %v697
        %v1365 = vunpack.c.h.b16 %v697
        %v1366 = vunpack.c.l.b16 %v698
        %v1367 = vunpack.c.h.b16 %v698
        %v1368 = vunpack.c.l.b16 %v699
        %v1369 = vunpack.c.h.b16 %v699
        %v1370 = vunpack.c.l.b16 %v700
        %v1371 = vunpack.c.h.b16 %v700
        %v1372 = vunpack.c.l.b16 %v701
        %v1373 = vunpack.c.h.b16 %v701
        %v1374 = vunpack.c.l.b16 %v702
        %v1375 = vunpack.c.h.b16 %v702
        %v1376 = vunpack.c.l.b16 %v703
        %v1377 = vunpack.c.h.b16 %v703
        %v1378 = vunpack.c.l.b16 %v704
        %v1379 = vunpack.c.h.b16 %v704
        %v1380 = vunpack.c.l.b16 %v705
        %v1381 = vunpack.c.h.b16 %v705
        %v1382 = vunpack.c.l.b16 %v706
        %v1383 = vunpack.c.h.b16 %v706
        %v1384 = vunpack.c.l.b16 %v707
        %v1385 = vunpack.c.h.b16 %v707
        %v1386 = vunpack.c.l.b16 %v708
        %v1387 = vunpack.c.h.b16 %v708
        %v1388 = vunpack.c.l.b16 %v709
        %v1389 = vunpack.c.h.b16 %v709
        %v1390 = vunpack.c.l.b16 %v710
        %v1391 = vunpack.c.h.b16 %v710
        %v1392 = vunpack.c.l.b16 %v711
        %v1393 = vunpack.c.h.b16 %v711
        %v1394 = vunpack.c.l.b16 %v712
        %v1395 = vunpack.c.h.b16 %v712
        %v1396 = vunpack.c.l.b16 %v713
        %v1397 = vunpack.c.h.b16 %v713
        %v1398 = vunpack.c.l.b16 %v714
        %v1399 = vunpack.c.h.b16 %v714
        %v1400 = vunpack.c.l.b16 %v715
        %v1401 = vunpack.c.h.b16 %v715
        %v1402 = vunpack.c.l.b16 %v716
        %v1403 = vunpack.c.h.b16 %v716
        %v1404 = vunpack.c.l.b16 %v717
        %v1405 = vunpack.c.h.b16 %v717
        %v1406 = vunpack.c.l.b16 %v718
        %v1407 = vunpack.c.h.b16 %v718
        %v1408 = vunpack.c.l.b16 %v719
        %v1409 = vunpack.c.h.b16 %v719
        %v1410 = vunpack.c.l.b16 %v720
        %v1411 = vunpack.c.h.b16 %v720
        %v1412 = vunpack.c.l.b16 %v721
        %v1413 = vunpack.c.h.b16 %v721
        %v1414 = vunpack.c.l.b16 %v722
        %v1415 = vunpack.c.h.b16 %v722
        %v1416 = vpack.c.b16 %v1354, %v1352
        %v1417 = vpack.c.b16 %v1355, %v1353
        %v1418 = vpack.c.b16 %v1358, %v1356
        %v1419 = vpack.c.b16 %v1359, %v1357
        %v1420 = vpack.c.b16 %v1362, %v1360
        %v1421 = vpack.c.b16 %v1363, %v1361
        %v1422 = vpack.c.b16 %v1366, %v1364
        %v1423 = vpack.c.b16 %v1367, %v1365
        %v1424 = vpack.c.b16 %v1370, %v1368
        %v1425 = vpack.c.b16 %v1371, %v1369
        %v1426 = vpack.c.b16 %v1374, %v1372
        %v1427 = vpack.c.b16 %v1375, %v1373
        %v1428 = vpack.c.b16 %v1378, %v1376
        %v1429 = vpack.c.b16 %v1379, %v1377
        %v1430 = vpack.c.b16 %v1382, %v1380
        %v1431 = vpack.c.b16 %v1383, %v1381
        %v1432 = vpack.c.b16 %v1386, %v1384
        %v1433 = vpack.c.b16 %v1387, %v1385
        %v1434 = vpack.c.b16 %v1390, %v1388
        %v1435 = vpack.c.b16 %v1391, %v1389
        %v1436 = vpack.c.b16 %v1394, %v1392
        %v1437 = vpack.c.b16 %v1395, %v1393
        %v1438 = vpack.c.b16 %v1398, %v1396
        %v1439 = vpack.c.b16 %v1399, %v1397
        %v1440 = vpack.c.b16 %v1402, %v1400
        %v1441 = vpack.c.b16 %v1403, %v1401
        %v1442 = vpack.c.b16 %v1406, %v1404
        %v1443 = vpack.c.b16 %v1407, %v1405
        %v1444 = vpack.c.b16 %v1410, %v1408
        %v1445 = vpack.c.b16 %v1411, %v1409
        %v1446 = vpack.c.b16 %v1414, %v1412
        %v1447 = vpack.c.b16 %v1415, %v1413
        %1480 = vmatpush.bf16.msra.mxu0 %v1430
        %1481 = vmatpush.bf16.msra.mxu0 %v1428
        %1482 = vmatpush.bf16.msra.mxu0 %v1426
        %1483 = vmatpush.bf16.msra.mxu0 %v1424
        %1484 = vmatpush.bf16.msra.mxu0 %v1422
        %1485 = vmatpush.bf16.msra.mxu0 %v1420
        %1486 = vmatpush.bf16.msra.mxu0 %v1418
        %1487 = vmatpush.bf16.msra.mxu0 %v1416
        %1488 = vmatmul.bf16.gmra.mxu0 %v674
        %v1489 = vpop.f32.mrf.mxu0
        %v1490 = vadd.f32 %v1183, %v1489
        %v1491 = vpop.f32.mrf.mxu0
        %v1492 = vadd.f32 %v1185, %v1491
        %1493 = vmatmul.bf16.gmra.mxu0 %v676
        %v1494 = vpop.f32.mrf.mxu0
        %v1495 = vadd.f32 %v1188, %v1494
        %v1496 = vpop.f32.mrf.mxu0
        %v1497 = vadd.f32 %v1190, %v1496
        %1498 = vmatmul.bf16.gmra.mxu0 %v678
        %v1499 = vpop.f32.mrf.mxu0
        %v1500 = vadd.f32 %v1193, %v1499
        %v1501 = vpop.f32.mrf.mxu0
        %v1502 = vadd.f32 %v1195, %v1501
        %1503 = vmatmul.bf16.gmra.mxu0 %v680
        %v1504 = vpop.f32.mrf.mxu0
        %v1505 = vadd.f32 %v1198, %v1504
        %v1506 = vpop.f32.mrf.mxu0
        %v1507 = vadd.f32 %v1200, %v1506
        %1508 = vmatmul.bf16.gmra.mxu0 %v682
        %v1509 = vpop.f32.mrf.mxu0
        %v1510 = vadd.f32 %v1203, %v1509
        %v1511 = vpop.f32.mrf.mxu0
        %v1512 = vadd.f32 %v1205, %v1511
        %1513 = vmatmul.bf16.gmra.mxu0 %v684
        %v1514 = vpop.f32.mrf.mxu0
        %v1515 = vadd.f32 %v1208, %v1514
        %v1516 = vpop.f32.mrf.mxu0
        %v1517 = vadd.f32 %v1210, %v1516
        %1518 = vmatmul.bf16.gmra.mxu0 %v686
        %v1519 = vpop.f32.mrf.mxu0
        %v1520 = vadd.f32 %v1213, %v1519
        %v1521 = vpop.f32.mrf.mxu0
        %v1522 = vadd.f32 %v1215, %v1521
        %1523 = vmatmul.bf16.gmra.mxu0 %v688
        %v1524 = vpop.f32.mrf.mxu0
        %v1525 = vadd.f32 %v1218, %v1524
        %v1526 = vpop.f32.mrf.mxu0
        %v1527 = vadd.f32 %v1220, %v1526
        %1528 = vdwg.mxu0
        %1529 = vmatpush.bf16.msra.mxu0 %v1446
        %1530 = vmatpush.bf16.msra.mxu0 %v1444
        %1531 = vmatpush.bf16.msra.mxu0 %v1442
        %1532 = vmatpush.bf16.msra.mxu0 %v1440
        %1533 = vmatpush.bf16.msra.mxu0 %v1438
        %1534 = vmatpush.bf16.msra.mxu0 %v1436
        %1535 = vmatpush.bf16.msra.mxu0 %v1434
        %1536 = vmatpush.bf16.msra.mxu0 %v1432
        %1537 = vmatmul.bf16.gmra.mxu0 %v675
        %v1538 = vpop.f32.mrf.mxu0
        %v1539 = vadd.f32 %v1490, %v1538
        %v1540 = vpop.f32.mrf.mxu0
        %v1541 = vadd.f32 %v1492, %v1540
        %1542 = vmatmul.bf16.gmra.mxu0 %v677
        %v1543 = vpop.f32.mrf.mxu0
        %v1544 = vadd.f32 %v1495, %v1543
        %v1545 = vpop.f32.mrf.mxu0
        %v1546 = vadd.f32 %v1497, %v1545
        %1547 = vmatmul.bf16.gmra.mxu0 %v679
        %v1548 = vpop.f32.mrf.mxu0
        %v1549 = vadd.f32 %v1500, %v1548
        %v1550 = vpop.f32.mrf.mxu0
        %v1551 = vadd.f32 %v1502, %v1550
        %1552 = vmatmul.bf16.gmra.mxu0 %v681
        %v1553 = vpop.f32.mrf.mxu0
        %v1554 = vadd.f32 %v1505, %v1553
        %v1555 = vpop.f32.mrf.mxu0
        %v1556 = vadd.f32 %v1507, %v1555
        %1557 = vmatmul.bf16.gmra.mxu0 %v683
        %v1558 = vpop.f32.mrf.mxu0
        %v1559 = vadd.f32 %v1510, %v1558
        %v1560 = vpop.f32.mrf.mxu0
        %v1561 = vadd.f32 %v1512, %v1560
        %1562 = vmatmul.bf16.gmra.mxu0 %v685
        %v1563 = vpop.f32.mrf.mxu0
        %v1564 = vadd.f32 %v1515, %v1563
        %v1565 = vpop.f32.mrf.mxu0
        %v1566 = vadd.f32 %v1517, %v1565
        %1567 = vmatmul.bf16.gmra.mxu0 %v687
        %v1568 = vpop.f32.mrf.mxu0
        %v1569 = vadd.f32 %v1520, %v1568
        %v1570 = vpop.f32.mrf.mxu0
        %v1571 = vadd.f32 %v1522, %v1570
        %1572 = vmatmul.bf16.gmra.mxu0 %v689
        %v1573 = vpop.f32.mrf.mxu0
        %v1574 = vadd.f32 %v1525, %v1573
        %v1575 = vpop.f32.mrf.mxu0
        %v1576 = vadd.f32 %v1527, %v1575
        %1577 = vdwg.mxu0
        %1578 = vmatpush.bf16.msra.mxu0 %v1431
        %1579 = vmatpush.bf16.msra.mxu0 %v1429
        %1580 = vmatpush.bf16.msra.mxu0 %v1427
        %1581 = vmatpush.bf16.msra.mxu0 %v1425
        %1582 = vmatpush.bf16.msra.mxu0 %v1423
        %1583 = vmatpush.bf16.msra.mxu0 %v1421
        %1584 = vmatpush.bf16.msra.mxu0 %v1419
        %1585 = vmatpush.bf16.msra.mxu0 %v1417
        %1586 = vmatmul.bf16.gmra.mxu0 %v674
        %v1587 = vpop.f32.mrf.mxu0
        %v1588 = vadd.f32 %v1281, %v1587
        %v1589 = vpop.f32.mrf.mxu0
        %v1590 = vadd.f32 %v1283, %v1589
        %1591 = vmatmul.bf16.gmra.mxu0 %v676
        %v1592 = vpop.f32.mrf.mxu0
        %v1593 = vadd.f32 %v1286, %v1592
        %v1594 = vpop.f32.mrf.mxu0
        %v1595 = vadd.f32 %v1288, %v1594
        %1596 = vmatmul.bf16.gmra.mxu0 %v678
        %v1597 = vpop.f32.mrf.mxu0
        %v1598 = vadd.f32 %v1291, %v1597
        %v1599 = vpop.f32.mrf.mxu0
        %v1600 = vadd.f32 %v1293, %v1599
        %1601 = vmatmul.bf16.gmra.mxu0 %v680
        %v1602 = vpop.f32.mrf.mxu0
        %v1603 = vadd.f32 %v1296, %v1602
        %v1604 = vpop.f32.mrf.mxu0
        %v1605 = vadd.f32 %v1298, %v1604
        %1606 = vmatmul.bf16.gmra.mxu0 %v682
        %v1607 = vpop.f32.mrf.mxu0
        %v1608 = vadd.f32 %v1301, %v1607
        %v1609 = vpop.f32.mrf.mxu0
        %v1610 = vadd.f32 %v1303, %v1609
        %1611 = vmatmul.bf16.gmra.mxu0 %v684
        %v1612 = vpop.f32.mrf.mxu0
        %v1613 = vadd.f32 %v1306, %v1612
        %v1614 = vpop.f32.mrf.mxu0
        %v1615 = vadd.f32 %v1308, %v1614
        %1616 = vmatmul.bf16.gmra.mxu0 %v686
        %v1617 = vpop.f32.mrf.mxu0
        %v1618 = vadd.f32 %v1311, %v1617
        %v1619 = vpop.f32.mrf.mxu0
        %v1620 = vadd.f32 %v1313, %v1619
        %1621 = vmatmul.bf16.gmra.mxu0 %v688
        %v1622 = vpop.f32.mrf.mxu0
        %v1623 = vadd.f32 %v1316, %v1622
        %v1624 = vpop.f32.mrf.mxu0
        %v1625 = vadd.f32 %v1318, %v1624
        %1626 = vdwg.mxu0
        %1627 = vmatpush.bf16.msra.mxu0 %v1447
        %1628 = vmatpush.bf16.msra.mxu0 %v1445
        %1629 = vmatpush.bf16.msra.mxu0 %v1443
        %1630 = vmatpush.bf16.msra.mxu0 %v1441
        %1631 = vmatpush.bf16.msra.mxu0 %v1439
        %1632 = vmatpush.bf16.msra.mxu0 %v1437
        %1633 = vmatpush.bf16.msra.mxu0 %v1435
        %1634 = vmatpush.bf16.msra.mxu0 %v1433
        %1635 = vmatmul.bf16.gmra.mxu0 %v675
        %v1636 = vpop.f32.mrf.mxu0
        %v1637 = vadd.f32 %v1588, %v1636
        %v1638 = vpop.f32.mrf.mxu0
        %v1639 = vadd.f32 %v1590, %v1638
        %1640 = vmatmul.bf16.gmra.mxu0 %v677
        %v1641 = vpop.f32.mrf.mxu0
        %v1642 = vadd.f32 %v1593, %v1641
        %v1643 = vpop.f32.mrf.mxu0
        %v1644 = vadd.f32 %v1595, %v1643
        %1645 = vmatmul.bf16.gmra.mxu0 %v679
        %v1646 = vpop.f32.mrf.mxu0
        %v1647 = vadd.f32 %v1598, %v1646
        %v1648 = vpop.f32.mrf.mxu0
        %v1649 = vadd.f32 %v1600, %v1648
        %1650 = vmatmul.bf16.gmra.mxu0 %v681
        %v1651 = vpop.f32.mrf.mxu0
        %v1652 = vadd.f32 %v1603, %v1651
        %v1653 = vpop.f32.mrf.mxu0
        %v1654 = vadd.f32 %v1605, %v1653
        %1655 = vmatmul.bf16.gmra.mxu0 %v683
        %v1656 = vpop.f32.mrf.mxu0
        %v1657 = vadd.f32 %v1608, %v1656
        %v1658 = vpop.f32.mrf.mxu0
        %v1659 = vadd.f32 %v1610, %v1658
        %1660 = vmatmul.bf16.gmra.mxu0 %v685
        %v1661 = vpop.f32.mrf.mxu0
        %v1662 = vadd.f32 %v1613, %v1661
        %v1663 = vpop.f32.mrf.mxu0
        %v1664 = vadd.f32 %v1615, %v1663
        %1665 = vmatmul.bf16.gmra.mxu0 %v687
        %v1666 = vpop.f32.mrf.mxu0
        %v1667 = vadd.f32 %v1618, %v1666
        %v1668 = vpop.f32.mrf.mxu0
        %v1669 = vadd.f32 %v1620, %v1668
        %1670 = vmatmul.bf16.gmra.mxu0 %v689
        %v1671 = vpop.f32.mrf.mxu0
        %v1672 = vadd.f32 %v1623, %v1671
        %v1673 = vpop.f32.mrf.mxu0
        %v1674 = vadd.f32 %v1625, %v1673
        %1675 = vdwg.mxu0
        %v1676 = vadd.s32 %v626, 1
        %v1677 = vadd.s32 %v627, 1
        %v1678 = vadd.s32 %v628, 1
        %v1679 = vadd.s32 %v629, 1
        %v1680 = vadd.s32 %v630, 1
        %v1681 = vadd.s32 %v631, 1
        %v1682 = vadd.s32 %v632, 1
        %v1683 = vadd.s32 %v633, 1
        %v1684 = vadd.s32 %v634, 1
        %v1685 = vadd.s32 %v635, 1
        %v1686 = vadd.s32 %v636, 1
        %v1687 = vadd.s32 %v637, 1
        %v1688 = vadd.s32 %v638, 1
        %v1689 = vadd.s32 %v639, 1
        %v1690 = vadd.s32 %v640, 1
        %v1691 = vadd.s32 %v641, 1
        %vm1692 = vcmp.ge.s32.totalorder %v1676, 0
        %vm1693 = vcmp.ge.s32.totalorder %v1677, 0
        %vm1694 = vcmp.ge.s32.totalorder %v1678, 0
        %vm1695 = vcmp.ge.s32.totalorder %v1679, 0
        %vm1696 = vcmp.ge.s32.totalorder %v1680, 0
        %vm1697 = vcmp.ge.s32.totalorder %v1681, 0
        %vm1698 = vcmp.ge.s32.totalorder %v1682, 0
        %vm1699 = vcmp.ge.s32.totalorder %v1683, 0
        %vm1700 = vcmp.ge.s32.totalorder %v1684, 0
        %vm1701 = vcmp.ge.s32.totalorder %v1685, 0
        %vm1702 = vcmp.ge.s32.totalorder %v1686, 0
        %vm1703 = vcmp.ge.s32.totalorder %v1687, 0
        %vm1704 = vcmp.ge.s32.totalorder %v1688, 0
        %vm1705 = vcmp.ge.s32.totalorder %v1689, 0
        %vm1706 = vcmp.ge.s32.totalorder %v1690, 0
        %vm1707 = vcmp.ge.s32.totalorder %v1691, 0
        %vm1708 = vcmp.lt.s32.totalorder %v1676, 8
        %vm1709 = vcmp.lt.s32.totalorder %v1677, 8
        %vm1710 = vcmp.lt.s32.totalorder %v1678, 8
        %vm1711 = vcmp.lt.s32.totalorder %v1679, 8
        %vm1712 = vcmp.lt.s32.totalorder %v1680, 8
        %vm1713 = vcmp.lt.s32.totalorder %v1681, 8
        %vm1714 = vcmp.lt.s32.totalorder %v1682, 8
        %vm1715 = vcmp.lt.s32.totalorder %v1683, 8
        %vm1716 = vcmp.lt.s32.totalorder %v1684, 8
        %vm1717 = vcmp.lt.s32.totalorder %v1685, 8
        %vm1718 = vcmp.lt.s32.totalorder %v1686, 8
        %vm1719 = vcmp.lt.s32.totalorder %v1687, 8
        %vm1720 = vcmp.lt.s32.totalorder %v1688, 8
        %vm1721 = vcmp.lt.s32.totalorder %v1689, 8
        %vm1722 = vcmp.lt.s32.totalorder %v1690, 8
        %vm1723 = vcmp.lt.s32.totalorder %v1691, 8
        %vm1724 = vmand %vm1692, %vm1708
        %vm1725 = vmand %vm1693, %vm1709
        %vm1726 = vmand %vm1694, %vm1710
        %vm1727 = vmand %vm1695, %vm1711
        %vm1728 = vmand %vm1696, %vm1712
        %vm1729 = vmand %vm1697, %vm1713
        %vm1730 = vmand %vm1698, %vm1714
        %vm1731 = vmand %vm1699, %vm1715
        %vm1732 = vmand %vm1700, %vm1716
        %vm1733 = vmand %vm1701, %vm1717
        %vm1734 = vmand %vm1702, %vm1718
        %vm1735 = vmand %vm1703, %vm1719
        %vm1736 = vmand %vm1704, %vm1720
        %vm1737 = vmand %vm1705, %vm1721
        %vm1738 = vmand %vm1706, %vm1722
        %vm1739 = vmand %vm1707, %vm1723
        %v1740 = vrot.slane %v642, 1
        %v1741 = vrot.slane %v643, 1
        %v1742 = vrot.slane %v644, 1
        %v1743 = vrot.slane %v645, 1
        %v1744 = vrot.slane %v646, 1
        %v1745 = vrot.slane %v647, 1
        %v1746 = vrot.slane %v648, 1
        %v1747 = vrot.slane %v649, 1
        %v1748 = vrot.slane %v650, 1
        %v1749 = vrot.slane %v651, 1
        %v1750 = vrot.slane %v652, 1
        %v1751 = vrot.slane %v653, 1
        %v1752 = vrot.slane %v654, 1
        %v1753 = vrot.slane %v655, 1
        %v1754 = vrot.slane %v656, 1
        %v1755 = vrot.slane %v657, 1
        %v1756 = vrot.slane %v658, 1
        %v1757 = vrot.slane %v659, 1
        %v1758 = vrot.slane %v660, 1
        %v1759 = vrot.slane %v661, 1
        %v1760 = vrot.slane %v662, 1
        %v1761 = vrot.slane %v663, 1
        %v1762 = vrot.slane %v664, 1
        %v1763 = vrot.slane %v665, 1
        %v1764 = vrot.slane %v666, 1
        %v1765 = vrot.slane %v667, 1
        %v1766 = vrot.slane %v668, 1
        %v1767 = vrot.slane %v669, 1
        %v1768 = vrot.slane %v670, 1
        %v1769 = vrot.slane %v671, 1
        %v1770 = vrot.slane %v672, 1
        %v1771 = vrot.slane %v673, 1
        %vm1772 = vcmp.lt.s32.totalorder %v434, 7
        %v1773 = vsel %vm1772, %v1768, %v1770
        %v1774 = vsel %vm1772, %v1769, %v1771
        %v1775 = vsel %vm1772, %v1766, %v1768
        %v1776 = vsel %vm1772, %v1767, %v1769
        %v1777 = vsel %vm1772, %v1764, %v1766
        %v1778 = vsel %vm1772, %v1765, %v1767
        %v1779 = vsel %vm1772, %v1762, %v1764
        %v1780 = vsel %vm1772, %v1763, %v1765
        %v1781 = vsel %vm1772, %v1760, %v1762
        %v1782 = vsel %vm1772, %v1761, %v1763
        %v1783 = vsel %vm1772, %v1758, %v1760
        %v1784 = vsel %vm1772, %v1759, %v1761
        %v1785 = vsel %vm1772, %v1756, %v1758
        %v1786 = vsel %vm1772, %v1757, %v1759
        %v1787 = vsel %vm1772, %v1754, %v1756
        %v1788 = vsel %vm1772, %v1755, %v1757
        %v1789 = vsel %vm1772, %v1752, %v1754
        %v1790 = vsel %vm1772, %v1753, %v1755
        %v1791 = vsel %vm1772, %v1750, %v1752
        %v1792 = vsel %vm1772, %v1751, %v1753
        %v1793 = vsel %vm1772, %v1748, %v1750
        %v1794 = vsel %vm1772, %v1749, %v1751
        %v1795 = vsel %vm1772, %v1746, %v1748
        %v1796 = vsel %vm1772, %v1747, %v1749
        %v1797 = vsel %vm1772, %v1744, %v1746
        %v1798 = vsel %vm1772, %v1745, %v1747
        %v1799 = vsel %vm1772, %v1742, %v1744
        %v1800 = vsel %vm1772, %v1743, %v1745
        %v1801 = vsel %vm1772, %v1740, %v1742
        %v1802 = vsel %vm1772, %v1741, %v1743
        %v1803 = vsel %vm1772, %v1770, %v1740
        %v1804 = vsel %vm1772, %v1771, %v1741
        %v1805 = vsel %vm1724, 1, 0
        %v1806 = vsel %vm1725, 1, 0
        %v1807 = vsel %vm1726, 1, 0
        %v1808 = vsel %vm1727, 1, 0
        %v1809 = vsel %vm1728, 1, 0
        %v1810 = vsel %vm1729, 1, 0
        %v1811 = vsel %vm1730, 1, 0
        %v1812 = vsel %vm1731, 1, 0
        %v1813 = vsel %vm1732, 1, 0
        %v1814 = vsel %vm1733, 1, 0
        %v1815 = vsel %vm1734, 1, 0
        %v1816 = vsel %vm1735, 1, 0
        %v1817 = vsel %vm1736, 1, 0
        %v1818 = vsel %vm1737, 1, 0
        %v1819 = vsel %vm1738, 1, 0
        %v1820 = vsel %vm1739, 1, 0
        %vm1821 = vcmp.eq.s32.totalorder %v1805, 1
        %vm1822 = vcmp.eq.s32.totalorder %v1806, 1
        %vm1823 = vcmp.eq.s32.totalorder %v1807, 1
        %vm1824 = vcmp.eq.s32.totalorder %v1808, 1
        %vm1825 = vcmp.eq.s32.totalorder %v1809, 1
        %vm1826 = vcmp.eq.s32.totalorder %v1810, 1
        %vm1827 = vcmp.eq.s32.totalorder %v1811, 1
        %vm1828 = vcmp.eq.s32.totalorder %v1812, 1
        %vm1829 = vcmp.eq.s32.totalorder %v1813, 1
        %vm1830 = vcmp.eq.s32.totalorder %v1814, 1
        %vm1831 = vcmp.eq.s32.totalorder %v1815, 1
        %vm1832 = vcmp.eq.s32.totalorder %v1816, 1
        %vm1833 = vcmp.eq.s32.totalorder %v1817, 1
        %vm1834 = vcmp.eq.s32.totalorder %v1818, 1
        %vm1835 = vcmp.eq.s32.totalorder %v1819, 1
        %vm1836 = vcmp.eq.s32.totalorder %v1820, 1
        %v1837 = vsel %vm1821, %v1801, 0.0
        %v1838 = vsel %vm1821, %v1802, 0.0
        %v1839 = vsel %vm1822, %v1799, 0.0
        %v1840 = vsel %vm1822, %v1800, 0.0
        %v1841 = vsel %vm1823, %v1797, 0.0
        %v1842 = vsel %vm1823, %v1798, 0.0
        %v1843 = vsel %vm1824, %v1795, 0.0
        %v1844 = vsel %vm1824, %v1796, 0.0
        %v1845 = vsel %vm1825, %v1793, 0.0
        %v1846 = vsel %vm1825, %v1794, 0.0
        %v1847 = vsel %vm1826, %v1791, 0.0
        %v1848 = vsel %vm1826, %v1792, 0.0
        %v1849 = vsel %vm1827, %v1789, 0.0
        %v1850 = vsel %vm1827, %v1790, 0.0
        %v1851 = vsel %vm1828, %v1787, 0.0
        %v1852 = vsel %vm1828, %v1788, 0.0
        %v1853 = vsel %vm1829, %v1785, 0.0
        %v1854 = vsel %vm1829, %v1786, 0.0
        %v1855 = vsel %vm1830, %v1783, 0.0
        %v1856 = vsel %vm1830, %v1784, 0.0
        %v1857 = vsel %vm1831, %v1781, 0.0
        %v1858 = vsel %vm1831, %v1782, 0.0
        %v1859 = vsel %vm1832, %v1779, 0.0
        %v1860 = vsel %vm1832, %v1780, 0.0
        %v1861 = vsel %vm1833, %v1777, 0.0
        %v1862 = vsel %vm1833, %v1778, 0.0
        %v1863 = vsel %vm1834, %v1775, 0.0
        %v1864 = vsel %vm1834, %v1776, 0.0
        %v1865 = vsel %vm1835, %v1773, 0.0
        %v1866 = vsel %vm1835, %v1774, 0.0
        %v1867 = vsel %vm1836, %v1803, 0.0
        %v1868 = vsel %vm1836, %v1804, 0.0
        %v1869 = vpack.c.bf16 %v1839, %v1837
        %v1870 = vpack.c.bf16 %v1840, %v1838
        %v1871 = vpack.c.bf16 %v1843, %v1841
        %v1872 = vpack.c.bf16 %v1844, %v1842
        %v1873 = vpack.c.bf16 %v1847, %v1845
        %v1874 = vpack.c.bf16 %v1848, %v1846
        %v1875 = vpack.c.bf16 %v1851, %v1849
        %v1876 = vpack.c.bf16 %v1852, %v1850
        %v1877 = vpack.c.bf16 %v1855, %v1853
        %v1878 = vpack.c.bf16 %v1856, %v1854
        %v1879 = vpack.c.bf16 %v1859, %v1857
        %v1880 = vpack.c.bf16 %v1860, %v1858
        %v1881 = vpack.c.bf16 %v1863, %v1861
        %v1882 = vpack.c.bf16 %v1864, %v1862
        %v1883 = vpack.c.bf16 %v1867, %v1865
        %v1884 = vpack.c.bf16 %v1868, %v1866
        %s1885 = scalar_lea.vmem [#allocation5], 512
        %v1886 = vld [vmem:[%s1885] sm:$0xff]
        %v1887 = vld [vmem:[%s1885 + $0x8] sm:$0xff]
        %v1888 = vld [vmem:[%s1885 + $0x10] sm:$0xff]
        %v1889 = vld [vmem:[%s1885 + $0x18] sm:$0xff]
        %v1890 = vld [vmem:[%s1885 + $0x20] sm:$0xff]
        %v1891 = vld [vmem:[%s1885 + $0x28] sm:$0xff]
        %v1892 = vld [vmem:[%s1885 + $0x30] sm:$0xff]
        %v1893 = vld [vmem:[%s1885 + $0x38] sm:$0xff]
        %v1894 = vld [vmem:[%s1885 + $0x40] sm:$0xff]
        %v1895 = vld [vmem:[%s1885 + $0x48] sm:$0xff]
        %v1896 = vld [vmem:[%s1885 + $0x50] sm:$0xff]
        %v1897 = vld [vmem:[%s1885 + $0x58] sm:$0xff]
        %v1898 = vld [vmem:[%s1885 + $0x60] sm:$0xff]
        %v1899 = vld [vmem:[%s1885 + $0x68] sm:$0xff]
        %v1900 = vld [vmem:[%s1885 + $0x70] sm:$0xff]
        %v1901 = vld [vmem:[%s1885 + $0x78] sm:$0xff]
        %v1902 = vld [vmem:[%s1885 + $0x80] sm:$0xff]
        %v1903 = vld [vmem:[%s1885 + $0x88] sm:$0xff]
        %v1904 = vld [vmem:[%s1885 + $0x90] sm:$0xff]
        %v1905 = vld [vmem:[%s1885 + $0x98] sm:$0xff]
        %v1906 = vld [vmem:[%s1885 + $0xa0] sm:$0xff]
        %v1907 = vld [vmem:[%s1885 + $0xa8] sm:$0xff]
        %v1908 = vld [vmem:[%s1885 + $0xb0] sm:$0xff]
        %v1909 = vld [vmem:[%s1885 + $0xb8] sm:$0xff]
        %v1910 = vld [vmem:[%s1885 + $0xc0] sm:$0xff]
        %v1911 = vld [vmem:[%s1885 + $0xc8] sm:$0xff]
        %v1912 = vld [vmem:[%s1885 + $0xd0] sm:$0xff]
        %v1913 = vld [vmem:[%s1885 + $0xd8] sm:$0xff]
        %v1914 = vld [vmem:[%s1885 + $0xe0] sm:$0xff]
        %v1915 = vld [vmem:[%s1885 + $0xe8] sm:$0xff]
        %v1916 = vld [vmem:[%s1885 + $0xf0] sm:$0xff]
        %v1917 = vld [vmem:[%s1885 + $0xf8] sm:$0xff]
        %v1950 = vunpack.c.l.b16 %v1886
        %v1951 = vunpack.c.h.b16 %v1886
        %v1952 = vunpack.c.l.b16 %v1887
        %v1953 = vunpack.c.h.b16 %v1887
        %v1954 = vunpack.c.l.b16 %v1888
        %v1955 = vunpack.c.h.b16 %v1888
        %v1956 = vunpack.c.l.b16 %v1889
        %v1957 = vunpack.c.h.b16 %v1889
        %v1958 = vunpack.c.l.b16 %v1890
        %v1959 = vunpack.c.h.b16 %v1890
        %v1960 = vunpack.c.l.b16 %v1891
        %v1961 = vunpack.c.h.b16 %v1891
        %v1962 = vunpack.c.l.b16 %v1892
        %v1963 = vunpack.c.h.b16 %v1892
        %v1964 = vunpack.c.l.b16 %v1893
        %v1965 = vunpack.c.h.b16 %v1893
        %v1966 = vunpack.c.l.b16 %v1894
        %v1967 = vunpack.c.h.b16 %v1894
        %v1968 = vunpack.c.l.b16 %v1895
        %v1969 = vunpack.c.h.b16 %v1895
        %v1970 = vunpack.c.l.b16 %v1896
        %v1971 = vunpack.c.h.b16 %v1896
        %v1972 = vunpack.c.l.b16 %v1897
        %v1973 = vunpack.c.h.b16 %v1897
        %v1974 = vunpack.c.l.b16 %v1898
        %v1975 = vunpack.c.h.b16 %v1898
        %v1976 = vunpack.c.l.b16 %v1899
        %v1977 = vunpack.c.h.b16 %v1899
        %v1978 = vunpack.c.l.b16 %v1900
        %v1979 = vunpack.c.h.b16 %v1900
        %v1980 = vunpack.c.l.b16 %v1901
        %v1981 = vunpack.c.h.b16 %v1901
        %v1982 = vunpack.c.l.b16 %v1902
        %v1983 = vunpack.c.h.b16 %v1902
        %v1984 = vunpack.c.l.b16 %v1903
        %v1985 = vunpack.c.h.b16 %v1903
        %v1986 = vunpack.c.l.b16 %v1904
        %v1987 = vunpack.c.h.b16 %v1904
        %v1988 = vunpack.c.l.b16 %v1905
        %v1989 = vunpack.c.h.b16 %v1905
        %v1990 = vunpack.c.l.b16 %v1906
        %v1991 = vunpack.c.h.b16 %v1906
        %v1992 = vunpack.c.l.b16 %v1907
        %v1993 = vunpack.c.h.b16 %v1907
        %v1994 = vunpack.c.l.b16 %v1908
        %v1995 = vunpack.c.h.b16 %v1908
        %v1996 = vunpack.c.l.b16 %v1909
        %v1997 = vunpack.c.h.b16 %v1909
        %v1998 = vunpack.c.l.b16 %v1910
        %v1999 = vunpack.c.h.b16 %v1910
        %v2000 = vunpack.c.l.b16 %v1911
        %v2001 = vunpack.c.h.b16 %v1911
        %v2002 = vunpack.c.l.b16 %v1912
        %v2003 = vunpack.c.h.b16 %v1912
        %v2004 = vunpack.c.l.b16 %v1913
        %v2005 = vunpack.c.h.b16 %v1913
        %v2006 = vunpack.c.l.b16 %v1914
        %v2007 = vunpack.c.h.b16 %v1914
        %v2008 = vunpack.c.l.b16 %v1915
        %v2009 = vunpack.c.h.b16 %v1915
        %v2010 = vunpack.c.l.b16 %v1916
        %v2011 = vunpack.c.h.b16 %v1916
        %v2012 = vunpack.c.l.b16 %v1917
        %v2013 = vunpack.c.h.b16 %v1917
        %v2014 = vpack.c.b16 %v1952, %v1950
        %v2015 = vpack.c.b16 %v1953, %v1951
        %v2016 = vpack.c.b16 %v1956, %v1954
        %v2017 = vpack.c.b16 %v1957, %v1955
        %v2018 = vpack.c.b16 %v1960, %v1958
        %v2019 = vpack.c.b16 %v1961, %v1959
        %v2020 = vpack.c.b16 %v1964, %v1962
        %v2021 = vpack.c.b16 %v1965, %v1963
        %v2022 = vpack.c.b16 %v1968, %v1966
        %v2023 = vpack.c.b16 %v1969, %v1967
        %v2024 = vpack.c.b16 %v1972, %v1970
        %v2025 = vpack.c.b16 %v1973, %v1971
        %v2026 = vpack.c.b16 %v1976, %v1974
        %v2027 = vpack.c.b16 %v1977, %v1975
        %v2028 = vpack.c.b16 %v1980, %v1978
        %v2029 = vpack.c.b16 %v1981, %v1979
        %v2030 = vpack.c.b16 %v1984, %v1982
        %v2031 = vpack.c.b16 %v1985, %v1983
        %v2032 = vpack.c.b16 %v1988, %v1986
        %v2033 = vpack.c.b16 %v1989, %v1987
        %v2034 = vpack.c.b16 %v1992, %v1990
        %v2035 = vpack.c.b16 %v1993, %v1991
        %v2036 = vpack.c.b16 %v1996, %v1994
        %v2037 = vpack.c.b16 %v1997, %v1995
        %v2038 = vpack.c.b16 %v2000, %v1998
        %v2039 = vpack.c.b16 %v2001, %v1999
        %v2040 = vpack.c.b16 %v2004, %v2002
        %v2041 = vpack.c.b16 %v2005, %v2003
        %v2042 = vpack.c.b16 %v2008, %v2006
        %v2043 = vpack.c.b16 %v2009, %v2007
        %v2044 = vpack.c.b16 %v2012, %v2010
        %v2045 = vpack.c.b16 %v2013, %v2011
        %2078 = vmatpush.bf16.msra.mxu0 %v2028
        %2079 = vmatpush.bf16.msra.mxu0 %v2026
        %2080 = vmatpush.bf16.msra.mxu0 %v2024
        %2081 = vmatpush.bf16.msra.mxu0 %v2022
        %2082 = vmatpush.bf16.msra.mxu0 %v2020
        %2083 = vmatpush.bf16.msra.mxu0 %v2018
        %2084 = vmatpush.bf16.msra.mxu0 %v2016
        %2085 = vmatpush.bf16.msra.mxu0 %v2014
        %2086 = vmatmul.bf16.gmra.mxu0 %v1869
        %v2087 = vpop.f32.mrf.mxu0
        %v2088 = vadd.f32 0.0, %v2087
        %v2089 = vpop.f32.mrf.mxu0
        %v2090 = vadd.f32 0.0, %v2089
        %2091 = vmatmul.bf16.gmra.mxu0 %v1871
        %v2092 = vpop.f32.mrf.mxu0
        %v2093 = vadd.f32 0.0, %v2092
        %v2094 = vpop.f32.mrf.mxu0
        %v2095 = vadd.f32 0.0, %v2094
        %2096 = vmatmul.bf16.gmra.mxu0 %v1873
        %v2097 = vpop.f32.mrf.mxu0
        %v2098 = vadd.f32 0.0, %v2097
        %v2099 = vpop.f32.mrf.mxu0
        %v2100 = vadd.f32 0.0, %v2099
        %2101 = vmatmul.bf16.gmra.mxu0 %v1875
        %v2102 = vpop.f32.mrf.mxu0
        %v2103 = vadd.f32 0.0, %v2102
        %v2104 = vpop.f32.mrf.mxu0
        %v2105 = vadd.f32 0.0, %v2104
        %2106 = vmatmul.bf16.gmra.mxu0 %v1877
        %v2107 = vpop.f32.mrf.mxu0
        %v2108 = vadd.f32 0.0, %v2107
        %v2109 = vpop.f32.mrf.mxu0
        %v2110 = vadd.f32 0.0, %v2109
        %2111 = vmatmul.bf16.gmra.mxu0 %v1879
        %v2112 = vpop.f32.mrf.mxu0
        %v2113 = vadd.f32 0.0, %v2112
        %v2114 = vpop.f32.mrf.mxu0
        %v2115 = vadd.f32 0.0, %v2114
        %2116 = vmatmul.bf16.gmra.mxu0 %v1881
        %v2117 = vpop.f32.mrf.mxu0
        %v2118 = vadd.f32 0.0, %v2117
        %v2119 = vpop.f32.mrf.mxu0
        %v2120 = vadd.f32 0.0, %v2119
        %2121 = vmatmul.bf16.gmra.mxu0 %v1883
        %v2122 = vpop.f32.mrf.mxu0
        %v2123 = vadd.f32 0.0, %v2122
        %v2124 = vpop.f32.mrf.mxu0
        %v2125 = vadd.f32 0.0, %v2124
        %2126 = vdwg.mxu0
        %2127 = vmatpush.bf16.msra.mxu0 %v2044
        %2128 = vmatpush.bf16.msra.mxu0 %v2042
        %2129 = vmatpush.bf16.msra.mxu0 %v2040
        %2130 = vmatpush.bf16.msra.mxu0 %v2038
        %2131 = vmatpush.bf16.msra.mxu0 %v2036
        %2132 = vmatpush.bf16.msra.mxu0 %v2034
        %2133 = vmatpush.bf16.msra.mxu0 %v2032
        %2134 = vmatpush.bf16.msra.mxu0 %v2030
        %2135 = vmatmul.bf16.gmra.mxu0 %v1870
        %v2136 = vpop.f32.mrf.mxu0
        %v2137 = vadd.f32 %v2088, %v2136
        %v2138 = vpop.f32.mrf.mxu0
        %v2139 = vadd.f32 %v2090, %v2138
        %2140 = vmatmul.bf16.gmra.mxu0 %v1872
        %v2141 = vpop.f32.mrf.mxu0
        %v2142 = vadd.f32 %v2093, %v2141
        %v2143 = vpop.f32.mrf.mxu0
        %v2144 = vadd.f32 %v2095, %v2143
        %2145 = vmatmul.bf16.gmra.mxu0 %v1874
        %v2146 = vpop.f32.mrf.mxu0
        %v2147 = vadd.f32 %v2098, %v2146
        %v2148 = vpop.f32.mrf.mxu0
        %v2149 = vadd.f32 %v2100, %v2148
        %2150 = vmatmul.bf16.gmra.mxu0 %v1876
        %v2151 = vpop.f32.mrf.mxu0
        %v2152 = vadd.f32 %v2103, %v2151
        %v2153 = vpop.f32.mrf.mxu0
        %v2154 = vadd.f32 %v2105, %v2153
        %2155 = vmatmul.bf16.gmra.mxu0 %v1878
        %v2156 = vpop.f32.mrf.mxu0
        %v2157 = vadd.f32 %v2108, %v2156
        %v2158 = vpop.f32.mrf.mxu0
        %v2159 = vadd.f32 %v2110, %v2158
        %2160 = vmatmul.bf16.gmra.mxu0 %v1880
        %v2161 = vpop.f32.mrf.mxu0
        %v2162 = vadd.f32 %v2113, %v2161
        %v2163 = vpop.f32.mrf.mxu0
        %v2164 = vadd.f32 %v2115, %v2163
        %2165 = vmatmul.bf16.gmra.mxu0 %v1882
        %v2166 = vpop.f32.mrf.mxu0
        %v2167 = vadd.f32 %v2118, %v2166
        %v2168 = vpop.f32.mrf.mxu0
        %v2169 = vadd.f32 %v2120, %v2168
        %2170 = vmatmul.bf16.gmra.mxu0 %v1884
        %v2171 = vpop.f32.mrf.mxu0
        %v2172 = vadd.f32 %v2123, %v2171
        %v2173 = vpop.f32.mrf.mxu0
        %v2174 = vadd.f32 %v2125, %v2173
        %2175 = vdwg.mxu0
        %2176 = vmatpush.bf16.msra.mxu0 %v2029
        %2177 = vmatpush.bf16.msra.mxu0 %v2027
        %2178 = vmatpush.bf16.msra.mxu0 %v2025
        %2179 = vmatpush.bf16.msra.mxu0 %v2023
        %2180 = vmatpush.bf16.msra.mxu0 %v2021
        %2181 = vmatpush.bf16.msra.mxu0 %v2019
        %2182 = vmatpush.bf16.msra.mxu0 %v2017
        %2183 = vmatpush.bf16.msra.mxu0 %v2015
        %2184 = vmatmul.bf16.gmra.mxu0 %v1869
        %v2185 = vpop.f32.mrf.mxu0
        %v2186 = vadd.f32 0.0, %v2185
        %v2187 = vpop.f32.mrf.mxu0
        %v2188 = vadd.f32 0.0, %v2187
        %2189 = vmatmul.bf16.gmra.mxu0 %v1871
        %v2190 = vpop.f32.mrf.mxu0
        %v2191 = vadd.f32 0.0, %v2190
        %v2192 = vpop.f32.mrf.mxu0
        %v2193 = vadd.f32 0.0, %v2192
        %2194 = vmatmul.bf16.gmra.mxu0 %v1873
        %v2195 = vpop.f32.mrf.mxu0
        %v2196 = vadd.f32 0.0, %v2195
        %v2197 = vpop.f32.mrf.mxu0
        %v2198 = vadd.f32 0.0, %v2197
        %2199 = vmatmul.bf16.gmra.mxu0 %v1875
        %v2200 = vpop.f32.mrf.mxu0
        %v2201 = vadd.f32 0.0, %v2200
        %v2202 = vpop.f32.mrf.mxu0
        %v2203 = vadd.f32 0.0, %v2202
        %2204 = vmatmul.bf16.gmra.mxu0 %v1877
        %v2205 = vpop.f32.mrf.mxu0
        %v2206 = vadd.f32 0.0, %v2205
        %v2207 = vpop.f32.mrf.mxu0
        %v2208 = vadd.f32 0.0, %v2207
        %2209 = vmatmul.bf16.gmra.mxu0 %v1879
        %v2210 = vpop.f32.mrf.mxu0
        %v2211 = vadd.f32 0.0, %v2210
        %v2212 = vpop.f32.mrf.mxu0
        %v2213 = vadd.f32 0.0, %v2212
        %2214 = vmatmul.bf16.gmra.mxu0 %v1881
        %v2215 = vpop.f32.mrf.mxu0
        %v2216 = vadd.f32 0.0, %v2215
        %v2217 = vpop.f32.mrf.mxu0
        %v2218 = vadd.f32 0.0, %v2217
        %2219 = vmatmul.bf16.gmra.mxu0 %v1883
        %v2220 = vpop.f32.mrf.mxu0
        %v2221 = vadd.f32 0.0, %v2220
        %v2222 = vpop.f32.mrf.mxu0
        %v2223 = vadd.f32 0.0, %v2222
        %2224 = vdwg.mxu0
        %2225 = vmatpush.bf16.msra.mxu0 %v2045
        %2226 = vmatpush.bf16.msra.mxu0 %v2043
        %2227 = vmatpush.bf16.msra.mxu0 %v2041
        %2228 = vmatpush.bf16.msra.mxu0 %v2039
        %2229 = vmatpush.bf16.msra.mxu0 %v2037
        %2230 = vmatpush.bf16.msra.mxu0 %v2035
        %2231 = vmatpush.bf16.msra.mxu0 %v2033
        %2232 = vmatpush.bf16.msra.mxu0 %v2031
        %2233 = vmatmul.bf16.gmra.mxu0 %v1870
        %v2234 = vpop.f32.mrf.mxu0
        %v2235 = vadd.f32 %v2186, %v2234
        %v2236 = vpop.f32.mrf.mxu0
        %v2237 = vadd.f32 %v2188, %v2236
        %2238 = vmatmul.bf16.gmra.mxu0 %v1872
        %v2239 = vpop.f32.mrf.mxu0
        %v2240 = vadd.f32 %v2191, %v2239
        %v2241 = vpop.f32.mrf.mxu0
        %v2242 = vadd.f32 %v2193, %v2241
        %2243 = vmatmul.bf16.gmra.mxu0 %v1874
        %v2244 = vpop.f32.mrf.mxu0
        %v2245 = vadd.f32 %v2196, %v2244
        %v2246 = vpop.f32.mrf.mxu0
        %v2247 = vadd.f32 %v2198, %v2246
        %2248 = vmatmul.bf16.gmra.mxu0 %v1876
        %v2249 = vpop.f32.mrf.mxu0
        %v2250 = vadd.f32 %v2201, %v2249
        %v2251 = vpop.f32.mrf.mxu0
        %v2252 = vadd.f32 %v2203, %v2251
        %2253 = vmatmul.bf16.gmra.mxu0 %v1878
        %v2254 = vpop.f32.mrf.mxu0
        %v2255 = vadd.f32 %v2206, %v2254
        %v2256 = vpop.f32.mrf.mxu0
        %v2257 = vadd.f32 %v2208, %v2256
        %2258 = vmatmul.bf16.gmra.mxu0 %v1880
        %v2259 = vpop.f32.mrf.mxu0
        %v2260 = vadd.f32 %v2211, %v2259
        %v2261 = vpop.f32.mrf.mxu0
        %v2262 = vadd.f32 %v2213, %v2261
        %2263 = vmatmul.bf16.gmra.mxu0 %v1882
        %v2264 = vpop.f32.mrf.mxu0
        %v2265 = vadd.f32 %v2216, %v2264
        %v2266 = vpop.f32.mrf.mxu0
        %v2267 = vadd.f32 %v2218, %v2266
        %2268 = vmatmul.bf16.gmra.mxu0 %v1884
        %v2269 = vpop.f32.mrf.mxu0
        %v2270 = vadd.f32 %v2221, %v2269
        %v2271 = vpop.f32.mrf.mxu0
        %v2272 = vadd.f32 %v2223, %v2271
        %2273 = vdwg.mxu0
        %v2274 = vadd.f32 %v1539, %v2137
        %v2275 = vadd.f32 %v1637, %v2235
        %v2276 = vadd.f32 %v1541, %v2139
        %v2277 = vadd.f32 %v1639, %v2237
        %v2278 = vadd.f32 %v1544, %v2142
        %v2279 = vadd.f32 %v1642, %v2240
        %v2280 = vadd.f32 %v1546, %v2144
        %v2281 = vadd.f32 %v1644, %v2242
        %v2282 = vadd.f32 %v1549, %v2147
        %v2283 = vadd.f32 %v1647, %v2245
        %v2284 = vadd.f32 %v1551, %v2149
        %v2285 = vadd.f32 %v1649, %v2247
        %v2286 = vadd.f32 %v1554, %v2152
        %v2287 = vadd.f32 %v1652, %v2250
        %v2288 = vadd.f32 %v1556, %v2154
        %v2289 = vadd.f32 %v1654, %v2252
        %v2290 = vadd.f32 %v1559, %v2157
        %v2291 = vadd.f32 %v1657, %v2255
        %v2292 = vadd.f32 %v1561, %v2159
        %v2293 = vadd.f32 %v1659, %v2257
        %v2294 = vadd.f32 %v1564, %v2162
        %v2295 = vadd.f32 %v1662, %v2260
        %v2296 = vadd.f32 %v1566, %v2164
        %v2297 = vadd.f32 %v1664, %v2262
        %v2298 = vadd.f32 %v1569, %v2167
        %v2299 = vadd.f32 %v1667, %v2265
        %v2300 = vadd.f32 %v1571, %v2169
        %v2301 = vadd.f32 %v1669, %v2267
        %v2302 = vadd.f32 %v1574, %v2172
        %v2303 = vadd.f32 %v1672, %v2270
        %v2304 = vadd.f32 %v1576, %v2174
        %v2305 = vadd.f32 %v1674, %v2272
        %v2306 = vld [vmem:[%s2] sm:$0x3]
        %v2308 = vperm.slane %v2306, 0
        %v2309 = vperm.slane %v2306, 1
        %v2312 = vadd.f32 %v2274, %v2308
        %v2313 = vadd.f32 %v2275, %v2309
        %v2314 = vadd.f32 %v2276, %v2308
        %v2315 = vadd.f32 %v2277, %v2309
        %v2316 = vadd.f32 %v2278, %v2308
        %v2317 = vadd.f32 %v2279, %v2309
        %v2318 = vadd.f32 %v2280, %v2308
        %v2319 = vadd.f32 %v2281, %v2309
        %v2320 = vadd.f32 %v2282, %v2308
        %v2321 = vadd.f32 %v2283, %v2309
        %v2322 = vadd.f32 %v2284, %v2308
        %v2323 = vadd.f32 %v2285, %v2309
        %v2324 = vadd.f32 %v2286, %v2308
        %v2325 = vadd.f32 %v2287, %v2309
        %v2326 = vadd.f32 %v2288, %v2308
        %v2327 = vadd.f32 %v2289, %v2309
        %v2328 = vadd.f32 %v2290, %v2308
        %v2329 = vadd.f32 %v2291, %v2309
        %v2330 = vadd.f32 %v2292, %v2308
        %v2331 = vadd.f32 %v2293, %v2309
        %v2332 = vadd.f32 %v2294, %v2308
        %v2333 = vadd.f32 %v2295, %v2309
        %v2334 = vadd.f32 %v2296, %v2308
        %v2335 = vadd.f32 %v2297, %v2309
        %v2336 = vadd.f32 %v2298, %v2308
        %v2337 = vadd.f32 %v2299, %v2309
        %v2338 = vadd.f32 %v2300, %v2308
        %v2339 = vadd.f32 %v2301, %v2309
        %v2340 = vadd.f32 %v2302, %v2308
        %v2341 = vadd.f32 %v2303, %v2309
        %v2342 = vadd.f32 %v2304, %v2308
        %v2343 = vadd.f32 %v2305, %v2309
        %v2344 = vrot.slane %v2312, 4
        %v2345 = vadd.f32 %v2312, %v2344
        %v2346 = vrot.slane %v2345, 2
        %v2347 = vadd.f32 %v2345, %v2346
        %v2348 = vrot.slane %v2347, 1
        %v2349 = vadd.f32 %v2347, %v2348
        %v2350 = vrot.slane %v2313, 4
        %v2351 = vadd.f32 %v2313, %v2350
        %v2352 = vrot.slane %v2351, 2
        %v2353 = vadd.f32 %v2351, %v2352
        %v2354 = vrot.slane %v2353, 1
        %v2355 = vadd.f32 %v2353, %v2354
        %v2356 = vrot.slane %v2314, 4
        %v2357 = vadd.f32 %v2314, %v2356
        %v2358 = vrot.slane %v2357, 2
        %v2359 = vadd.f32 %v2357, %v2358
        %v2360 = vrot.slane %v2359, 1
        %v2361 = vadd.f32 %v2359, %v2360
        %v2362 = vrot.slane %v2315, 4
        %v2363 = vadd.f32 %v2315, %v2362
        %v2364 = vrot.slane %v2363, 2
        %v2365 = vadd.f32 %v2363, %v2364
        %v2366 = vrot.slane %v2365, 1
        %v2367 = vadd.f32 %v2365, %v2366
        %v2368 = vrot.slane %v2316, 4
        %v2369 = vadd.f32 %v2316, %v2368
        %v2370 = vrot.slane %v2369, 2
        %v2371 = vadd.f32 %v2369, %v2370
        %v2372 = vrot.slane %v2371, 1
        %v2373 = vadd.f32 %v2371, %v2372
        %v2374 = vrot.slane %v2317, 4
        %v2375 = vadd.f32 %v2317, %v2374
        %v2376 = vrot.slane %v2375, 2
        %v2377 = vadd.f32 %v2375, %v2376
        %v2378 = vrot.slane %v2377, 1
        %v2379 = vadd.f32 %v2377, %v2378
        %v2380 = vrot.slane %v2318, 4
        %v2381 = vadd.f32 %v2318, %v2380
        %v2382 = vrot.slane %v2381, 2
        %v2383 = vadd.f32 %v2381, %v2382
        %v2384 = vrot.slane %v2383, 1
        %v2385 = vadd.f32 %v2383, %v2384
        %v2386 = vrot.slane %v2319, 4
        %v2387 = vadd.f32 %v2319, %v2386
        %v2388 = vrot.slane %v2387, 2
        %v2389 = vadd.f32 %v2387, %v2388
        %v2390 = vrot.slane %v2389, 1
        %v2391 = vadd.f32 %v2389, %v2390
        %v2392 = vrot.slane %v2320, 4
        %v2393 = vadd.f32 %v2320, %v2392
        %v2394 = vrot.slane %v2393, 2
        %v2395 = vadd.f32 %v2393, %v2394
        %v2396 = vrot.slane %v2395, 1
        %v2397 = vadd.f32 %v2395, %v2396
        %v2398 = vrot.slane %v2321, 4
        %v2399 = vadd.f32 %v2321, %v2398
        %v2400 = vrot.slane %v2399, 2
        %v2401 = vadd.f32 %v2399, %v2400
        %v2402 = vrot.slane %v2401, 1
        %v2403 = vadd.f32 %v2401, %v2402
        %v2404 = vrot.slane %v2322, 4
        %v2405 = vadd.f32 %v2322, %v2404
        %v2406 = vrot.slane %v2405, 2
        %v2407 = vadd.f32 %v2405, %v2406
        %v2408 = vrot.slane %v2407, 1
        %v2409 = vadd.f32 %v2407, %v2408
        %v2410 = vrot.slane %v2323, 4
        %v2411 = vadd.f32 %v2323, %v2410
        %v2412 = vrot.slane %v2411, 2
        %v2413 = vadd.f32 %v2411, %v2412
        %v2414 = vrot.slane %v2413, 1
        %v2415 = vadd.f32 %v2413, %v2414
        %v2416 = vrot.slane %v2324, 4
        %v2417 = vadd.f32 %v2324, %v2416
        %v2418 = vrot.slane %v2417, 2
        %v2419 = vadd.f32 %v2417, %v2418
        %v2420 = vrot.slane %v2419, 1
        %v2421 = vadd.f32 %v2419, %v2420
        %v2422 = vrot.slane %v2325, 4
        %v2423 = vadd.f32 %v2325, %v2422
        %v2424 = vrot.slane %v2423, 2
        %v2425 = vadd.f32 %v2423, %v2424
        %v2426 = vrot.slane %v2425, 1
        %v2427 = vadd.f32 %v2425, %v2426
        %v2428 = vrot.slane %v2326, 4
        %v2429 = vadd.f32 %v2326, %v2428
        %v2430 = vrot.slane %v2429, 2
        %v2431 = vadd.f32 %v2429, %v2430
        %v2432 = vrot.slane %v2431, 1
        %v2433 = vadd.f32 %v2431, %v2432
        %v2434 = vrot.slane %v2327, 4
        %v2435 = vadd.f32 %v2327, %v2434
        %v2436 = vrot.slane %v2435, 2
        %v2437 = vadd.f32 %v2435, %v2436
        %v2438 = vrot.slane %v2437, 1
        %v2439 = vadd.f32 %v2437, %v2438
        %v2440 = vrot.slane %v2328, 4
        %v2441 = vadd.f32 %v2328, %v2440
        %v2442 = vrot.slane %v2441, 2
        %v2443 = vadd.f32 %v2441, %v2442
        %v2444 = vrot.slane %v2443, 1
        %v2445 = vadd.f32 %v2443, %v2444
        %v2446 = vrot.slane %v2329, 4
        %v2447 = vadd.f32 %v2329, %v2446
        %v2448 = vrot.slane %v2447, 2
        %v2449 = vadd.f32 %v2447, %v2448
        %v2450 = vrot.slane %v2449, 1
        %v2451 = vadd.f32 %v2449, %v2450
        %v2452 = vrot.slane %v2330, 4
        %v2453 = vadd.f32 %v2330, %v2452
        %v2454 = vrot.slane %v2453, 2
        %v2455 = vadd.f32 %v2453, %v2454
        %v2456 = vrot.slane %v2455, 1
        %v2457 = vadd.f32 %v2455, %v2456
        %v2458 = vrot.slane %v2331, 4
        %v2459 = vadd.f32 %v2331, %v2458
        %v2460 = vrot.slane %v2459, 2
        %v2461 = vadd.f32 %v2459, %v2460
        %v2462 = vrot.slane %v2461, 1
        %v2463 = vadd.f32 %v2461, %v2462
        %v2464 = vrot.slane %v2332, 4
        %v2465 = vadd.f32 %v2332, %v2464
        %v2466 = vrot.slane %v2465, 2
        %v2467 = vadd.f32 %v2465, %v2466
        %v2468 = vrot.slane %v2467, 1
        %v2469 = vadd.f32 %v2467, %v2468
        %v2470 = vrot.slane %v2333, 4
        %v2471 = vadd.f32 %v2333, %v2470
        %v2472 = vrot.slane %v2471, 2
        %v2473 = vadd.f32 %v2471, %v2472
        %v2474 = vrot.slane %v2473, 1
        %v2475 = vadd.f32 %v2473, %v2474
        %v2476 = vrot.slane %v2334, 4
        %v2477 = vadd.f32 %v2334, %v2476
        %v2478 = vrot.slane %v2477, 2
        %v2479 = vadd.f32 %v2477, %v2478
        %v2480 = vrot.slane %v2479, 1
        %v2481 = vadd.f32 %v2479, %v2480
        %v2482 = vrot.slane %v2335, 4
        %v2483 = vadd.f32 %v2335, %v2482
        %v2484 = vrot.slane %v2483, 2
        %v2485 = vadd.f32 %v2483, %v2484
        %v2486 = vrot.slane %v2485, 1
        %v2487 = vadd.f32 %v2485, %v2486
        %v2488 = vrot.slane %v2336, 4
        %v2489 = vadd.f32 %v2336, %v2488
        %v2490 = vrot.slane %v2489, 2
        %v2491 = vadd.f32 %v2489, %v2490
        %v2492 = vrot.slane %v2491, 1
        %v2493 = vadd.f32 %v2491, %v2492
        %v2494 = vrot.slane %v2337, 4
        %v2495 = vadd.f32 %v2337, %v2494
        %v2496 = vrot.slane %v2495, 2
        %v2497 = vadd.f32 %v2495, %v2496
        %v2498 = vrot.slane %v2497, 1
        %v2499 = vadd.f32 %v2497, %v2498
        %v2500 = vrot.slane %v2338, 4
        %v2501 = vadd.f32 %v2338, %v2500
        %v2502 = vrot.slane %v2501, 2
        %v2503 = vadd.f32 %v2501, %v2502
        %v2504 = vrot.slane %v2503, 1
        %v2505 = vadd.f32 %v2503, %v2504
        %v2506 = vrot.slane %v2339, 4
        %v2507 = vadd.f32 %v2339, %v2506
        %v2508 = vrot.slane %v2507, 2
        %v2509 = vadd.f32 %v2507, %v2508
        %v2510 = vrot.slane %v2509, 1
        %v2511 = vadd.f32 %v2509, %v2510
        %v2512 = vrot.slane %v2340, 4
        %v2513 = vadd.f32 %v2340, %v2512
        %v2514 = vrot.slane %v2513, 2
        %v2515 = vadd.f32 %v2513, %v2514
        %v2516 = vrot.slane %v2515, 1
        %v2517 = vadd.f32 %v2515, %v2516
        %v2518 = vrot.slane %v2341, 4
        %v2519 = vadd.f32 %v2341, %v2518
        %v2520 = vrot.slane %v2519, 2
        %v2521 = vadd.f32 %v2519, %v2520
        %v2522 = vrot.slane %v2521, 1
        %v2523 = vadd.f32 %v2521, %v2522
        %v2524 = vrot.slane %v2342, 4
        %v2525 = vadd.f32 %v2342, %v2524
        %v2526 = vrot.slane %v2525, 2
        %v2527 = vadd.f32 %v2525, %v2526
        %v2528 = vrot.slane %v2527, 1
        %v2529 = vadd.f32 %v2527, %v2528
        %v2530 = vrot.slane %v2343, 4
        %v2531 = vadd.f32 %v2343, %v2530
        %v2532 = vrot.slane %v2531, 2
        %v2533 = vadd.f32 %v2531, %v2532
        %v2534 = vrot.slane %v2533, 1
        %v2535 = vadd.f32 %v2533, %v2534
        %v2536 = vrcp.pop 8.0
        %v2537 = vmul.f32 8.0, %v2536
        %v2538 = vsub.f32 1.0, %v2537
        %v2539 = vmul.f32 %v2536, %v2538
        %v2540 = vadd.f32 %v2536, %v2539
        %vm2541 = vweird.f32 %v2536
        %v2542 = vsel %vm2541, %v2536, %v2540
        %v2543 = vmul.f32 %v2349, %v2542
        %v2544 = vmul.f32 %v2355, %v2542
        %v2545 = vmul.f32 %v2361, %v2542
        %v2546 = vmul.f32 %v2367, %v2542
        %v2547 = vmul.f32 %v2373, %v2542
        %v2548 = vmul.f32 %v2379, %v2542
        %v2549 = vmul.f32 %v2385, %v2542
        %v2550 = vmul.f32 %v2391, %v2542
        %v2551 = vmul.f32 %v2397, %v2542
        %v2552 = vmul.f32 %v2403, %v2542
        %v2553 = vmul.f32 %v2409, %v2542
        %v2554 = vmul.f32 %v2415, %v2542
        %v2555 = vmul.f32 %v2421, %v2542
        %v2556 = vmul.f32 %v2427, %v2542
        %v2557 = vmul.f32 %v2433, %v2542
        %v2558 = vmul.f32 %v2439, %v2542
        %v2559 = vmul.f32 %v2445, %v2542
        %v2560 = vmul.f32 %v2451, %v2542
        %v2561 = vmul.f32 %v2457, %v2542
        %v2562 = vmul.f32 %v2463, %v2542
        %v2563 = vmul.f32 %v2469, %v2542
        %v2564 = vmul.f32 %v2475, %v2542
        %v2565 = vmul.f32 %v2481, %v2542
        %v2566 = vmul.f32 %v2487, %v2542
        %v2567 = vmul.f32 %v2493, %v2542
        %v2568 = vmul.f32 %v2499, %v2542
        %v2569 = vmul.f32 %v2505, %v2542
        %v2570 = vmul.f32 %v2511, %v2542
        %v2571 = vmul.f32 %v2517, %v2542
        %v2572 = vmul.f32 %v2523, %v2542
        %v2573 = vmul.f32 %v2529, %v2542
        %v2574 = vmul.f32 %v2535, %v2542
        %v2575 = vld [vmem:[#allocation8] sm:$0xff]
        %v2576 = vld [vmem:[#allocation8 + $0x8] sm:$0xff]
        %v2577 = vld [vmem:[#allocation8 + $0x10] sm:$0xff]
        %v2578 = vld [vmem:[#allocation8 + $0x18] sm:$0xff]
        %v2579 = vld [vmem:[#allocation8 + $0x20] sm:$0xff]
        %v2580 = vld [vmem:[#allocation8 + $0x28] sm:$0xff]
        %v2581 = vld [vmem:[#allocation8 + $0x30] sm:$0xff]
        %v2582 = vld [vmem:[#allocation8 + $0x38] sm:$0xff]
        %v2583 = vld [vmem:[#allocation8 + $0x40] sm:$0xff]
        %v2584 = vld [vmem:[#allocation8 + $0x48] sm:$0xff]
        %v2585 = vld [vmem:[#allocation8 + $0x50] sm:$0xff]
        %v2586 = vld [vmem:[#allocation8 + $0x58] sm:$0xff]
        %v2587 = vld [vmem:[#allocation8 + $0x60] sm:$0xff]
        %v2588 = vld [vmem:[#allocation8 + $0x68] sm:$0xff]
        %v2589 = vld [vmem:[#allocation8 + $0x70] sm:$0xff]
        %v2590 = vld [vmem:[#allocation8 + $0x78] sm:$0xff]
        %v2591 = vld [vmem:[#allocation8 + $0x80] sm:$0xff]
        %v2592 = vld [vmem:[#allocation8 + $0x88] sm:$0xff]
        %v2593 = vld [vmem:[#allocation8 + $0x90] sm:$0xff]
        %v2594 = vld [vmem:[#allocation8 + $0x98] sm:$0xff]
        %v2595 = vld [vmem:[#allocation8 + $0xa0] sm:$0xff]
        %v2596 = vld [vmem:[#allocation8 + $0xa8] sm:$0xff]
        %v2597 = vld [vmem:[#allocation8 + $0xb0] sm:$0xff]
        %v2598 = vld [vmem:[#allocation8 + $0xb8] sm:$0xff]
        %v2599 = vld [vmem:[#allocation8 + $0xc0] sm:$0xff]
        %v2600 = vld [vmem:[#allocation8 + $0xc8] sm:$0xff]
        %v2601 = vld [vmem:[#allocation8 + $0xd0] sm:$0xff]
        %v2602 = vld [vmem:[#allocation8 + $0xd8] sm:$0xff]
        %v2603 = vld [vmem:[#allocation8 + $0xe0] sm:$0xff]
        %v2604 = vld [vmem:[#allocation8 + $0xe8] sm:$0xff]
        %v2605 = vld [vmem:[#allocation8 + $0xf0] sm:$0xff]
        %v2606 = vld [vmem:[#allocation8 + $0xf8] sm:$0xff]
        %v2607 = vld [vmem:[#allocation8 + $0x100] sm:$0xff]
        %v2608 = vld [vmem:[#allocation8 + $0x108] sm:$0xff]
        %v2609 = vld [vmem:[#allocation8 + $0x110] sm:$0xff]
        %v2610 = vld [vmem:[#allocation8 + $0x118] sm:$0xff]
        %v2611 = vld [vmem:[#allocation8 + $0x120] sm:$0xff]
        %v2612 = vld [vmem:[#allocation8 + $0x128] sm:$0xff]
        %v2613 = vld [vmem:[#allocation8 + $0x130] sm:$0xff]
        %v2614 = vld [vmem:[#allocation8 + $0x138] sm:$0xff]
        %v2615 = vld [vmem:[#allocation8 + $0x140] sm:$0xff]
        %v2616 = vld [vmem:[#allocation8 + $0x148] sm:$0xff]
        %v2617 = vld [vmem:[#allocation8 + $0x150] sm:$0xff]
        %v2618 = vld [vmem:[#allocation8 + $0x158] sm:$0xff]
        %v2619 = vld [vmem:[#allocation8 + $0x160] sm:$0xff]
        %v2620 = vld [vmem:[#allocation8 + $0x168] sm:$0xff]
        %v2621 = vld [vmem:[#allocation8 + $0x170] sm:$0xff]
        %v2622 = vld [vmem:[#allocation8 + $0x178] sm:$0xff]
        %v2623 = vld [vmem:[#allocation8 + $0x180] sm:$0xff]
        %v2624 = vld [vmem:[#allocation8 + $0x188] sm:$0xff]
        %v2625 = vld [vmem:[#allocation8 + $0x190] sm:$0xff]
        %v2626 = vld [vmem:[#allocation8 + $0x198] sm:$0xff]
        %v2627 = vld [vmem:[#allocation8 + $0x1a0] sm:$0xff]
        %v2628 = vld [vmem:[#allocation8 + $0x1a8] sm:$0xff]
        %v2629 = vld [vmem:[#allocation8 + $0x1b0] sm:$0xff]
        %v2630 = vld [vmem:[#allocation8 + $0x1b8] sm:$0xff]
        %v2631 = vld [vmem:[#allocation8 + $0x1c0] sm:$0xff]
        %v2632 = vld [vmem:[#allocation8 + $0x1c8] sm:$0xff]
        %v2633 = vld [vmem:[#allocation8 + $0x1d0] sm:$0xff]
        %v2634 = vld [vmem:[#allocation8 + $0x1d8] sm:$0xff]
        %v2635 = vld [vmem:[#allocation8 + $0x1e0] sm:$0xff]
        %v2636 = vld [vmem:[#allocation8 + $0x1e8] sm:$0xff]
        %v2637 = vld [vmem:[#allocation8 + $0x1f0] sm:$0xff]
        %v2638 = vld [vmem:[#allocation8 + $0x1f8] sm:$0xff]
        %vm2671 = vcmask 1041409
        %v2672 = vsel %vm2671, %v2545, %v2543
        %vm2673 = vcmask 1042434
        %v2674 = vsel %vm2673, %v2547, %v2672
        %vm2675 = vcmask 1043459
        %v2676 = vsel %vm2675, %v2549, %v2674
        %vm2677 = vcmask 1044484
        %v2678 = vsel %vm2677, %v2551, %v2676
        %vm2679 = vcmask 1045509
        %v2680 = vsel %vm2679, %v2553, %v2678
        %vm2681 = vcmask 1046534
        %v2682 = vsel %vm2681, %v2555, %v2680
        %vm2683 = vcmask 1047559
        %v2684 = vsel %vm2683, %v2557, %v2682
        %v2685 = vsel %vm2671, %v2546, %v2544
        %v2686 = vsel %vm2673, %v2548, %v2685
        %v2687 = vsel %vm2675, %v2550, %v2686
        %v2688 = vsel %vm2677, %v2552, %v2687
        %v2689 = vsel %vm2679, %v2554, %v2688
        %v2690 = vsel %vm2681, %v2556, %v2689
        %v2691 = vsel %vm2683, %v2558, %v2690
        %v2692 = vsel %vm2671, %v2561, %v2559
        %v2693 = vsel %vm2673, %v2563, %v2692
        %v2694 = vsel %vm2675, %v2565, %v2693
        %v2695 = vsel %vm2677, %v2567, %v2694
        %v2696 = vsel %vm2679, %v2569, %v2695
        %v2697 = vsel %vm2681, %v2571, %v2696
        %v2698 = vsel %vm2683, %v2573, %v2697
        %v2699 = vsel %vm2671, %v2562, %v2560
        %v2700 = vsel %vm2673, %v2564, %v2699
        %v2701 = vsel %vm2675, %v2566, %v2700
        %v2702 = vsel %vm2677, %v2568, %v2701
        %v2703 = vsel %vm2679, %v2570, %v2702
        %v2704 = vsel %vm2681, %v2572, %v2703
        %v2705 = vsel %vm2683, %v2574, %v2704
        %2710 = vmatpush.msra.mxu0 %v2605
        %2711 = vmatpush.msra.mxu0 %v2603
        %2712 = vmatpush.msra.mxu0 %v2601
        %2713 = vmatpush.msra.mxu0 %v2599
        %2714 = vmatpush.msra.mxu0 %v2597
        %2715 = vmatpush.msra.mxu0 %v2595
        %2716 = vmatpush.msra.mxu0 %v2593
        %2717 = vmatpush.msra.mxu0 %v2591
        %2718 = vmatpush.msra.mxu0 %v2589
        %2719 = vmatpush.msra.mxu0 %v2587
        %2720 = vmatpush.msra.mxu0 %v2585
        %2721 = vmatpush.msra.mxu0 %v2583
        %2722 = vmatpush.msra.mxu0 %v2581
        %2723 = vmatpush.msra.mxu0 %v2579
        %2724 = vmatpush.msra.mxu0 %v2577
        %2725 = vmatpush.msra.mxu0 %v2575
        %2726 = vmatmul.f32.gmra.mxu0 %v2684
        %v2727 = vpop.f32.mrf.mxu0
        %v2728 = vadd.f32 0.0, %v2727
        %2729 = vmatmul.f32.gmra.mxu0 %v2698
        %v2730 = vpop.f32.mrf.mxu0
        %v2731 = vadd.f32 0.0, %v2730
        %2732 = vdwg.mxu0
        %2733 = vmatpush.msra.mxu0 %v2637
        %2734 = vmatpush.msra.mxu0 %v2635
        %2735 = vmatpush.msra.mxu0 %v2633
        %2736 = vmatpush.msra.mxu0 %v2631
        %2737 = vmatpush.msra.mxu0 %v2629
        %2738 = vmatpush.msra.mxu0 %v2627
        %2739 = vmatpush.msra.mxu0 %v2625
        %2740 = vmatpush.msra.mxu0 %v2623
        %2741 = vmatpush.msra.mxu0 %v2621
        %2742 = vmatpush.msra.mxu0 %v2619
        %2743 = vmatpush.msra.mxu0 %v2617
        %2744 = vmatpush.msra.mxu0 %v2615
        %2745 = vmatpush.msra.mxu0 %v2613
        %2746 = vmatpush.msra.mxu0 %v2611
        %2747 = vmatpush.msra.mxu0 %v2609
        %2748 = vmatpush.msra.mxu0 %v2607
        %2749 = vmatmul.f32.gmra.mxu0 %v2691
        %v2750 = vpop.f32.mrf.mxu0
        %v2751 = vadd.f32 %v2728, %v2750
        %2752 = vmatmul.f32.gmra.mxu0 %v2705
        %v2753 = vpop.f32.mrf.mxu0
        %v2754 = vadd.f32 %v2731, %v2753
        %2755 = vdwg.mxu0
        %2756 = vmatpush.msra.mxu0 %v2606
        %2757 = vmatpush.msra.mxu0 %v2604
        %2758 = vmatpush.msra.mxu0 %v2602
        %2759 = vmatpush.msra.mxu0 %v2600
        %2760 = vmatpush.msra.mxu0 %v2598
        %2761 = vmatpush.msra.mxu0 %v2596
        %2762 = vmatpush.msra.mxu0 %v2594
        %2763 = vmatpush.msra.mxu0 %v2592
        %2764 = vmatpush.msra.mxu0 %v2590
        %2765 = vmatpush.msra.mxu0 %v2588
        %2766 = vmatpush.msra.mxu0 %v2586
        %2767 = vmatpush.msra.mxu0 %v2584
        %2768 = vmatpush.msra.mxu0 %v2582
        %2769 = vmatpush.msra.mxu0 %v2580
        %2770 = vmatpush.msra.mxu0 %v2578
        %2771 = vmatpush.msra.mxu0 %v2576
        %2772 = vmatmul.f32.gmra.mxu0 %v2684
        %v2773 = vpop.f32.mrf.mxu0
        %v2774 = vadd.f32 0.0, %v2773
        %2775 = vmatmul.f32.gmra.mxu0 %v2698
        %v2776 = vpop.f32.mrf.mxu0
        %v2777 = vadd.f32 0.0, %v2776
        %2778 = vdwg.mxu0
        %2779 = vmatpush.msra.mxu0 %v2638
        %2780 = vmatpush.msra.mxu0 %v2636
        %2781 = vmatpush.msra.mxu0 %v2634
        %2782 = vmatpush.msra.mxu0 %v2632
        %2783 = vmatpush.msra.mxu0 %v2630
        %2784 = vmatpush.msra.mxu0 %v2628
        %2785 = vmatpush.msra.mxu0 %v2626
        %2786 = vmatpush.msra.mxu0 %v2624
        %2787 = vmatpush.msra.mxu0 %v2622
        %2788 = vmatpush.msra.mxu0 %v2620
        %2789 = vmatpush.msra.mxu0 %v2618
        %2790 = vmatpush.msra.mxu0 %v2616
        %2791 = vmatpush.msra.mxu0 %v2614
        %2792 = vmatpush.msra.mxu0 %v2612
        %2793 = vmatpush.msra.mxu0 %v2610
        %2794 = vmatpush.msra.mxu0 %v2608
        %2795 = vmatmul.f32.gmra.mxu0 %v2691
        %v2796 = vpop.f32.mrf.mxu0
        %v2797 = vadd.f32 %v2774, %v2796
        %2798 = vmatmul.f32.gmra.mxu0 %v2705
        %v2799 = vpop.f32.mrf.mxu0
        %v2800 = vadd.f32 %v2777, %v2799
        %2801 = vdwg.mxu0
        %v2806 = vrot.slane %v2797, 7
        %v2807 = vrot.slane %v2800, 7
        %vm2808 = vcmask 1040384
        %v2809 = vsel %vm2808, %v2751, %v2806
        %v2810 = vsel %vm2671, %v2751, %v2806
        %v2811 = vrot.slane %v2810, 1
        %v2812 = vsel %vm2673, %v2751, %v2806
        %v2813 = vrot.slane %v2812, 2
        %v2814 = vsel %vm2675, %v2751, %v2806
        %v2815 = vrot.slane %v2814, 3
        %v2816 = vsel %vm2677, %v2751, %v2806
        %v2817 = vrot.slane %v2816, 4
        %v2818 = vsel %vm2679, %v2751, %v2806
        %v2819 = vrot.slane %v2818, 5
        %v2820 = vsel %vm2681, %v2751, %v2806
        %v2821 = vrot.slane %v2820, 6
        %vm2822 = vcmask 1046528
        %v2823 = vsel %vm2822, %v2806, %v2751
        %v2824 = vrot.slane %v2823, 7
        %v2825 = vsel %vm2808, %v2754, %v2807
        %v2826 = vsel %vm2671, %v2754, %v2807
        %v2827 = vrot.slane %v2826, 1
        %v2828 = vsel %vm2673, %v2754, %v2807
        %v2829 = vrot.slane %v2828, 2
        %v2830 = vsel %vm2675, %v2754, %v2807
        %v2831 = vrot.slane %v2830, 3
        %v2832 = vsel %vm2677, %v2754, %v2807
        %v2833 = vrot.slane %v2832, 4
        %v2834 = vsel %vm2679, %v2754, %v2807
        %v2835 = vrot.slane %v2834, 5
        %v2836 = vsel %vm2681, %v2754, %v2807
        %v2837 = vrot.slane %v2836, 6
        %v2838 = vsel %vm2822, %v2807, %v2754
        %v2839 = vrot.slane %v2838, 7
        %v2840 = vperm.slane %v2809, 0
        %v2841 = vperm.slane %v2809, 1
        %v2842 = vperm.slane %v2811, 0
        %v2843 = vperm.slane %v2811, 1
        %v2844 = vperm.slane %v2813, 0
        %v2845 = vperm.slane %v2813, 1
        %v2846 = vperm.slane %v2815, 0
        %v2847 = vperm.slane %v2815, 1
        %v2848 = vperm.slane %v2817, 0
        %v2849 = vperm.slane %v2817, 1
        %v2850 = vperm.slane %v2819, 0
        %v2851 = vperm.slane %v2819, 1
        %v2852 = vperm.slane %v2821, 0
        %v2853 = vperm.slane %v2821, 1
        %v2854 = vperm.slane %v2824, 0
        %v2855 = vperm.slane %v2824, 1
        %v2856 = vperm.slane %v2825, 0
        %v2857 = vperm.slane %v2825, 1
        %v2858 = vperm.slane %v2827, 0
        %v2859 = vperm.slane %v2827, 1
        %v2860 = vperm.slane %v2829, 0
        %v2861 = vperm.slane %v2829, 1
        %v2862 = vperm.slane %v2831, 0
        %v2863 = vperm.slane %v2831, 1
        %v2864 = vperm.slane %v2833, 0
        %v2865 = vperm.slane %v2833, 1
        %v2866 = vperm.slane %v2835, 0
        %v2867 = vperm.slane %v2835, 1
        %v2868 = vperm.slane %v2837, 0
        %v2869 = vperm.slane %v2837, 1
        %v2870 = vperm.slane %v2839, 0
        %v2871 = vperm.slane %v2839, 1
        %v2904 = vsub.f32 %v2312, %v2840
        %v2905 = vsub.f32 %v2313, %v2841
        %v2906 = vsub.f32 %v2314, %v2842
        %v2907 = vsub.f32 %v2315, %v2843
        %v2908 = vsub.f32 %v2316, %v2844
        %v2909 = vsub.f32 %v2317, %v2845
        %v2910 = vsub.f32 %v2318, %v2846
        %v2911 = vsub.f32 %v2319, %v2847
        %v2912 = vsub.f32 %v2320, %v2848
        %v2913 = vsub.f32 %v2321, %v2849
        %v2914 = vsub.f32 %v2322, %v2850
        %v2915 = vsub.f32 %v2323, %v2851
        %v2916 = vsub.f32 %v2324, %v2852
        %v2917 = vsub.f32 %v2325, %v2853
        %v2918 = vsub.f32 %v2326, %v2854
        %v2919 = vsub.f32 %v2327, %v2855
        %v2920 = vsub.f32 %v2328, %v2856
        %v2921 = vsub.f32 %v2329, %v2857
        %v2922 = vsub.f32 %v2330, %v2858
        %v2923 = vsub.f32 %v2331, %v2859
        %v2924 = vsub.f32 %v2332, %v2860
        %v2925 = vsub.f32 %v2333, %v2861
        %v2926 = vsub.f32 %v2334, %v2862
        %v2927 = vsub.f32 %v2335, %v2863
        %v2928 = vsub.f32 %v2336, %v2864
        %v2929 = vsub.f32 %v2337, %v2865
        %v2930 = vsub.f32 %v2338, %v2866
        %v2931 = vsub.f32 %v2339, %v2867
        %v2932 = vsub.f32 %v2340, %v2868
        %v2933 = vsub.f32 %v2341, %v2869
        %v2934 = vsub.f32 %v2342, %v2870
        %v2935 = vsub.f32 %v2343, %v2871
        %v2936 = vmul.f32 %v2904, %v2904
        %v2937 = vmul.f32 %v2905, %v2905
        %v2938 = vmul.f32 %v2906, %v2906
        %v2939 = vmul.f32 %v2907, %v2907
        %v2940 = vmul.f32 %v2908, %v2908
        %v2941 = vmul.f32 %v2909, %v2909
        %v2942 = vmul.f32 %v2910, %v2910
        %v2943 = vmul.f32 %v2911, %v2911
        %v2944 = vmul.f32 %v2912, %v2912
        %v2945 = vmul.f32 %v2913, %v2913
        %v2946 = vmul.f32 %v2914, %v2914
        %v2947 = vmul.f32 %v2915, %v2915
        %v2948 = vmul.f32 %v2916, %v2916
        %v2949 = vmul.f32 %v2917, %v2917
        %v2950 = vmul.f32 %v2918, %v2918
        %v2951 = vmul.f32 %v2919, %v2919
        %v2952 = vmul.f32 %v2920, %v2920
        %v2953 = vmul.f32 %v2921, %v2921
        %v2954 = vmul.f32 %v2922, %v2922
        %v2955 = vmul.f32 %v2923, %v2923
        %v2956 = vmul.f32 %v2924, %v2924
        %v2957 = vmul.f32 %v2925, %v2925
        %v2958 = vmul.f32 %v2926, %v2926
        %v2959 = vmul.f32 %v2927, %v2927
        %v2960 = vmul.f32 %v2928, %v2928
        %v2961 = vmul.f32 %v2929, %v2929
        %v2962 = vmul.f32 %v2930, %v2930
        %v2963 = vmul.f32 %v2931, %v2931
        %v2964 = vmul.f32 %v2932, %v2932
        %v2965 = vmul.f32 %v2933, %v2933
        %v2966 = vmul.f32 %v2934, %v2934
        %v2967 = vmul.f32 %v2935, %v2935
        %v2968 = vrot.slane %v2936, 4
        %v2969 = vadd.f32 %v2936, %v2968
        %v2970 = vrot.slane %v2969, 2
        %v2971 = vadd.f32 %v2969, %v2970
        %v2972 = vrot.slane %v2971, 1
        %v2973 = vadd.f32 %v2971, %v2972
        %v2974 = vrot.slane %v2937, 4
        %v2975 = vadd.f32 %v2937, %v2974
        %v2976 = vrot.slane %v2975, 2
        %v2977 = vadd.f32 %v2975, %v2976
        %v2978 = vrot.slane %v2977, 1
        %v2979 = vadd.f32 %v2977, %v2978
        %v2980 = vrot.slane %v2938, 4
        %v2981 = vadd.f32 %v2938, %v2980
        %v2982 = vrot.slane %v2981, 2
        %v2983 = vadd.f32 %v2981, %v2982
        %v2984 = vrot.slane %v2983, 1
        %v2985 = vadd.f32 %v2983, %v2984
        %v2986 = vrot.slane %v2939, 4
        %v2987 = vadd.f32 %v2939, %v2986
        %v2988 = vrot.slane %v2987, 2
        %v2989 = vadd.f32 %v2987, %v2988
        %v2990 = vrot.slane %v2989, 1
        %v2991 = vadd.f32 %v2989, %v2990
        %v2992 = vrot.slane %v2940, 4
        %v2993 = vadd.f32 %v2940, %v2992
        %v2994 = vrot.slane %v2993, 2
        %v2995 = vadd.f32 %v2993, %v2994
        %v2996 = vrot.slane %v2995, 1
        %v2997 = vadd.f32 %v2995, %v2996
        %v2998 = vrot.slane %v2941, 4
        %v2999 = vadd.f32 %v2941, %v2998
        %v3000 = vrot.slane %v2999, 2
        %v3001 = vadd.f32 %v2999, %v3000
        %v3002 = vrot.slane %v3001, 1
        %v3003 = vadd.f32 %v3001, %v3002
        %v3004 = vrot.slane %v2942, 4
        %v3005 = vadd.f32 %v2942, %v3004
        %v3006 = vrot.slane %v3005, 2
        %v3007 = vadd.f32 %v3005, %v3006
        %v3008 = vrot.slane %v3007, 1
        %v3009 = vadd.f32 %v3007, %v3008
        %v3010 = vrot.slane %v2943, 4
        %v3011 = vadd.f32 %v2943, %v3010
        %v3012 = vrot.slane %v3011, 2
        %v3013 = vadd.f32 %v3011, %v3012
        %v3014 = vrot.slane %v3013, 1
        %v3015 = vadd.f32 %v3013, %v3014
        %v3016 = vrot.slane %v2944, 4
        %v3017 = vadd.f32 %v2944, %v3016
        %v3018 = vrot.slane %v3017, 2
        %v3019 = vadd.f32 %v3017, %v3018
        %v3020 = vrot.slane %v3019, 1
        %v3021 = vadd.f32 %v3019, %v3020
        %v3022 = vrot.slane %v2945, 4
        %v3023 = vadd.f32 %v2945, %v3022
        %v3024 = vrot.slane %v3023, 2
        %v3025 = vadd.f32 %v3023, %v3024
        %v3026 = vrot.slane %v3025, 1
        %v3027 = vadd.f32 %v3025, %v3026
        %v3028 = vrot.slane %v2946, 4
        %v3029 = vadd.f32 %v2946, %v3028
        %v3030 = vrot.slane %v3029, 2
        %v3031 = vadd.f32 %v3029, %v3030
        %v3032 = vrot.slane %v3031, 1
        %v3033 = vadd.f32 %v3031, %v3032
        %v3034 = vrot.slane %v2947, 4
        %v3035 = vadd.f32 %v2947, %v3034
        %v3036 = vrot.slane %v3035, 2
        %v3037 = vadd.f32 %v3035, %v3036
        %v3038 = vrot.slane %v3037, 1
        %v3039 = vadd.f32 %v3037, %v3038
        %v3040 = vrot.slane %v2948, 4
        %v3041 = vadd.f32 %v2948, %v3040
        %v3042 = vrot.slane %v3041, 2
        %v3043 = vadd.f32 %v3041, %v3042
        %v3044 = vrot.slane %v3043, 1
        %v3045 = vadd.f32 %v3043, %v3044
        %v3046 = vrot.slane %v2949, 4
        %v3047 = vadd.f32 %v2949, %v3046
        %v3048 = vrot.slane %v3047, 2
        %v3049 = vadd.f32 %v3047, %v3048
        %v3050 = vrot.slane %v3049, 1
        %v3051 = vadd.f32 %v3049, %v3050
        %v3052 = vrot.slane %v2950, 4
        %v3053 = vadd.f32 %v2950, %v3052
        %v3054 = vrot.slane %v3053, 2
        %v3055 = vadd.f32 %v3053, %v3054
        %v3056 = vrot.slane %v3055, 1
        %v3057 = vadd.f32 %v3055, %v3056
        %v3058 = vrot.slane %v2951, 4
        %v3059 = vadd.f32 %v2951, %v3058
        %v3060 = vrot.slane %v3059, 2
        %v3061 = vadd.f32 %v3059, %v3060
        %v3062 = vrot.slane %v3061, 1
        %v3063 = vadd.f32 %v3061, %v3062
        %v3064 = vrot.slane %v2952, 4
        %v3065 = vadd.f32 %v2952, %v3064
        %v3066 = vrot.slane %v3065, 2
        %v3067 = vadd.f32 %v3065, %v3066
        %v3068 = vrot.slane %v3067, 1
        %v3069 = vadd.f32 %v3067, %v3068
        %v3070 = vrot.slane %v2953, 4
        %v3071 = vadd.f32 %v2953, %v3070
        %v3072 = vrot.slane %v3071, 2
        %v3073 = vadd.f32 %v3071, %v3072
        %v3074 = vrot.slane %v3073, 1
        %v3075 = vadd.f32 %v3073, %v3074
        %v3076 = vrot.slane %v2954, 4
        %v3077 = vadd.f32 %v2954, %v3076
        %v3078 = vrot.slane %v3077, 2
        %v3079 = vadd.f32 %v3077, %v3078
        %v3080 = vrot.slane %v3079, 1
        %v3081 = vadd.f32 %v3079, %v3080
        %v3082 = vrot.slane %v2955, 4
        %v3083 = vadd.f32 %v2955, %v3082
        %v3084 = vrot.slane %v3083, 2
        %v3085 = vadd.f32 %v3083, %v3084
        %v3086 = vrot.slane %v3085, 1
        %v3087 = vadd.f32 %v3085, %v3086
        %v3088 = vrot.slane %v2956, 4
        %v3089 = vadd.f32 %v2956, %v3088
        %v3090 = vrot.slane %v3089, 2
        %v3091 = vadd.f32 %v3089, %v3090
        %v3092 = vrot.slane %v3091, 1
        %v3093 = vadd.f32 %v3091, %v3092
        %v3094 = vrot.slane %v2957, 4
        %v3095 = vadd.f32 %v2957, %v3094
        %v3096 = vrot.slane %v3095, 2
        %v3097 = vadd.f32 %v3095, %v3096
        %v3098 = vrot.slane %v3097, 1
        %v3099 = vadd.f32 %v3097, %v3098
        %v3100 = vrot.slane %v2958, 4
        %v3101 = vadd.f32 %v2958, %v3100
        %v3102 = vrot.slane %v3101, 2
        %v3103 = vadd.f32 %v3101, %v3102
        %v3104 = vrot.slane %v3103, 1
        %v3105 = vadd.f32 %v3103, %v3104
        %v3106 = vrot.slane %v2959, 4
        %v3107 = vadd.f32 %v2959, %v3106
        %v3108 = vrot.slane %v3107, 2
        %v3109 = vadd.f32 %v3107, %v3108
        %v3110 = vrot.slane %v3109, 1
        %v3111 = vadd.f32 %v3109, %v3110
        %v3112 = vrot.slane %v2960, 4
        %v3113 = vadd.f32 %v2960, %v3112
        %v3114 = vrot.slane %v3113, 2
        %v3115 = vadd.f32 %v3113, %v3114
        %v3116 = vrot.slane %v3115, 1
        %v3117 = vadd.f32 %v3115, %v3116
        %v3118 = vrot.slane %v2961, 4
        %v3119 = vadd.f32 %v2961, %v3118
        %v3120 = vrot.slane %v3119, 2
        %v3121 = vadd.f32 %v3119, %v3120
        %v3122 = vrot.slane %v3121, 1
        %v3123 = vadd.f32 %v3121, %v3122
        %v3124 = vrot.slane %v2962, 4
        %v3125 = vadd.f32 %v2962, %v3124
        %v3126 = vrot.slane %v3125, 2
        %v3127 = vadd.f32 %v3125, %v3126
        %v3128 = vrot.slane %v3127, 1
        %v3129 = vadd.f32 %v3127, %v3128
        %v3130 = vrot.slane %v2963, 4
        %v3131 = vadd.f32 %v2963, %v3130
        %v3132 = vrot.slane %v3131, 2
        %v3133 = vadd.f32 %v3131, %v3132
        %v3134 = vrot.slane %v3133, 1
        %v3135 = vadd.f32 %v3133, %v3134
        %v3136 = vrot.slane %v2964, 4
        %v3137 = vadd.f32 %v2964, %v3136
        %v3138 = vrot.slane %v3137, 2
        %v3139 = vadd.f32 %v3137, %v3138
        %v3140 = vrot.slane %v3139, 1
        %v3141 = vadd.f32 %v3139, %v3140
        %v3142 = vrot.slane %v2965, 4
        %v3143 = vadd.f32 %v2965, %v3142
        %v3144 = vrot.slane %v3143, 2
        %v3145 = vadd.f32 %v3143, %v3144
        %v3146 = vrot.slane %v3145, 1
        %v3147 = vadd.f32 %v3145, %v3146
        %v3148 = vrot.slane %v2966, 4
        %v3149 = vadd.f32 %v2966, %v3148
        %v3150 = vrot.slane %v3149, 2
        %v3151 = vadd.f32 %v3149, %v3150
        %v3152 = vrot.slane %v3151, 1
        %v3153 = vadd.f32 %v3151, %v3152
        %v3154 = vrot.slane %v2967, 4
        %v3155 = vadd.f32 %v2967, %v3154
        %v3156 = vrot.slane %v3155, 2
        %v3157 = vadd.f32 %v3155, %v3156
        %v3158 = vrot.slane %v3157, 1
        %v3159 = vadd.f32 %v3157, %v3158
        %v3160 = vmul.f32 %v2973, %v2542
        %v3161 = vmul.f32 %v2979, %v2542
        %v3162 = vmul.f32 %v2985, %v2542
        %v3163 = vmul.f32 %v2991, %v2542
        %v3164 = vmul.f32 %v2997, %v2542
        %v3165 = vmul.f32 %v3003, %v2542
        %v3166 = vmul.f32 %v3009, %v2542
        %v3167 = vmul.f32 %v3015, %v2542
        %v3168 = vmul.f32 %v3021, %v2542
        %v3169 = vmul.f32 %v3027, %v2542
        %v3170 = vmul.f32 %v3033, %v2542
        %v3171 = vmul.f32 %v3039, %v2542
        %v3172 = vmul.f32 %v3045, %v2542
        %v3173 = vmul.f32 %v3051, %v2542
        %v3174 = vmul.f32 %v3057, %v2542
        %v3175 = vmul.f32 %v3063, %v2542
        %v3176 = vmul.f32 %v3069, %v2542
        %v3177 = vmul.f32 %v3075, %v2542
        %v3178 = vmul.f32 %v3081, %v2542
        %v3179 = vmul.f32 %v3087, %v2542
        %v3180 = vmul.f32 %v3093, %v2542
        %v3181 = vmul.f32 %v3099, %v2542
        %v3182 = vmul.f32 %v3105, %v2542
        %v3183 = vmul.f32 %v3111, %v2542
        %v3184 = vmul.f32 %v3117, %v2542
        %v3185 = vmul.f32 %v3123, %v2542
        %v3186 = vmul.f32 %v3129, %v2542
        %v3187 = vmul.f32 %v3135, %v2542
        %v3188 = vmul.f32 %v3141, %v2542
        %v3189 = vmul.f32 %v3147, %v2542
        %v3190 = vmul.f32 %v3153, %v2542
        %v3191 = vmul.f32 %v3159, %v2542
        %v3224 = vsel %vm2671, %v3162, %v3160
        %v3225 = vsel %vm2673, %v3164, %v3224
        %v3226 = vsel %vm2675, %v3166, %v3225
        %v3227 = vsel %vm2677, %v3168, %v3226
        %v3228 = vsel %vm2679, %v3170, %v3227
        %v3229 = vsel %vm2681, %v3172, %v3228
        %v3230 = vsel %vm2683, %v3174, %v3229
        %v3231 = vsel %vm2671, %v3163, %v3161
        %v3232 = vsel %vm2673, %v3165, %v3231
        %v3233 = vsel %vm2675, %v3167, %v3232
        %v3234 = vsel %vm2677, %v3169, %v3233
        %v3235 = vsel %vm2679, %v3171, %v3234
        %v3236 = vsel %vm2681, %v3173, %v3235
        %v3237 = vsel %vm2683, %v3175, %v3236
        %v3238 = vsel %vm2671, %v3178, %v3176
        %v3239 = vsel %vm2673, %v3180, %v3238
        %v3240 = vsel %vm2675, %v3182, %v3239
        %v3241 = vsel %vm2677, %v3184, %v3240
        %v3242 = vsel %vm2679, %v3186, %v3241
        %v3243 = vsel %vm2681, %v3188, %v3242
        %v3244 = vsel %vm2683, %v3190, %v3243
        %v3245 = vsel %vm2671, %v3179, %v3177
        %v3246 = vsel %vm2673, %v3181, %v3245
        %v3247 = vsel %vm2675, %v3183, %v3246
        %v3248 = vsel %vm2677, %v3185, %v3247
        %v3249 = vsel %vm2679, %v3187, %v3248
        %v3250 = vsel %vm2681, %v3189, %v3249
        %v3251 = vsel %vm2683, %v3191, %v3250
        %3256 = vmatpush.msra.mxu0 %v2605
        %3257 = vmatpush.msra.mxu0 %v2603
        %3258 = vmatpush.msra.mxu0 %v2601
        %3259 = vmatpush.msra.mxu0 %v2599
        %3260 = vmatpush.msra.mxu0 %v2597
        %3261 = vmatpush.msra.mxu0 %v2595
        %3262 = vmatpush.msra.mxu0 %v2593
        %3263 = vmatpush.msra.mxu0 %v2591
        %3264 = vmatpush.msra.mxu0 %v2589
        %3265 = vmatpush.msra.mxu0 %v2587
        %3266 = vmatpush.msra.mxu0 %v2585
        %3267 = vmatpush.msra.mxu0 %v2583
        %3268 = vmatpush.msra.mxu0 %v2581
        %3269 = vmatpush.msra.mxu0 %v2579
        %3270 = vmatpush.msra.mxu0 %v2577
        %3271 = vmatpush.msra.mxu0 %v2575
        %3272 = vmatmul.f32.gmra.mxu0 %v3230
        %v3273 = vpop.f32.mrf.mxu0
        %v3274 = vadd.f32 1e-05, %v3273
        %3275 = vmatmul.f32.gmra.mxu0 %v3244
        %v3276 = vpop.f32.mrf.mxu0
        %v3277 = vadd.f32 1e-05, %v3276
        %3278 = vdwg.mxu0
        %3279 = vmatpush.msra.mxu0 %v2637
        %3280 = vmatpush.msra.mxu0 %v2635
        %3281 = vmatpush.msra.mxu0 %v2633
        %3282 = vmatpush.msra.mxu0 %v2631
        %3283 = vmatpush.msra.mxu0 %v2629
        %3284 = vmatpush.msra.mxu0 %v2627
        %3285 = vmatpush.msra.mxu0 %v2625
        %3286 = vmatpush.msra.mxu0 %v2623
        %3287 = vmatpush.msra.mxu0 %v2621
        %3288 = vmatpush.msra.mxu0 %v2619
        %3289 = vmatpush.msra.mxu0 %v2617
        %3290 = vmatpush.msra.mxu0 %v2615
        %3291 = vmatpush.msra.mxu0 %v2613
        %3292 = vmatpush.msra.mxu0 %v2611
        %3293 = vmatpush.msra.mxu0 %v2609
        %3294 = vmatpush.msra.mxu0 %v2607
        %3295 = vmatmul.f32.gmra.mxu0 %v3237
        %v3296 = vpop.f32.mrf.mxu0
        %v3297 = vadd.f32 %v3274, %v3296
        %3298 = vmatmul.f32.gmra.mxu0 %v3251
        %v3299 = vpop.f32.mrf.mxu0
        %v3300 = vadd.f32 %v3277, %v3299
        %3301 = vdwg.mxu0
        %3302 = vmatpush.msra.mxu0 %v2606
        %3303 = vmatpush.msra.mxu0 %v2604
        %3304 = vmatpush.msra.mxu0 %v2602
        %3305 = vmatpush.msra.mxu0 %v2600
        %3306 = vmatpush.msra.mxu0 %v2598
        %3307 = vmatpush.msra.mxu0 %v2596
        %3308 = vmatpush.msra.mxu0 %v2594
        %3309 = vmatpush.msra.mxu0 %v2592
        %3310 = vmatpush.msra.mxu0 %v2590
        %3311 = vmatpush.msra.mxu0 %v2588
        %3312 = vmatpush.msra.mxu0 %v2586
        %3313 = vmatpush.msra.mxu0 %v2584
        %3314 = vmatpush.msra.mxu0 %v2582
        %3315 = vmatpush.msra.mxu0 %v2580
        %3316 = vmatpush.msra.mxu0 %v2578
        %3317 = vmatpush.msra.mxu0 %v2576
        %3318 = vmatmul.f32.gmra.mxu0 %v3230
        %v3319 = vpop.f32.mrf.mxu0
        %v3320 = vadd.f32 1e-05, %v3319
        %3321 = vmatmul.f32.gmra.mxu0 %v3244
        %v3322 = vpop.f32.mrf.mxu0
        %v3323 = vadd.f32 1e-05, %v3322
        %3324 = vdwg.mxu0
        %3325 = vmatpush.msra.mxu0 %v2638
        %3326 = vmatpush.msra.mxu0 %v2636
        %3327 = vmatpush.msra.mxu0 %v2634
        %3328 = vmatpush.msra.mxu0 %v2632
        %3329 = vmatpush.msra.mxu0 %v2630
        %3330 = vmatpush.msra.mxu0 %v2628
        %3331 = vmatpush.msra.mxu0 %v2626
        %3332 = vmatpush.msra.mxu0 %v2624
        %3333 = vmatpush.msra.mxu0 %v2622
        %3334 = vmatpush.msra.mxu0 %v2620
        %3335 = vmatpush.msra.mxu0 %v2618
        %3336 = vmatpush.msra.mxu0 %v2616
        %3337 = vmatpush.msra.mxu0 %v2614
        %3338 = vmatpush.msra.mxu0 %v2612
        %3339 = vmatpush.msra.mxu0 %v2610
        %3340 = vmatpush.msra.mxu0 %v2608
        %3341 = vmatmul.f32.gmra.mxu0 %v3237
        %v3342 = vpop.f32.mrf.mxu0
        %v3343 = vadd.f32 %v3320, %v3342
        %3344 = vmatmul.f32.gmra.mxu0 %v3251
        %v3345 = vpop.f32.mrf.mxu0
        %v3346 = vadd.f32 %v3323, %v3345
        %3347 = vdwg.mxu0
        %v3348 = vrsqrt.pop %v3297
        %v3349 = vmul.f32 %v3348, %v3297
        %v3350 = vmul.f32 %v3349, %v3348
        %v3351 = vmul.f32 0.5, %v3350
        %v3352 = vsub.f32 1.5, %v3351
        %v3353 = vmul.f32 %v3348, %v3352
        %vm3354 = vweird.f32 %v3297
        %vm3355 = vweird.f32 %v3348
        %vm3356 = vmor %vm3354, %vm3355
        %v3357 = vsel %vm3356, %v3348, %v3353
        %v3358 = vrsqrt.pop %v3343
        %v3359 = vmul.f32 %v3358, %v3343
        %v3360 = vmul.f32 %v3359, %v3358
        %v3361 = vmul.f32 0.5, %v3360
        %v3362 = vsub.f32 1.5, %v3361
        %v3363 = vmul.f32 %v3358, %v3362
        %vm3364 = vweird.f32 %v3343
        %vm3365 = vweird.f32 %v3358
        %vm3366 = vmor %vm3364, %vm3365
        %v3367 = vsel %vm3366, %v3358, %v3363
        %v3368 = vrsqrt.pop %v3300
        %v3369 = vmul.f32 %v3368, %v3300
        %v3370 = vmul.f32 %v3369, %v3368
        %v3371 = vmul.f32 0.5, %v3370
        %v3372 = vsub.f32 1.5, %v3371
        %v3373 = vmul.f32 %v3368, %v3372
        %vm3374 = vweird.f32 %v3300
        %vm3375 = vweird.f32 %v3368
        %vm3376 = vmor %vm3374, %vm3375
        %v3377 = vsel %vm3376, %v3368, %v3373
        %v3378 = vrsqrt.pop %v3346
        %v3379 = vmul.f32 %v3378, %v3346
        %v3380 = vmul.f32 %v3379, %v3378
        %v3381 = vmul.f32 0.5, %v3380
        %v3382 = vsub.f32 1.5, %v3381
        %v3383 = vmul.f32 %v3378, %v3382
        %vm3384 = vweird.f32 %v3346
        %vm3385 = vweird.f32 %v3378
        %vm3386 = vmor %vm3384, %vm3385
        %v3387 = vsel %vm3386, %v3378, %v3383
        %v3392 = vrot.slane %v3367, 7
        %v3393 = vrot.slane %v3387, 7
        %v3394 = vsel %vm2808, %v3357, %v3392
        %v3395 = vsel %vm2671, %v3357, %v3392
        %v3396 = vrot.slane %v3395, 1
        %v3397 = vsel %vm2673, %v3357, %v3392
        %v3398 = vrot.slane %v3397, 2
        %v3399 = vsel %vm2675, %v3357, %v3392
        %v3400 = vrot.slane %v3399, 3
        %v3401 = vsel %vm2677, %v3357, %v3392
        %v3402 = vrot.slane %v3401, 4
        %v3403 = vsel %vm2679, %v3357, %v3392
        %v3404 = vrot.slane %v3403, 5
        %v3405 = vsel %vm2681, %v3357, %v3392
        %v3406 = vrot.slane %v3405, 6
        %v3407 = vsel %vm2822, %v3392, %v3357
        %v3408 = vrot.slane %v3407, 7
        %v3409 = vsel %vm2808, %v3377, %v3393
        %v3410 = vsel %vm2671, %v3377, %v3393
        %v3411 = vrot.slane %v3410, 1
        %v3412 = vsel %vm2673, %v3377, %v3393
        %v3413 = vrot.slane %v3412, 2
        %v3414 = vsel %vm2675, %v3377, %v3393
        %v3415 = vrot.slane %v3414, 3
        %v3416 = vsel %vm2677, %v3377, %v3393
        %v3417 = vrot.slane %v3416, 4
        %v3418 = vsel %vm2679, %v3377, %v3393
        %v3419 = vrot.slane %v3418, 5
        %v3420 = vsel %vm2681, %v3377, %v3393
        %v3421 = vrot.slane %v3420, 6
        %v3422 = vsel %vm2822, %v3393, %v3377
        %v3423 = vrot.slane %v3422, 7
        %v3424 = vperm.slane %v3394, 0
        %v3425 = vperm.slane %v3394, 1
        %v3426 = vperm.slane %v3396, 0
        %v3427 = vperm.slane %v3396, 1
        %v3428 = vperm.slane %v3398, 0
        %v3429 = vperm.slane %v3398, 1
        %v3430 = vperm.slane %v3400, 0
        %v3431 = vperm.slane %v3400, 1
        %v3432 = vperm.slane %v3402, 0
        %v3433 = vperm.slane %v3402, 1
        %v3434 = vperm.slane %v3404, 0
        %v3435 = vperm.slane %v3404, 1
        %v3436 = vperm.slane %v3406, 0
        %v3437 = vperm.slane %v3406, 1
        %v3438 = vperm.slane %v3408, 0
        %v3439 = vperm.slane %v3408, 1
        %v3440 = vperm.slane %v3409, 0
        %v3441 = vperm.slane %v3409, 1
        %v3442 = vperm.slane %v3411, 0
        %v3443 = vperm.slane %v3411, 1
        %v3444 = vperm.slane %v3413, 0
        %v3445 = vperm.slane %v3413, 1
        %v3446 = vperm.slane %v3415, 0
        %v3447 = vperm.slane %v3415, 1
        %v3448 = vperm.slane %v3417, 0
        %v3449 = vperm.slane %v3417, 1
        %v3450 = vperm.slane %v3419, 0
        %v3451 = vperm.slane %v3419, 1
        %v3452 = vperm.slane %v3421, 0
        %v3453 = vperm.slane %v3421, 1
        %v3454 = vperm.slane %v3423, 0
        %v3455 = vperm.slane %v3423, 1
        %v3488 = vmul.f32 %v2904, %v3424
        %v3489 = vmul.f32 %v2905, %v3425
        %v3490 = vmul.f32 %v2906, %v3426
        %v3491 = vmul.f32 %v2907, %v3427
        %v3492 = vmul.f32 %v2908, %v3428
        %v3493 = vmul.f32 %v2909, %v3429
        %v3494 = vmul.f32 %v2910, %v3430
        %v3495 = vmul.f32 %v2911, %v3431
        %v3496 = vmul.f32 %v2912, %v3432
        %v3497 = vmul.f32 %v2913, %v3433
        %v3498 = vmul.f32 %v2914, %v3434
        %v3499 = vmul.f32 %v2915, %v3435
        %v3500 = vmul.f32 %v2916, %v3436
        %v3501 = vmul.f32 %v2917, %v3437
        %v3502 = vmul.f32 %v2918, %v3438
        %v3503 = vmul.f32 %v2919, %v3439
        %v3504 = vmul.f32 %v2920, %v3440
        %v3505 = vmul.f32 %v2921, %v3441
        %v3506 = vmul.f32 %v2922, %v3442
        %v3507 = vmul.f32 %v2923, %v3443
        %v3508 = vmul.f32 %v2924, %v3444
        %v3509 = vmul.f32 %v2925, %v3445
        %v3510 = vmul.f32 %v2926, %v3446
        %v3511 = vmul.f32 %v2927, %v3447
        %v3512 = vmul.f32 %v2928, %v3448
        %v3513 = vmul.f32 %v2929, %v3449
        %v3514 = vmul.f32 %v2930, %v3450
        %v3515 = vmul.f32 %v2931, %v3451
        %v3516 = vmul.f32 %v2932, %v3452
        %v3517 = vmul.f32 %v2933, %v3453
        %v3518 = vmul.f32 %v2934, %v3454
        %v3519 = vmul.f32 %v2935, %v3455
        %v3520 = vmax.f32 %v3488, 0.0
        %v3521 = vmax.f32 %v3489, 0.0
        %v3522 = vmax.f32 %v3490, 0.0
        %v3523 = vmax.f32 %v3491, 0.0
        %v3524 = vmax.f32 %v3492, 0.0
        %v3525 = vmax.f32 %v3493, 0.0
        %v3526 = vmax.f32 %v3494, 0.0
        %v3527 = vmax.f32 %v3495, 0.0
        %v3528 = vmax.f32 %v3496, 0.0
        %v3529 = vmax.f32 %v3497, 0.0
        %v3530 = vmax.f32 %v3498, 0.0
        %v3531 = vmax.f32 %v3499, 0.0
        %v3532 = vmax.f32 %v3500, 0.0
        %v3533 = vmax.f32 %v3501, 0.0
        %v3534 = vmax.f32 %v3502, 0.0
        %v3535 = vmax.f32 %v3503, 0.0
        %v3536 = vmax.f32 %v3504, 0.0
        %v3537 = vmax.f32 %v3505, 0.0
        %v3538 = vmax.f32 %v3506, 0.0
        %v3539 = vmax.f32 %v3507, 0.0
        %v3540 = vmax.f32 %v3508, 0.0
        %v3541 = vmax.f32 %v3509, 0.0
        %v3542 = vmax.f32 %v3510, 0.0
        %v3543 = vmax.f32 %v3511, 0.0
        %v3544 = vmax.f32 %v3512, 0.0
        %v3545 = vmax.f32 %v3513, 0.0
        %v3546 = vmax.f32 %v3514, 0.0
        %v3547 = vmax.f32 %v3515, 0.0
        %v3548 = vmax.f32 %v3516, 0.0
        %v3549 = vmax.f32 %v3517, 0.0
        %v3550 = vmax.f32 %v3518, 0.0
        %v3551 = vmax.f32 %v3519, 0.0
        %v3552 = vpack.c.bf16 %v3522, %v3520
        %v3553 = vpack.c.bf16 %v3523, %v3521
        %v3554 = vpack.c.bf16 %v3526, %v3524
        %v3555 = vpack.c.bf16 %v3527, %v3525
        %v3556 = vpack.c.bf16 %v3530, %v3528
        %v3557 = vpack.c.bf16 %v3531, %v3529
        %v3558 = vpack.c.bf16 %v3534, %v3532
        %v3559 = vpack.c.bf16 %v3535, %v3533
        %v3560 = vpack.c.bf16 %v3538, %v3536
        %v3561 = vpack.c.bf16 %v3539, %v3537
        %v3562 = vpack.c.bf16 %v3542, %v3540
        %v3563 = vpack.c.bf16 %v3543, %v3541
        %v3564 = vpack.c.bf16 %v3546, %v3544
        %v3565 = vpack.c.bf16 %v3547, %v3545
        %v3566 = vpack.c.bf16 %v3550, %v3548
        %v3567 = vpack.c.bf16 %v3551, %v3549
        %s3568 = scalar_lea.vmem [#allocation7], 256
        %v3569 = vld [vmem:[%s3568] sm:$0xff]
        %v3570 = vld [vmem:[%s3568 + $0x8] sm:$0xff]
        %v3571 = vld [vmem:[%s3568 + $0x10] sm:$0xff]
        %v3572 = vld [vmem:[%s3568 + $0x18] sm:$0xff]
        %v3573 = vld [vmem:[%s3568 + $0x20] sm:$0xff]
        %v3574 = vld [vmem:[%s3568 + $0x28] sm:$0xff]
        %v3575 = vld [vmem:[%s3568 + $0x30] sm:$0xff]
        %v3576 = vld [vmem:[%s3568 + $0x38] sm:$0xff]
        %v3577 = vld [vmem:[%s3568 + $0x40] sm:$0xff]
        %v3578 = vld [vmem:[%s3568 + $0x48] sm:$0xff]
        %v3579 = vld [vmem:[%s3568 + $0x50] sm:$0xff]
        %v3580 = vld [vmem:[%s3568 + $0x58] sm:$0xff]
        %v3581 = vld [vmem:[%s3568 + $0x60] sm:$0xff]
        %v3582 = vld [vmem:[%s3568 + $0x68] sm:$0xff]
        %v3583 = vld [vmem:[%s3568 + $0x70] sm:$0xff]
        %v3584 = vld [vmem:[%s3568 + $0x78] sm:$0xff]
        %v3585 = vld [vmem:[%s3568 + $0x80] sm:$0xff]
        %v3586 = vld [vmem:[%s3568 + $0x88] sm:$0xff]
        %v3587 = vld [vmem:[%s3568 + $0x90] sm:$0xff]
        %v3588 = vld [vmem:[%s3568 + $0x98] sm:$0xff]
        %v3589 = vld [vmem:[%s3568 + $0xa0] sm:$0xff]
        %v3590 = vld [vmem:[%s3568 + $0xa8] sm:$0xff]
        %v3591 = vld [vmem:[%s3568 + $0xb0] sm:$0xff]
        %v3592 = vld [vmem:[%s3568 + $0xb8] sm:$0xff]
        %v3593 = vld [vmem:[%s3568 + $0xc0] sm:$0xff]
        %v3594 = vld [vmem:[%s3568 + $0xc8] sm:$0xff]
        %v3595 = vld [vmem:[%s3568 + $0xd0] sm:$0xff]
        %v3596 = vld [vmem:[%s3568 + $0xd8] sm:$0xff]
        %v3597 = vld [vmem:[%s3568 + $0xe0] sm:$0xff]
        %v3598 = vld [vmem:[%s3568 + $0xe8] sm:$0xff]
        %v3599 = vld [vmem:[%s3568 + $0xf0] sm:$0xff]
        %v3600 = vld [vmem:[%s3568 + $0xf8] sm:$0xff]
        %v3601 = vrot.slane %v3520, 7
        %v3602 = vrot.slane %v3521, 7
        %v3603 = vrot.slane %v3522, 7
        %v3604 = vrot.slane %v3523, 7
        %v3605 = vrot.slane %v3524, 7
        %v3606 = vrot.slane %v3525, 7
        %v3607 = vrot.slane %v3526, 7
        %v3608 = vrot.slane %v3527, 7
        %v3609 = vrot.slane %v3528, 7
        %v3610 = vrot.slane %v3529, 7
        %v3611 = vrot.slane %v3530, 7
        %v3612 = vrot.slane %v3531, 7
        %v3613 = vrot.slane %v3532, 7
        %v3614 = vrot.slane %v3533, 7
        %v3615 = vrot.slane %v3534, 7
        %v3616 = vrot.slane %v3535, 7
        %v3617 = vrot.slane %v3536, 7
        %v3618 = vrot.slane %v3537, 7
        %v3619 = vrot.slane %v3538, 7
        %v3620 = vrot.slane %v3539, 7
        %v3621 = vrot.slane %v3540, 7
        %v3622 = vrot.slane %v3541, 7
        %v3623 = vrot.slane %v3542, 7
        %v3624 = vrot.slane %v3543, 7
        %v3625 = vrot.slane %v3544, 7
        %v3626 = vrot.slane %v3545, 7
        %v3627 = vrot.slane %v3546, 7
        %v3628 = vrot.slane %v3547, 7
        %v3629 = vrot.slane %v3548, 7
        %v3630 = vrot.slane %v3549, 7
        %v3631 = vrot.slane %v3550, 7
        %v3632 = vrot.slane %v3551, 7
        %v3633 = vsel %vm819, %v3629, %v3631
        %v3634 = vsel %vm819, %v3630, %v3632
        %v3635 = vsel %vm819, %v3627, %v3629
        %v3636 = vsel %vm819, %v3628, %v3630
        %v3637 = vsel %vm819, %v3625, %v3627
        %v3638 = vsel %vm819, %v3626, %v3628
        %v3639 = vsel %vm819, %v3623, %v3625
        %v3640 = vsel %vm819, %v3624, %v3626
        %v3641 = vsel %vm819, %v3621, %v3623
        %v3642 = vsel %vm819, %v3622, %v3624
        %v3643 = vsel %vm819, %v3619, %v3621
        %v3644 = vsel %vm819, %v3620, %v3622
        %v3645 = vsel %vm819, %v3617, %v3619
        %v3646 = vsel %vm819, %v3618, %v3620
        %v3647 = vsel %vm819, %v3615, %v3617
        %v3648 = vsel %vm819, %v3616, %v3618
        %v3649 = vsel %vm819, %v3613, %v3615
        %v3650 = vsel %vm819, %v3614, %v3616
        %v3651 = vsel %vm819, %v3611, %v3613
        %v3652 = vsel %vm819, %v3612, %v3614
        %v3653 = vsel %vm819, %v3609, %v3611
        %v3654 = vsel %vm819, %v3610, %v3612
        %v3655 = vsel %vm819, %v3607, %v3609
        %v3656 = vsel %vm819, %v3608, %v3610
        %v3657 = vsel %vm819, %v3605, %v3607
        %v3658 = vsel %vm819, %v3606, %v3608
        %v3659 = vsel %vm819, %v3603, %v3605
        %v3660 = vsel %vm819, %v3604, %v3606
        %v3661 = vsel %vm819, %v3601, %v3603
        %v3662 = vsel %vm819, %v3602, %v3604
        %v3663 = vsel %vm819, %v3631, %v3601
        %v3664 = vsel %vm819, %v3632, %v3602
        %v3665 = vsel %vm868, %v3663, 0.0
        %v3666 = vsel %vm868, %v3664, 0.0
        %v3667 = vsel %vm869, %v3661, 0.0
        %v3668 = vsel %vm869, %v3662, 0.0
        %v3669 = vsel %vm870, %v3659, 0.0
        %v3670 = vsel %vm870, %v3660, 0.0
        %v3671 = vsel %vm871, %v3657, 0.0
        %v3672 = vsel %vm871, %v3658, 0.0
        %v3673 = vsel %vm872, %v3655, 0.0
        %v3674 = vsel %vm872, %v3656, 0.0
        %v3675 = vsel %vm873, %v3653, 0.0
        %v3676 = vsel %vm873, %v3654, 0.0
        %v3677 = vsel %vm874, %v3651, 0.0
        %v3678 = vsel %vm874, %v3652, 0.0
        %v3679 = vsel %vm875, %v3649, 0.0
        %v3680 = vsel %vm875, %v3650, 0.0
        %v3681 = vsel %vm876, %v3647, 0.0
        %v3682 = vsel %vm876, %v3648, 0.0
        %v3683 = vsel %vm877, %v3645, 0.0
        %v3684 = vsel %vm877, %v3646, 0.0
        %v3685 = vsel %vm878, %v3643, 0.0
        %v3686 = vsel %vm878, %v3644, 0.0
        %v3687 = vsel %vm879, %v3641, 0.0
        %v3688 = vsel %vm879, %v3642, 0.0
        %v3689 = vsel %vm880, %v3639, 0.0
        %v3690 = vsel %vm880, %v3640, 0.0
        %v3691 = vsel %vm881, %v3637, 0.0
        %v3692 = vsel %vm881, %v3638, 0.0
        %v3693 = vsel %vm882, %v3635, 0.0
        %v3694 = vsel %vm882, %v3636, 0.0
        %v3695 = vsel %vm883, %v3633, 0.0
        %v3696 = vsel %vm883, %v3634, 0.0
        %v3697 = vpack.c.bf16 %v3667, %v3665
        %v3698 = vpack.c.bf16 %v3668, %v3666
        %v3699 = vpack.c.bf16 %v3671, %v3669
        %v3700 = vpack.c.bf16 %v3672, %v3670
        %v3701 = vpack.c.bf16 %v3675, %v3673
        %v3702 = vpack.c.bf16 %v3676, %v3674
        %v3703 = vpack.c.bf16 %v3679, %v3677
        %v3704 = vpack.c.bf16 %v3680, %v3678
        %v3705 = vpack.c.bf16 %v3683, %v3681
        %v3706 = vpack.c.bf16 %v3684, %v3682
        %v3707 = vpack.c.bf16 %v3687, %v3685
        %v3708 = vpack.c.bf16 %v3688, %v3686
        %v3709 = vpack.c.bf16 %v3691, %v3689
        %v3710 = vpack.c.bf16 %v3692, %v3690
        %v3711 = vpack.c.bf16 %v3695, %v3693
        %v3712 = vpack.c.bf16 %v3696, %v3694
        %v3713 = vld [vmem:[#allocation7] sm:$0xff]
        %v3714 = vld [vmem:[#allocation7 + $0x8] sm:$0xff]
        %v3715 = vld [vmem:[#allocation7 + $0x10] sm:$0xff]
        %v3716 = vld [vmem:[#allocation7 + $0x18] sm:$0xff]
        %v3717 = vld [vmem:[#allocation7 + $0x20] sm:$0xff]
        %v3718 = vld [vmem:[#allocation7 + $0x28] sm:$0xff]
        %v3719 = vld [vmem:[#allocation7 + $0x30] sm:$0xff]
        %v3720 = vld [vmem:[#allocation7 + $0x38] sm:$0xff]
        %v3721 = vld [vmem:[#allocation7 + $0x40] sm:$0xff]
        %v3722 = vld [vmem:[#allocation7 + $0x48] sm:$0xff]
        %v3723 = vld [vmem:[#allocation7 + $0x50] sm:$0xff]
        %v3724 = vld [vmem:[#allocation7 + $0x58] sm:$0xff]
        %v3725 = vld [vmem:[#allocation7 + $0x60] sm:$0xff]
        %v3726 = vld [vmem:[#allocation7 + $0x68] sm:$0xff]
        %v3727 = vld [vmem:[#allocation7 + $0x70] sm:$0xff]
        %v3728 = vld [vmem:[#allocation7 + $0x78] sm:$0xff]
        %v3729 = vld [vmem:[#allocation7 + $0x80] sm:$0xff]
        %v3730 = vld [vmem:[#allocation7 + $0x88] sm:$0xff]
        %v3731 = vld [vmem:[#allocation7 + $0x90] sm:$0xff]
        %v3732 = vld [vmem:[#allocation7 + $0x98] sm:$0xff]
        %v3733 = vld [vmem:[#allocation7 + $0xa0] sm:$0xff]
        %v3734 = vld [vmem:[#allocation7 + $0xa8] sm:$0xff]
        %v3735 = vld [vmem:[#allocation7 + $0xb0] sm:$0xff]
        %v3736 = vld [vmem:[#allocation7 + $0xb8] sm:$0xff]
        %v3737 = vld [vmem:[#allocation7 + $0xc0] sm:$0xff]
        %v3738 = vld [vmem:[#allocation7 + $0xc8] sm:$0xff]
        %v3739 = vld [vmem:[#allocation7 + $0xd0] sm:$0xff]
        %v3740 = vld [vmem:[#allocation7 + $0xd8] sm:$0xff]
        %v3741 = vld [vmem:[#allocation7 + $0xe0] sm:$0xff]
        %v3742 = vld [vmem:[#allocation7 + $0xe8] sm:$0xff]
        %v3743 = vld [vmem:[#allocation7 + $0xf0] sm:$0xff]
        %v3744 = vld [vmem:[#allocation7 + $0xf8] sm:$0xff]
        %v3777 = vunpack.c.l.b16 %v3713
        %v3778 = vunpack.c.h.b16 %v3713
        %v3779 = vunpack.c.l.b16 %v3714
        %v3780 = vunpack.c.h.b16 %v3714
        %v3781 = vunpack.c.l.b16 %v3715
        %v3782 = vunpack.c.h.b16 %v3715
        %v3783 = vunpack.c.l.b16 %v3716
        %v3784 = vunpack.c.h.b16 %v3716
        %v3785 = vunpack.c.l.b16 %v3717
        %v3786 = vunpack.c.h.b16 %v3717
        %v3787 = vunpack.c.l.b16 %v3718
        %v3788 = vunpack.c.h.b16 %v3718
        %v3789 = vunpack.c.l.b16 %v3719
        %v3790 = vunpack.c.h.b16 %v3719
        %v3791 = vunpack.c.l.b16 %v3720
        %v3792 = vunpack.c.h.b16 %v3720
        %v3793 = vunpack.c.l.b16 %v3721
        %v3794 = vunpack.c.h.b16 %v3721
        %v3795 = vunpack.c.l.b16 %v3722
        %v3796 = vunpack.c.h.b16 %v3722
        %v3797 = vunpack.c.l.b16 %v3723
        %v3798 = vunpack.c.h.b16 %v3723
        %v3799 = vunpack.c.l.b16 %v3724
        %v3800 = vunpack.c.h.b16 %v3724
        %v3801 = vunpack.c.l.b16 %v3725
        %v3802 = vunpack.c.h.b16 %v3725
        %v3803 = vunpack.c.l.b16 %v3726
        %v3804 = vunpack.c.h.b16 %v3726
        %v3805 = vunpack.c.l.b16 %v3727
        %v3806 = vunpack.c.h.b16 %v3727
        %v3807 = vunpack.c.l.b16 %v3728
        %v3808 = vunpack.c.h.b16 %v3728
        %v3809 = vunpack.c.l.b16 %v3729
        %v3810 = vunpack.c.h.b16 %v3729
        %v3811 = vunpack.c.l.b16 %v3730
        %v3812 = vunpack.c.h.b16 %v3730
        %v3813 = vunpack.c.l.b16 %v3731
        %v3814 = vunpack.c.h.b16 %v3731
        %v3815 = vunpack.c.l.b16 %v3732
        %v3816 = vunpack.c.h.b16 %v3732
        %v3817 = vunpack.c.l.b16 %v3733
        %v3818 = vunpack.c.h.b16 %v3733
        %v3819 = vunpack.c.l.b16 %v3734
        %v3820 = vunpack.c.h.b16 %v3734
        %v3821 = vunpack.c.l.b16 %v3735
        %v3822 = vunpack.c.h.b16 %v3735
        %v3823 = vunpack.c.l.b16 %v3736
        %v3824 = vunpack.c.h.b16 %v3736
        %v3825 = vunpack.c.l.b16 %v3737
        %v3826 = vunpack.c.h.b16 %v3737
        %v3827 = vunpack.c.l.b16 %v3738
        %v3828 = vunpack.c.h.b16 %v3738
        %v3829 = vunpack.c.l.b16 %v3739
        %v3830 = vunpack.c.h.b16 %v3739
        %v3831 = vunpack.c.l.b16 %v3740
        %v3832 = vunpack.c.h.b16 %v3740
        %v3833 = vunpack.c.l.b16 %v3741
        %v3834 = vunpack.c.h.b16 %v3741
        %v3835 = vunpack.c.l.b16 %v3742
        %v3836 = vunpack.c.h.b16 %v3742
        %v3837 = vunpack.c.l.b16 %v3743
        %v3838 = vunpack.c.h.b16 %v3743
        %v3839 = vunpack.c.l.b16 %v3744
        %v3840 = vunpack.c.h.b16 %v3744
        %v3841 = vpack.c.b16 %v3779, %v3777
        %v3842 = vpack.c.b16 %v3780, %v3778
        %v3843 = vpack.c.b16 %v3783, %v3781
        %v3844 = vpack.c.b16 %v3784, %v3782
        %v3845 = vpack.c.b16 %v3787, %v3785
        %v3846 = vpack.c.b16 %v3788, %v3786
        %v3847 = vpack.c.b16 %v3791, %v3789
        %v3848 = vpack.c.b16 %v3792, %v3790
        %v3849 = vpack.c.b16 %v3795, %v3793
        %v3850 = vpack.c.b16 %v3796, %v3794
        %v3851 = vpack.c.b16 %v3799, %v3797
        %v3852 = vpack.c.b16 %v3800, %v3798
        %v3853 = vpack.c.b16 %v3803, %v3801
        %v3854 = vpack.c.b16 %v3804, %v3802
        %v3855 = vpack.c.b16 %v3807, %v3805
        %v3856 = vpack.c.b16 %v3808, %v3806
        %v3857 = vpack.c.b16 %v3811, %v3809
        %v3858 = vpack.c.b16 %v3812, %v3810
        %v3859 = vpack.c.b16 %v3815, %v3813
        %v3860 = vpack.c.b16 %v3816, %v3814
        %v3861 = vpack.c.b16 %v3819, %v3817
        %v3862 = vpack.c.b16 %v3820, %v3818
        %v3863 = vpack.c.b16 %v3823, %v3821
        %v3864 = vpack.c.b16 %v3824, %v3822
        %v3865 = vpack.c.b16 %v3827, %v3825
        %v3866 = vpack.c.b16 %v3828, %v3826
        %v3867 = vpack.c.b16 %v3831, %v3829
        %v3868 = vpack.c.b16 %v3832, %v3830
        %v3869 = vpack.c.b16 %v3835, %v3833
        %v3870 = vpack.c.b16 %v3836, %v3834
        %v3871 = vpack.c.b16 %v3839, %v3837
        %v3872 = vpack.c.b16 %v3840, %v3838
        %3905 = vmatpush.bf16.msra.mxu0 %v3855
        %3906 = vmatpush.bf16.msra.mxu0 %v3853
        %3907 = vmatpush.bf16.msra.mxu0 %v3851
        %3908 = vmatpush.bf16.msra.mxu0 %v3849
        %3909 = vmatpush.bf16.msra.mxu0 %v3847
        %3910 = vmatpush.bf16.msra.mxu0 %v3845
        %3911 = vmatpush.bf16.msra.mxu0 %v3843
        %3912 = vmatpush.bf16.msra.mxu0 %v3841
        %3913 = vmatmul.bf16.gmra.mxu0 %v3697
        %v3914 = vpop.f32.mrf.mxu0
        %v3915 = vadd.f32 0.0, %v3914
        %v3916 = vpop.f32.mrf.mxu0
        %v3917 = vadd.f32 0.0, %v3916
        %3918 = vmatmul.bf16.gmra.mxu0 %v3699
        %v3919 = vpop.f32.mrf.mxu0
        %v3920 = vadd.f32 0.0, %v3919
        %v3921 = vpop.f32.mrf.mxu0
        %v3922 = vadd.f32 0.0, %v3921
        %3923 = vmatmul.bf16.gmra.mxu0 %v3701
        %v3924 = vpop.f32.mrf.mxu0
        %v3925 = vadd.f32 0.0, %v3924
        %v3926 = vpop.f32.mrf.mxu0
        %v3927 = vadd.f32 0.0, %v3926
        %3928 = vmatmul.bf16.gmra.mxu0 %v3703
        %v3929 = vpop.f32.mrf.mxu0
        %v3930 = vadd.f32 0.0, %v3929
        %v3931 = vpop.f32.mrf.mxu0
        %v3932 = vadd.f32 0.0, %v3931
        %3933 = vmatmul.bf16.gmra.mxu0 %v3705
        %v3934 = vpop.f32.mrf.mxu0
        %v3935 = vadd.f32 0.0, %v3934
        %v3936 = vpop.f32.mrf.mxu0
        %v3937 = vadd.f32 0.0, %v3936
        %3938 = vmatmul.bf16.gmra.mxu0 %v3707
        %v3939 = vpop.f32.mrf.mxu0
        %v3940 = vadd.f32 0.0, %v3939
        %v3941 = vpop.f32.mrf.mxu0
        %v3942 = vadd.f32 0.0, %v3941
        %3943 = vmatmul.bf16.gmra.mxu0 %v3709
        %v3944 = vpop.f32.mrf.mxu0
        %v3945 = vadd.f32 0.0, %v3944
        %v3946 = vpop.f32.mrf.mxu0
        %v3947 = vadd.f32 0.0, %v3946
        %3948 = vmatmul.bf16.gmra.mxu0 %v3711
        %v3949 = vpop.f32.mrf.mxu0
        %v3950 = vadd.f32 0.0, %v3949
        %v3951 = vpop.f32.mrf.mxu0
        %v3952 = vadd.f32 0.0, %v3951
        %3953 = vdwg.mxu0
        %3954 = vmatpush.bf16.msra.mxu0 %v3871
        %3955 = vmatpush.bf16.msra.mxu0 %v3869
        %3956 = vmatpush.bf16.msra.mxu0 %v3867
        %3957 = vmatpush.bf16.msra.mxu0 %v3865
        %3958 = vmatpush.bf16.msra.mxu0 %v3863
        %3959 = vmatpush.bf16.msra.mxu0 %v3861
        %3960 = vmatpush.bf16.msra.mxu0 %v3859
        %3961 = vmatpush.bf16.msra.mxu0 %v3857
        %3962 = vmatmul.bf16.gmra.mxu0 %v3698
        %v3963 = vpop.f32.mrf.mxu0
        %v3964 = vadd.f32 %v3915, %v3963
        %v3965 = vpop.f32.mrf.mxu0
        %v3966 = vadd.f32 %v3917, %v3965
        %3967 = vmatmul.bf16.gmra.mxu0 %v3700
        %v3968 = vpop.f32.mrf.mxu0
        %v3969 = vadd.f32 %v3920, %v3968
        %v3970 = vpop.f32.mrf.mxu0
        %v3971 = vadd.f32 %v3922, %v3970
        %3972 = vmatmul.bf16.gmra.mxu0 %v3702
        %v3973 = vpop.f32.mrf.mxu0
        %v3974 = vadd.f32 %v3925, %v3973
        %v3975 = vpop.f32.mrf.mxu0
        %v3976 = vadd.f32 %v3927, %v3975
        %3977 = vmatmul.bf16.gmra.mxu0 %v3704
        %v3978 = vpop.f32.mrf.mxu0
        %v3979 = vadd.f32 %v3930, %v3978
        %v3980 = vpop.f32.mrf.mxu0
        %v3981 = vadd.f32 %v3932, %v3980
        %3982 = vmatmul.bf16.gmra.mxu0 %v3706
        %v3983 = vpop.f32.mrf.mxu0
        %v3984 = vadd.f32 %v3935, %v3983
        %v3985 = vpop.f32.mrf.mxu0
        %v3986 = vadd.f32 %v3937, %v3985
        %3987 = vmatmul.bf16.gmra.mxu0 %v3708
        %v3988 = vpop.f32.mrf.mxu0
        %v3989 = vadd.f32 %v3940, %v3988
        %v3990 = vpop.f32.mrf.mxu0
        %v3991 = vadd.f32 %v3942, %v3990
        %3992 = vmatmul.bf16.gmra.mxu0 %v3710
        %v3993 = vpop.f32.mrf.mxu0
        %v3994 = vadd.f32 %v3945, %v3993
        %v3995 = vpop.f32.mrf.mxu0
        %v3996 = vadd.f32 %v3947, %v3995
        %3997 = vmatmul.bf16.gmra.mxu0 %v3712
        %v3998 = vpop.f32.mrf.mxu0
        %v3999 = vadd.f32 %v3950, %v3998
        %v4000 = vpop.f32.mrf.mxu0
        %v4001 = vadd.f32 %v3952, %v4000
        %4002 = vdwg.mxu0
        %4003 = vmatpush.bf16.msra.mxu0 %v3856
        %4004 = vmatpush.bf16.msra.mxu0 %v3854
        %4005 = vmatpush.bf16.msra.mxu0 %v3852
        %4006 = vmatpush.bf16.msra.mxu0 %v3850
        %4007 = vmatpush.bf16.msra.mxu0 %v3848
        %4008 = vmatpush.bf16.msra.mxu0 %v3846
        %4009 = vmatpush.bf16.msra.mxu0 %v3844
        %4010 = vmatpush.bf16.msra.mxu0 %v3842
        %4011 = vmatmul.bf16.gmra.mxu0 %v3697
        %v4012 = vpop.f32.mrf.mxu0
        %v4013 = vadd.f32 0.0, %v4012
        %v4014 = vpop.f32.mrf.mxu0
        %v4015 = vadd.f32 0.0, %v4014
        %4016 = vmatmul.bf16.gmra.mxu0 %v3699
        %v4017 = vpop.f32.mrf.mxu0
        %v4018 = vadd.f32 0.0, %v4017
        %v4019 = vpop.f32.mrf.mxu0
        %v4020 = vadd.f32 0.0, %v4019
        %4021 = vmatmul.bf16.gmra.mxu0 %v3701
        %v4022 = vpop.f32.mrf.mxu0
        %v4023 = vadd.f32 0.0, %v4022
        %v4024 = vpop.f32.mrf.mxu0
        %v4025 = vadd.f32 0.0, %v4024
        %4026 = vmatmul.bf16.gmra.mxu0 %v3703
        %v4027 = vpop.f32.mrf.mxu0
        %v4028 = vadd.f32 0.0, %v4027
        %v4029 = vpop.f32.mrf.mxu0
        %v4030 = vadd.f32 0.0, %v4029
        %4031 = vmatmul.bf16.gmra.mxu0 %v3705
        %v4032 = vpop.f32.mrf.mxu0
        %v4033 = vadd.f32 0.0, %v4032
        %v4034 = vpop.f32.mrf.mxu0
        %v4035 = vadd.f32 0.0, %v4034
        %4036 = vmatmul.bf16.gmra.mxu0 %v3707
        %v4037 = vpop.f32.mrf.mxu0
        %v4038 = vadd.f32 0.0, %v4037
        %v4039 = vpop.f32.mrf.mxu0
        %v4040 = vadd.f32 0.0, %v4039
        %4041 = vmatmul.bf16.gmra.mxu0 %v3709
        %v4042 = vpop.f32.mrf.mxu0
        %v4043 = vadd.f32 0.0, %v4042
        %v4044 = vpop.f32.mrf.mxu0
        %v4045 = vadd.f32 0.0, %v4044
        %4046 = vmatmul.bf16.gmra.mxu0 %v3711
        %v4047 = vpop.f32.mrf.mxu0
        %v4048 = vadd.f32 0.0, %v4047
        %v4049 = vpop.f32.mrf.mxu0
        %v4050 = vadd.f32 0.0, %v4049
        %4051 = vdwg.mxu0
        %4052 = vmatpush.bf16.msra.mxu0 %v3872
        %4053 = vmatpush.bf16.msra.mxu0 %v3870
        %4054 = vmatpush.bf16.msra.mxu0 %v3868
        %4055 = vmatpush.bf16.msra.mxu0 %v3866
        %4056 = vmatpush.bf16.msra.mxu0 %v3864
        %4057 = vmatpush.bf16.msra.mxu0 %v3862
        %4058 = vmatpush.bf16.msra.mxu0 %v3860
        %4059 = vmatpush.bf16.msra.mxu0 %v3858
        %4060 = vmatmul.bf16.gmra.mxu0 %v3698
        %v4061 = vpop.f32.mrf.mxu0
        %v4062 = vadd.f32 %v4013, %v4061
        %v4063 = vpop.f32.mrf.mxu0
        %v4064 = vadd.f32 %v4015, %v4063
        %4065 = vmatmul.bf16.gmra.mxu0 %v3700
        %v4066 = vpop.f32.mrf.mxu0
        %v4067 = vadd.f32 %v4018, %v4066
        %v4068 = vpop.f32.mrf.mxu0
        %v4069 = vadd.f32 %v4020, %v4068
        %4070 = vmatmul.bf16.gmra.mxu0 %v3702
        %v4071 = vpop.f32.mrf.mxu0
        %v4072 = vadd.f32 %v4023, %v4071
        %v4073 = vpop.f32.mrf.mxu0
        %v4074 = vadd.f32 %v4025, %v4073
        %4075 = vmatmul.bf16.gmra.mxu0 %v3704
        %v4076 = vpop.f32.mrf.mxu0
        %v4077 = vadd.f32 %v4028, %v4076
        %v4078 = vpop.f32.mrf.mxu0
        %v4079 = vadd.f32 %v4030, %v4078
        %4080 = vmatmul.bf16.gmra.mxu0 %v3706
        %v4081 = vpop.f32.mrf.mxu0
        %v4082 = vadd.f32 %v4033, %v4081
        %v4083 = vpop.f32.mrf.mxu0
        %v4084 = vadd.f32 %v4035, %v4083
        %4085 = vmatmul.bf16.gmra.mxu0 %v3708
        %v4086 = vpop.f32.mrf.mxu0
        %v4087 = vadd.f32 %v4038, %v4086
        %v4088 = vpop.f32.mrf.mxu0
        %v4089 = vadd.f32 %v4040, %v4088
        %4090 = vmatmul.bf16.gmra.mxu0 %v3710
        %v4091 = vpop.f32.mrf.mxu0
        %v4092 = vadd.f32 %v4043, %v4091
        %v4093 = vpop.f32.mrf.mxu0
        %v4094 = vadd.f32 %v4045, %v4093
        %4095 = vmatmul.bf16.gmra.mxu0 %v3712
        %v4096 = vpop.f32.mrf.mxu0
        %v4097 = vadd.f32 %v4048, %v4096
        %v4098 = vpop.f32.mrf.mxu0
        %v4099 = vadd.f32 %v4050, %v4098
        %4100 = vdwg.mxu0
        %v4133 = vunpack.c.l.b16 %v3569
        %v4134 = vunpack.c.h.b16 %v3569
        %v4135 = vunpack.c.l.b16 %v3570
        %v4136 = vunpack.c.h.b16 %v3570
        %v4137 = vunpack.c.l.b16 %v3571
        %v4138 = vunpack.c.h.b16 %v3571
        %v4139 = vunpack.c.l.b16 %v3572
        %v4140 = vunpack.c.h.b16 %v3572
        %v4141 = vunpack.c.l.b16 %v3573
        %v4142 = vunpack.c.h.b16 %v3573
        %v4143 = vunpack.c.l.b16 %v3574
        %v4144 = vunpack.c.h.b16 %v3574
        %v4145 = vunpack.c.l.b16 %v3575
        %v4146 = vunpack.c.h.b16 %v3575
        %v4147 = vunpack.c.l.b16 %v3576
        %v4148 = vunpack.c.h.b16 %v3576
        %v4149 = vunpack.c.l.b16 %v3577
        %v4150 = vunpack.c.h.b16 %v3577
        %v4151 = vunpack.c.l.b16 %v3578
        %v4152 = vunpack.c.h.b16 %v3578
        %v4153 = vunpack.c.l.b16 %v3579
        %v4154 = vunpack.c.h.b16 %v3579
        %v4155 = vunpack.c.l.b16 %v3580
        %v4156 = vunpack.c.h.b16 %v3580
        %v4157 = vunpack.c.l.b16 %v3581
        %v4158 = vunpack.c.h.b16 %v3581
        %v4159 = vunpack.c.l.b16 %v3582
        %v4160 = vunpack.c.h.b16 %v3582
        %v4161 = vunpack.c.l.b16 %v3583
        %v4162 = vunpack.c.h.b16 %v3583
        %v4163 = vunpack.c.l.b16 %v3584
        %v4164 = vunpack.c.h.b16 %v3584
        %v4165 = vunpack.c.l.b16 %v3585
        %v4166 = vunpack.c.h.b16 %v3585
        %v4167 = vunpack.c.l.b16 %v3586
        %v4168 = vunpack.c.h.b16 %v3586
        %v4169 = vunpack.c.l.b16 %v3587
        %v4170 = vunpack.c.h.b16 %v3587
        %v4171 = vunpack.c.l.b16 %v3588
        %v4172 = vunpack.c.h.b16 %v3588
        %v4173 = vunpack.c.l.b16 %v3589
        %v4174 = vunpack.c.h.b16 %v3589
        %v4175 = vunpack.c.l.b16 %v3590
        %v4176 = vunpack.c.h.b16 %v3590
        %v4177 = vunpack.c.l.b16 %v3591
        %v4178 = vunpack.c.h.b16 %v3591
        %v4179 = vunpack.c.l.b16 %v3592
        %v4180 = vunpack.c.h.b16 %v3592
        %v4181 = vunpack.c.l.b16 %v3593
        %v4182 = vunpack.c.h.b16 %v3593
        %v4183 = vunpack.c.l.b16 %v3594
        %v4184 = vunpack.c.h.b16 %v3594
        %v4185 = vunpack.c.l.b16 %v3595
        %v4186 = vunpack.c.h.b16 %v3595
        %v4187 = vunpack.c.l.b16 %v3596
        %v4188 = vunpack.c.h.b16 %v3596
        %v4189 = vunpack.c.l.b16 %v3597
        %v4190 = vunpack.c.h.b16 %v3597
        %v4191 = vunpack.c.l.b16 %v3598
        %v4192 = vunpack.c.h.b16 %v3598
        %v4193 = vunpack.c.l.b16 %v3599
        %v4194 = vunpack.c.h.b16 %v3599
        %v4195 = vunpack.c.l.b16 %v3600
        %v4196 = vunpack.c.h.b16 %v3600
        %v4197 = vpack.c.b16 %v4135, %v4133
        %v4198 = vpack.c.b16 %v4136, %v4134
        %v4199 = vpack.c.b16 %v4139, %v4137
        %v4200 = vpack.c.b16 %v4140, %v4138
        %v4201 = vpack.c.b16 %v4143, %v4141
        %v4202 = vpack.c.b16 %v4144, %v4142
        %v4203 = vpack.c.b16 %v4147, %v4145
        %v4204 = vpack.c.b16 %v4148, %v4146
        %v4205 = vpack.c.b16 %v4151, %v4149
        %v4206 = vpack.c.b16 %v4152, %v4150
        %v4207 = vpack.c.b16 %v4155, %v4153
        %v4208 = vpack.c.b16 %v4156, %v4154
        %v4209 = vpack.c.b16 %v4159, %v4157
        %v4210 = vpack.c.b16 %v4160, %v4158
        %v4211 = vpack.c.b16 %v4163, %v4161
        %v4212 = vpack.c.b16 %v4164, %v4162
        %v4213 = vpack.c.b16 %v4167, %v4165
        %v4214 = vpack.c.b16 %v4168, %v4166
        %v4215 = vpack.c.b16 %v4171, %v4169
        %v4216 = vpack.c.b16 %v4172, %v4170
        %v4217 = vpack.c.b16 %v4175, %v4173
        %v4218 = vpack.c.b16 %v4176, %v4174
        %v4219 = vpack.c.b16 %v4179, %v4177
        %v4220 = vpack.c.b16 %v4180, %v4178
        %v4221 = vpack.c.b16 %v4183, %v4181
        %v4222 = vpack.c.b16 %v4184, %v4182
        %v4223 = vpack.c.b16 %v4187, %v4185
        %v4224 = vpack.c.b16 %v4188, %v4186
        %v4225 = vpack.c.b16 %v4191, %v4189
        %v4226 = vpack.c.b16 %v4192, %v4190
        %v4227 = vpack.c.b16 %v4195, %v4193
        %v4228 = vpack.c.b16 %v4196, %v4194
        %4261 = vmatpush.bf16.msra.mxu0 %v4211
        %4262 = vmatpush.bf16.msra.mxu0 %v4209
        %4263 = vmatpush.bf16.msra.mxu0 %v4207
        %4264 = vmatpush.bf16.msra.mxu0 %v4205
        %4265 = vmatpush.bf16.msra.mxu0 %v4203
        %4266 = vmatpush.bf16.msra.mxu0 %v4201
        %4267 = vmatpush.bf16.msra.mxu0 %v4199
        %4268 = vmatpush.bf16.msra.mxu0 %v4197
        %4269 = vmatmul.bf16.gmra.mxu0 %v3552
        %v4270 = vpop.f32.mrf.mxu0
        %v4271 = vadd.f32 %v3964, %v4270
        %v4272 = vpop.f32.mrf.mxu0
        %v4273 = vadd.f32 %v3966, %v4272
        %4274 = vmatmul.bf16.gmra.mxu0 %v3554
        %v4275 = vpop.f32.mrf.mxu0
        %v4276 = vadd.f32 %v3969, %v4275
        %v4277 = vpop.f32.mrf.mxu0
        %v4278 = vadd.f32 %v3971, %v4277
        %4279 = vmatmul.bf16.gmra.mxu0 %v3556
        %v4280 = vpop.f32.mrf.mxu0
        %v4281 = vadd.f32 %v3974, %v4280
        %v4282 = vpop.f32.mrf.mxu0
        %v4283 = vadd.f32 %v3976, %v4282
        %4284 = vmatmul.bf16.gmra.mxu0 %v3558
        %v4285 = vpop.f32.mrf.mxu0
        %v4286 = vadd.f32 %v3979, %v4285
        %v4287 = vpop.f32.mrf.mxu0
        %v4288 = vadd.f32 %v3981, %v4287
        %4289 = vmatmul.bf16.gmra.mxu0 %v3560
        %v4290 = vpop.f32.mrf.mxu0
        %v4291 = vadd.f32 %v3984, %v4290
        %v4292 = vpop.f32.mrf.mxu0
        %v4293 = vadd.f32 %v3986, %v4292
        %4294 = vmatmul.bf16.gmra.mxu0 %v3562
        %v4295 = vpop.f32.mrf.mxu0
        %v4296 = vadd.f32 %v3989, %v4295
        %v4297 = vpop.f32.mrf.mxu0
        %v4298 = vadd.f32 %v3991, %v4297
        %4299 = vmatmul.bf16.gmra.mxu0 %v3564
        %v4300 = vpop.f32.mrf.mxu0
        %v4301 = vadd.f32 %v3994, %v4300
        %v4302 = vpop.f32.mrf.mxu0
        %v4303 = vadd.f32 %v3996, %v4302
        %4304 = vmatmul.bf16.gmra.mxu0 %v3566
        %v4305 = vpop.f32.mrf.mxu0
        %v4306 = vadd.f32 %v3999, %v4305
        %v4307 = vpop.f32.mrf.mxu0
        %v4308 = vadd.f32 %v4001, %v4307
        %4309 = vdwg.mxu0
        %4310 = vmatpush.bf16.msra.mxu0 %v4227
        %4311 = vmatpush.bf16.msra.mxu0 %v4225
        %4312 = vmatpush.bf16.msra.mxu0 %v4223
        %4313 = vmatpush.bf16.msra.mxu0 %v4221
        %4314 = vmatpush.bf16.msra.mxu0 %v4219
        %4315 = vmatpush.bf16.msra.mxu0 %v4217
        %4316 = vmatpush.bf16.msra.mxu0 %v4215
        %4317 = vmatpush.bf16.msra.mxu0 %v4213
        %4318 = vmatmul.bf16.gmra.mxu0 %v3553
        %v4319 = vpop.f32.mrf.mxu0
        %v4320 = vadd.f32 %v4271, %v4319
        %v4321 = vpop.f32.mrf.mxu0
        %v4322 = vadd.f32 %v4273, %v4321
        %4323 = vmatmul.bf16.gmra.mxu0 %v3555
        %v4324 = vpop.f32.mrf.mxu0
        %v4325 = vadd.f32 %v4276, %v4324
        %v4326 = vpop.f32.mrf.mxu0
        %v4327 = vadd.f32 %v4278, %v4326
        %4328 = vmatmul.bf16.gmra.mxu0 %v3557
        %v4329 = vpop.f32.mrf.mxu0
        %v4330 = vadd.f32 %v4281, %v4329
        %v4331 = vpop.f32.mrf.mxu0
        %v4332 = vadd.f32 %v4283, %v4331
        %4333 = vmatmul.bf16.gmra.mxu0 %v3559
        %v4334 = vpop.f32.mrf.mxu0
        %v4335 = vadd.f32 %v4286, %v4334
        %v4336 = vpop.f32.mrf.mxu0
        %v4337 = vadd.f32 %v4288, %v4336
        %4338 = vmatmul.bf16.gmra.mxu0 %v3561
        %v4339 = vpop.f32.mrf.mxu0
        %v4340 = vadd.f32 %v4291, %v4339
        %v4341 = vpop.f32.mrf.mxu0
        %v4342 = vadd.f32 %v4293, %v4341
        %4343 = vmatmul.bf16.gmra.mxu0 %v3563
        %v4344 = vpop.f32.mrf.mxu0
        %v4345 = vadd.f32 %v4296, %v4344
        %v4346 = vpop.f32.mrf.mxu0
        %v4347 = vadd.f32 %v4298, %v4346
        %4348 = vmatmul.bf16.gmra.mxu0 %v3565
        %v4349 = vpop.f32.mrf.mxu0
        %v4350 = vadd.f32 %v4301, %v4349
        %v4351 = vpop.f32.mrf.mxu0
        %v4352 = vadd.f32 %v4303, %v4351
        %4353 = vmatmul.bf16.gmra.mxu0 %v3567
        %v4354 = vpop.f32.mrf.mxu0
        %v4355 = vadd.f32 %v4306, %v4354
        %v4356 = vpop.f32.mrf.mxu0
        %v4357 = vadd.f32 %v4308, %v4356
        %4358 = vdwg.mxu0
        %4359 = vmatpush.bf16.msra.mxu0 %v4212
        %4360 = vmatpush.bf16.msra.mxu0 %v4210
        %4361 = vmatpush.bf16.msra.mxu0 %v4208
        %4362 = vmatpush.bf16.msra.mxu0 %v4206
        %4363 = vmatpush.bf16.msra.mxu0 %v4204
        %4364 = vmatpush.bf16.msra.mxu0 %v4202
        %4365 = vmatpush.bf16.msra.mxu0 %v4200
        %4366 = vmatpush.bf16.msra.mxu0 %v4198
        %4367 = vmatmul.bf16.gmra.mxu0 %v3552
        %v4368 = vpop.f32.mrf.mxu0
        %v4369 = vadd.f32 %v4062, %v4368
        %v4370 = vpop.f32.mrf.mxu0
        %v4371 = vadd.f32 %v4064, %v4370
        %4372 = vmatmul.bf16.gmra.mxu0 %v3554
        %v4373 = vpop.f32.mrf.mxu0
        %v4374 = vadd.f32 %v4067, %v4373
        %v4375 = vpop.f32.mrf.mxu0
        %v4376 = vadd.f32 %v4069, %v4375
        %4377 = vmatmul.bf16.gmra.mxu0 %v3556
        %v4378 = vpop.f32.mrf.mxu0
        %v4379 = vadd.f32 %v4072, %v4378
        %v4380 = vpop.f32.mrf.mxu0
        %v4381 = vadd.f32 %v4074, %v4380
        %4382 = vmatmul.bf16.gmra.mxu0 %v3558
        %v4383 = vpop.f32.mrf.mxu0
        %v4384 = vadd.f32 %v4077, %v4383
        %v4385 = vpop.f32.mrf.mxu0
        %v4386 = vadd.f32 %v4079, %v4385
        %4387 = vmatmul.bf16.gmra.mxu0 %v3560
        %v4388 = vpop.f32.mrf.mxu0
        %v4389 = vadd.f32 %v4082, %v4388
        %v4390 = vpop.f32.mrf.mxu0
        %v4391 = vadd.f32 %v4084, %v4390
        %4392 = vmatmul.bf16.gmra.mxu0 %v3562
        %v4393 = vpop.f32.mrf.mxu0
        %v4394 = vadd.f32 %v4087, %v4393
        %v4395 = vpop.f32.mrf.mxu0
        %v4396 = vadd.f32 %v4089, %v4395
        %4397 = vmatmul.bf16.gmra.mxu0 %v3564
        %v4398 = vpop.f32.mrf.mxu0
        %v4399 = vadd.f32 %v4092, %v4398
        %v4400 = vpop.f32.mrf.mxu0
        %v4401 = vadd.f32 %v4094, %v4400
        %4402 = vmatmul.bf16.gmra.mxu0 %v3566
        %v4403 = vpop.f32.mrf.mxu0
        %v4404 = vadd.f32 %v4097, %v4403
        %v4405 = vpop.f32.mrf.mxu0
        %v4406 = vadd.f32 %v4099, %v4405
        %4407 = vdwg.mxu0
        %4408 = vmatpush.bf16.msra.mxu0 %v4228
        %4409 = vmatpush.bf16.msra.mxu0 %v4226
        %4410 = vmatpush.bf16.msra.mxu0 %v4224
        %4411 = vmatpush.bf16.msra.mxu0 %v4222
        %4412 = vmatpush.bf16.msra.mxu0 %v4220
        %4413 = vmatpush.bf16.msra.mxu0 %v4218
        %4414 = vmatpush.bf16.msra.mxu0 %v4216
        %4415 = vmatpush.bf16.msra.mxu0 %v4214
        %4416 = vmatmul.bf16.gmra.mxu0 %v3553
        %v4417 = vpop.f32.mrf.mxu0
        %v4418 = vadd.f32 %v4369, %v4417
        %v4419 = vpop.f32.mrf.mxu0
        %v4420 = vadd.f32 %v4371, %v4419
        %4421 = vmatmul.bf16.gmra.mxu0 %v3555
        %v4422 = vpop.f32.mrf.mxu0
        %v4423 = vadd.f32 %v4374, %v4422
        %v4424 = vpop.f32.mrf.mxu0
        %v4425 = vadd.f32 %v4376, %v4424
        %4426 = vmatmul.bf16.gmra.mxu0 %v3557
        %v4427 = vpop.f32.mrf.mxu0
        %v4428 = vadd.f32 %v4379, %v4427
        %v4429 = vpop.f32.mrf.mxu0
        %v4430 = vadd.f32 %v4381, %v4429
        %4431 = vmatmul.bf16.gmra.mxu0 %v3559
        %v4432 = vpop.f32.mrf.mxu0
        %v4433 = vadd.f32 %v4384, %v4432
        %v4434 = vpop.f32.mrf.mxu0
        %v4435 = vadd.f32 %v4386, %v4434
        %4436 = vmatmul.bf16.gmra.mxu0 %v3561
        %v4437 = vpop.f32.mrf.mxu0
        %v4438 = vadd.f32 %v4389, %v4437
        %v4439 = vpop.f32.mrf.mxu0
        %v4440 = vadd.f32 %v4391, %v4439
        %4441 = vmatmul.bf16.gmra.mxu0 %v3563
        %v4442 = vpop.f32.mrf.mxu0
        %v4443 = vadd.f32 %v4394, %v4442
        %v4444 = vpop.f32.mrf.mxu0
        %v4445 = vadd.f32 %v4396, %v4444
        %4446 = vmatmul.bf16.gmra.mxu0 %v3565
        %v4447 = vpop.f32.mrf.mxu0
        %v4448 = vadd.f32 %v4399, %v4447
        %v4449 = vpop.f32.mrf.mxu0
        %v4450 = vadd.f32 %v4401, %v4449
        %4451 = vmatmul.bf16.gmra.mxu0 %v3567
        %v4452 = vpop.f32.mrf.mxu0
        %v4453 = vadd.f32 %v4404, %v4452
        %v4454 = vpop.f32.mrf.mxu0
        %v4455 = vadd.f32 %v4406, %v4454
        %4456 = vdwg.mxu0
        %v4457 = vrot.slane %v3520, 1
        %v4458 = vrot.slane %v3521, 1
        %v4459 = vrot.slane %v3522, 1
        %v4460 = vrot.slane %v3523, 1
        %v4461 = vrot.slane %v3524, 1
        %v4462 = vrot.slane %v3525, 1
        %v4463 = vrot.slane %v3526, 1
        %v4464 = vrot.slane %v3527, 1
        %v4465 = vrot.slane %v3528, 1
        %v4466 = vrot.slane %v3529, 1
        %v4467 = vrot.slane %v3530, 1
        %v4468 = vrot.slane %v3531, 1
        %v4469 = vrot.slane %v3532, 1
        %v4470 = vrot.slane %v3533, 1
        %v4471 = vrot.slane %v3534, 1
        %v4472 = vrot.slane %v3535, 1
        %v4473 = vrot.slane %v3536, 1
        %v4474 = vrot.slane %v3537, 1
        %v4475 = vrot.slane %v3538, 1
        %v4476 = vrot.slane %v3539, 1
        %v4477 = vrot.slane %v3540, 1
        %v4478 = vrot.slane %v3541, 1
        %v4479 = vrot.slane %v3542, 1
        %v4480 = vrot.slane %v3543, 1
        %v4481 = vrot.slane %v3544, 1
        %v4482 = vrot.slane %v3545, 1
        %v4483 = vrot.slane %v3546, 1
        %v4484 = vrot.slane %v3547, 1
        %v4485 = vrot.slane %v3548, 1
        %v4486 = vrot.slane %v3549, 1
        %v4487 = vrot.slane %v3550, 1
        %v4488 = vrot.slane %v3551, 1
        %v4489 = vsel %vm1772, %v4485, %v4487
        %v4490 = vsel %vm1772, %v4486, %v4488
        %v4491 = vsel %vm1772, %v4483, %v4485
        %v4492 = vsel %vm1772, %v4484, %v4486
        %v4493 = vsel %vm1772, %v4481, %v4483
        %v4494 = vsel %vm1772, %v4482, %v4484
        %v4495 = vsel %vm1772, %v4479, %v4481
        %v4496 = vsel %vm1772, %v4480, %v4482
        %v4497 = vsel %vm1772, %v4477, %v4479
        %v4498 = vsel %vm1772, %v4478, %v4480
        %v4499 = vsel %vm1772, %v4475, %v4477
        %v4500 = vsel %vm1772, %v4476, %v4478
        %v4501 = vsel %vm1772, %v4473, %v4475
        %v4502 = vsel %vm1772, %v4474, %v4476
        %v4503 = vsel %vm1772, %v4471, %v4473
        %v4504 = vsel %vm1772, %v4472, %v4474
        %v4505 = vsel %vm1772, %v4469, %v4471
        %v4506 = vsel %vm1772, %v4470, %v4472
        %v4507 = vsel %vm1772, %v4467, %v4469
        %v4508 = vsel %vm1772, %v4468, %v4470
        %v4509 = vsel %vm1772, %v4465, %v4467
        %v4510 = vsel %vm1772, %v4466, %v4468
        %v4511 = vsel %vm1772, %v4463, %v4465
        %v4512 = vsel %vm1772, %v4464, %v4466
        %v4513 = vsel %vm1772, %v4461, %v4463
        %v4514 = vsel %vm1772, %v4462, %v4464
        %v4515 = vsel %vm1772, %v4459, %v4461
        %v4516 = vsel %vm1772, %v4460, %v4462
        %v4517 = vsel %vm1772, %v4457, %v4459
        %v4518 = vsel %vm1772, %v4458, %v4460
        %v4519 = vsel %vm1772, %v4487, %v4457
        %v4520 = vsel %vm1772, %v4488, %v4458
        %v4521 = vsel %vm1821, %v4517, 0.0
        %v4522 = vsel %vm1821, %v4518, 0.0
        %v4523 = vsel %vm1822, %v4515, 0.0
        %v4524 = vsel %vm1822, %v4516, 0.0
        %v4525 = vsel %vm1823, %v4513, 0.0
        %v4526 = vsel %vm1823, %v4514, 0.0
        %v4527 = vsel %vm1824, %v4511, 0.0
        %v4528 = vsel %vm1824, %v4512, 0.0
        %v4529 = vsel %vm1825, %v4509, 0.0
        %v4530 = vsel %vm1825, %v4510, 0.0
        %v4531 = vsel %vm1826, %v4507, 0.0
        %v4532 = vsel %vm1826, %v4508, 0.0
        %v4533 = vsel %vm1827, %v4505, 0.0
        %v4534 = vsel %vm1827, %v4506, 0.0
        %v4535 = vsel %vm1828, %v4503, 0.0
        %v4536 = vsel %vm1828, %v4504, 0.0
        %v4537 = vsel %vm1829, %v4501, 0.0
        %v4538 = vsel %vm1829, %v4502, 0.0
        %v4539 = vsel %vm1830, %v4499, 0.0
        %v4540 = vsel %vm1830, %v4500, 0.0
        %v4541 = vsel %vm1831, %v4497, 0.0
        %v4542 = vsel %vm1831, %v4498, 0.0
        %v4543 = vsel %vm1832, %v4495, 0.0
        %v4544 = vsel %vm1832, %v4496, 0.0
        %v4545 = vsel %vm1833, %v4493, 0.0
        %v4546 = vsel %vm1833, %v4494, 0.0
        %v4547 = vsel %vm1834, %v4491, 0.0
        %v4548 = vsel %vm1834, %v4492, 0.0
        %v4549 = vsel %vm1835, %v4489, 0.0
        %v4550 = vsel %vm1835, %v4490, 0.0
        %v4551 = vsel %vm1836, %v4519, 0.0
        %v4552 = vsel %vm1836, %v4520, 0.0
        %v4553 = vpack.c.bf16 %v4523, %v4521
        %v4554 = vpack.c.bf16 %v4524, %v4522
        %v4555 = vpack.c.bf16 %v4527, %v4525
        %v4556 = vpack.c.bf16 %v4528, %v4526
        %v4557 = vpack.c.bf16 %v4531, %v4529
        %v4558 = vpack.c.bf16 %v4532, %v4530
        %v4559 = vpack.c.bf16 %v4535, %v4533
        %v4560 = vpack.c.bf16 %v4536, %v4534
        %v4561 = vpack.c.bf16 %v4539, %v4537
        %v4562 = vpack.c.bf16 %v4540, %v4538
        %v4563 = vpack.c.bf16 %v4543, %v4541
        %v4564 = vpack.c.bf16 %v4544, %v4542
        %v4565 = vpack.c.bf16 %v4547, %v4545
        %v4566 = vpack.c.bf16 %v4548, %v4546
        %v4567 = vpack.c.bf16 %v4551, %v4549
        %v4568 = vpack.c.bf16 %v4552, %v4550
        %s4569 = scalar_lea.vmem [#allocation7], 512
        %v4570 = vld [vmem:[%s4569] sm:$0xff]
        %v4571 = vld [vmem:[%s4569 + $0x8] sm:$0xff]
        %v4572 = vld [vmem:[%s4569 + $0x10] sm:$0xff]
        %v4573 = vld [vmem:[%s4569 + $0x18] sm:$0xff]
        %v4574 = vld [vmem:[%s4569 + $0x20] sm:$0xff]
        %v4575 = vld [vmem:[%s4569 + $0x28] sm:$0xff]
        %v4576 = vld [vmem:[%s4569 + $0x30] sm:$0xff]
        %v4577 = vld [vmem:[%s4569 + $0x38] sm:$0xff]
        %v4578 = vld [vmem:[%s4569 + $0x40] sm:$0xff]
        %v4579 = vld [vmem:[%s4569 + $0x48] sm:$0xff]
        %v4580 = vld [vmem:[%s4569 + $0x50] sm:$0xff]
        %v4581 = vld [vmem:[%s4569 + $0x58] sm:$0xff]
        %v4582 = vld [vmem:[%s4569 + $0x60] sm:$0xff]
        %v4583 = vld [vmem:[%s4569 + $0x68] sm:$0xff]
        %v4584 = vld [vmem:[%s4569 + $0x70] sm:$0xff]
        %v4585 = vld [vmem:[%s4569 + $0x78] sm:$0xff]
        %v4586 = vld [vmem:[%s4569 + $0x80] sm:$0xff]
        %v4587 = vld [vmem:[%s4569 + $0x88] sm:$0xff]
        %v4588 = vld [vmem:[%s4569 + $0x90] sm:$0xff]
        %v4589 = vld [vmem:[%s4569 + $0x98] sm:$0xff]
        %v4590 = vld [vmem:[%s4569 + $0xa0] sm:$0xff]
        %v4591 = vld [vmem:[%s4569 + $0xa8] sm:$0xff]
        %v4592 = vld [vmem:[%s4569 + $0xb0] sm:$0xff]
        %v4593 = vld [vmem:[%s4569 + $0xb8] sm:$0xff]
        %v4594 = vld [vmem:[%s4569 + $0xc0] sm:$0xff]
        %v4595 = vld [vmem:[%s4569 + $0xc8] sm:$0xff]
        %v4596 = vld [vmem:[%s4569 + $0xd0] sm:$0xff]
        %v4597 = vld [vmem:[%s4569 + $0xd8] sm:$0xff]
        %v4598 = vld [vmem:[%s4569 + $0xe0] sm:$0xff]
        %v4599 = vld [vmem:[%s4569 + $0xe8] sm:$0xff]
        %v4600 = vld [vmem:[%s4569 + $0xf0] sm:$0xff]
        %v4601 = vld [vmem:[%s4569 + $0xf8] sm:$0xff]
        %v4634 = vunpack.c.l.b16 %v4570
        %v4635 = vunpack.c.h.b16 %v4570
        %v4636 = vunpack.c.l.b16 %v4571
        %v4637 = vunpack.c.h.b16 %v4571
        %v4638 = vunpack.c.l.b16 %v4572
        %v4639 = vunpack.c.h.b16 %v4572
        %v4640 = vunpack.c.l.b16 %v4573
        %v4641 = vunpack.c.h.b16 %v4573
        %v4642 = vunpack.c.l.b16 %v4574
        %v4643 = vunpack.c.h.b16 %v4574
        %v4644 = vunpack.c.l.b16 %v4575
        %v4645 = vunpack.c.h.b16 %v4575
        %v4646 = vunpack.c.l.b16 %v4576
        %v4647 = vunpack.c.h.b16 %v4576
        %v4648 = vunpack.c.l.b16 %v4577
        %v4649 = vunpack.c.h.b16 %v4577
        %v4650 = vunpack.c.l.b16 %v4578
        %v4651 = vunpack.c.h.b16 %v4578
        %v4652 = vunpack.c.l.b16 %v4579
        %v4653 = vunpack.c.h.b16 %v4579
        %v4654 = vunpack.c.l.b16 %v4580
        %v4655 = vunpack.c.h.b16 %v4580
        %v4656 = vunpack.c.l.b16 %v4581
        %v4657 = vunpack.c.h.b16 %v4581
        %v4658 = vunpack.c.l.b16 %v4582
        %v4659 = vunpack.c.h.b16 %v4582
        %v4660 = vunpack.c.l.b16 %v4583
        %v4661 = vunpack.c.h.b16 %v4583
        %v4662 = vunpack.c.l.b16 %v4584
        %v4663 = vunpack.c.h.b16 %v4584
        %v4664 = vunpack.c.l.b16 %v4585
        %v4665 = vunpack.c.h.b16 %v4585
        %v4666 = vunpack.c.l.b16 %v4586
        %v4667 = vunpack.c.h.b16 %v4586
        %v4668 = vunpack.c.l.b16 %v4587
        %v4669 = vunpack.c.h.b16 %v4587
        %v4670 = vunpack.c.l.b16 %v4588
        %v4671 = vunpack.c.h.b16 %v4588
        %v4672 = vunpack.c.l.b16 %v4589
        %v4673 = vunpack.c.h.b16 %v4589
        %v4674 = vunpack.c.l.b16 %v4590
        %v4675 = vunpack.c.h.b16 %v4590
        %v4676 = vunpack.c.l.b16 %v4591
        %v4677 = vunpack.c.h.b16 %v4591
        %v4678 = vunpack.c.l.b16 %v4592
        %v4679 = vunpack.c.h.b16 %v4592
        %v4680 = vunpack.c.l.b16 %v4593
        %v4681 = vunpack.c.h.b16 %v4593
        %v4682 = vunpack.c.l.b16 %v4594
        %v4683 = vunpack.c.h.b16 %v4594
        %v4684 = vunpack.c.l.b16 %v4595
        %v4685 = vunpack.c.h.b16 %v4595
        %v4686 = vunpack.c.l.b16 %v4596
        %v4687 = vunpack.c.h.b16 %v4596
        %v4688 = vunpack.c.l.b16 %v4597
        %v4689 = vunpack.c.h.b16 %v4597
        %v4690 = vunpack.c.l.b16 %v4598
        %v4691 = vunpack.c.h.b16 %v4598
        %v4692 = vunpack.c.l.b16 %v4599
        %v4693 = vunpack.c.h.b16 %v4599
        %v4694 = vunpack.c.l.b16 %v4600
        %v4695 = vunpack.c.h.b16 %v4600
        %v4696 = vunpack.c.l.b16 %v4601
        %v4697 = vunpack.c.h.b16 %v4601
        %v4698 = vpack.c.b16 %v4636, %v4634
        %v4699 = vpack.c.b16 %v4637, %v4635
        %v4700 = vpack.c.b16 %v4640, %v4638
        %v4701 = vpack.c.b16 %v4641, %v4639
        %v4702 = vpack.c.b16 %v4644, %v4642
        %v4703 = vpack.c.b16 %v4645, %v4643
        %v4704 = vpack.c.b16 %v4648, %v4646
        %v4705 = vpack.c.b16 %v4649, %v4647
        %v4706 = vpack.c.b16 %v4652, %v4650
        %v4707 = vpack.c.b16 %v4653, %v4651
        %v4708 = vpack.c.b16 %v4656, %v4654
        %v4709 = vpack.c.b16 %v4657, %v4655
        %v4710 = vpack.c.b16 %v4660, %v4658
        %v4711 = vpack.c.b16 %v4661, %v4659
        %v4712 = vpack.c.b16 %v4664, %v4662
        %v4713 = vpack.c.b16 %v4665, %v4663
        %v4714 = vpack.c.b16 %v4668, %v4666
        %v4715 = vpack.c.b16 %v4669, %v4667
        %v4716 = vpack.c.b16 %v4672, %v4670
        %v4717 = vpack.c.b16 %v4673, %v4671
        %v4718 = vpack.c.b16 %v4676, %v4674
        %v4719 = vpack.c.b16 %v4677, %v4675
        %v4720 = vpack.c.b16 %v4680, %v4678
        %v4721 = vpack.c.b16 %v4681, %v4679
        %v4722 = vpack.c.b16 %v4684, %v4682
        %v4723 = vpack.c.b16 %v4685, %v4683
        %v4724 = vpack.c.b16 %v4688, %v4686
        %v4725 = vpack.c.b16 %v4689, %v4687
        %v4726 = vpack.c.b16 %v4692, %v4690
        %v4727 = vpack.c.b16 %v4693, %v4691
        %v4728 = vpack.c.b16 %v4696, %v4694
        %v4729 = vpack.c.b16 %v4697, %v4695
        %4762 = vmatpush.bf16.msra.mxu0 %v4712
        %4763 = vmatpush.bf16.msra.mxu0 %v4710
        %4764 = vmatpush.bf16.msra.mxu0 %v4708
        %4765 = vmatpush.bf16.msra.mxu0 %v4706
        %4766 = vmatpush.bf16.msra.mxu0 %v4704
        %4767 = vmatpush.bf16.msra.mxu0 %v4702
        %4768 = vmatpush.bf16.msra.mxu0 %v4700
        %4769 = vmatpush.bf16.msra.mxu0 %v4698
        %4770 = vmatmul.bf16.gmra.mxu0 %v4553
        %v4771 = vpop.f32.mrf.mxu0
        %v4772 = vadd.f32 0.0, %v4771
        %v4773 = vpop.f32.mrf.mxu0
        %v4774 = vadd.f32 0.0, %v4773
        %4775 = vmatmul.bf16.gmra.mxu0 %v4555
        %v4776 = vpop.f32.mrf.mxu0
        %v4777 = vadd.f32 0.0, %v4776
        %v4778 = vpop.f32.mrf.mxu0
        %v4779 = vadd.f32 0.0, %v4778
        %4780 = vmatmul.bf16.gmra.mxu0 %v4557
        %v4781 = vpop.f32.mrf.mxu0
        %v4782 = vadd.f32 0.0, %v4781
        %v4783 = vpop.f32.mrf.mxu0
        %v4784 = vadd.f32 0.0, %v4783
        %4785 = vmatmul.bf16.gmra.mxu0 %v4559
        %v4786 = vpop.f32.mrf.mxu0
        %v4787 = vadd.f32 0.0, %v4786
        %v4788 = vpop.f32.mrf.mxu0
        %v4789 = vadd.f32 0.0, %v4788
        %4790 = vmatmul.bf16.gmra.mxu0 %v4561
        %v4791 = vpop.f32.mrf.mxu0
        %v4792 = vadd.f32 0.0, %v4791
        %v4793 = vpop.f32.mrf.mxu0
        %v4794 = vadd.f32 0.0, %v4793
        %4795 = vmatmul.bf16.gmra.mxu0 %v4563
        %v4796 = vpop.f32.mrf.mxu0
        %v4797 = vadd.f32 0.0, %v4796
        %v4798 = vpop.f32.mrf.mxu0
        %v4799 = vadd.f32 0.0, %v4798
        %4800 = vmatmul.bf16.gmra.mxu0 %v4565
        %v4801 = vpop.f32.mrf.mxu0
        %v4802 = vadd.f32 0.0, %v4801
        %v4803 = vpop.f32.mrf.mxu0
        %v4804 = vadd.f32 0.0, %v4803
        %4805 = vmatmul.bf16.gmra.mxu0 %v4567
        %v4806 = vpop.f32.mrf.mxu0
        %v4807 = vadd.f32 0.0, %v4806
        %v4808 = vpop.f32.mrf.mxu0
        %v4809 = vadd.f32 0.0, %v4808
        %4810 = vdwg.mxu0
        %4811 = vmatpush.bf16.msra.mxu0 %v4728
        %4812 = vmatpush.bf16.msra.mxu0 %v4726
        %4813 = vmatpush.bf16.msra.mxu0 %v4724
        %4814 = vmatpush.bf16.msra.mxu0 %v4722
        %4815 = vmatpush.bf16.msra.mxu0 %v4720
        %4816 = vmatpush.bf16.msra.mxu0 %v4718
        %4817 = vmatpush.bf16.msra.mxu0 %v4716
        %4818 = vmatpush.bf16.msra.mxu0 %v4714
        %4819 = vmatmul.bf16.gmra.mxu0 %v4554
        %v4820 = vpop.f32.mrf.mxu0
        %v4821 = vadd.f32 %v4772, %v4820
        %v4822 = vpop.f32.mrf.mxu0
        %v4823 = vadd.f32 %v4774, %v4822
        %4824 = vmatmul.bf16.gmra.mxu0 %v4556
        %v4825 = vpop.f32.mrf.mxu0
        %v4826 = vadd.f32 %v4777, %v4825
        %v4827 = vpop.f32.mrf.mxu0
        %v4828 = vadd.f32 %v4779, %v4827
        %4829 = vmatmul.bf16.gmra.mxu0 %v4558
        %v4830 = vpop.f32.mrf.mxu0
        %v4831 = vadd.f32 %v4782, %v4830
        %v4832 = vpop.f32.mrf.mxu0
        %v4833 = vadd.f32 %v4784, %v4832
        %4834 = vmatmul.bf16.gmra.mxu0 %v4560
        %v4835 = vpop.f32.mrf.mxu0
        %v4836 = vadd.f32 %v4787, %v4835
        %v4837 = vpop.f32.mrf.mxu0
        %v4838 = vadd.f32 %v4789, %v4837
        %4839 = vmatmul.bf16.gmra.mxu0 %v4562
        %v4840 = vpop.f32.mrf.mxu0
        %v4841 = vadd.f32 %v4792, %v4840
        %v4842 = vpop.f32.mrf.mxu0
        %v4843 = vadd.f32 %v4794, %v4842
        %4844 = vmatmul.bf16.gmra.mxu0 %v4564
        %v4845 = vpop.f32.mrf.mxu0
        %v4846 = vadd.f32 %v4797, %v4845
        %v4847 = vpop.f32.mrf.mxu0
        %v4848 = vadd.f32 %v4799, %v4847
        %4849 = vmatmul.bf16.gmra.mxu0 %v4566
        %v4850 = vpop.f32.mrf.mxu0
        %v4851 = vadd.f32 %v4802, %v4850
        %v4852 = vpop.f32.mrf.mxu0
        %v4853 = vadd.f32 %v4804, %v4852
        %4854 = vmatmul.bf16.gmra.mxu0 %v4568
        %v4855 = vpop.f32.mrf.mxu0
        %v4856 = vadd.f32 %v4807, %v4855
        %v4857 = vpop.f32.mrf.mxu0
        %v4858 = vadd.f32 %v4809, %v4857
        %4859 = vdwg.mxu0
        %4860 = vmatpush.bf16.msra.mxu0 %v4713
        %4861 = vmatpush.bf16.msra.mxu0 %v4711
        %4862 = vmatpush.bf16.msra.mxu0 %v4709
        %4863 = vmatpush.bf16.msra.mxu0 %v4707
        %4864 = vmatpush.bf16.msra.mxu0 %v4705
        %4865 = vmatpush.bf16.msra.mxu0 %v4703
        %4866 = vmatpush.bf16.msra.mxu0 %v4701
        %4867 = vmatpush.bf16.msra.mxu0 %v4699
        %4868 = vmatmul.bf16.gmra.mxu0 %v4553
        %v4869 = vpop.f32.mrf.mxu0
        %v4870 = vadd.f32 0.0, %v4869
        %v4871 = vpop.f32.mrf.mxu0
        %v4872 = vadd.f32 0.0, %v4871
        %4873 = vmatmul.bf16.gmra.mxu0 %v4555
        %v4874 = vpop.f32.mrf.mxu0
        %v4875 = vadd.f32 0.0, %v4874
        %v4876 = vpop.f32.mrf.mxu0
        %v4877 = vadd.f32 0.0, %v4876
        %4878 = vmatmul.bf16.gmra.mxu0 %v4557
        %v4879 = vpop.f32.mrf.mxu0
        %v4880 = vadd.f32 0.0, %v4879
        %v4881 = vpop.f32.mrf.mxu0
        %v4882 = vadd.f32 0.0, %v4881
        %4883 = vmatmul.bf16.gmra.mxu0 %v4559
        %v4884 = vpop.f32.mrf.mxu0
        %v4885 = vadd.f32 0.0, %v4884
        %v4886 = vpop.f32.mrf.mxu0
        %v4887 = vadd.f32 0.0, %v4886
        %4888 = vmatmul.bf16.gmra.mxu0 %v4561
        %v4889 = vpop.f32.mrf.mxu0
        %v4890 = vadd.f32 0.0, %v4889
        %v4891 = vpop.f32.mrf.mxu0
        %v4892 = vadd.f32 0.0, %v4891
        %4893 = vmatmul.bf16.gmra.mxu0 %v4563
        %v4894 = vpop.f32.mrf.mxu0
        %v4895 = vadd.f32 0.0, %v4894
        %v4896 = vpop.f32.mrf.mxu0
        %v4897 = vadd.f32 0.0, %v4896
        %4898 = vmatmul.bf16.gmra.mxu0 %v4565
        %v4899 = vpop.f32.mrf.mxu0
        %v4900 = vadd.f32 0.0, %v4899
        %v4901 = vpop.f32.mrf.mxu0
        %v4902 = vadd.f32 0.0, %v4901
        %4903 = vmatmul.bf16.gmra.mxu0 %v4567
        %v4904 = vpop.f32.mrf.mxu0
        %v4905 = vadd.f32 0.0, %v4904
        %v4906 = vpop.f32.mrf.mxu0
        %v4907 = vadd.f32 0.0, %v4906
        %4908 = vdwg.mxu0
        %4909 = vmatpush.bf16.msra.mxu0 %v4729
        %4910 = vmatpush.bf16.msra.mxu0 %v4727
        %4911 = vmatpush.bf16.msra.mxu0 %v4725
        %4912 = vmatpush.bf16.msra.mxu0 %v4723
        %4913 = vmatpush.bf16.msra.mxu0 %v4721
        %4914 = vmatpush.bf16.msra.mxu0 %v4719
        %4915 = vmatpush.bf16.msra.mxu0 %v4717
        %4916 = vmatpush.bf16.msra.mxu0 %v4715
        %4917 = vmatmul.bf16.gmra.mxu0 %v4554
        %v4918 = vpop.f32.mrf.mxu0
        %v4919 = vadd.f32 %v4870, %v4918
        %v4920 = vpop.f32.mrf.mxu0
        %v4921 = vadd.f32 %v4872, %v4920
        %4922 = vmatmul.bf16.gmra.mxu0 %v4556
        %v4923 = vpop.f32.mrf.mxu0
        %v4924 = vadd.f32 %v4875, %v4923
        %v4925 = vpop.f32.mrf.mxu0
        %v4926 = vadd.f32 %v4877, %v4925
        %4927 = vmatmul.bf16.gmra.mxu0 %v4558
        %v4928 = vpop.f32.mrf.mxu0
        %v4929 = vadd.f32 %v4880, %v4928
        %v4930 = vpop.f32.mrf.mxu0
        %v4931 = vadd.f32 %v4882, %v4930
        %4932 = vmatmul.bf16.gmra.mxu0 %v4560
        %v4933 = vpop.f32.mrf.mxu0
        %v4934 = vadd.f32 %v4885, %v4933
        %v4935 = vpop.f32.mrf.mxu0
        %v4936 = vadd.f32 %v4887, %v4935
        %4937 = vmatmul.bf16.gmra.mxu0 %v4562
        %v4938 = vpop.f32.mrf.mxu0
        %v4939 = vadd.f32 %v4890, %v4938
        %v4940 = vpop.f32.mrf.mxu0
        %v4941 = vadd.f32 %v4892, %v4940
        %4942 = vmatmul.bf16.gmra.mxu0 %v4564
        %v4943 = vpop.f32.mrf.mxu0
        %v4944 = vadd.f32 %v4895, %v4943
        %v4945 = vpop.f32.mrf.mxu0
        %v4946 = vadd.f32 %v4897, %v4945
        %4947 = vmatmul.bf16.gmra.mxu0 %v4566
        %v4948 = vpop.f32.mrf.mxu0
        %v4949 = vadd.f32 %v4900, %v4948
        %v4950 = vpop.f32.mrf.mxu0
        %v4951 = vadd.f32 %v4902, %v4950
        %4952 = vmatmul.bf16.gmra.mxu0 %v4568
        %v4953 = vpop.f32.mrf.mxu0
        %v4954 = vadd.f32 %v4905, %v4953
        %v4955 = vpop.f32.mrf.mxu0
        %v4956 = vadd.f32 %v4907, %v4955
        %4957 = vdwg.mxu0
        %v4958 = vadd.f32 %v4320, %v4821
        %v4959 = vadd.f32 %v4418, %v4919
        %v4960 = vadd.f32 %v4322, %v4823
        %v4961 = vadd.f32 %v4420, %v4921
        %v4962 = vadd.f32 %v4325, %v4826
        %v4963 = vadd.f32 %v4423, %v4924
        %v4964 = vadd.f32 %v4327, %v4828
        %v4965 = vadd.f32 %v4425, %v4926
        %v4966 = vadd.f32 %v4330, %v4831
        %v4967 = vadd.f32 %v4428, %v4929
        %v4968 = vadd.f32 %v4332, %v4833
        %v4969 = vadd.f32 %v4430, %v4931
        %v4970 = vadd.f32 %v4335, %v4836
        %v4971 = vadd.f32 %v4433, %v4934
        %v4972 = vadd.f32 %v4337, %v4838
        %v4973 = vadd.f32 %v4435, %v4936
        %v4974 = vadd.f32 %v4340, %v4841
        %v4975 = vadd.f32 %v4438, %v4939
        %v4976 = vadd.f32 %v4342, %v4843
        %v4977 = vadd.f32 %v4440, %v4941
        %v4978 = vadd.f32 %v4345, %v4846
        %v4979 = vadd.f32 %v4443, %v4944
        %v4980 = vadd.f32 %v4347, %v4848
        %v4981 = vadd.f32 %v4445, %v4946
        %v4982 = vadd.f32 %v4350, %v4851
        %v4983 = vadd.f32 %v4448, %v4949
        %v4984 = vadd.f32 %v4352, %v4853
        %v4985 = vadd.f32 %v4450, %v4951
        %v4986 = vadd.f32 %v4355, %v4856
        %v4987 = vadd.f32 %v4453, %v4954
        %v4988 = vadd.f32 %v4357, %v4858
        %v4989 = vadd.f32 %v4455, %v4956
        %v4990 = vld [vmem:[%s4] sm:$0x3]
        %v4992 = vperm.slane %v4990, 0
        %v4993 = vperm.slane %v4990, 1
        %v4996 = vadd.f32 %v4958, %v4992
        %v4997 = vadd.f32 %v4959, %v4993
        %v4998 = vadd.f32 %v4960, %v4992
        %v4999 = vadd.f32 %v4961, %v4993
        %v5000 = vadd.f32 %v4962, %v4992
        %v5001 = vadd.f32 %v4963, %v4993
        %v5002 = vadd.f32 %v4964, %v4992
        %v5003 = vadd.f32 %v4965, %v4993
        %v5004 = vadd.f32 %v4966, %v4992
        %v5005 = vadd.f32 %v4967, %v4993
        %v5006 = vadd.f32 %v4968, %v4992
        %v5007 = vadd.f32 %v4969, %v4993
        %v5008 = vadd.f32 %v4970, %v4992
        %v5009 = vadd.f32 %v4971, %v4993
        %v5010 = vadd.f32 %v4972, %v4992
        %v5011 = vadd.f32 %v4973, %v4993
        %v5012 = vadd.f32 %v4974, %v4992
        %v5013 = vadd.f32 %v4975, %v4993
        %v5014 = vadd.f32 %v4976, %v4992
        %v5015 = vadd.f32 %v4977, %v4993
        %v5016 = vadd.f32 %v4978, %v4992
        %v5017 = vadd.f32 %v4979, %v4993
        %v5018 = vadd.f32 %v4980, %v4992
        %v5019 = vadd.f32 %v4981, %v4993
        %v5020 = vadd.f32 %v4982, %v4992
        %v5021 = vadd.f32 %v4983, %v4993
        %v5022 = vadd.f32 %v4984, %v4992
        %v5023 = vadd.f32 %v4985, %v4993
        %v5024 = vadd.f32 %v4986, %v4992
        %v5025 = vadd.f32 %v4987, %v4993
        %v5026 = vadd.f32 %v4988, %v4992
        %v5027 = vadd.f32 %v4989, %v4993
        %v5028 = vrot.slane %v4996, 4
        %v5029 = vadd.f32 %v4996, %v5028
        %v5030 = vrot.slane %v5029, 2
        %v5031 = vadd.f32 %v5029, %v5030
        %v5032 = vrot.slane %v5031, 1
        %v5033 = vadd.f32 %v5031, %v5032
        %v5034 = vrot.slane %v4997, 4
        %v5035 = vadd.f32 %v4997, %v5034
        %v5036 = vrot.slane %v5035, 2
        %v5037 = vadd.f32 %v5035, %v5036
        %v5038 = vrot.slane %v5037, 1
        %v5039 = vadd.f32 %v5037, %v5038
        %v5040 = vrot.slane %v4998, 4
        %v5041 = vadd.f32 %v4998, %v5040
        %v5042 = vrot.slane %v5041, 2
        %v5043 = vadd.f32 %v5041, %v5042
        %v5044 = vrot.slane %v5043, 1
        %v5045 = vadd.f32 %v5043, %v5044
        %v5046 = vrot.slane %v4999, 4
        %v5047 = vadd.f32 %v4999, %v5046
        %v5048 = vrot.slane %v5047, 2
        %v5049 = vadd.f32 %v5047, %v5048
        %v5050 = vrot.slane %v5049, 1
        %v5051 = vadd.f32 %v5049, %v5050
        %v5052 = vrot.slane %v5000, 4
        %v5053 = vadd.f32 %v5000, %v5052
        %v5054 = vrot.slane %v5053, 2
        %v5055 = vadd.f32 %v5053, %v5054
        %v5056 = vrot.slane %v5055, 1
        %v5057 = vadd.f32 %v5055, %v5056
        %v5058 = vrot.slane %v5001, 4
        %v5059 = vadd.f32 %v5001, %v5058
        %v5060 = vrot.slane %v5059, 2
        %v5061 = vadd.f32 %v5059, %v5060
        %v5062 = vrot.slane %v5061, 1
        %v5063 = vadd.f32 %v5061, %v5062
        %v5064 = vrot.slane %v5002, 4
        %v5065 = vadd.f32 %v5002, %v5064
        %v5066 = vrot.slane %v5065, 2
        %v5067 = vadd.f32 %v5065, %v5066
        %v5068 = vrot.slane %v5067, 1
        %v5069 = vadd.f32 %v5067, %v5068
        %v5070 = vrot.slane %v5003, 4
        %v5071 = vadd.f32 %v5003, %v5070
        %v5072 = vrot.slane %v5071, 2
        %v5073 = vadd.f32 %v5071, %v5072
        %v5074 = vrot.slane %v5073, 1
        %v5075 = vadd.f32 %v5073, %v5074
        %v5076 = vrot.slane %v5004, 4
        %v5077 = vadd.f32 %v5004, %v5076
        %v5078 = vrot.slane %v5077, 2
        %v5079 = vadd.f32 %v5077, %v5078
        %v5080 = vrot.slane %v5079, 1
        %v5081 = vadd.f32 %v5079, %v5080
        %v5082 = vrot.slane %v5005, 4
        %v5083 = vadd.f32 %v5005, %v5082
        %v5084 = vrot.slane %v5083, 2
        %v5085 = vadd.f32 %v5083, %v5084
        %v5086 = vrot.slane %v5085, 1
        %v5087 = vadd.f32 %v5085, %v5086
        %v5088 = vrot.slane %v5006, 4
        %v5089 = vadd.f32 %v5006, %v5088
        %v5090 = vrot.slane %v5089, 2
        %v5091 = vadd.f32 %v5089, %v5090
        %v5092 = vrot.slane %v5091, 1
        %v5093 = vadd.f32 %v5091, %v5092
        %v5094 = vrot.slane %v5007, 4
        %v5095 = vadd.f32 %v5007, %v5094
        %v5096 = vrot.slane %v5095, 2
        %v5097 = vadd.f32 %v5095, %v5096
        %v5098 = vrot.slane %v5097, 1
        %v5099 = vadd.f32 %v5097, %v5098
        %v5100 = vrot.slane %v5008, 4
        %v5101 = vadd.f32 %v5008, %v5100
        %v5102 = vrot.slane %v5101, 2
        %v5103 = vadd.f32 %v5101, %v5102
        %v5104 = vrot.slane %v5103, 1
        %v5105 = vadd.f32 %v5103, %v5104
        %v5106 = vrot.slane %v5009, 4
        %v5107 = vadd.f32 %v5009, %v5106
        %v5108 = vrot.slane %v5107, 2
        %v5109 = vadd.f32 %v5107, %v5108
        %v5110 = vrot.slane %v5109, 1
        %v5111 = vadd.f32 %v5109, %v5110
        %v5112 = vrot.slane %v5010, 4
        %v5113 = vadd.f32 %v5010, %v5112
        %v5114 = vrot.slane %v5113, 2
        %v5115 = vadd.f32 %v5113, %v5114
        %v5116 = vrot.slane %v5115, 1
        %v5117 = vadd.f32 %v5115, %v5116
        %v5118 = vrot.slane %v5011, 4
        %v5119 = vadd.f32 %v5011, %v5118
        %v5120 = vrot.slane %v5119, 2
        %v5121 = vadd.f32 %v5119, %v5120
        %v5122 = vrot.slane %v5121, 1
        %v5123 = vadd.f32 %v5121, %v5122
        %v5124 = vrot.slane %v5012, 4
        %v5125 = vadd.f32 %v5012, %v5124
        %v5126 = vrot.slane %v5125, 2
        %v5127 = vadd.f32 %v5125, %v5126
        %v5128 = vrot.slane %v5127, 1
        %v5129 = vadd.f32 %v5127, %v5128
        %v5130 = vrot.slane %v5013, 4
        %v5131 = vadd.f32 %v5013, %v5130
        %v5132 = vrot.slane %v5131, 2
        %v5133 = vadd.f32 %v5131, %v5132
        %v5134 = vrot.slane %v5133, 1
        %v5135 = vadd.f32 %v5133, %v5134
        %v5136 = vrot.slane %v5014, 4
        %v5137 = vadd.f32 %v5014, %v5136
        %v5138 = vrot.slane %v5137, 2
        %v5139 = vadd.f32 %v5137, %v5138
        %v5140 = vrot.slane %v5139, 1
        %v5141 = vadd.f32 %v5139, %v5140
        %v5142 = vrot.slane %v5015, 4
        %v5143 = vadd.f32 %v5015, %v5142
        %v5144 = vrot.slane %v5143, 2
        %v5145 = vadd.f32 %v5143, %v5144
        %v5146 = vrot.slane %v5145, 1
        %v5147 = vadd.f32 %v5145, %v5146
        %v5148 = vrot.slane %v5016, 4
        %v5149 = vadd.f32 %v5016, %v5148
        %v5150 = vrot.slane %v5149, 2
        %v5151 = vadd.f32 %v5149, %v5150
        %v5152 = vrot.slane %v5151, 1
        %v5153 = vadd.f32 %v5151, %v5152
        %v5154 = vrot.slane %v5017, 4
        %v5155 = vadd.f32 %v5017, %v5154
        %v5156 = vrot.slane %v5155, 2
        %v5157 = vadd.f32 %v5155, %v5156
        %v5158 = vrot.slane %v5157, 1
        %v5159 = vadd.f32 %v5157, %v5158
        %v5160 = vrot.slane %v5018, 4
        %v5161 = vadd.f32 %v5018, %v5160
        %v5162 = vrot.slane %v5161, 2
        %v5163 = vadd.f32 %v5161, %v5162
        %v5164 = vrot.slane %v5163, 1
        %v5165 = vadd.f32 %v5163, %v5164
        %v5166 = vrot.slane %v5019, 4
        %v5167 = vadd.f32 %v5019, %v5166
        %v5168 = vrot.slane %v5167, 2
        %v5169 = vadd.f32 %v5167, %v5168
        %v5170 = vrot.slane %v5169, 1
        %v5171 = vadd.f32 %v5169, %v5170
        %v5172 = vrot.slane %v5020, 4
        %v5173 = vadd.f32 %v5020, %v5172
        %v5174 = vrot.slane %v5173, 2
        %v5175 = vadd.f32 %v5173, %v5174
        %v5176 = vrot.slane %v5175, 1
        %v5177 = vadd.f32 %v5175, %v5176
        %v5178 = vrot.slane %v5021, 4
        %v5179 = vadd.f32 %v5021, %v5178
        %v5180 = vrot.slane %v5179, 2
        %v5181 = vadd.f32 %v5179, %v5180
        %v5182 = vrot.slane %v5181, 1
        %v5183 = vadd.f32 %v5181, %v5182
        %v5184 = vrot.slane %v5022, 4
        %v5185 = vadd.f32 %v5022, %v5184
        %v5186 = vrot.slane %v5185, 2
        %v5187 = vadd.f32 %v5185, %v5186
        %v5188 = vrot.slane %v5187, 1
        %v5189 = vadd.f32 %v5187, %v5188
        %v5190 = vrot.slane %v5023, 4
        %v5191 = vadd.f32 %v5023, %v5190
        %v5192 = vrot.slane %v5191, 2
        %v5193 = vadd.f32 %v5191, %v5192
        %v5194 = vrot.slane %v5193, 1
        %v5195 = vadd.f32 %v5193, %v5194
        %v5196 = vrot.slane %v5024, 4
        %v5197 = vadd.f32 %v5024, %v5196
        %v5198 = vrot.slane %v5197, 2
        %v5199 = vadd.f32 %v5197, %v5198
        %v5200 = vrot.slane %v5199, 1
        %v5201 = vadd.f32 %v5199, %v5200
        %v5202 = vrot.slane %v5025, 4
        %v5203 = vadd.f32 %v5025, %v5202
        %v5204 = vrot.slane %v5203, 2
        %v5205 = vadd.f32 %v5203, %v5204
        %v5206 = vrot.slane %v5205, 1
        %v5207 = vadd.f32 %v5205, %v5206
        %v5208 = vrot.slane %v5026, 4
        %v5209 = vadd.f32 %v5026, %v5208
        %v5210 = vrot.slane %v5209, 2
        %v5211 = vadd.f32 %v5209, %v5210
        %v5212 = vrot.slane %v5211, 1
        %v5213 = vadd.f32 %v5211, %v5212
        %v5214 = vrot.slane %v5027, 4
        %v5215 = vadd.f32 %v5027, %v5214
        %v5216 = vrot.slane %v5215, 2
        %v5217 = vadd.f32 %v5215, %v5216
        %v5218 = vrot.slane %v5217, 1
        %v5219 = vadd.f32 %v5217, %v5218
        %v5220 = vmul.f32 %v5033, %v2542
        %v5221 = vmul.f32 %v5039, %v2542
        %v5222 = vmul.f32 %v5045, %v2542
        %v5223 = vmul.f32 %v5051, %v2542
        %v5224 = vmul.f32 %v5057, %v2542
        %v5225 = vmul.f32 %v5063, %v2542
        %v5226 = vmul.f32 %v5069, %v2542
        %v5227 = vmul.f32 %v5075, %v2542
        %v5228 = vmul.f32 %v5081, %v2542
        %v5229 = vmul.f32 %v5087, %v2542
        %v5230 = vmul.f32 %v5093, %v2542
        %v5231 = vmul.f32 %v5099, %v2542
        %v5232 = vmul.f32 %v5105, %v2542
        %v5233 = vmul.f32 %v5111, %v2542
        %v5234 = vmul.f32 %v5117, %v2542
        %v5235 = vmul.f32 %v5123, %v2542
        %v5236 = vmul.f32 %v5129, %v2542
        %v5237 = vmul.f32 %v5135, %v2542
        %v5238 = vmul.f32 %v5141, %v2542
        %v5239 = vmul.f32 %v5147, %v2542
        %v5240 = vmul.f32 %v5153, %v2542
        %v5241 = vmul.f32 %v5159, %v2542
        %v5242 = vmul.f32 %v5165, %v2542
        %v5243 = vmul.f32 %v5171, %v2542
        %v5244 = vmul.f32 %v5177, %v2542
        %v5245 = vmul.f32 %v5183, %v2542
        %v5246 = vmul.f32 %v5189, %v2542
        %v5247 = vmul.f32 %v5195, %v2542
        %v5248 = vmul.f32 %v5201, %v2542
        %v5249 = vmul.f32 %v5207, %v2542
        %v5250 = vmul.f32 %v5213, %v2542
        %v5251 = vmul.f32 %v5219, %v2542
        %v5284 = vsel %vm2671, %v5222, %v5220
        %v5285 = vsel %vm2673, %v5224, %v5284
        %v5286 = vsel %vm2675, %v5226, %v5285
        %v5287 = vsel %vm2677, %v5228, %v5286
        %v5288 = vsel %vm2679, %v5230, %v5287
        %v5289 = vsel %vm2681, %v5232, %v5288
        %v5290 = vsel %vm2683, %v5234, %v5289
        %v5291 = vsel %vm2671, %v5223, %v5221
        %v5292 = vsel %vm2673, %v5225, %v5291
        %v5293 = vsel %vm2675, %v5227, %v5292
        %v5294 = vsel %vm2677, %v5229, %v5293
        %v5295 = vsel %vm2679, %v5231, %v5294
        %v5296 = vsel %vm2681, %v5233, %v5295
        %v5297 = vsel %vm2683, %v5235, %v5296
        %v5298 = vsel %vm2671, %v5238, %v5236
        %v5299 = vsel %vm2673, %v5240, %v5298
        %v5300 = vsel %vm2675, %v5242, %v5299
        %v5301 = vsel %vm2677, %v5244, %v5300
        %v5302 = vsel %vm2679, %v5246, %v5301
        %v5303 = vsel %vm2681, %v5248, %v5302
        %v5304 = vsel %vm2683, %v5250, %v5303
        %v5305 = vsel %vm2671, %v5239, %v5237
        %v5306 = vsel %vm2673, %v5241, %v5305
        %v5307 = vsel %vm2675, %v5243, %v5306
        %v5308 = vsel %vm2677, %v5245, %v5307
        %v5309 = vsel %vm2679, %v5247, %v5308
        %v5310 = vsel %vm2681, %v5249, %v5309
        %v5311 = vsel %vm2683, %v5251, %v5310
        %5316 = vmatpush.msra.mxu0 %v2605
        %5317 = vmatpush.msra.mxu0 %v2603
        %5318 = vmatpush.msra.mxu0 %v2601
        %5319 = vmatpush.msra.mxu0 %v2599
        %5320 = vmatpush.msra.mxu0 %v2597
        %5321 = vmatpush.msra.mxu0 %v2595
        %5322 = vmatpush.msra.mxu0 %v2593
        %5323 = vmatpush.msra.mxu0 %v2591
        %5324 = vmatpush.msra.mxu0 %v2589
        %5325 = vmatpush.msra.mxu0 %v2587
        %5326 = vmatpush.msra.mxu0 %v2585
        %5327 = vmatpush.msra.mxu0 %v2583
        %5328 = vmatpush.msra.mxu0 %v2581
        %5329 = vmatpush.msra.mxu0 %v2579
        %5330 = vmatpush.msra.mxu0 %v2577
        %5331 = vmatpush.msra.mxu0 %v2575
        %5332 = vmatmul.f32.gmra.mxu0 %v5290
        %v5333 = vpop.f32.mrf.mxu0
        %v5334 = vadd.f32 0.0, %v5333
        %5335 = vmatmul.f32.gmra.mxu0 %v5304
        %v5336 = vpop.f32.mrf.mxu0
        %v5337 = vadd.f32 0.0, %v5336
        %5338 = vdwg.mxu0
        %5339 = vmatpush.msra.mxu0 %v2637
        %5340 = vmatpush.msra.mxu0 %v2635
        %5341 = vmatpush.msra.mxu0 %v2633
        %5342 = vmatpush.msra.mxu0 %v2631
        %5343 = vmatpush.msra.mxu0 %v2629
        %5344 = vmatpush.msra.mxu0 %v2627
        %5345 = vmatpush.msra.mxu0 %v2625
        %5346 = vmatpush.msra.mxu0 %v2623
        %5347 = vmatpush.msra.mxu0 %v2621
        %5348 = vmatpush.msra.mxu0 %v2619
        %5349 = vmatpush.msra.mxu0 %v2617
        %5350 = vmatpush.msra.mxu0 %v2615
        %5351 = vmatpush.msra.mxu0 %v2613
        %5352 = vmatpush.msra.mxu0 %v2611
        %5353 = vmatpush.msra.mxu0 %v2609
        %5354 = vmatpush.msra.mxu0 %v2607
        %5355 = vmatmul.f32.gmra.mxu0 %v5297
        %v5356 = vpop.f32.mrf.mxu0
        %v5357 = vadd.f32 %v5334, %v5356
        %5358 = vmatmul.f32.gmra.mxu0 %v5311
        %v5359 = vpop.f32.mrf.mxu0
        %v5360 = vadd.f32 %v5337, %v5359
        %5361 = vdwg.mxu0
        %5362 = vmatpush.msra.mxu0 %v2606
        %5363 = vmatpush.msra.mxu0 %v2604
        %5364 = vmatpush.msra.mxu0 %v2602
        %5365 = vmatpush.msra.mxu0 %v2600
        %5366 = vmatpush.msra.mxu0 %v2598
        %5367 = vmatpush.msra.mxu0 %v2596
        %5368 = vmatpush.msra.mxu0 %v2594
        %5369 = vmatpush.msra.mxu0 %v2592
        %5370 = vmatpush.msra.mxu0 %v2590
        %5371 = vmatpush.msra.mxu0 %v2588
        %5372 = vmatpush.msra.mxu0 %v2586
        %5373 = vmatpush.msra.mxu0 %v2584
        %5374 = vmatpush.msra.mxu0 %v2582
        %5375 = vmatpush.msra.mxu0 %v2580
        %5376 = vmatpush.msra.mxu0 %v2578
        %5377 = vmatpush.msra.mxu0 %v2576
        %5378 = vmatmul.f32.gmra.mxu0 %v5290
        %v5379 = vpop.f32.mrf.mxu0
        %v5380 = vadd.f32 0.0, %v5379
        %5381 = vmatmul.f32.gmra.mxu0 %v5304
        %v5382 = vpop.f32.mrf.mxu0
        %v5383 = vadd.f32 0.0, %v5382
        %5384 = vdwg.mxu0
        %5385 = vmatpush.msra.mxu0 %v2638
        %5386 = vmatpush.msra.mxu0 %v2636
        %5387 = vmatpush.msra.mxu0 %v2634
        %5388 = vmatpush.msra.mxu0 %v2632
        %5389 = vmatpush.msra.mxu0 %v2630
        %5390 = vmatpush.msra.mxu0 %v2628
        %5391 = vmatpush.msra.mxu0 %v2626
        %5392 = vmatpush.msra.mxu0 %v2624
        %5393 = vmatpush.msra.mxu0 %v2622
        %5394 = vmatpush.msra.mxu0 %v2620
        %5395 = vmatpush.msra.mxu0 %v2618
        %5396 = vmatpush.msra.mxu0 %v2616
        %5397 = vmatpush.msra.mxu0 %v2614
        %5398 = vmatpush.msra.mxu0 %v2612
        %5399 = vmatpush.msra.mxu0 %v2610
        %5400 = vmatpush.msra.mxu0 %v2608
        %5401 = vmatmul.f32.gmra.mxu0 %v5297
        %v5402 = vpop.f32.mrf.mxu0
        %v5403 = vadd.f32 %v5380, %v5402
        %5404 = vmatmul.f32.gmra.mxu0 %v5311
        %v5405 = vpop.f32.mrf.mxu0
        %v5406 = vadd.f32 %v5383, %v5405
        %5407 = vdwg.mxu0
        %v5412 = vrot.slane %v5403, 7
        %v5413 = vrot.slane %v5406, 7
        %v5414 = vsel %vm2808, %v5357, %v5412
        %v5415 = vsel %vm2671, %v5357, %v5412
        %v5416 = vrot.slane %v5415, 1
        %v5417 = vsel %vm2673, %v5357, %v5412
        %v5418 = vrot.slane %v5417, 2
        %v5419 = vsel %vm2675, %v5357, %v5412
        %v5420 = vrot.slane %v5419, 3
        %v5421 = vsel %vm2677, %v5357, %v5412
        %v5422 = vrot.slane %v5421, 4
        %v5423 = vsel %vm2679, %v5357, %v5412
        %v5424 = vrot.slane %v5423, 5
        %v5425 = vsel %vm2681, %v5357, %v5412
        %v5426 = vrot.slane %v5425, 6
        %v5427 = vsel %vm2822, %v5412, %v5357
        %v5428 = vrot.slane %v5427, 7
        %v5429 = vsel %vm2808, %v5360, %v5413
        %v5430 = vsel %vm2671, %v5360, %v5413
        %v5431 = vrot.slane %v5430, 1
        %v5432 = vsel %vm2673, %v5360, %v5413
        %v5433 = vrot.slane %v5432, 2
        %v5434 = vsel %vm2675, %v5360, %v5413
        %v5435 = vrot.slane %v5434, 3
        %v5436 = vsel %vm2677, %v5360, %v5413
        %v5437 = vrot.slane %v5436, 4
        %v5438 = vsel %vm2679, %v5360, %v5413
        %v5439 = vrot.slane %v5438, 5
        %v5440 = vsel %vm2681, %v5360, %v5413
        %v5441 = vrot.slane %v5440, 6
        %v5442 = vsel %vm2822, %v5413, %v5360
        %v5443 = vrot.slane %v5442, 7
        %v5444 = vperm.slane %v5414, 0
        %v5445 = vperm.slane %v5414, 1
        %v5446 = vperm.slane %v5416, 0
        %v5447 = vperm.slane %v5416, 1
        %v5448 = vperm.slane %v5418, 0
        %v5449 = vperm.slane %v5418, 1
        %v5450 = vperm.slane %v5420, 0
        %v5451 = vperm.slane %v5420, 1
        %v5452 = vperm.slane %v5422, 0
        %v5453 = vperm.slane %v5422, 1
        %v5454 = vperm.slane %v5424, 0
        %v5455 = vperm.slane %v5424, 1
        %v5456 = vperm.slane %v5426, 0
        %v5457 = vperm.slane %v5426, 1
        %v5458 = vperm.slane %v5428, 0
        %v5459 = vperm.slane %v5428, 1
        %v5460 = vperm.slane %v5429, 0
        %v5461 = vperm.slane %v5429, 1
        %v5462 = vperm.slane %v5431, 0
        %v5463 = vperm.slane %v5431, 1
        %v5464 = vperm.slane %v5433, 0
        %v5465 = vperm.slane %v5433, 1
        %v5466 = vperm.slane %v5435, 0
        %v5467 = vperm.slane %v5435, 1
        %v5468 = vperm.slane %v5437, 0
        %v5469 = vperm.slane %v5437, 1
        %v5470 = vperm.slane %v5439, 0
        %v5471 = vperm.slane %v5439, 1
        %v5472 = vperm.slane %v5441, 0
        %v5473 = vperm.slane %v5441, 1
        %v5474 = vperm.slane %v5443, 0
        %v5475 = vperm.slane %v5443, 1
        %v5508 = vsub.f32 %v4996, %v5444
        %v5509 = vsub.f32 %v4997, %v5445
        %v5510 = vsub.f32 %v4998, %v5446
        %v5511 = vsub.f32 %v4999, %v5447
        %v5512 = vsub.f32 %v5000, %v5448
        %v5513 = vsub.f32 %v5001, %v5449
        %v5514 = vsub.f32 %v5002, %v5450
        %v5515 = vsub.f32 %v5003, %v5451
        %v5516 = vsub.f32 %v5004, %v5452
        %v5517 = vsub.f32 %v5005, %v5453
        %v5518 = vsub.f32 %v5006, %v5454
        %v5519 = vsub.f32 %v5007, %v5455
        %v5520 = vsub.f32 %v5008, %v5456
        %v5521 = vsub.f32 %v5009, %v5457
        %v5522 = vsub.f32 %v5010, %v5458
        %v5523 = vsub.f32 %v5011, %v5459
        %v5524 = vsub.f32 %v5012, %v5460
        %v5525 = vsub.f32 %v5013, %v5461
        %v5526 = vsub.f32 %v5014, %v5462
        %v5527 = vsub.f32 %v5015, %v5463
        %v5528 = vsub.f32 %v5016, %v5464
        %v5529 = vsub.f32 %v5017, %v5465
        %v5530 = vsub.f32 %v5018, %v5466
        %v5531 = vsub.f32 %v5019, %v5467
        %v5532 = vsub.f32 %v5020, %v5468
        %v5533 = vsub.f32 %v5021, %v5469
        %v5534 = vsub.f32 %v5022, %v5470
        %v5535 = vsub.f32 %v5023, %v5471
        %v5536 = vsub.f32 %v5024, %v5472
        %v5537 = vsub.f32 %v5025, %v5473
        %v5538 = vsub.f32 %v5026, %v5474
        %v5539 = vsub.f32 %v5027, %v5475
        %v5540 = vmul.f32 %v5508, %v5508
        %v5541 = vmul.f32 %v5509, %v5509
        %v5542 = vmul.f32 %v5510, %v5510
        %v5543 = vmul.f32 %v5511, %v5511
        %v5544 = vmul.f32 %v5512, %v5512
        %v5545 = vmul.f32 %v5513, %v5513
        %v5546 = vmul.f32 %v5514, %v5514
        %v5547 = vmul.f32 %v5515, %v5515
        %v5548 = vmul.f32 %v5516, %v5516
        %v5549 = vmul.f32 %v5517, %v5517
        %v5550 = vmul.f32 %v5518, %v5518
        %v5551 = vmul.f32 %v5519, %v5519
        %v5552 = vmul.f32 %v5520, %v5520
        %v5553 = vmul.f32 %v5521, %v5521
        %v5554 = vmul.f32 %v5522, %v5522
        %v5555 = vmul.f32 %v5523, %v5523
        %v5556 = vmul.f32 %v5524, %v5524
        %v5557 = vmul.f32 %v5525, %v5525
        %v5558 = vmul.f32 %v5526, %v5526
        %v5559 = vmul.f32 %v5527, %v5527
        %v5560 = vmul.f32 %v5528, %v5528
        %v5561 = vmul.f32 %v5529, %v5529
        %v5562 = vmul.f32 %v5530, %v5530
        %v5563 = vmul.f32 %v5531, %v5531
        %v5564 = vmul.f32 %v5532, %v5532
        %v5565 = vmul.f32 %v5533, %v5533
        %v5566 = vmul.f32 %v5534, %v5534
        %v5567 = vmul.f32 %v5535, %v5535
        %v5568 = vmul.f32 %v5536, %v5536
        %v5569 = vmul.f32 %v5537, %v5537
        %v5570 = vmul.f32 %v5538, %v5538
        %v5571 = vmul.f32 %v5539, %v5539
        %v5572 = vrot.slane %v5540, 4
        %v5573 = vadd.f32 %v5540, %v5572
        %v5574 = vrot.slane %v5573, 2
        %v5575 = vadd.f32 %v5573, %v5574
        %v5576 = vrot.slane %v5575, 1
        %v5577 = vadd.f32 %v5575, %v5576
        %v5578 = vrot.slane %v5541, 4
        %v5579 = vadd.f32 %v5541, %v5578
        %v5580 = vrot.slane %v5579, 2
        %v5581 = vadd.f32 %v5579, %v5580
        %v5582 = vrot.slane %v5581, 1
        %v5583 = vadd.f32 %v5581, %v5582
        %v5584 = vrot.slane %v5542, 4
        %v5585 = vadd.f32 %v5542, %v5584
        %v5586 = vrot.slane %v5585, 2
        %v5587 = vadd.f32 %v5585, %v5586
        %v5588 = vrot.slane %v5587, 1
        %v5589 = vadd.f32 %v5587, %v5588
        %v5590 = vrot.slane %v5543, 4
        %v5591 = vadd.f32 %v5543, %v5590
        %v5592 = vrot.slane %v5591, 2
        %v5593 = vadd.f32 %v5591, %v5592
        %v5594 = vrot.slane %v5593, 1
        %v5595 = vadd.f32 %v5593, %v5594
        %v5596 = vrot.slane %v5544, 4
        %v5597 = vadd.f32 %v5544, %v5596
        %v5598 = vrot.slane %v5597, 2
        %v5599 = vadd.f32 %v5597, %v5598
        %v5600 = vrot.slane %v5599, 1
        %v5601 = vadd.f32 %v5599, %v5600
        %v5602 = vrot.slane %v5545, 4
        %v5603 = vadd.f32 %v5545, %v5602
        %v5604 = vrot.slane %v5603, 2
        %v5605 = vadd.f32 %v5603, %v5604
        %v5606 = vrot.slane %v5605, 1
        %v5607 = vadd.f32 %v5605, %v5606
        %v5608 = vrot.slane %v5546, 4
        %v5609 = vadd.f32 %v5546, %v5608
        %v5610 = vrot.slane %v5609, 2
        %v5611 = vadd.f32 %v5609, %v5610
        %v5612 = vrot.slane %v5611, 1
        %v5613 = vadd.f32 %v5611, %v5612
        %v5614 = vrot.slane %v5547, 4
        %v5615 = vadd.f32 %v5547, %v5614
        %v5616 = vrot.slane %v5615, 2
        %v5617 = vadd.f32 %v5615, %v5616
        %v5618 = vrot.slane %v5617, 1
        %v5619 = vadd.f32 %v5617, %v5618
        %v5620 = vrot.slane %v5548, 4
        %v5621 = vadd.f32 %v5548, %v5620
        %v5622 = vrot.slane %v5621, 2
        %v5623 = vadd.f32 %v5621, %v5622
        %v5624 = vrot.slane %v5623, 1
        %v5625 = vadd.f32 %v5623, %v5624
        %v5626 = vrot.slane %v5549, 4
        %v5627 = vadd.f32 %v5549, %v5626
        %v5628 = vrot.slane %v5627, 2
        %v5629 = vadd.f32 %v5627, %v5628
        %v5630 = vrot.slane %v5629, 1
        %v5631 = vadd.f32 %v5629, %v5630
        %v5632 = vrot.slane %v5550, 4
        %v5633 = vadd.f32 %v5550, %v5632
        %v5634 = vrot.slane %v5633, 2
        %v5635 = vadd.f32 %v5633, %v5634
        %v5636 = vrot.slane %v5635, 1
        %v5637 = vadd.f32 %v5635, %v5636
        %v5638 = vrot.slane %v5551, 4
        %v5639 = vadd.f32 %v5551, %v5638
        %v5640 = vrot.slane %v5639, 2
        %v5641 = vadd.f32 %v5639, %v5640
        %v5642 = vrot.slane %v5641, 1
        %v5643 = vadd.f32 %v5641, %v5642
        %v5644 = vrot.slane %v5552, 4
        %v5645 = vadd.f32 %v5552, %v5644
        %v5646 = vrot.slane %v5645, 2
        %v5647 = vadd.f32 %v5645, %v5646
        %v5648 = vrot.slane %v5647, 1
        %v5649 = vadd.f32 %v5647, %v5648
        %v5650 = vrot.slane %v5553, 4
        %v5651 = vadd.f32 %v5553, %v5650
        %v5652 = vrot.slane %v5651, 2
        %v5653 = vadd.f32 %v5651, %v5652
        %v5654 = vrot.slane %v5653, 1
        %v5655 = vadd.f32 %v5653, %v5654
        %v5656 = vrot.slane %v5554, 4
        %v5657 = vadd.f32 %v5554, %v5656
        %v5658 = vrot.slane %v5657, 2
        %v5659 = vadd.f32 %v5657, %v5658
        %v5660 = vrot.slane %v5659, 1
        %v5661 = vadd.f32 %v5659, %v5660
        %v5662 = vrot.slane %v5555, 4
        %v5663 = vadd.f32 %v5555, %v5662
        %v5664 = vrot.slane %v5663, 2
        %v5665 = vadd.f32 %v5663, %v5664
        %v5666 = vrot.slane %v5665, 1
        %v5667 = vadd.f32 %v5665, %v5666
        %v5668 = vrot.slane %v5556, 4
        %v5669 = vadd.f32 %v5556, %v5668
        %v5670 = vrot.slane %v5669, 2
        %v5671 = vadd.f32 %v5669, %v5670
        %v5672 = vrot.slane %v5671, 1
        %v5673 = vadd.f32 %v5671, %v5672
        %v5674 = vrot.slane %v5557, 4
        %v5675 = vadd.f32 %v5557, %v5674
        %v5676 = vrot.slane %v5675, 2
        %v5677 = vadd.f32 %v5675, %v5676
        %v5678 = vrot.slane %v5677, 1
        %v5679 = vadd.f32 %v5677, %v5678
        %v5680 = vrot.slane %v5558, 4
        %v5681 = vadd.f32 %v5558, %v5680
        %v5682 = vrot.slane %v5681, 2
        %v5683 = vadd.f32 %v5681, %v5682
        %v5684 = vrot.slane %v5683, 1
        %v5685 = vadd.f32 %v5683, %v5684
        %v5686 = vrot.slane %v5559, 4
        %v5687 = vadd.f32 %v5559, %v5686
        %v5688 = vrot.slane %v5687, 2
        %v5689 = vadd.f32 %v5687, %v5688
        %v5690 = vrot.slane %v5689, 1
        %v5691 = vadd.f32 %v5689, %v5690
        %v5692 = vrot.slane %v5560, 4
        %v5693 = vadd.f32 %v5560, %v5692
        %v5694 = vrot.slane %v5693, 2
        %v5695 = vadd.f32 %v5693, %v5694
        %v5696 = vrot.slane %v5695, 1
        %v5697 = vadd.f32 %v5695, %v5696
        %v5698 = vrot.slane %v5561, 4
        %v5699 = vadd.f32 %v5561, %v5698
        %v5700 = vrot.slane %v5699, 2
        %v5701 = vadd.f32 %v5699, %v5700
        %v5702 = vrot.slane %v5701, 1
        %v5703 = vadd.f32 %v5701, %v5702
        %v5704 = vrot.slane %v5562, 4
        %v5705 = vadd.f32 %v5562, %v5704
        %v5706 = vrot.slane %v5705, 2
        %v5707 = vadd.f32 %v5705, %v5706
        %v5708 = vrot.slane %v5707, 1
        %v5709 = vadd.f32 %v5707, %v5708
        %v5710 = vrot.slane %v5563, 4
        %v5711 = vadd.f32 %v5563, %v5710
        %v5712 = vrot.slane %v5711, 2
        %v5713 = vadd.f32 %v5711, %v5712
        %v5714 = vrot.slane %v5713, 1
        %v5715 = vadd.f32 %v5713, %v5714
        %v5716 = vrot.slane %v5564, 4
        %v5717 = vadd.f32 %v5564, %v5716
        %v5718 = vrot.slane %v5717, 2
        %v5719 = vadd.f32 %v5717, %v5718
        %v5720 = vrot.slane %v5719, 1
        %v5721 = vadd.f32 %v5719, %v5720
        %v5722 = vrot.slane %v5565, 4
        %v5723 = vadd.f32 %v5565, %v5722
        %v5724 = vrot.slane %v5723, 2
        %v5725 = vadd.f32 %v5723, %v5724
        %v5726 = vrot.slane %v5725, 1
        %v5727 = vadd.f32 %v5725, %v5726
        %v5728 = vrot.slane %v5566, 4
        %v5729 = vadd.f32 %v5566, %v5728
        %v5730 = vrot.slane %v5729, 2
        %v5731 = vadd.f32 %v5729, %v5730
        %v5732 = vrot.slane %v5731, 1
        %v5733 = vadd.f32 %v5731, %v5732
        %v5734 = vrot.slane %v5567, 4
        %v5735 = vadd.f32 %v5567, %v5734
        %v5736 = vrot.slane %v5735, 2
        %v5737 = vadd.f32 %v5735, %v5736
        %v5738 = vrot.slane %v5737, 1
        %v5739 = vadd.f32 %v5737, %v5738
        %v5740 = vrot.slane %v5568, 4
        %v5741 = vadd.f32 %v5568, %v5740
        %v5742 = vrot.slane %v5741, 2
        %v5743 = vadd.f32 %v5741, %v5742
        %v5744 = vrot.slane %v5743, 1
        %v5745 = vadd.f32 %v5743, %v5744
        %v5746 = vrot.slane %v5569, 4
        %v5747 = vadd.f32 %v5569, %v5746
        %v5748 = vrot.slane %v5747, 2
        %v5749 = vadd.f32 %v5747, %v5748
        %v5750 = vrot.slane %v5749, 1
        %v5751 = vadd.f32 %v5749, %v5750
        %v5752 = vrot.slane %v5570, 4
        %v5753 = vadd.f32 %v5570, %v5752
        %v5754 = vrot.slane %v5753, 2
        %v5755 = vadd.f32 %v5753, %v5754
        %v5756 = vrot.slane %v5755, 1
        %v5757 = vadd.f32 %v5755, %v5756
        %v5758 = vrot.slane %v5571, 4
        %v5759 = vadd.f32 %v5571, %v5758
        %v5760 = vrot.slane %v5759, 2
        %v5761 = vadd.f32 %v5759, %v5760
        %v5762 = vrot.slane %v5761, 1
        %v5763 = vadd.f32 %v5761, %v5762
        %v5764 = vmul.f32 %v5577, %v2542
        %v5765 = vmul.f32 %v5583, %v2542
        %v5766 = vmul.f32 %v5589, %v2542
        %v5767 = vmul.f32 %v5595, %v2542
        %v5768 = vmul.f32 %v5601, %v2542
        %v5769 = vmul.f32 %v5607, %v2542
        %v5770 = vmul.f32 %v5613, %v2542
        %v5771 = vmul.f32 %v5619, %v2542
        %v5772 = vmul.f32 %v5625, %v2542
        %v5773 = vmul.f32 %v5631, %v2542
        %v5774 = vmul.f32 %v5637, %v2542
        %v5775 = vmul.f32 %v5643, %v2542
        %v5776 = vmul.f32 %v5649, %v2542
        %v5777 = vmul.f32 %v5655, %v2542
        %v5778 = vmul.f32 %v5661, %v2542
        %v5779 = vmul.f32 %v5667, %v2542
        %v5780 = vmul.f32 %v5673, %v2542
        %v5781 = vmul.f32 %v5679, %v2542
        %v5782 = vmul.f32 %v5685, %v2542
        %v5783 = vmul.f32 %v5691, %v2542
        %v5784 = vmul.f32 %v5697, %v2542
        %v5785 = vmul.f32 %v5703, %v2542
        %v5786 = vmul.f32 %v5709, %v2542
        %v5787 = vmul.f32 %v5715, %v2542
        %v5788 = vmul.f32 %v5721, %v2542
        %v5789 = vmul.f32 %v5727, %v2542
        %v5790 = vmul.f32 %v5733, %v2542
        %v5791 = vmul.f32 %v5739, %v2542
        %v5792 = vmul.f32 %v5745, %v2542
        %v5793 = vmul.f32 %v5751, %v2542
        %v5794 = vmul.f32 %v5757, %v2542
        %v5795 = vmul.f32 %v5763, %v2542
        %v5828 = vsel %vm2671, %v5766, %v5764
        %v5829 = vsel %vm2673, %v5768, %v5828
        %v5830 = vsel %vm2675, %v5770, %v5829
        %v5831 = vsel %vm2677, %v5772, %v5830
        %v5832 = vsel %vm2679, %v5774, %v5831
        %v5833 = vsel %vm2681, %v5776, %v5832
        %v5834 = vsel %vm2683, %v5778, %v5833
        %v5835 = vsel %vm2671, %v5767, %v5765
        %v5836 = vsel %vm2673, %v5769, %v5835
        %v5837 = vsel %vm2675, %v5771, %v5836
        %v5838 = vsel %vm2677, %v5773, %v5837
        %v5839 = vsel %vm2679, %v5775, %v5838
        %v5840 = vsel %vm2681, %v5777, %v5839
        %v5841 = vsel %vm2683, %v5779, %v5840
        %v5842 = vsel %vm2671, %v5782, %v5780
        %v5843 = vsel %vm2673, %v5784, %v5842
        %v5844 = vsel %vm2675, %v5786, %v5843
        %v5845 = vsel %vm2677, %v5788, %v5844
        %v5846 = vsel %vm2679, %v5790, %v5845
        %v5847 = vsel %vm2681, %v5792, %v5846
        %v5848 = vsel %vm2683, %v5794, %v5847
        %v5849 = vsel %vm2671, %v5783, %v5781
        %v5850 = vsel %vm2673, %v5785, %v5849
        %v5851 = vsel %vm2675, %v5787, %v5850
        %v5852 = vsel %vm2677, %v5789, %v5851
        %v5853 = vsel %vm2679, %v5791, %v5852
        %v5854 = vsel %vm2681, %v5793, %v5853
        %v5855 = vsel %vm2683, %v5795, %v5854
        %5860 = vmatpush.msra.mxu0 %v2605
        %5861 = vmatpush.msra.mxu0 %v2603
        %5862 = vmatpush.msra.mxu0 %v2601
        %5863 = vmatpush.msra.mxu0 %v2599
        %5864 = vmatpush.msra.mxu0 %v2597
        %5865 = vmatpush.msra.mxu0 %v2595
        %5866 = vmatpush.msra.mxu0 %v2593
        %5867 = vmatpush.msra.mxu0 %v2591
        %5868 = vmatpush.msra.mxu0 %v2589
        %5869 = vmatpush.msra.mxu0 %v2587
        %5870 = vmatpush.msra.mxu0 %v2585
        %5871 = vmatpush.msra.mxu0 %v2583
        %5872 = vmatpush.msra.mxu0 %v2581
        %5873 = vmatpush.msra.mxu0 %v2579
        %5874 = vmatpush.msra.mxu0 %v2577
        %5875 = vmatpush.msra.mxu0 %v2575
        %5876 = vmatmul.f32.gmra.mxu0 %v5834
        %v5877 = vpop.f32.mrf.mxu0
        %v5878 = vadd.f32 1e-05, %v5877
        %5879 = vmatmul.f32.gmra.mxu0 %v5848
        %v5880 = vpop.f32.mrf.mxu0
        %v5881 = vadd.f32 1e-05, %v5880
        %5882 = vdwg.mxu0
        %5883 = vmatpush.msra.mxu0 %v2637
        %5884 = vmatpush.msra.mxu0 %v2635
        %5885 = vmatpush.msra.mxu0 %v2633
        %5886 = vmatpush.msra.mxu0 %v2631
        %5887 = vmatpush.msra.mxu0 %v2629
        %5888 = vmatpush.msra.mxu0 %v2627
        %5889 = vmatpush.msra.mxu0 %v2625
        %5890 = vmatpush.msra.mxu0 %v2623
        %5891 = vmatpush.msra.mxu0 %v2621
        %5892 = vmatpush.msra.mxu0 %v2619
        %5893 = vmatpush.msra.mxu0 %v2617
        %5894 = vmatpush.msra.mxu0 %v2615
        %5895 = vmatpush.msra.mxu0 %v2613
        %5896 = vmatpush.msra.mxu0 %v2611
        %5897 = vmatpush.msra.mxu0 %v2609
        %5898 = vmatpush.msra.mxu0 %v2607
        %5899 = vmatmul.f32.gmra.mxu0 %v5841
        %v5900 = vpop.f32.mrf.mxu0
        %v5901 = vadd.f32 %v5878, %v5900
        %5902 = vmatmul.f32.gmra.mxu0 %v5855
        %v5903 = vpop.f32.mrf.mxu0
        %v5904 = vadd.f32 %v5881, %v5903
        %5905 = vdwg.mxu0
        %5906 = vmatpush.msra.mxu0 %v2606
        %5907 = vmatpush.msra.mxu0 %v2604
        %5908 = vmatpush.msra.mxu0 %v2602
        %5909 = vmatpush.msra.mxu0 %v2600
        %5910 = vmatpush.msra.mxu0 %v2598
        %5911 = vmatpush.msra.mxu0 %v2596
        %5912 = vmatpush.msra.mxu0 %v2594
        %5913 = vmatpush.msra.mxu0 %v2592
        %5914 = vmatpush.msra.mxu0 %v2590
        %5915 = vmatpush.msra.mxu0 %v2588
        %5916 = vmatpush.msra.mxu0 %v2586
        %5917 = vmatpush.msra.mxu0 %v2584
        %5918 = vmatpush.msra.mxu0 %v2582
        %5919 = vmatpush.msra.mxu0 %v2580
        %5920 = vmatpush.msra.mxu0 %v2578
        %5921 = vmatpush.msra.mxu0 %v2576
        %5922 = vmatmul.f32.gmra.mxu0 %v5834
        %v5923 = vpop.f32.mrf.mxu0
        %v5924 = vadd.f32 1e-05, %v5923
        %5925 = vmatmul.f32.gmra.mxu0 %v5848
        %v5926 = vpop.f32.mrf.mxu0
        %v5927 = vadd.f32 1e-05, %v5926
        %5928 = vdwg.mxu0
        %5929 = vmatpush.msra.mxu0 %v2638
        %5930 = vmatpush.msra.mxu0 %v2636
        %5931 = vmatpush.msra.mxu0 %v2634
        %5932 = vmatpush.msra.mxu0 %v2632
        %5933 = vmatpush.msra.mxu0 %v2630
        %5934 = vmatpush.msra.mxu0 %v2628
        %5935 = vmatpush.msra.mxu0 %v2626
        %5936 = vmatpush.msra.mxu0 %v2624
        %5937 = vmatpush.msra.mxu0 %v2622
        %5938 = vmatpush.msra.mxu0 %v2620
        %5939 = vmatpush.msra.mxu0 %v2618
        %5940 = vmatpush.msra.mxu0 %v2616
        %5941 = vmatpush.msra.mxu0 %v2614
        %5942 = vmatpush.msra.mxu0 %v2612
        %5943 = vmatpush.msra.mxu0 %v2610
        %5944 = vmatpush.msra.mxu0 %v2608
        %5945 = vmatmul.f32.gmra.mxu0 %v5841
        %v5946 = vpop.f32.mrf.mxu0
        %v5947 = vadd.f32 %v5924, %v5946
        %5948 = vmatmul.f32.gmra.mxu0 %v5855
        %v5949 = vpop.f32.mrf.mxu0
        %v5950 = vadd.f32 %v5927, %v5949
        %5951 = vdwg.mxu0
        %v5952 = vrsqrt.pop %v5901
        %v5953 = vmul.f32 %v5952, %v5901
        %v5954 = vmul.f32 %v5953, %v5952
        %v5955 = vmul.f32 0.5, %v5954
        %v5956 = vsub.f32 1.5, %v5955
        %v5957 = vmul.f32 %v5952, %v5956
        %vm5958 = vweird.f32 %v5901
        %vm5959 = vweird.f32 %v5952
        %vm5960 = vmor %vm5958, %vm5959
        %v5961 = vsel %vm5960, %v5952, %v5957
        %v5962 = vrsqrt.pop %v5947
        %v5963 = vmul.f32 %v5962, %v5947
        %v5964 = vmul.f32 %v5963, %v5962
        %v5965 = vmul.f32 0.5, %v5964
        %v5966 = vsub.f32 1.5, %v5965
        %v5967 = vmul.f32 %v5962, %v5966
        %vm5968 = vweird.f32 %v5947
        %vm5969 = vweird.f32 %v5962
        %vm5970 = vmor %vm5968, %vm5969
        %v5971 = vsel %vm5970, %v5962, %v5967
        %v5972 = vrsqrt.pop %v5904
        %v5973 = vmul.f32 %v5972, %v5904
        %v5974 = vmul.f32 %v5973, %v5972
        %v5975 = vmul.f32 0.5, %v5974
        %v5976 = vsub.f32 1.5, %v5975
        %v5977 = vmul.f32 %v5972, %v5976
        %vm5978 = vweird.f32 %v5904
        %vm5979 = vweird.f32 %v5972
        %vm5980 = vmor %vm5978, %vm5979
        %v5981 = vsel %vm5980, %v5972, %v5977
        %v5982 = vrsqrt.pop %v5950
        %v5983 = vmul.f32 %v5982, %v5950
        %v5984 = vmul.f32 %v5983, %v5982
        %v5985 = vmul.f32 0.5, %v5984
        %v5986 = vsub.f32 1.5, %v5985
        %v5987 = vmul.f32 %v5982, %v5986
        %vm5988 = vweird.f32 %v5950
        %vm5989 = vweird.f32 %v5982
        %vm5990 = vmor %vm5988, %vm5989
        %v5991 = vsel %vm5990, %v5982, %v5987
        %v5996 = vrot.slane %v5971, 7
        %v5997 = vrot.slane %v5991, 7
        %v5998 = vsel %vm2808, %v5961, %v5996
        %v5999 = vsel %vm2671, %v5961, %v5996
        %v6000 = vrot.slane %v5999, 1
        %v6001 = vsel %vm2673, %v5961, %v5996
        %v6002 = vrot.slane %v6001, 2
        %v6003 = vsel %vm2675, %v5961, %v5996
        %v6004 = vrot.slane %v6003, 3
        %v6005 = vsel %vm2677, %v5961, %v5996
        %v6006 = vrot.slane %v6005, 4
        %v6007 = vsel %vm2679, %v5961, %v5996
        %v6008 = vrot.slane %v6007, 5
        %v6009 = vsel %vm2681, %v5961, %v5996
        %v6010 = vrot.slane %v6009, 6
        %v6011 = vsel %vm2822, %v5996, %v5961
        %v6012 = vrot.slane %v6011, 7
        %v6013 = vsel %vm2808, %v5981, %v5997
        %v6014 = vsel %vm2671, %v5981, %v5997
        %v6015 = vrot.slane %v6014, 1
        %v6016 = vsel %vm2673, %v5981, %v5997
        %v6017 = vrot.slane %v6016, 2
        %v6018 = vsel %vm2675, %v5981, %v5997
        %v6019 = vrot.slane %v6018, 3
        %v6020 = vsel %vm2677, %v5981, %v5997
        %v6021 = vrot.slane %v6020, 4
        %v6022 = vsel %vm2679, %v5981, %v5997
        %v6023 = vrot.slane %v6022, 5
        %v6024 = vsel %vm2681, %v5981, %v5997
        %v6025 = vrot.slane %v6024, 6
        %v6026 = vsel %vm2822, %v5997, %v5981
        %v6027 = vrot.slane %v6026, 7
        %v6028 = vperm.slane %v5998, 0
        %v6029 = vperm.slane %v5998, 1
        %v6030 = vperm.slane %v6000, 0
        %v6031 = vperm.slane %v6000, 1
        %v6032 = vperm.slane %v6002, 0
        %v6033 = vperm.slane %v6002, 1
        %v6034 = vperm.slane %v6004, 0
        %v6035 = vperm.slane %v6004, 1
        %v6036 = vperm.slane %v6006, 0
        %v6037 = vperm.slane %v6006, 1
        %v6038 = vperm.slane %v6008, 0
        %v6039 = vperm.slane %v6008, 1
        %v6040 = vperm.slane %v6010, 0
        %v6041 = vperm.slane %v6010, 1
        %v6042 = vperm.slane %v6012, 0
        %v6043 = vperm.slane %v6012, 1
        %v6044 = vperm.slane %v6013, 0
        %v6045 = vperm.slane %v6013, 1
        %v6046 = vperm.slane %v6015, 0
        %v6047 = vperm.slane %v6015, 1
        %v6048 = vperm.slane %v6017, 0
        %v6049 = vperm.slane %v6017, 1
        %v6050 = vperm.slane %v6019, 0
        %v6051 = vperm.slane %v6019, 1
        %v6052 = vperm.slane %v6021, 0
        %v6053 = vperm.slane %v6021, 1
        %v6054 = vperm.slane %v6023, 0
        %v6055 = vperm.slane %v6023, 1
        %v6056 = vperm.slane %v6025, 0
        %v6057 = vperm.slane %v6025, 1
        %v6058 = vperm.slane %v6027, 0
        %v6059 = vperm.slane %v6027, 1
        %v6092 = vmul.f32 %v5508, %v6028
        %v6093 = vmul.f32 %v5509, %v6029
        %v6094 = vmul.f32 %v5510, %v6030
        %v6095 = vmul.f32 %v5511, %v6031
        %v6096 = vmul.f32 %v5512, %v6032
        %v6097 = vmul.f32 %v5513, %v6033
        %v6098 = vmul.f32 %v5514, %v6034
        %v6099 = vmul.f32 %v5515, %v6035
        %v6100 = vmul.f32 %v5516, %v6036
        %v6101 = vmul.f32 %v5517, %v6037
        %v6102 = vmul.f32 %v5518, %v6038
        %v6103 = vmul.f32 %v5519, %v6039
        %v6104 = vmul.f32 %v5520, %v6040
        %v6105 = vmul.f32 %v5521, %v6041
        %v6106 = vmul.f32 %v5522, %v6042
        %v6107 = vmul.f32 %v5523, %v6043
        %v6108 = vmul.f32 %v5524, %v6044
        %v6109 = vmul.f32 %v5525, %v6045
        %v6110 = vmul.f32 %v5526, %v6046
        %v6111 = vmul.f32 %v5527, %v6047
        %v6112 = vmul.f32 %v5528, %v6048
        %v6113 = vmul.f32 %v5529, %v6049
        %v6114 = vmul.f32 %v5530, %v6050
        %v6115 = vmul.f32 %v5531, %v6051
        %v6116 = vmul.f32 %v5532, %v6052
        %v6117 = vmul.f32 %v5533, %v6053
        %v6118 = vmul.f32 %v5534, %v6054
        %v6119 = vmul.f32 %v5535, %v6055
        %v6120 = vmul.f32 %v5536, %v6056
        %v6121 = vmul.f32 %v5537, %v6057
        %v6122 = vmul.f32 %v5538, %v6058
        %v6123 = vmul.f32 %v5539, %v6059
        %v6124 = vrot.slane %v5357, 1
        %v6125 = vrot.slane %v5403, 1
        %v6126 = vrot.slane %v5357, 2
        %v6127 = vrot.slane %v5403, 2
        %v6128 = vrot.slane %v5357, 3
        %v6129 = vrot.slane %v5403, 3
        %v6130 = vrot.slane %v5357, 4
        %v6131 = vrot.slane %v5403, 4
        %v6132 = vrot.slane %v5357, 5
        %v6133 = vrot.slane %v5403, 5
        %v6134 = vrot.slane %v5357, 6
        %v6135 = vrot.slane %v5403, 6
        %v6136 = vrot.slane %v5357, 7
        %v6137 = vrot.slane %v5360, 1
        %v6138 = vrot.slane %v5406, 1
        %v6139 = vrot.slane %v5360, 2
        %v6140 = vrot.slane %v5406, 2
        %v6141 = vrot.slane %v5360, 3
        %v6142 = vrot.slane %v5406, 3
        %v6143 = vrot.slane %v5360, 4
        %v6144 = vrot.slane %v5406, 4
        %v6145 = vrot.slane %v5360, 5
        %v6146 = vrot.slane %v5406, 5
        %v6147 = vrot.slane %v5360, 6
        %v6148 = vrot.slane %v5406, 6
        %v6149 = vrot.slane %v5360, 7
        %v6182 = vsub.f32 %v5220, %v5357
        %v6183 = vsub.f32 %v5221, %v5403
        %v6184 = vsub.f32 %v5222, %v6124
        %v6185 = vsub.f32 %v5223, %v6125
        %v6186 = vsub.f32 %v5224, %v6126
        %v6187 = vsub.f32 %v5225, %v6127
        %v6188 = vsub.f32 %v5226, %v6128
        %v6189 = vsub.f32 %v5227, %v6129
        %v6190 = vsub.f32 %v5228, %v6130
        %v6191 = vsub.f32 %v5229, %v6131
        %v6192 = vsub.f32 %v5230, %v6132
        %v6193 = vsub.f32 %v5231, %v6133
        %v6194 = vsub.f32 %v5232, %v6134
        %v6195 = vsub.f32 %v5233, %v6135
        %v6196 = vsub.f32 %v5234, %v6136
        %v6197 = vsub.f32 %v5235, %v5412
        %v6198 = vsub.f32 %v5236, %v5360
        %v6199 = vsub.f32 %v5237, %v5406
        %v6200 = vsub.f32 %v5238, %v6137
        %v6201 = vsub.f32 %v5239, %v6138
        %v6202 = vsub.f32 %v5240, %v6139
        %v6203 = vsub.f32 %v5241, %v6140
        %v6204 = vsub.f32 %v5242, %v6141
        %v6205 = vsub.f32 %v5243, %v6142
        %v6206 = vsub.f32 %v5244, %v6143
        %v6207 = vsub.f32 %v5245, %v6144
        %v6208 = vsub.f32 %v5246, %v6145
        %v6209 = vsub.f32 %v5247, %v6146
        %v6210 = vsub.f32 %v5248, %v6147
        %v6211 = vsub.f32 %v5249, %v6148
        %v6212 = vsub.f32 %v5250, %v6149
        %v6213 = vsub.f32 %v5251, %v5413
        %v6214 = vrot.slane %v5961, 1
        %v6215 = vrot.slane %v5971, 1
        %v6216 = vrot.slane %v5961, 2
        %v6217 = vrot.slane %v5971, 2
        %v6218 = vrot.slane %v5961, 3
        %v6219 = vrot.slane %v5971, 3
        %v6220 = vrot.slane %v5961, 4
        %v6221 = vrot.slane %v5971, 4
        %v6222 = vrot.slane %v5961, 5
        %v6223 = vrot.slane %v5971, 5
        %v6224 = vrot.slane %v5961, 6
        %v6225 = vrot.slane %v5971, 6
        %v6226 = vrot.slane %v5961, 7
        %v6227 = vrot.slane %v5981, 1
        %v6228 = vrot.slane %v5991, 1
        %v6229 = vrot.slane %v5981, 2
        %v6230 = vrot.slane %v5991, 2
        %v6231 = vrot.slane %v5981, 3
        %v6232 = vrot.slane %v5991, 3
        %v6233 = vrot.slane %v5981, 4
        %v6234 = vrot.slane %v5991, 4
        %v6235 = vrot.slane %v5981, 5
        %v6236 = vrot.slane %v5991, 5
        %v6237 = vrot.slane %v5981, 6
        %v6238 = vrot.slane %v5991, 6
        %v6239 = vrot.slane %v5981, 7
        %v6272 = vmul.f32 %v6182, %v5961
        %v6273 = vmul.f32 %v6183, %v5971
        %v6274 = vmul.f32 %v6184, %v6214
        %v6275 = vmul.f32 %v6185, %v6215
        %v6276 = vmul.f32 %v6186, %v6216
        %v6277 = vmul.f32 %v6187, %v6217
        %v6278 = vmul.f32 %v6188, %v6218
        %v6279 = vmul.f32 %v6189, %v6219
        %v6280 = vmul.f32 %v6190, %v6220
        %v6281 = vmul.f32 %v6191, %v6221
        %v6282 = vmul.f32 %v6192, %v6222
        %v6283 = vmul.f32 %v6193, %v6223
        %v6284 = vmul.f32 %v6194, %v6224
        %v6285 = vmul.f32 %v6195, %v6225
        %v6286 = vmul.f32 %v6196, %v6226
        %v6287 = vmul.f32 %v6197, %v5996
        %v6288 = vmul.f32 %v6198, %v5981
        %v6289 = vmul.f32 %v6199, %v5991
        %v6290 = vmul.f32 %v6200, %v6227
        %v6291 = vmul.f32 %v6201, %v6228
        %v6292 = vmul.f32 %v6202, %v6229
        %v6293 = vmul.f32 %v6203, %v6230
        %v6294 = vmul.f32 %v6204, %v6231
        %v6295 = vmul.f32 %v6205, %v6232
        %v6296 = vmul.f32 %v6206, %v6233
        %v6297 = vmul.f32 %v6207, %v6234
        %v6298 = vmul.f32 %v6208, %v6235
        %v6299 = vmul.f32 %v6209, %v6236
        %v6300 = vmul.f32 %v6210, %v6237
        %v6301 = vmul.f32 %v6211, %v6238
        %v6302 = vmul.f32 %v6212, %v6239
        %v6303 = vmul.f32 %v6213, %v5997
        %v6304 = vld [vmem:[%s6] sm:$0xff]
        %v6305 = vld [vmem:[%s6 + $0x8] sm:$0xff]
        %v6306 = vld [vmem:[%s6 + $0x10] sm:$0xff]
        %v6307 = vld [vmem:[%s6 + $0x18] sm:$0xff]
        %v6308 = vld [vmem:[%s6 + $0x20] sm:$0xff]
        %v6309 = vld [vmem:[%s6 + $0x28] sm:$0xff]
        %v6310 = vld [vmem:[%s6 + $0x30] sm:$0xff]
        %v6311 = vld [vmem:[%s6 + $0x38] sm:$0xff]
        %v6312 = vld [vmem:[%s6 + $0x40] sm:$0xff]
        %v6313 = vld [vmem:[%s6 + $0x48] sm:$0xff]
        %v6314 = vld [vmem:[%s6 + $0x50] sm:$0xff]
        %v6315 = vld [vmem:[%s6 + $0x58] sm:$0xff]
        %v6316 = vld [vmem:[%s6 + $0x60] sm:$0xff]
        %v6317 = vld [vmem:[%s6 + $0x68] sm:$0xff]
        %v6318 = vld [vmem:[%s6 + $0x70] sm:$0xff]
        %v6319 = vld [vmem:[%s6 + $0x78] sm:$0xff]
        %v6320 = vld [vmem:[%s6 + $0x80] sm:$0xff]
        %v6321 = vld [vmem:[%s6 + $0x88] sm:$0xff]
        %v6322 = vld [vmem:[%s6 + $0x90] sm:$0xff]
        %v6323 = vld [vmem:[%s6 + $0x98] sm:$0xff]
        %v6324 = vld [vmem:[%s6 + $0xa0] sm:$0xff]
        %v6325 = vld [vmem:[%s6 + $0xa8] sm:$0xff]
        %v6326 = vld [vmem:[%s6 + $0xb0] sm:$0xff]
        %v6327 = vld [vmem:[%s6 + $0xb8] sm:$0xff]
        %v6328 = vld [vmem:[%s6 + $0xc0] sm:$0xff]
        %v6329 = vld [vmem:[%s6 + $0xc8] sm:$0xff]
        %v6330 = vld [vmem:[%s6 + $0xd0] sm:$0xff]
        %v6331 = vld [vmem:[%s6 + $0xd8] sm:$0xff]
        %v6332 = vld [vmem:[%s6 + $0xe0] sm:$0xff]
        %v6333 = vld [vmem:[%s6 + $0xe8] sm:$0xff]
        %v6334 = vld [vmem:[%s6 + $0xf0] sm:$0xff]
        %v6335 = vld [vmem:[%s6 + $0xf8] sm:$0xff]
        %v6336 = vld [vmem:[%s7] sm:$0x1]
        %v6338 = vperm.slane %v6336, 0
        %v6372 = vrot.slane %v6274, 7
        %v6373 = vsel %vm2671, %v6372, %v6272
        %v6374 = vrot.slane %v6276, 6
        %v6375 = vsel %vm2673, %v6374, %v6373
        %v6376 = vrot.slane %v6278, 5
        %v6377 = vsel %vm2675, %v6376, %v6375
        %v6378 = vrot.slane %v6280, 4
        %v6379 = vsel %vm2677, %v6378, %v6377
        %v6380 = vrot.slane %v6282, 3
        %v6381 = vsel %vm2679, %v6380, %v6379
        %v6382 = vrot.slane %v6284, 2
        %v6383 = vsel %vm2681, %v6382, %v6381
        %v6384 = vrot.slane %v6286, 1
        %v6385 = vsel %vm2683, %v6384, %v6383
        %v6386 = vrot.slane %v6275, 7
        %v6387 = vsel %vm2671, %v6386, %v6273
        %v6388 = vrot.slane %v6277, 6
        %v6389 = vsel %vm2673, %v6388, %v6387
        %v6390 = vrot.slane %v6279, 5
        %v6391 = vsel %vm2675, %v6390, %v6389
        %v6392 = vrot.slane %v6281, 4
        %v6393 = vsel %vm2677, %v6392, %v6391
        %v6394 = vrot.slane %v6283, 3
        %v6395 = vsel %vm2679, %v6394, %v6393
        %v6396 = vrot.slane %v6285, 2
        %v6397 = vsel %vm2681, %v6396, %v6395
        %v6398 = vrot.slane %v6287, 1
        %v6399 = vsel %vm2683, %v6398, %v6397
        %v6400 = vrot.slane %v6290, 7
        %v6401 = vsel %vm2671, %v6400, %v6288
        %v6402 = vrot.slane %v6292, 6
        %v6403 = vsel %vm2673, %v6402, %v6401
        %v6404 = vrot.slane %v6294, 5
        %v6405 = vsel %vm2675, %v6404, %v6403
        %v6406 = vrot.slane %v6296, 4
        %v6407 = vsel %vm2677, %v6406, %v6405
        %v6408 = vrot.slane %v6298, 3
        %v6409 = vsel %vm2679, %v6408, %v6407
        %v6410 = vrot.slane %v6300, 2
        %v6411 = vsel %vm2681, %v6410, %v6409
        %v6412 = vrot.slane %v6302, 1
        %v6413 = vsel %vm2683, %v6412, %v6411
        %v6414 = vrot.slane %v6291, 7
        %v6415 = vsel %vm2671, %v6414, %v6289
        %v6416 = vrot.slane %v6293, 6
        %v6417 = vsel %vm2673, %v6416, %v6415
        %v6418 = vrot.slane %v6295, 5
        %v6419 = vsel %vm2675, %v6418, %v6417
        %v6420 = vrot.slane %v6297, 4
        %v6421 = vsel %vm2677, %v6420, %v6419
        %v6422 = vrot.slane %v6299, 3
        %v6423 = vsel %vm2679, %v6422, %v6421
        %v6424 = vrot.slane %v6301, 2
        %v6425 = vsel %vm2681, %v6424, %v6423
        %v6426 = vrot.slane %v6303, 1
        %v6427 = vsel %vm2683, %v6426, %v6425
        %6432 = vmatpush.msra.mxu0 %v6319
        %6433 = vmatpush.msra.mxu0 %v6318
        %6434 = vmatpush.msra.mxu0 %v6317
        %6435 = vmatpush.msra.mxu0 %v6316
        %6436 = vmatpush.msra.mxu0 %v6315
        %6437 = vmatpush.msra.mxu0 %v6314
        %6438 = vmatpush.msra.mxu0 %v6313
        %6439 = vmatpush.msra.mxu0 %v6312
        %6440 = vmatpush.msra.mxu0 %v6311
        %6441 = vmatpush.msra.mxu0 %v6310
        %6442 = vmatpush.msra.mxu0 %v6309
        %6443 = vmatpush.msra.mxu0 %v6308
        %6444 = vmatpush.msra.mxu0 %v6307
        %6445 = vmatpush.msra.mxu0 %v6306
        %6446 = vmatpush.msra.mxu0 %v6305
        %6447 = vmatpush.msra.mxu0 %v6304
        %6448 = vmatmul.f32.gmra.mxu0 %v6385
        %v6449 = vpop.f32.mrf.mxu0
        %v6450 = vadd.f32 %v6338, %v6449
        %6451 = vmatmul.f32.gmra.mxu0 %v6413
        %v6452 = vpop.f32.mrf.mxu0
        %v6453 = vadd.f32 %v6338, %v6452
        %6454 = vdwg.mxu0
        %6455 = vmatpush.msra.mxu0 %v6335
        %6456 = vmatpush.msra.mxu0 %v6334
        %6457 = vmatpush.msra.mxu0 %v6333
        %6458 = vmatpush.msra.mxu0 %v6332
        %6459 = vmatpush.msra.mxu0 %v6331
        %6460 = vmatpush.msra.mxu0 %v6330
        %6461 = vmatpush.msra.mxu0 %v6329
        %6462 = vmatpush.msra.mxu0 %v6328
        %6463 = vmatpush.msra.mxu0 %v6327
        %6464 = vmatpush.msra.mxu0 %v6326
        %6465 = vmatpush.msra.mxu0 %v6325
        %6466 = vmatpush.msra.mxu0 %v6324
        %6467 = vmatpush.msra.mxu0 %v6323
        %6468 = vmatpush.msra.mxu0 %v6322
        %6469 = vmatpush.msra.mxu0 %v6321
        %6470 = vmatpush.msra.mxu0 %v6320
        %6471 = vmatmul.f32.gmra.mxu0 %v6399
        %v6472 = vpop.f32.mrf.mxu0
        %v6473 = vadd.f32 %v6450, %v6472
        %6474 = vmatmul.f32.gmra.mxu0 %v6427
        %v6475 = vpop.f32.mrf.mxu0
        %v6476 = vadd.f32 %v6453, %v6475
        %6477 = vdwg.mxu0
        %v6478 = vmax.f32 %v6473, 0.0
        %v6479 = vmax.f32 %v6476, 0.0
        %v6480 = vld [vmem:[%s8] sm:$0xf]
        %v6481 = vld [vmem:[%s9] sm:$0x3]
        %v6483 = vperm.slane %v6481, 0
        %v6484 = vperm.slane %v6481, 1
        %6488 = vst [vmem:[#allocation1] ss:$4 sm:$0xff] %v6480
        %v6489 = vld.sshfl [vmem:[#allocation1] sm:$0xff pattern:$0x73625140]
        %v6490 = vld.sshfl [vmem:[#allocation1 + $0x8] sm:$0xff pattern:$0x73625140]
        %vm6491 = vcmask 15360
        %v6493 = vsel %vm6491, %v6478, 0
        %v6496 = vsel %vm6491, %v6479, 0
        %vm6498 = vcmask 1041408
        %v6499 = vsel %vm6498, %v6489, 0
        %v6501 = vsel %vm6498, %v6490, 0
        %6503 = vmatpush.msra.mxu0 0.0
        %6504 = vmatpush.msra.mxu0 0.0
        %6505 = vmatpush.msra.mxu0 0.0
        %6506 = vmatpush.msra.mxu0 0.0
        %6507 = vmatpush.msra.mxu0 0.0
        %6508 = vmatpush.msra.mxu0 0.0
        %6509 = vmatpush.msra.mxu0 0.0
        %6510 = vmatpush.msra.mxu0 0.0
        %6511 = vmatpush.msra.mxu0 0.0
        %6512 = vmatpush.msra.mxu0 0.0
        %6513 = vmatpush.msra.mxu0 0.0
        %6514 = vmatpush.msra.mxu0 0.0
        %6515 = vmatpush.msra.mxu0 0.0
        %6516 = vmatpush.msra.mxu0 0.0
        %6517 = vmatpush.msra.mxu0 0.0
        %6518 = vmatpush.msra.mxu0 %v6499
        %6519 = vmatmul.f32.gmra.mxu0 %v6493
        %v6520 = vpop.f32.mrf.mxu0
        %v6521 = vadd.f32 %v6483, %v6520
        %6522 = vmatmul.f32.gmra.mxu0 %v6496
        %v6523 = vpop.f32.mrf.mxu0
        %v6524 = vadd.f32 %v6483, %v6523
        %6525 = vdwg.mxu0
        %6526 = vmatpush.msra.mxu0 0.0
        %6527 = vmatpush.msra.mxu0 0.0
        %6528 = vmatpush.msra.mxu0 0.0
        %6529 = vmatpush.msra.mxu0 0.0
        %6530 = vmatpush.msra.mxu0 0.0
        %6531 = vmatpush.msra.mxu0 0.0
        %6532 = vmatpush.msra.mxu0 0.0
        %6533 = vmatpush.msra.mxu0 0.0
        %6534 = vmatpush.msra.mxu0 0.0
        %6535 = vmatpush.msra.mxu0 0.0
        %6536 = vmatpush.msra.mxu0 0.0
        %6537 = vmatpush.msra.mxu0 0.0
        %6538 = vmatpush.msra.mxu0 0.0
        %6539 = vmatpush.msra.mxu0 0.0
        %6540 = vmatpush.msra.mxu0 0.0
        %6541 = vmatpush.msra.mxu0 %v6501
        %6542 = vmatmul.f32.gmra.mxu0 %v6493
        %v6543 = vpop.f32.mrf.mxu0
        %v6544 = vadd.f32 %v6484, %v6543
        %6545 = vmatmul.f32.gmra.mxu0 %v6496
        %v6546 = vpop.f32.mrf.mxu0
        %v6547 = vadd.f32 %v6484, %v6546
        %6548 = vdwg.mxu0
        %v6549 = vsub.f32 0.0, %v6521
        %v6550 = vsub.f32 0.0, %v6544
        %v6551 = vsub.f32 0.0, %v6524
        %v6552 = vsub.f32 0.0, %v6547
        %v6553 = vmul.f32 %v6549, 1.442695
        %v6554 = vpow.pop %v6553
        %v6555 = vmul.f32 %v6550, 1.442695
        %v6556 = vpow.pop %v6555
        %v6557 = vmul.f32 %v6551, 1.442695
        %v6558 = vpow.pop %v6557
        %v6559 = vmul.f32 %v6552, 1.442695
        %v6560 = vpow.pop %v6559
        %v6561 = vadd.f32 %v6554, 1.0
        %v6562 = vadd.f32 %v6556, 1.0
        %v6563 = vadd.f32 %v6558, 1.0
        %v6564 = vadd.f32 %v6560, 1.0
        %v6565 = vrcp.pop %v6561
        %v6566 = vmul.f32 %v6561, %v6565
        %v6567 = vsub.f32 1.0, %v6566
        %v6568 = vmul.f32 %v6565, %v6567
        %v6569 = vadd.f32 %v6565, %v6568
        %vm6570 = vweird.f32 %v6561
        %vm6571 = vweird.f32 %v6565
        %vm6572 = vmor %vm6570, %vm6571
        %v6573 = vsel %vm6572, %v6565, %v6569
        %v6574 = vand.u32 2147483647, %v6561
        %vm6575 = vcmp.eq.f32.partialorder %v6574, 8.507059e+37
        %v6576 = vand.u32 %v6561, 2147483648
        %v6577 = vor.u32 1.1754944e-38, %v6576
        %v6578 = vsel %vm6575, %v6577, %v6573
        %v6579 = vmul.f32 1.0, %v6578
        %v6580 = vrcp.pop %v6562
        %v6581 = vmul.f32 %v6562, %v6580
        %v6582 = vsub.f32 1.0, %v6581
        %v6583 = vmul.f32 %v6580, %v6582
        %v6584 = vadd.f32 %v6580, %v6583
        %vm6585 = vweird.f32 %v6562
        %vm6586 = vweird.f32 %v6580
        %vm6587 = vmor %vm6585, %vm6586
        %v6588 = vsel %vm6587, %v6580, %v6584
        %v6589 = vand.u32 2147483647, %v6562
        %vm6590 = vcmp.eq.f32.partialorder %v6589, 8.507059e+37
        %v6591 = vand.u32 %v6562, 2147483648
        %v6592 = vor.u32 1.1754944e-38, %v6591
        %v6593 = vsel %vm6590, %v6592, %v6588
        %v6594 = vmul.f32 1.0, %v6593
        %v6595 = vrcp.pop %v6563
        %v6596 = vmul.f32 %v6563, %v6595
        %v6597 = vsub.f32 1.0, %v6596
        %v6598 = vmul.f32 %v6595, %v6597
        %v6599 = vadd.f32 %v6595, %v6598
        %vm6600 = vweird.f32 %v6563
        %vm6601 = vweird.f32 %v6595
        %vm6602 = vmor %vm6600, %vm6601
        %v6603 = vsel %vm6602, %v6595, %v6599
        %v6604 = vand.u32 2147483647, %v6563
        %vm6605 = vcmp.eq.f32.partialorder %v6604, 8.507059e+37
        %v6606 = vand.u32 %v6563, 2147483648
        %v6607 = vor.u32 1.1754944e-38, %v6606
        %v6608 = vsel %vm6605, %v6607, %v6603
        %v6609 = vmul.f32 1.0, %v6608
        %v6610 = vrcp.pop %v6564
        %v6611 = vmul.f32 %v6564, %v6610
        %v6612 = vsub.f32 1.0, %v6611
        %v6613 = vmul.f32 %v6610, %v6612
        %v6614 = vadd.f32 %v6610, %v6613
        %vm6615 = vweird.f32 %v6564
        %vm6616 = vweird.f32 %v6610
        %vm6617 = vmor %vm6615, %vm6616
        %v6618 = vsel %vm6617, %v6610, %v6614
        %v6619 = vand.u32 2147483647, %v6564
        %vm6620 = vcmp.eq.f32.partialorder %v6619, 8.507059e+37
        %v6621 = vand.u32 %v6564, 2147483648
        %v6622 = vor.u32 1.1754944e-38, %v6621
        %v6623 = vsel %vm6620, %v6622, %v6618
        %v6624 = vmul.f32 1.0, %v6623
        %v6629 = vrot.slane %v6594, 7
        %v6630 = vrot.slane %v6624, 7
        %v6631 = vsel %vm2808, %v6579, %v6629
        %v6632 = vsel %vm2671, %v6579, %v6629
        %v6633 = vrot.slane %v6632, 1
        %v6634 = vsel %vm2673, %v6579, %v6629
        %v6635 = vrot.slane %v6634, 2
        %v6636 = vsel %vm2675, %v6579, %v6629
        %v6637 = vrot.slane %v6636, 3
        %v6638 = vsel %vm2677, %v6579, %v6629
        %v6639 = vrot.slane %v6638, 4
        %v6640 = vsel %vm2679, %v6579, %v6629
        %v6641 = vrot.slane %v6640, 5
        %v6642 = vsel %vm2681, %v6579, %v6629
        %v6643 = vrot.slane %v6642, 6
        %v6644 = vsel %vm2822, %v6629, %v6579
        %v6645 = vrot.slane %v6644, 7
        %v6646 = vsel %vm2808, %v6609, %v6630
        %v6647 = vsel %vm2671, %v6609, %v6630
        %v6648 = vrot.slane %v6647, 1
        %v6649 = vsel %vm2673, %v6609, %v6630
        %v6650 = vrot.slane %v6649, 2
        %v6651 = vsel %vm2675, %v6609, %v6630
        %v6652 = vrot.slane %v6651, 3
        %v6653 = vsel %vm2677, %v6609, %v6630
        %v6654 = vrot.slane %v6653, 4
        %v6655 = vsel %vm2679, %v6609, %v6630
        %v6656 = vrot.slane %v6655, 5
        %v6657 = vsel %vm2681, %v6609, %v6630
        %v6658 = vrot.slane %v6657, 6
        %v6659 = vsel %vm2822, %v6630, %v6609
        %v6660 = vrot.slane %v6659, 7
        %v6661 = vperm.slane %v6631, 0
        %v6662 = vperm.slane %v6631, 1
        %v6663 = vperm.slane %v6633, 0
        %v6664 = vperm.slane %v6633, 1
        %v6665 = vperm.slane %v6635, 0
        %v6666 = vperm.slane %v6635, 1
        %v6667 = vperm.slane %v6637, 0
        %v6668 = vperm.slane %v6637, 1
        %v6669 = vperm.slane %v6639, 0
        %v6670 = vperm.slane %v6639, 1
        %v6671 = vperm.slane %v6641, 0
        %v6672 = vperm.slane %v6641, 1
        %v6673 = vperm.slane %v6643, 0
        %v6674 = vperm.slane %v6643, 1
        %v6675 = vperm.slane %v6645, 0
        %v6676 = vperm.slane %v6645, 1
        %v6677 = vperm.slane %v6646, 0
        %v6678 = vperm.slane %v6646, 1
        %v6679 = vperm.slane %v6648, 0
        %v6680 = vperm.slane %v6648, 1
        %v6681 = vperm.slane %v6650, 0
        %v6682 = vperm.slane %v6650, 1
        %v6683 = vperm.slane %v6652, 0
        %v6684 = vperm.slane %v6652, 1
        %v6685 = vperm.slane %v6654, 0
        %v6686 = vperm.slane %v6654, 1
        %v6687 = vperm.slane %v6656, 0
        %v6688 = vperm.slane %v6656, 1
        %v6689 = vperm.slane %v6658, 0
        %v6690 = vperm.slane %v6658, 1
        %v6691 = vperm.slane %v6660, 0
        %v6692 = vperm.slane %v6660, 1
        %v6725 = vmul.f32 %v6092, %v6661
        %v6726 = vmul.f32 %v6093, %v6662
        %v6727 = vmul.f32 %v6094, %v6663
        %v6728 = vmul.f32 %v6095, %v6664
        %v6729 = vmul.f32 %v6096, %v6665
        %v6730 = vmul.f32 %v6097, %v6666
        %v6731 = vmul.f32 %v6098, %v6667
        %v6732 = vmul.f32 %v6099, %v6668
        %v6733 = vmul.f32 %v6100, %v6669
        %v6734 = vmul.f32 %v6101, %v6670
        %v6735 = vmul.f32 %v6102, %v6671
        %v6736 = vmul.f32 %v6103, %v6672
        %v6737 = vmul.f32 %v6104, %v6673
        %v6738 = vmul.f32 %v6105, %v6674
        %v6739 = vmul.f32 %v6106, %v6675
        %v6740 = vmul.f32 %v6107, %v6676
        %v6741 = vmul.f32 %v6108, %v6677
        %v6742 = vmul.f32 %v6109, %v6678
        %v6743 = vmul.f32 %v6110, %v6679
        %v6744 = vmul.f32 %v6111, %v6680
        %v6745 = vmul.f32 %v6112, %v6681
        %v6746 = vmul.f32 %v6113, %v6682
        %v6747 = vmul.f32 %v6114, %v6683
        %v6748 = vmul.f32 %v6115, %v6684
        %v6749 = vmul.f32 %v6116, %v6685
        %v6750 = vmul.f32 %v6117, %v6686
        %v6751 = vmul.f32 %v6118, %v6687
        %v6752 = vmul.f32 %v6119, %v6688
        %v6753 = vmul.f32 %v6120, %v6689
        %v6754 = vmul.f32 %v6121, %v6690
        %v6755 = vmul.f32 %v6122, %v6691
        %v6756 = vmul.f32 %v6123, %v6692
        %v6757 = vadd.f32 %v6725, %v642
        %v6758 = vadd.f32 %v6726, %v643
        %v6759 = vadd.f32 %v6727, %v644
        %v6760 = vadd.f32 %v6728, %v645
        %v6761 = vadd.f32 %v6729, %v646
        %v6762 = vadd.f32 %v6730, %v647
        %v6763 = vadd.f32 %v6731, %v648
        %v6764 = vadd.f32 %v6732, %v649
        %v6765 = vadd.f32 %v6733, %v650
        %v6766 = vadd.f32 %v6734, %v651
        %v6767 = vadd.f32 %v6735, %v652
        %v6768 = vadd.f32 %v6736, %v653
        %v6769 = vadd.f32 %v6737, %v654
        %v6770 = vadd.f32 %v6738, %v655
        %v6771 = vadd.f32 %v6739, %v656
        %v6772 = vadd.f32 %v6740, %v657
        %v6773 = vadd.f32 %v6741, %v658
        %v6774 = vadd.f32 %v6742, %v659
        %v6775 = vadd.f32 %v6743, %v660
        %v6776 = vadd.f32 %v6744, %v661
        %v6777 = vadd.f32 %v6745, %v662
        %v6778 = vadd.f32 %v6746, %v663
        %v6779 = vadd.f32 %v6747, %v664
        %v6780 = vadd.f32 %v6748, %v665
        %v6781 = vadd.f32 %v6749, %v666
        %v6782 = vadd.f32 %v6750, %v667
        %v6783 = vadd.f32 %v6751, %v668
        %v6784 = vadd.f32 %v6752, %v669
        %v6785 = vadd.f32 %v6753, %v670
        %v6786 = vadd.f32 %v6754, %v671
        %v6787 = vadd.f32 %v6755, %v672
        %v6788 = vadd.f32 %v6756, %v673
        %v6789 = vmax.f32 %v6757, 0.0
        %v6790 = vmax.f32 %v6758, 0.0
        %v6791 = vmax.f32 %v6759, 0.0
        %v6792 = vmax.f32 %v6760, 0.0
        %v6793 = vmax.f32 %v6761, 0.0
        %v6794 = vmax.f32 %v6762, 0.0
        %v6795 = vmax.f32 %v6763, 0.0
        %v6796 = vmax.f32 %v6764, 0.0
        %v6797 = vmax.f32 %v6765, 0.0
        %v6798 = vmax.f32 %v6766, 0.0
        %v6799 = vmax.f32 %v6767, 0.0
        %v6800 = vmax.f32 %v6768, 0.0
        %v6801 = vmax.f32 %v6769, 0.0
        %v6802 = vmax.f32 %v6770, 0.0
        %v6803 = vmax.f32 %v6771, 0.0
        %v6804 = vmax.f32 %v6772, 0.0
        %v6805 = vmax.f32 %v6773, 0.0
        %v6806 = vmax.f32 %v6774, 0.0
        %v6807 = vmax.f32 %v6775, 0.0
        %v6808 = vmax.f32 %v6776, 0.0
        %v6809 = vmax.f32 %v6777, 0.0
        %v6810 = vmax.f32 %v6778, 0.0
        %v6811 = vmax.f32 %v6779, 0.0
        %v6812 = vmax.f32 %v6780, 0.0
        %v6813 = vmax.f32 %v6781, 0.0
        %v6814 = vmax.f32 %v6782, 0.0
        %v6815 = vmax.f32 %v6783, 0.0
        %v6816 = vmax.f32 %v6784, 0.0
        %v6817 = vmax.f32 %v6785, 0.0
        %v6818 = vmax.f32 %v6786, 0.0
        %v6819 = vmax.f32 %v6787, 0.0
        %v6820 = vmax.f32 %v6788, 0.0
        %6821 = vst [vmem:[%s430] sm:$0xff] %v6789
        %6822 = vst [vmem:[%s430 + $0x8] sm:$0xff] %v6790
        %6823 = vst [vmem:[%s430 + $0x10] sm:$0xff] %v6791
        %6824 = vst [vmem:[%s430 + $0x18] sm:$0xff] %v6792
        %6825 = vst [vmem:[%s430 + $0x20] sm:$0xff] %v6793
        %6826 = vst [vmem:[%s430 + $0x28] sm:$0xff] %v6794
        %6827 = vst [vmem:[%s430 + $0x30] sm:$0xff] %v6795
        %6828 = vst [vmem:[%s430 + $0x38] sm:$0xff] %v6796
        %6829 = vst [vmem:[%s430 + $0x40] sm:$0xff] %v6797
        %6830 = vst [vmem:[%s430 + $0x48] sm:$0xff] %v6798
        %6831 = vst [vmem:[%s430 + $0x50] sm:$0xff] %v6799
        %6832 = vst [vmem:[%s430 + $0x58] sm:$0xff] %v6800
        %6833 = vst [vmem:[%s430 + $0x60] sm:$0xff] %v6801
        %6834 = vst [vmem:[%s430 + $0x68] sm:$0xff] %v6802
        %6835 = vst [vmem:[%s430 + $0x70] sm:$0xff] %v6803
        %6836 = vst [vmem:[%s430 + $0x78] sm:$0xff] %v6804
        %6837 = vst [vmem:[%s430 + $0x80] sm:$0xff] %v6805
        %6838 = vst [vmem:[%s430 + $0x88] sm:$0xff] %v6806
        %6839 = vst [vmem:[%s430 + $0x90] sm:$0xff] %v6807
        %6840 = vst [vmem:[%s430 + $0x98] sm:$0xff] %v6808
        %6841 = vst [vmem:[%s430 + $0xa0] sm:$0xff] %v6809
        %6842 = vst [vmem:[%s430 + $0xa8] sm:$0xff] %v6810
        %6843 = vst [vmem:[%s430 + $0xb0] sm:$0xff] %v6811
        %6844 = vst [vmem:[%s430 + $0xb8] sm:$0xff] %v6812
        %6845 = vst [vmem:[%s430 + $0xc0] sm:$0xff] %v6813
        %6846 = vst [vmem:[%s430 + $0xc8] sm:$0xff] %v6814
        %6847 = vst [vmem:[%s430 + $0xd0] sm:$0xff] %v6815
        %6848 = vst [vmem:[%s430 + $0xd8] sm:$0xff] %v6816
        %6849 = vst [vmem:[%s430 + $0xe0] sm:$0xff] %v6817
        %6850 = vst [vmem:[%s430 + $0xe8] sm:$0xff] %v6818
        %6851 = vst [vmem:[%s430 + $0xf0] sm:$0xff] %v6819
        %6852 = vst [vmem:[%s430 + $0xf8] sm:$0xff] %v6820
        %s6853 = sand.u32 %s252, 1
        %s6854 = scalar_lea.sflag [#allocation4], %s6853
        %s6855 = sand.u32 %s252, 1
        %s6856 = smul.addr %s6855, 256
        %s6857 = scalar_lea.vmem [#allocation10], %s6856
        // Predicated region
        $region77: #{tpu_custom_call.1} parent=59 // pred_check
          %p6858 = pneg %p262
        $region78: #{tpu_custom_call.1} parent=59 // pred_check_branch
          %6860 = sbr.rel (%p6858) target = $region80
        $region79: #{tpu_custom_call.1} parent=59 // pred_region
          %s6861 = smul.u32 16, %s29
          %6863 = vsyncadd %s6854, 0
          %s6864 = smul.addr %s6861, 2
          %s6865 = smul.addr %s6864, 8
          %s6866 = scalar_lea.hbm %s10, %s6865
          %s6867 = sshll.u32 %s6857, 4
          %s6868 = int_to_ptr.vmem [resolvable:$true] %s6867
          %s6869 = sshll.u32 %s6866, 4
          %s6870 = int_to_ptr.hbm [resolvable:$true] %s6869
          %6875 = dma.vmem_to_hbm [thread:$0]  %s6868, 4096, %s6870, %s6854, 256, 256, 16
        $region80: #{tpu_custom_call.1} parent=59 // pred_fallthru
          _
      $region60: #{tpu_custom_call.1} parent=5 // pred_fallthru
        _
      %p6876 = scmp.le.s32.totalorder 2, %s24
      // Predicated region
      $region81: #{tpu_custom_call.1} parent=5 // pred_check
        %p6877 = pneg %p6876
      $region82: #{tpu_custom_call.1} parent=5 // pred_check_branch
        %6879 = sbr.rel (%p6877) target = $region84
      $region83: #{tpu_custom_call.1} parent=5 // pred_region
        %s6880 = ssub.s32 %s24, 2
        // Predicated region
        $region85: #{tpu_custom_call.1} parent=83 // pred_check
          %p6881 = pneg %p268
        $region86: #{tpu_custom_call.1} parent=83 // pred_check_branch
          %6883 = sbr.rel (%p6881) target = $region88
        $region87: #{tpu_custom_call.1} parent=83 // pred_region
          %s6884 = sand.u32 %s253, 1
          %s6885 = scalar_lea.sflag [#allocation4], %s6884
          %s6886 = sand.u32 %s253, 1
          %s6887 = smul.addr %s6886, 256
          %s6888 = scalar_lea.vmem [#allocation10], %s6887
          %6890 = dma.done %s6885, 4096
        $region88: #{tpu_custom_call.1} parent=83 // pred_fallthru
          _
      $region84: #{tpu_custom_call.1} parent=5 // pred_fallthru
        _
    $region6: #{tpu_custom_call.1} parent=1 // loop_footer
      %s28 = sadd.s32 1, %s24
    $region7: #{tpu_custom_call.1} parent=1 // loop_footer_branch
      %23 = sbr.rel target = $region3
    $region8: #{tpu_custom_call.1} parent=1 // loop_exit
      _
    %6891 = vsyncpa [#allocation3], 1
    %s6892 = scalar_lea.sflag [#allocation3], 1
    %6893 = vsyncpa %s6892, 1
    %6894 = vsyncpa [#allocation6], 1
    %6895 = vsyncpa [#allocation9], 1
    %6896 = vsyncpa [#allocation4], 1
    %s6897 = scalar_lea.sflag [#allocation4], 1
    %6898 = vsyncpa %s6897, 1

</llo_original>
